<compile_context>
chip_gen: v6e
topology: v6e:2x2x1
jax: 0.10.0
libtpu: 0.0.40
codegen_flags: <defaults>
</compile_context>

<pallas_src>
import math

import jax
import jax.numpy as jnp
from jax import lax
from jax.experimental import pallas as pl
from jax.experimental.pallas import tpu as pltpu

F32 = jnp.float32
VMEM = pltpu.MemorySpace.VMEM


# --------------------------------------------------------------------------
# Small fused kernels (batched prenet, postnet conv+BN+tanh+dropout)
# --------------------------------------------------------------------------
def _prenet_kernel(x_ref, w1_ref, w2_ref, m1_ref, m2_ref, o_ref):
    h = jnp.maximum(jnp.dot(x_ref[...], w1_ref[...],
                            preferred_element_type=F32), 0.0) * m1_ref[...]
    h = jnp.maximum(jnp.dot(h, w2_ref[...],
                            preferred_element_type=F32), 0.0) * m2_ref[...]
    o_ref[...] = h


def prenet_apply(x, w1, w2, m1, m2):
    M = x.shape[0]
    P = w2.shape[1]
    return pl.pallas_call(
        _prenet_kernel,
        out_shape=jax.ShapeDtypeStruct((M, P), F32),
        in_specs=[pl.BlockSpec(memory_space=VMEM)] * 5,
        out_specs=pl.BlockSpec(memory_space=VMEM),
    )(x, w1, w2, m1, m2)


def _make_postnet_kernel(use_tanh):
    def kernel(x_ref, w_ref, b_ref, g_ref, be_ref, m_ref, o_ref):
        # im2col matmul: (B*L, K*Cin) x (K*Cin, Cout)
        y = jnp.dot(x_ref[...], w_ref[...], preferred_element_type=F32) + b_ref[...]
        n = float(x_ref.shape[0])
        mean = jnp.sum(y, axis=0, keepdims=True) * (1.0 / n)
        d = y - mean
        var = jnp.sum(d * d, axis=0, keepdims=True) * (1.0 / n)   # two-pass variance
        y = d * lax.rsqrt(var + 1e-5) * g_ref[...] + be_ref[...]
        if use_tanh:
            y = jnp.tanh(y)
        o_ref[...] = y * m_ref[...]                               # fused dropout
    return kernel


def postnet_conv(x_blc, w_kio, bias, gamma, beta, drop_mask, use_tanh):
    """x_blc: (B, L, Cin) channels-last; w_kio: (K, Cin, Cout); 'same' padding."""
    B, L, Cin = x_blc.shape
    K, _, Cout = w_kio.shape
    pad = (K - 1) // 2
    xp = jnp.pad(x_blc.astype(F32), ((0, 0), (pad, pad), (0, 0)))
    # im2col (layout plumbing stays in XLA, heavy math in the kernel)
    cols = jnp.concatenate([xp[:, k:k + L, :] for k in range(K)], axis=-1)
    cols = cols.reshape(B * L, K * Cin)
    w2 = w_kio.reshape(K * Cin, Cout).astype(F32)
    y = pl.pallas_call(
        _make_postnet_kernel(use_tanh),
        out_shape=jax.ShapeDtypeStruct((B * L, Cout), F32),
        in_specs=[pl.BlockSpec(memory_space=VMEM)] * 6,
        out_specs=pl.BlockSpec(memory_space=VMEM),
    )(cols, w2, bias.reshape(1, Cout).astype(F32),
      gamma.reshape(1, Cout).astype(F32), beta.reshape(1, Cout).astype(F32),
      drop_mask)
    return y.reshape(B, L, Cout)


# --------------------------------------------------------------------------
# Fused autoregressive decoder step (one Pallas kernel, grid over time)
# --------------------------------------------------------------------------
def _make_decoder_kernel(B, T, NO, P, E, AR, DR, A):
    NO1 = NO + 1
    TA, TE = T * A, T * E

    def kernel(ss_ref,
               tf_ref, dpre_ref, datt_ref, ddec_ref, lenmask_ref,
               pre_w1, pre_w2,
               awx_i, awx_c, awh, ab,
               wq_t, mprev, mcum, wmem_t, vsel, rmat, smat, tile_e,
               dwx_h, dwx_c, dwh, db,
               aa_w1, aa_b1, aa_w2, aa_b2, aa_w3, aa_b3,
               pg_wh, pg_wc, pg_b,
               melgate_ref, align_ref,
               att_h, att_c, dec_h, dec_c, ctx_s, prevmel_s,
               awp_s, awc_s, pm_s, mem_s):
        t = pl.program_id(0)

        @pl.when(t == 0)
        def _init():
            att_h[...] = jnp.zeros_like(att_h)
            att_c[...] = jnp.zeros_like(att_c)
            dec_h[...] = jnp.zeros_like(dec_h)
            dec_c[...] = jnp.zeros_like(dec_c)
            ctx_s[...] = jnp.zeros_like(ctx_s)
            prevmel_s[...] = jnp.zeros_like(prevmel_s)
            awp_s[...] = jnp.zeros_like(awp_s)
            awc_s[...] = jnp.zeros_like(awc_s)
            pm_s[...] = jnp.zeros_like(pm_s)
            mem_s[...] = jnp.zeros_like(mem_s)

        # ---- decoder input: scheduled sampling (prenet on prev mel) vs teacher forcing
        p1 = jnp.maximum(jnp.dot(prevmel_s[...], pre_w1[...],
                                 preferred_element_type=F32), 0.0) * dpre_ref[0]
        p2 = jnp.maximum(jnp.dot(p1, pre_w2[...],
                                 preferred_element_type=F32), 0.0) * dpre_ref[1]
        flag = (ss_ref[t] > 0).astype(F32)
        dec_in = flag * p2 + (1.0 - flag) * tf_ref[...]                     # (B, P)

        # ---- attention LSTM (input concat avoided by splitting wx) ----
        gates = (jnp.dot(dec_in, awx_i[...], preferred_element_type=F32)
                 + jnp.dot(ctx_s[...], awx_c[...], preferred_element_type=F32)
                 + jnp.dot(att_h[...], awh[...], preferred_element_type=F32)
                 + ab[...])                                                 # (B, 4AR)
        ig = jax.nn.sigmoid(gates[:, 0:AR])
        fg = jax.nn.sigmoid(gates[:, AR:2 * AR])
        gg = jnp.tanh(gates[:, 2 * AR:3 * AR])
        og = jax.nn.sigmoid(gates[:, 3 * AR:4 * AR])
        a_c = fg * att_c[...] + ig * gg
        a_h = og * jnp.tanh(a_c)
        a_h = a_h * datt_ref[0]                                             # dropout h
        a_c = a_c * datt_ref[1]                                             # dropout c
        att_h[...] = a_h
        att_c[...] = a_c

        # ---- attention (fully batched, flattened (B, T*A) layout) ----
        pq_t = jnp.dot(a_h, wq_t[...], preferred_element_type=F32)          # (B, TA)
        paw = (jnp.dot(awp_s[...], mprev[...], preferred_element_type=F32)
               + jnp.dot(awc_s[...], mcum[...], preferred_element_type=F32))  # (B, TA)
        e = jnp.tanh(pq_t + paw + pm_s[...])
        s = jnp.dot(e, vsel[...], preferred_element_type=F32)               # (B, T)
        pos = lax.broadcasted_iota(jnp.int32, (B, T), 1)
        valid = jnp.logical_and(pos <= t, lenmask_ref[...] > 0.5)
        s = jnp.where(valid, s, -1e30)
        m = jnp.max(s, axis=1, keepdims=True)
        pexp = jnp.exp(s - m)
        w = pexp / jnp.sum(pexp, axis=1, keepdims=True)                     # (B, T)

        wrep = jnp.dot(w, rmat[...], preferred_element_type=F32)            # (B, TE)
        ctx_raw = jnp.dot(wrep * mem_s[...], smat[...],
                          preferred_element_type=F32)                       # (B, E)

        # ---- autoattentive residual MLP ----
        a1 = jnp.maximum(jnp.dot(ctx_raw, aa_w1[...],
                                 preferred_element_type=F32) + aa_b1[...], 0.0)
        a2 = jnp.maximum(jnp.dot(a1, aa_w2[...],
                                 preferred_element_type=F32) + aa_b2[...], 0.0)
        a3 = jnp.dot(a2, aa_w3[...], preferred_element_type=F32) + aa_b3[...]
        ctx = ctx_raw + a3
        ctx_s[...] = ctx

        # ---- in-place memory / processed-memory update at slot t+1 ----
        laneA = lax.broadcasted_iota(jnp.int32, (1, TA), 1)
        mA = jnp.logical_and(laneA >= (t + 1) * A, laneA < (t + 2) * A).astype(F32)
        pm_s[...] = pm_s[...] + jnp.dot(ctx, wmem_t[...],
                                        preferred_element_type=F32) * mA
        laneE = lax.broadcasted_iota(jnp.int32, (1, TE), 1)
        mE = jnp.logical_and(laneE >= (t + 1) * E, laneE < (t + 2) * E).astype(F32)
        mem_s[...] = mem_s[...] + jnp.dot(ctx, tile_e[...],
                                          preferred_element_type=F32) * mE

        awc_s[...] = awc_s[...] + w
        awp_s[...] = w

        # ---- decoder LSTM ----
        dg = (jnp.dot(a_h, dwx_h[...], preferred_element_type=F32)
              + jnp.dot(ctx, dwx_c[...], preferred_element_type=F32)
              + jnp.dot(dec_h[...], dwh[...], preferred_element_type=F32)
              + db[...])                                                    # (B, 4DR)
        di = jax.nn.sigmoid(dg[:, 0:DR])
        df = jax.nn.sigmoid(dg[:, DR:2 * DR])
        dgg = jnp.tanh(dg[:, 2 * DR:3 * DR])
        do = jax.nn.sigmoid(dg[:, 3 * DR:4 * DR])
        d_c = df * dec_c[...] + di * dgg
        d_h = do * jnp.tanh(d_c)
        d_h = d_h * ddec_ref[0]
        d_c = d_c * ddec_ref[1]
        dec_h[...] = d_h
        dec_c[...] = d_c

        # ---- merged mel + gate projection (one matmul, one output slab) ----
        y = (jnp.dot(d_h, pg_wh[...], preferred_element_type=F32)
             + jnp.dot(ctx, pg_wc[...], preferred_element_type=F32) + pg_b[...])
        melgate_ref[...] = y                                                # (B, NO+1)
        align_ref[...] = w                                                  # (B, T)
        prevmel_s[...] = y[:, 0:NO]

    return kernel


def run_decoder(hp, params, tf_pre, dpre, datt, ddec, lenmask, ss_flags, T, B):
    NO = hp.n_spect_channels * hp.n_frames_per_step
    NO1 = NO + 1
    P, E = hp.prenet_dim, hp.encoder_embedding_dim
    AR, DR, A = hp.attention_rnn_dim, hp.decoder_rnn_dim, hp.attention_dim
    TA, TE = T * A, T * E

    # ---- derived / repacked weights (pure layout plumbing, done in XLA) ----
    awx = params["attn_rnn_wx"]
    awx_i, awx_c = awx[:P], awx[P:]
    ab = params["attn_rnn_b"].reshape(1, 4 * AR)
    dwx = params["dec_rnn_wx"]
    dwx_h, dwx_c = dwx[:AR], dwx[AR:]
    db = params["dec_rnn_b"].reshape(1, 4 * DR)

    wq_t = jnp.tile(params["attn_wq"], (1, T))                    # (AR, T*A)
    wmem_t = jnp.tile(params["attn_wmem"], (1, T))                # (E, T*A)
    vvec = params["attn_v"].reshape(-1)                           # (A,)
    vsel = (jnp.eye(T, dtype=F32)[:, None, :]
            * vvec[None, :, None]).reshape(TA, T)                 # (T*A, T)
    rmat = jnp.repeat(jnp.eye(T, dtype=F32), E, axis=1)           # (T, T*E)
    smat = jnp.tile(jnp.eye(E, dtype=F32), (T, 1))                # (T*E, E)
    tile_e = jnp.tile(jnp.eye(E, dtype=F32), (1, T))              # (E, T*E)

    # location conv folded with location dense into a band matrix:
    # paw[b, l*A + a] = sum_{k,c} aw_c[b, l + k - pad - 1] * wc[k, c, a]
    wc = jnp.einsum('kcf,fa->kca', params["loc_conv_w"], params["loc_dense_w"])
    K = params["loc_conv_w"].shape[0]
    pad = (K - 1) // 2
    M = jnp.zeros((2, T, T, A), F32)
    for k in range(K):
        off = k - pad - 1
        band = jnp.eye(T, T, k=-off, dtype=F32)   # band[j, l] = 1 iff j == l + off
        M = M + band[None, :, :, None] * wc[k][:, None, None, :]
    mprev = M[0].reshape(T, TA)
    mcum = M[1].reshape(T, TA)

    pg_w = jnp.concatenate([params["proj_w"], params["gate_w"]], axis=1)
    pg_wh, pg_wc = pg_w[:DR], pg_w[DR:]
    pg_b = jnp.concatenate([params["proj_b"], params["gate_b"]]).reshape(1, NO1)

    weights = [params["prenet_w1"], params["prenet_w2"],
               awx_i, awx_c, params["attn_rnn_wh"], ab,
               wq_t, mprev, mcum, wmem_t, vsel, rmat, smat, tile_e,
               dwx_h, dwx_c, params["dec_rnn_wh"], db,
               params["aa_w1"], params["aa_b1"].reshape(1, -1),
               params["aa_w2"], params["aa_b2"].reshape(1, -1),
               params["aa_w3"], params["aa_b3"].reshape(1, -1),
               pg_wh, pg_wc, pg_b]

    def _t3(i, ss):
        return (i, 0, 0)

    def _t4(i, ss):
        return (i, 0, 0, 0)

    def _c2(i, ss):
        return (0, 0)

    in_specs = ([pl.BlockSpec((None, B, P), _t3),        # teacher-forced prenet inputs
                 pl.BlockSpec((None, 2, B, P), _t4),     # ss-prenet dropout masks
                 pl.BlockSpec((None, 2, B, AR), _t4),    # attention h/c dropout masks
                 pl.BlockSpec((None, 2, B, DR), _t4),    # decoder h/c dropout masks
                 pl.BlockSpec((B, T), _c2)]              # length mask
                + [pl.BlockSpec(w.shape, _c2) for w in weights])

    grid_spec = pltpu.PrefetchScalarGridSpec(
        num_scalar_prefetch=1,
        grid=(T,),
        in_specs=in_specs,
        out_specs=[pl.BlockSpec((None, B, NO1), _t3),
                   pl.BlockSpec((None, B, T), _t3)],
        scratch_shapes=[
            pltpu.VMEM((B, AR), F32), pltpu.VMEM((B, AR), F32),
            pltpu.VMEM((B, DR), F32), pltpu.VMEM((B, DR), F32),
            pltpu.VMEM((B, E), F32), pltpu.VMEM((B, NO), F32),
            pltpu.VMEM((B, T), F32), pltpu.VMEM((B, T), F32),
            pltpu.VMEM((B, TA), F32), pltpu.VMEM((B, TE), F32),
        ],
    )

    melgate, align = pl.pallas_call(
        _make_decoder_kernel(B, T, NO, P, E, AR, DR, A),
        out_shape=(jax.ShapeDtypeStruct((T, B, NO1), F32),
                   jax.ShapeDtypeStruct((T, B, T), F32)),
        grid_spec=grid_spec,
        compiler_params=pltpu.CompilerParams(
            dimension_semantics=("arbitrary",)),
    )(ss_flags, tf_pre, dpre, datt, ddec, lenmask, *weights)
    return melgate, align


# --------------------------------------------------------------------------
# Hparams / parameters
# --------------------------------------------------------------------------
class HParams:
    n_spect_channels = 4
    n_frames_per_step = 1
    encoder_embedding_dim = 32
    attention_rnn_dim = 128
    decoder_rnn_dim = 128
    prenet_dim = 32
    attention_dim = 16
    attention_location_n_filters = 8
    attention_location_kernel_size = 5
    postnet_embedding_dim = 32
    postnet_kernel_size = 5
    postnet_n_convolutions = 3
    p_attention_dropout = 0.1
    p_decoder_dropout = 0.1
    max_decoder_steps = 1000
    gate_threshold = 0.5
    mask_padding = True
    fp16_run = False


def _xavier(key, fan_in, fan_out, shape, gain=1.0):
    a = gain * math.sqrt(6.0 / (fan_in + fan_out))
    return jax.random.uniform(key, shape, F32, -a, a)


def init_params(key, hp):
    E, AR, DR = hp.encoder_embedding_dim, hp.attention_rnn_dim, hp.decoder_rnn_dim
    A, NF, P = hp.attention_dim, hp.attention_location_n_filters, hp.prenet_dim
    n_out = hp.n_spect_channels * hp.n_frames_per_step
    Kl, Kp, PE = (hp.attention_location_kernel_size, hp.postnet_kernel_size,
                  hp.postnet_embedding_dim)

    keys = iter(jax.random.split(key, 64))
    nk = lambda: next(keys)
    lin_w = lambda fi, fo: _xavier(nk(), fi, fo, (fi, fo))
    conv_w = lambda K, ci, co: _xavier(nk(), ci * K, co * K, (K, ci, co))

    def lstm_u(shape, H):
        k = 1.0 / math.sqrt(H)
        return jax.random.uniform(nk(), shape, F32, -k, k)

    p = {
        "prenet_w1": lin_w(n_out, P),
        "prenet_w2": lin_w(P, P),
        "attn_rnn_wx": lstm_u((P + E, 4 * AR), AR),
        "attn_rnn_wh": lstm_u((AR, 4 * AR), AR),
        "attn_rnn_b": lstm_u((4 * AR,), AR),
        "attn_wq": lin_w(AR, A),
        "attn_wmem": lin_w(E, A),
        "attn_v": lin_w(A, 1),
        "loc_conv_w": conv_w(Kl, 2, NF),
        "loc_dense_w": lin_w(NF, A),
        "dec_rnn_wx": lstm_u((AR + E, 4 * DR), DR),
        "dec_rnn_wh": lstm_u((DR, 4 * DR), DR),
        "dec_rnn_b": lstm_u((4 * DR,), DR),
        "proj_w": lin_w(DR + E, n_out),
        "proj_b": jnp.zeros((n_out,), F32),
        "gate_w": lin_w(DR + E, 1),
        "gate_b": jnp.zeros((1,), F32),
        "aa_w1": lin_w(E, 2 * E), "aa_b1": jnp.zeros((2 * E,), F32),
        "aa_w2": lin_w(2 * E, 2 * E), "aa_b2": jnp.zeros((2 * E,), F32),
        "aa_w3": lin_w(2 * E, E), "aa_b3": jnp.zeros((E,), F32),
    }
    chans = [hp.n_spect_channels] + [PE] * (hp.postnet_n_convolutions - 1) \
            + [hp.n_spect_channels]
    post = []
    for i in range(hp.postnet_n_convolutions):
        ci, co = chans[i], chans[i + 1]
        post.append((conv_w(Kp, ci, co),
                     jnp.zeros((co,), F32),   # conv bias
                     jnp.ones((co,), F32),    # BN gamma
                     jnp.zeros((co,), F32)))  # BN beta
    p["postnet"] = post
    return p


# --------------------------------------------------------------------------
# Forward pass (Tacotron2.forward, training mode)
# --------------------------------------------------------------------------
def tacotron2_forward(params, hp, mel_padded, output_lengths, rng_key):
    B, n_mel, T = mel_padded.shape
    NO = hp.n_spect_channels * hp.n_frames_per_step
    P, E = hp.prenet_dim, hp.encoder_embedding_dim
    AR, DR = hp.attention_rnn_dim, hp.decoder_rnn_dim

    keys = iter(jax.random.split(rng_key, 16))

    def keep_mask(key, shape, p_drop):
        keep = 1.0 - p_drop
        return jax.random.bernoulli(key, keep, shape).astype(F32) / keep

    # ---- parse_decoder_inputs + go-frame, batched prenet over all steps ----
    dec_inputs = jnp.transpose(mel_padded.astype(F32), (2, 0, 1))         # (T, B, NO)
    dec_inputs = jnp.concatenate([jnp.zeros((1, B, NO), F32), dec_inputs],
                                 axis=0)[:T]                              # (T, B, NO)
    m1 = keep_mask(next(keys), (T * B, P), 0.5)
    m2 = keep_mask(next(keys), (T * B, P), 0.5)
    tf_pre = prenet_apply(dec_inputs.reshape(T * B, NO),
                          params["prenet_w1"], params["prenet_w2"], m1, m2)
    tf_pre = tf_pre.reshape(T, B, P)

    # ---- per-step dropout keep-masks (fused into the decoder kernel) ----
    dpre = keep_mask(next(keys), (T, 2, B, P), 0.5)
    datt = keep_mask(next(keys), (T, 2, B, AR), hp.p_attention_dropout)
    ddec = keep_mask(next(keys), (T, 2, B, DR), hp.p_decoder_dropout)

    # ---- scheduled-sampling coin flips (step 0 always teacher-forced) ----
    coin = jax.random.uniform(next(keys), (T,)) > 0.5
    ss_flags = jnp.where(jnp.arange(T) > 0, coin, False).astype(jnp.int32)

    positions = jnp.arange(T)
    len_valid = positions[None, :] < output_lengths[:, None]              # (B, T)
    lenmask = len_valid.astype(F32)

    # ---- fused autoregressive decoder (single Pallas kernel, grid over T) ----
    melgate, align = run_decoder(hp, params, tf_pre, dpre, datt, ddec,
                                 lenmask, ss_flags, T, B)

    mel_dec = melgate[:, :, :NO]                                          # (T, B, NO)
    gate = melgate[:, :, NO]                                              # (T, B)

    # ---- parse_decoder_outputs ----
    mel_outputs = jnp.transpose(mel_dec, (1, 0, 2))                       # (B, T, NO)
    mel_outputs = mel_outputs.reshape(B, T * hp.n_frames_per_step,
                                      hp.n_spect_channels)
    mel_outputs = jnp.transpose(mel_outputs, (0, 2, 1))                   # (B, n_mel, T)
    gate_outputs = jnp.transpose(gate, (1, 0))                            # (B, T)
    alignments = jnp.transpose(align, (1, 0, 2))                          # (B, T, T)

    # ---- postnet: im2col conv + BN(train stats) + tanh + dropout ----
    y = jnp.transpose(mel_outputs, (0, 2, 1))                             # (B, T, C)
    n_convs = len(params["postnet"])
    for i, (w, b, g, be) in enumerate(params["postnet"]):
        Cout = w.shape[2]
        mask = keep_mask(next(keys), (B * T, Cout), 0.5)
        y = postnet_conv(y, w, b, g, be, mask, use_tanh=(i < n_convs - 1))
    mel_post = mel_outputs + jnp.transpose(y, (0, 2, 1))

    # ---- parse_output (mask padding) ----
    if hp.mask_padding:
        pad_mask = jnp.logical_not(len_valid)
        mel_outputs = jnp.where(pad_mask[:, None, :], 0.0, mel_outputs)
        mel_post = jnp.where(pad_mask[:, None, :], 0.0, mel_post)
        gate_outputs = jnp.where(pad_mask, 1000.0, gate_outputs)

    return mel_outputs, mel_post, gate_outputs, alignments


if __name__ == "__main__":
    hp = HParams()
    master = jax.random.PRNGKey(0)
    k_param, k_data, k_drop = jax.random.split(master, 3)

    params = init_params(k_param, hp)

    B, T = 2, 8
    mel = jax.random.normal(k_data, (B, hp.n_spect_channels, T), F32)
    lengths = jnp.array([8, 6], jnp.int32)

    fwd = jax.jit(lambda p, m, l, k: tacotron2_forward(p, hp, m, l, k))
    outs = jax.block_until_ready(fwd(params, mel, lengths, k_drop))
    mel_out, mel_post, gate, align = outs

    assert mel_out.shape == (B, hp.n_spect_channels, T)
    assert mel_post.shape == (B, hp.n_spect_channels, T)
    assert gate.shape == (B, T)
    assert align.shape == (B, T, T)
    assert all(bool(jnp.all(jnp.isfinite(o))) for o in outs)
    print("KERNEL_OK")
</pallas_src>

<mosaic_0001>
module attributes {stable_mosaic.version = 11 : i64} {
  func.func @_prenet_kernel(%arg0: memref<16x4xf32, #tpu.memory_space<vmem>>, %arg1: memref<4x32xf32, #tpu.memory_space<vmem>>, %arg2: memref<32x32xf32, #tpu.memory_space<vmem>>, %arg3: memref<16x32xf32, #tpu.memory_space<vmem>>, %arg4: memref<16x32xf32, #tpu.memory_space<vmem>>, %arg5: memref<16x32xf32, #tpu.memory_space<vmem>>) attributes {dimension_semantics = [], scalar_prefetch = 0 : i64, scratch_operands = 0 : i64, tpu.core_type = #tpu.core_type<tc>} {
    %c0 = arith.constant 0 : index
    %c0_0 = arith.constant 0 : index
    %0 = vector.load %arg0[%c0, %c0_0] : memref<16x4xf32, #tpu.memory_space<vmem>>, vector<16x4xf32>
    %c0_1 = arith.constant 0 : index
    %c0_2 = arith.constant 0 : index
    %1 = vector.load %arg1[%c0_1, %c0_2] : memref<4x32xf32, #tpu.memory_space<vmem>>, vector<4x32xf32>
    %cst = arith.constant dense<0.000000e+00> : vector<16x32xf32>
    %2 = tpu.matmul %0, %1, %cst {dimension_numbers = #tpu.dot_dimension_numbers<[1], [0], [0], [1], [0, 0, 1, 1], [], []>} : vector<16x4xf32>, vector<4x32xf32>, vector<16x32xf32> -> vector<16x32xf32>
    %cst_3 = arith.constant 0.000000e+00 : f32
    %3 = vector.broadcast %cst_3 : f32 to vector<16x32xf32>
    %4 = arith.maximumf %2, %3 : vector<16x32xf32>
    %c0_4 = arith.constant 0 : index
    %c0_5 = arith.constant 0 : index
    %5 = vector.load %arg3[%c0_4, %c0_5] : memref<16x32xf32, #tpu.memory_space<vmem>>, vector<16x32xf32>
    %6 = arith.mulf %4, %5 : vector<16x32xf32>
    %c0_6 = arith.constant 0 : index
    %c0_7 = arith.constant 0 : index
    %7 = vector.load %arg2[%c0_6, %c0_7] : memref<32x32xf32, #tpu.memory_space<vmem>>, vector<32x32xf32>
    %cst_8 = arith.constant dense<0.000000e+00> : vector<16x32xf32>
    %8 = tpu.matmul %6, %7, %cst_8 {dimension_numbers = #tpu.dot_dimension_numbers<[1], [0], [0], [1], [0, 0, 1, 1], [], []>} : vector<16x32xf32>, vector<32x32xf32>, vector<16x32xf32> -> vector<16x32xf32>
    %cst_9 = arith.constant 0.000000e+00 : f32
    %9 = vector.broadcast %cst_9 : f32 to vector<16x32xf32>
    %10 = arith.maximumf %8, %9 : vector<16x32xf32>
    %c0_10 = arith.constant 0 : index
    %c0_11 = arith.constant 0 : index
    %11 = vector.load %arg4[%c0_10, %c0_11] : memref<16x32xf32, #tpu.memory_space<vmem>>, vector<16x32xf32>
    %12 = arith.mulf %10, %11 : vector<16x32xf32>
    %c0_12 = arith.constant 0 : index
    %c0_13 = arith.constant 0 : index
    %13 = vector.load %arg5[%c0_12, %c0_13] : memref<16x32xf32, #tpu.memory_space<vmem>>, vector<16x32xf32>
    tpu.vector_store %arg5[%c0_12, %c0_13], %12 {strides = array<i32>} : memref<16x32xf32, #tpu.memory_space<vmem>>, vector<16x32xf32>,
    return
  }
}

module attributes {stable_mosaic.version = 11 : i64} {
  func.func @kernel(%arg0: i32, %arg1: memref<8xi32, #tpu.memory_space<smem>>, %arg2: memref<1x2x32xf32, #tpu.memory_space<vmem>>, %arg3: memref<1x2x2x32xf32, #tpu.memory_space<vmem>>, %arg4: memref<1x2x2x128xf32, #tpu.memory_space<vmem>>, %arg5: memref<1x2x2x128xf32, #tpu.memory_space<vmem>>, %arg6: memref<2x8xf32, #tpu.memory_space<vmem>>, %arg7: memref<4x32xf32, #tpu.memory_space<vmem>>, %arg8: memref<32x32xf32, #tpu.memory_space<vmem>>, %arg9: memref<32x512xf32, #tpu.memory_space<vmem>>, %arg10: memref<32x512xf32, #tpu.memory_space<vmem>>, %arg11: memref<128x512xf32, #tpu.memory_space<vmem>>, %arg12: memref<1x512xf32, #tpu.memory_space<vmem>>, %arg13: memref<128x128xf32, #tpu.memory_space<vmem>>, %arg14: memref<8x128xf32, #tpu.memory_space<vmem>>, %arg15: memref<8x128xf32, #tpu.memory_space<vmem>>, %arg16: memref<32x128xf32, #tpu.memory_space<vmem>>, %arg17: memref<128x8xf32, #tpu.memory_space<vmem>>, %arg18: memref<8x256xf32, #tpu.memory_space<vmem>>, %arg19: memref<256x32xf32, #tpu.memory_space<vmem>>, %arg20: memref<32x256xf32, #tpu.memory_space<vmem>>, %arg21: memref<128x512xf32, #tpu.memory_space<vmem>>, %arg22: memref<32x512xf32, #tpu.memory_space<vmem>>, %arg23: memref<128x512xf32, #tpu.memory_space<vmem>>, %arg24: memref<1x512xf32, #tpu.memory_space<vmem>>, %arg25: memref<32x64xf32, #tpu.memory_space<vmem>>, %arg26: memref<1x64xf32, #tpu.memory_space<vmem>>, %arg27: memref<64x64xf32, #tpu.memory_space<vmem>>, %arg28: memref<1x64xf32, #tpu.memory_space<vmem>>, %arg29: memref<64x32xf32, #tpu.memory_space<vmem>>, %arg30: memref<1x32xf32, #tpu.memory_space<vmem>>, %arg31: memref<128x5xf32, #tpu.memory_space<vmem>>, %arg32: memref<32x5xf32, #tpu.memory_space<vmem>>, %arg33: memref<1x5xf32, #tpu.memory_space<vmem>>, %arg34: memref<1x2x5xf32, #tpu.memory_space<vmem>>, %arg35: memref<1x2x8xf32, #tpu.memory_space<vmem>>, %arg36: memref<2x128xf32, #tpu.memory_space<vmem>>, %arg37: memref<2x128xf32, #tpu.memory_space<vmem>>, %arg38: memref<2x128xf32, #tpu.memory_space<vmem>>, %arg39: memref<2x128xf32, #tpu.memory_space<vmem>>, %arg40: memref<2x32xf32, #tpu.memory_space<vmem>>, %arg41: memref<2x4xf32, #tpu.memory_space<vmem>>, %arg42: memref<2x8xf32, #tpu.memory_space<vmem>>, %arg43: memref<2x8xf32, #tpu.memory_space<vmem>>, %arg44: memref<2x128xf32, #tpu.memory_space<vmem>>, %arg45: memref<2x256xf32, #tpu.memory_space<vmem>>) attributes {dimension_semantics = [#tpu.dimension_semantics<arbitrary>], iteration_bounds = array<i64: 8>, scalar_prefetch = 1 : i64, scratch_operands = 10 : i64, tpu.core_type = #tpu.core_type<tc>, window_params = [{transform_indices = @transform_0, window_bounds = array<i64: 1, 2, 32>}, {transform_indices = @transform_1, window_bounds = array<i64: 1, 2, 2, 32>}, {transform_indices = @transform_2, window_bounds = array<i64: 1, 2, 2, 128>}, {transform_indices = @transform_3, window_bounds = array<i64: 1, 2, 2, 128>}, {pipeline_mode = #tpu.pipeline_mode<synchronous>, transform_indices = @transform_4, window_bounds = array<i64: 2, 8>}, {pipeline_mode = #tpu.pipeline_mode<synchronous>, transform_indices = @transform_5, window_bounds = array<i64: 4, 32>}, {pipeline_mode = #tpu.pipeline_mode<synchronous>, transform_indices = @transform_6, window_bounds = array<i64: 32, 32>}, {pipeline_mode = #tpu.pipeline_mode<synchronous>, transform_indices = @transform_7, window_bounds = array<i64: 32, 512>}, {pipeline_mode = #tpu.pipeline_mode<synchronous>, transform_indices = @transform_8, window_bounds = array<i64: 32, 512>}, {pipeline_mode = #tpu.pipeline_mode<synchronous>, transform_indices = @transform_9, window_bounds = array<i64: 128, 512>}, {pipeline_mode = #tpu.pipeline_mode<synchronous>, transform_indices = @transform_10, window_bounds = array<i64: 1, 512>}, {pipeline_mode = #tpu.pipeline_mode<synchronous>, transform_indices = @transform_11, window_bounds = array<i64: 128, 128>}, {pipeline_mode = #tpu.pipeline_mode<synchronous>, transform_indices = @transform_12, window_bounds = array<i64: 8, 128>}, {pipeline_mode = #tpu.pipeline_mode<synchronous>, transform_indices = @transform_13, window_bounds = array<i64: 8, 128>}, {pipeline_mode = #tpu.pipeline_mode<synchronous>, transform_indices = @transform_14, window_bounds = array<i64: 32, 128>}, {pipeline_mode = #tpu.pipeline_mode<synchronous>, transform_indices = @transform_15, window_bounds = array<i64: 128, 8>}, {pipeline_mode = #tpu.pipeline_mode<synchronous>, transform_indices = @transform_16, window_bounds = array<i64: 8, 256>}, {pipeline_mode = #tpu.pipeline_mode<synchronous>, transform_indices = @transform_17, window_bounds = array<i64: 256, 32>}, {pipeline_mode = #tpu.pipeline_mode<synchronous>, transform_indices = @transform_18, window_bounds = array<i64: 32, 256>}, {pipeline_mode = #tpu.pipeline_mode<synchronous>, transform_indices = @transform_19, window_bounds = array<i64: 128, 512>}, {pipeline_mode = #tpu.pipeline_mode<synchronous>, transform_indices = @transform_20, window_bounds = array<i64: 32, 512>}, {pipeline_mode = #tpu.pipeline_mode<synchronous>, transform_indices = @transform_21, window_bounds = array<i64: 128, 512>}, {pipeline_mode = #tpu.pipeline_mode<synchronous>, transform_indices = @transform_22, window_bounds = array<i64: 1, 512>}, {pipeline_mode = #tpu.pipeline_mode<synchronous>, transform_indices = @transform_23, window_bounds = array<i64: 32, 64>}, {pipeline_mode = #tpu.pipeline_mode<synchronous>, transform_indices = @transform_24, window_bounds = array<i64: 1, 64>}, {pipeline_mode = #tpu.pipeline_mode<synchronous>, transform_indices = @transform_25, window_bounds = array<i64: 64, 64>}, {pipeline_mode = #tpu.pipeline_mode<synchronous>, transform_indices = @transform_26, window_bounds = array<i64: 1, 64>}, {pipeline_mode = #tpu.pipeline_mode<synchronous>, transform_indices = @transform_27, window_bounds = array<i64: 64, 32>}, {pipeline_mode = #tpu.pipeline_mode<synchronous>, transform_indices = @transform_28, window_bounds = array<i64: 1, 32>}, {pipeline_mode = #tpu.pipeline_mode<synchronous>, transform_indices = @transform_29, window_bounds = array<i64: 128, 5>}, {pipeline_mode = #tpu.pipeline_mode<synchronous>, transform_indices = @transform_30, window_bounds = array<i64: 32, 5>}, {pipeline_mode = #tpu.pipeline_mode<synchronous>, transform_indices = @transform_31, window_bounds = array<i64: 1, 5>}, {transform_indices = @transform_32, window_bounds = array<i64: 1, 2, 5>}, {transform_indices = @transform_33, window_bounds = array<i64: 1, 2, 8>}]} {
    %c0_i32 = arith.constant 0 : i32
    %0 = arith.cmpi eq, %arg0, %c0_i32 : i32
    %1 = arith.extui %0 : i1 to i32
    %c0_i32_0 = arith.constant 0 : i32
    %2 = arith.cmpi ne, %1, %c0_i32_0 : i32
    scf.if %2 {
      %cst_174 = arith.constant 0.000000e+00 : f32
      %242 = vector.broadcast %cst_174 : f32 to vector<2x128xf32>
      %c0_175 = arith.constant 0 : index
      %c0_176 = arith.constant 0 : index
      %243 = vector.load %arg36[%c0_175, %c0_176] : memref<2x128xf32, #tpu.memory_space<vmem>>, vector<2x128xf32>
      tpu.vector_store %arg36[%c0_175, %c0_176], %242 {strides = array<i32>} : memref<2x128xf32, #tpu.memory_space<vmem>>, vector<2x128xf32>,
      %cst_177 = arith.constant 0.000000e+00 : f32
      %244 = vector.broadcast %cst_177 : f32 to vector<2x128xf32>
      %c0_178 = arith.constant 0 : index
      %c0_179 = arith.constant 0 : index
      %245 = vector.load %arg37[%c0_178, %c0_179] : memref<2x128xf32, #tpu.memory_space<vmem>>, vector<2x128xf32>
      tpu.vector_store %arg37[%c0_178, %c0_179], %244 {strides = array<i32>} : memref<2x128xf32, #tpu.memory_space<vmem>>, vector<2x128xf32>,
      %cst_180 = arith.constant 0.000000e+00 : f32
      %246 = vector.broadcast %cst_180 : f32 to vector<2x128xf32>
      %c0_181 = arith.constant 0 : index
      %c0_182 = arith.constant 0 : index
      %247 = vector.load %arg38[%c0_181, %c0_182] : memref<2x128xf32, #tpu.memory_space<vmem>>, vector<2x128xf32>
      tpu.vector_store %arg38[%c0_181, %c0_182], %246 {strides = array<i32>} : memref<2x128xf32, #tpu.memory_space<vmem>>, vector<2x128xf32>,
      %cst_183 = arith.constant 0.000000e+00 : f32
      %248 = vector.broadcast %cst_183 : f32 to vector<2x128xf32>
      %c0_184 = arith.constant 0 : index
      %c0_185 = arith.constant 0 : index
      %249 = vector.load %arg39[%c0_184, %c0_185] : memref<2x128xf32, #tpu.memory_space<vmem>>, vector<2x128xf32>
      tpu.vector_store %arg39[%c0_184, %c0_185], %248 {strides = array<i32>} : memref<2x128xf32, #tpu.memory_space<vmem>>, vector<2x128xf32>,
      %cst_186 = arith.constant 0.000000e+00 : f32
      %250 = vector.broadcast %cst_186 : f32 to vector<2x32xf32>
      %c0_187 = arith.constant 0 : index
      %c0_188 = arith.constant 0 : index
      %251 = vector.load %arg40[%c0_187, %c0_188] : memref<2x32xf32, #tpu.memory_space<vmem>>, vector<2x32xf32>
      tpu.vector_store %arg40[%c0_187, %c0_188], %250 {strides = array<i32>} : memref<2x32xf32, #tpu.memory_space<vmem>>, vector<2x32xf32>,
      %cst_189 = arith.constant 0.000000e+00 : f32
      %252 = vector.broadcast %cst_189 : f32 to vector<2x4xf32>
      %c0_190 = arith.constant 0 : index
      %c0_191 = arith.constant 0 : index
      %253 = vector.load %arg41[%c0_190, %c0_191] : memref<2x4xf32, #tpu.memory_space<vmem>>, vector<2x4xf32>
      tpu.vector_store %arg41[%c0_190, %c0_191], %252 {strides = array<i32>} : memref<2x4xf32, #tpu.memory_space<vmem>>, vector<2x4xf32>,
      %cst_192 = arith.constant 0.000000e+00 : f32
      %254 = vector.broadcast %cst_192 : f32 to vector<2x8xf32>
      %c0_193 = arith.constant 0 : index
      %c0_194 = arith.constant 0 : index
      %255 = vector.load %arg42[%c0_193, %c0_194] : memref<2x8xf32, #tpu.memory_space<vmem>>, vector<2x8xf32>
      tpu.vector_store %arg42[%c0_193, %c0_194], %254 {strides = array<i32>} : memref<2x8xf32, #tpu.memory_space<vmem>>, vector<2x8xf32>,
      %cst_195 = arith.constant 0.000000e+00 : f32
      %256 = vector.broadcast %cst_195 : f32 to vector<2x8xf32>
      %c0_196 = arith.constant 0 : index
      %c0_197 = arith.constant 0 : index
      %257 = vector.load %arg43[%c0_196, %c0_197] : memref<2x8xf32, #tpu.memory_space<vmem>>, vector<2x8xf32>
      tpu.vector_store %arg43[%c0_196, %c0_197], %256 {strides = array<i32>} : memref<2x8xf32, #tpu.memory_space<vmem>>, vector<2x8xf32>,
      %cst_198 = arith.constant 0.000000e+00 : f32
      %258 = vector.broadcast %cst_198 : f32 to vector<2x128xf32>
      %c0_199 = arith.constant 0 : index
      %c0_200 = arith.constant 0 : index
      %259 = vector.load %arg44[%c0_199, %c0_200] : memref<2x128xf32, #tpu.memory_space<vmem>>, vector<2x128xf32>
      tpu.vector_store %arg44[%c0_199, %c0_200], %258 {strides = array<i32>} : memref<2x128xf32, #tpu.memory_space<vmem>>, vector<2x128xf32>,
      %cst_201 = arith.constant 0.000000e+00 : f32
      %260 = vector.broadcast %cst_201 : f32 to vector<2x256xf32>
      %c0_202 = arith.constant 0 : index
      %c0_203 = arith.constant 0 : index
      %261 = vector.load %arg45[%c0_202, %c0_203] : memref<2x256xf32, #tpu.memory_space<vmem>>, vector<2x256xf32>
      tpu.vector_store %arg45[%c0_202, %c0_203], %260 {strides = array<i32>} : memref<2x256xf32, #tpu.memory_space<vmem>>, vector<2x256xf32>,
    } else {
    }
    %c0 = arith.constant 0 : index
    %c0_1 = arith.constant 0 : index
    %3 = vector.load %arg41[%c0, %c0_1] : memref<2x4xf32, #tpu.memory_space<vmem>>, vector<2x4xf32>
    %c0_2 = arith.constant 0 : index
    %c0_3 = arith.constant 0 : index
    %4 = vector.load %arg7[%c0_2, %c0_3] : memref<4x32xf32, #tpu.memory_space<vmem>>, vector<4x32xf32>
    %cst = arith.constant dense<0.000000e+00> : vector<2x32xf32>
    %5 = tpu.matmul %3, %4, %cst {dimension_numbers = #tpu.dot_dimension_numbers<[1], [0], [0], [1], [0, 0, 1, 1], [], []>} : vector<2x4xf32>, vector<4x32xf32>, vector<2x32xf32> -> vector<2x32xf32>
    %cst_4 = arith.constant 0.000000e+00 : f32
    %6 = vector.broadcast %cst_4 : f32 to vector<2x32xf32>
    %7 = arith.maximumf %5, %6 : vector<2x32xf32>
    %c0_5 = arith.constant 0 : index
    %c0_6 = arith.constant 0 : index
    %c0_7 = arith.constant 0 : index
    %c0_8 = arith.constant 0 : index
    %8 = vector.load %arg3[%c0_5, %c0_6, %c0_7, %c0_8] : memref<1x2x2x32xf32, #tpu.memory_space<vmem>>, vector<1x1x2x32xf32>
    %9 = vector.shape_cast %8 : vector<1x1x2x32xf32> to vector<2x32xf32>
    %10 = arith.mulf %7, %9 : vector<2x32xf32>
    %c0_9 = arith.constant 0 : index
    %c0_10 = arith.constant 0 : index
    %11 = vector.load %arg8[%c0_9, %c0_10] : memref<32x32xf32, #tpu.memory_space<vmem>>, vector<32x32xf32>
    %cst_11 = arith.constant dense<0.000000e+00> : vector<2x32xf32>
    %12 = tpu.matmul %10, %11, %cst_11 {dimension_numbers = #tpu.dot_dimension_numbers<[1], [0], [0], [1], [0, 0, 1, 1], [], []>} : vector<2x32xf32>, vector<32x32xf32>, vector<2x32xf32> -> vector<2x32xf32>
    %cst_12 = arith.constant 0.000000e+00 : f32
    %13 = vector.broadcast %cst_12 : f32 to vector<2x32xf32>
    %14 = arith.maximumf %12, %13 : vector<2x32xf32>
    %c0_13 = arith.constant 0 : index
    %c1 = arith.constant 1 : index
    %c0_14 = arith.constant 0 : index
    %c0_15 = arith.constant 0 : index
    %15 = vector.load %arg3[%c0_13, %c1, %c0_14, %c0_15] : memref<1x2x2x32xf32, #tpu.memory_space<vmem>>, vector<1x1x2x32xf32>
    %16 = vector.shape_cast %15 : vector<1x1x2x32xf32> to vector<2x32xf32>
    %17 = arith.mulf %14, %16 : vector<2x32xf32>
    %18 = arith.index_cast %arg0 : i32 to index
    %19 = memref.load %arg1[%18] : memref<8xi32, #tpu.memory_space<smem>>
    %c0_i32_16 = arith.constant 0 : i32
    %20 = arith.cmpi sgt, %19, %c0_i32_16 : i32
    %21 = arith.extui %20 : i1 to i32
    %22 = arith.sitofp %21 : i32 to f32
    %23 = vector.broadcast %22 : f32 to vector<2x32xf32>
    %24 = arith.mulf %23, %17 : vector<2x32xf32>
    %cst_17 = arith.constant 1.000000e+00 : f32
    %25 = arith.subf %cst_17, %22 : f32
    %c0_18 = arith.constant 0 : index
    %c0_19 = arith.constant 0 : index
    %c0_20 = arith.constant 0 : index
    %26 = vector.load %arg2[%c0_18, %c0_19, %c0_20] : memref<1x2x32xf32, #tpu.memory_space<vmem>>, vector<1x2x32xf32>
    %27 = vector.shape_cast %26 : vector<1x2x32xf32> to vector<2x32xf32>
    %28 = vector.broadcast %25 : f32 to vector<2x32xf32>
    %29 = arith.mulf %28, %27 : vector<2x32xf32>
    %30 = arith.addf %24, %29 : vector<2x32xf32>
    %c0_21 = arith.constant 0 : index
    %c0_22 = arith.constant 0 : index
    %31 = vector.load %arg9[%c0_21, %c0_22] : memref<32x512xf32, #tpu.memory_space<vmem>>, vector<32x512xf32>
    %cst_23 = arith.constant dense<0.000000e+00> : vector<2x512xf32>
    %32 = tpu.matmul %30, %31, %cst_23 {dimension_numbers = #tpu.dot_dimension_numbers<[1], [0], [0], [1], [0, 0, 1, 1], [], []>} : vector<2x32xf32>, vector<32x512xf32>, vector<2x512xf32> -> vector<2x512xf32>
    %c0_24 = arith.constant 0 : index
    %c0_25 = arith.constant 0 : index
    %33 = vector.load %arg40[%c0_24, %c0_25] : memref<2x32xf32, #tpu.memory_space<vmem>>, vector<2x32xf32>
    %c0_26 = arith.constant 0 : index
    %c0_27 = arith.constant 0 : index
    %34 = vector.load %arg10[%c0_26, %c0_27] : memref<32x512xf32, #tpu.memory_space<vmem>>, vector<32x512xf32>
    %cst_28 = arith.constant dense<0.000000e+00> : vector<2x512xf32>
    %35 = tpu.matmul %33, %34, %cst_28 {dimension_numbers = #tpu.dot_dimension_numbers<[1], [0], [0], [1], [0, 0, 1, 1], [], []>} : vector<2x32xf32>, vector<32x512xf32>, vector<2x512xf32> -> vector<2x512xf32>
    %36 = arith.addf %32, %35 : vector<2x512xf32>
    %c0_29 = arith.constant 0 : index
    %c0_30 = arith.constant 0 : index
    %37 = vector.load %arg36[%c0_29, %c0_30] : memref<2x128xf32, #tpu.memory_space<vmem>>, vector<2x128xf32>
    %c0_31 = arith.constant 0 : index
    %c0_32 = arith.constant 0 : index
    %38 = vector.load %arg11[%c0_31, %c0_32] : memref<128x512xf32, #tpu.memory_space<vmem>>, vector<128x512xf32>
    %cst_33 = arith.constant dense<0.000000e+00> : vector<2x512xf32>
    %39 = tpu.matmul %37, %38, %cst_33 {dimension_numbers = #tpu.dot_dimension_numbers<[1], [0], [0], [1], [0, 0, 1, 1], [], []>} : vector<2x128xf32>, vector<128x512xf32>, vector<2x512xf32> -> vector<2x512xf32>
    %40 = arith.addf %36, %39 : vector<2x512xf32>
    %c0_34 = arith.constant 0 : index
    %c0_35 = arith.constant 0 : index
    %41 = vector.load %arg12[%c0_34, %c0_35] : memref<1x512xf32, #tpu.memory_space<vmem>>, vector<1x512xf32>
    %42 = vector.broadcast %41 : vector<1x512xf32> to vector<2x512xf32>
    %43 = arith.addf %40, %42 : vector<2x512xf32>
    %44 = vector.extract_strided_slice %43 {offsets = [0, 0], sizes = [2, 128], strides = [1, 1]} : vector<2x512xf32> to vector<2x128xf32>
    %45 = arith.negf %44 : vector<2x128xf32>
    %46 = math.exp %45 : vector<2x128xf32>
    %cst_36 = arith.constant 1.000000e+00 : f32
    %47 = vector.broadcast %cst_36 : f32 to vector<2x128xf32>
    %48 = arith.addf %47, %46 : vector<2x128xf32>
    %49 = arith.divf %47, %48 : vector<2x128xf32>
    %50 = vector.extract_strided_slice %43 {offsets = [0, 128], sizes = [2, 128], strides = [1, 1]} : vector<2x512xf32> to vector<2x128xf32>
    %51 = arith.negf %50 : vector<2x128xf32>
    %52 = math.exp %51 : vector<2x128xf32>
    %cst_37 = arith.constant 1.000000e+00 : f32
    %53 = vector.broadcast %cst_37 : f32 to vector<2x128xf32>
    %54 = arith.addf %53, %52 : vector<2x128xf32>
    %55 = arith.divf %53, %54 : vector<2x128xf32>
    %56 = vector.extract_strided_slice %43 {offsets = [0, 256], sizes = [2, 128], strides = [1, 1]} : vector<2x512xf32> to vector<2x128xf32>
    %57 = math.tanh %56 : vector<2x128xf32>
    %58 = vector.extract_strided_slice %43 {offsets = [0, 384], sizes = [2, 128], strides = [1, 1]} : vector<2x512xf32> to vector<2x128xf32>
    %59 = arith.negf %58 : vector<2x128xf32>
    %60 = math.exp %59 : vector<2x128xf32>
    %cst_38 = arith.constant 1.000000e+00 : f32
    %61 = vector.broadcast %cst_38 : f32 to vector<2x128xf32>
    %62 = arith.addf %61, %60 : vector<2x128xf32>
    %63 = arith.divf %61, %62 : vector<2x128xf32>
    %c0_39 = arith.constant 0 : index
    %c0_40 = arith.constant 0 : index
    %64 = vector.load %arg37[%c0_39, %c0_40] : memref<2x128xf32, #tpu.memory_space<vmem>>, vector<2x128xf32>
    %65 = arith.mulf %55, %64 : vector<2x128xf32>
    %66 = arith.mulf %49, %57 : vector<2x128xf32>
    %67 = arith.addf %65, %66 : vector<2x128xf32>
    %68 = math.tanh %67 : vector<2x128xf32>
    %69 = arith.mulf %63, %68 : vector<2x128xf32>
    %c0_41 = arith.constant 0 : index
    %c0_42 = arith.constant 0 : index
    %c0_43 = arith.constant 0 : index
    %c0_44 = arith.constant 0 : index
    %70 = vector.load %arg4[%c0_41, %c0_42, %c0_43, %c0_44] : memref<1x2x2x128xf32, #tpu.memory_space<vmem>>, vector<1x1x2x128xf32>
    %71 = vector.shape_cast %70 : vector<1x1x2x128xf32> to vector<2x128xf32>
    %72 = arith.mulf %69, %71 : vector<2x128xf32>
    %c0_45 = arith.constant 0 : index
    %c1_46 = arith.constant 1 : index
    %c0_47 = arith.constant 0 : index
    %c0_48 = arith.constant 0 : index
    %73 = vector.load %arg4[%c0_45, %c1_46, %c0_47, %c0_48] : memref<1x2x2x128xf32, #tpu.memory_space<vmem>>, vector<1x1x2x128xf32>
    %74 = vector.shape_cast %73 : vector<1x1x2x128xf32> to vector<2x128xf32>
    %75 = arith.mulf %67, %74 : vector<2x128xf32>
    %c0_49 = arith.constant 0 : index
    %c0_50 = arith.constant 0 : index
    %76 = vector.load %arg36[%c0_49, %c0_50] : memref<2x128xf32, #tpu.memory_space<vmem>>, vector<2x128xf32>
    tpu.vector_store %arg36[%c0_49, %c0_50], %72 {strides = array<i32>} : memref<2x128xf32, #tpu.memory_space<vmem>>, vector<2x128xf32>,
    %c0_51 = arith.constant 0 : index
    %c0_52 = arith.constant 0 : index
    %77 = vector.load %arg37[%c0_51, %c0_52] : memref<2x128xf32, #tpu.memory_space<vmem>>, vector<2x128xf32>
    tpu.vector_store %arg37[%c0_51, %c0_52], %75 {strides = array<i32>} : memref<2x128xf32, #tpu.memory_space<vmem>>, vector<2x128xf32>,
    %c0_53 = arith.constant 0 : index
    %c0_54 = arith.constant 0 : index
    %78 = vector.load %arg13[%c0_53, %c0_54] : memref<128x128xf32, #tpu.memory_space<vmem>>, vector<128x128xf32>
    %cst_55 = arith.constant dense<0.000000e+00> : vector<2x128xf32>
    %79 = tpu.matmul %72, %78, %cst_55 {dimension_numbers = #tpu.dot_dimension_numbers<[1], [0], [0], [1], [0, 0, 1, 1], [], []>} : vector<2x128xf32>, vector<128x128xf32>, vector<2x128xf32> -> vector<2x128xf32>
    %c0_56 = arith.constant 0 : index
    %c0_57 = arith.constant 0 : index
    %80 = vector.load %arg42[%c0_56, %c0_57] : memref<2x8xf32, #tpu.memory_space<vmem>>, vector<2x8xf32>
    %c0_58 = arith.constant 0 : index
    %c0_59 = arith.constant 0 : index
    %81 = vector.load %arg14[%c0_58, %c0_59] : memref<8x128xf32, #tpu.memory_space<vmem>>, vector<8x128xf32>
    %cst_60 = arith.constant dense<0.000000e+00> : vector<2x128xf32>
    %82 = tpu.matmul %80, %81, %cst_60 {dimension_numbers = #tpu.dot_dimension_numbers<[1], [0], [0], [1], [0, 0, 1, 1], [], []>} : vector<2x8xf32>, vector<8x128xf32>, vector<2x128xf32> -> vector<2x128xf32>
    %c0_61 = arith.constant 0 : index
    %c0_62 = arith.constant 0 : index
    %83 = vector.load %arg43[%c0_61, %c0_62] : memref<2x8xf32, #tpu.memory_space<vmem>>, vector<2x8xf32>
    %c0_63 = arith.constant 0 : index
    %c0_64 = arith.constant 0 : index
    %84 = vector.load %arg15[%c0_63, %c0_64] : memref<8x128xf32, #tpu.memory_space<vmem>>, vector<8x128xf32>
    %cst_65 = arith.constant dense<0.000000e+00> : vector<2x128xf32>
    %85 = tpu.matmul %83, %84, %cst_65 {dimension_numbers = #tpu.dot_dimension_numbers<[1], [0], [0], [1], [0, 0, 1, 1], [], []>} : vector<2x8xf32>, vector<8x128xf32>, vector<2x128xf32> -> vector<2x128xf32>
    %86 = arith.addf %82, %85 : vector<2x128xf32>
    %87 = arith.addf %79, %86 : vector<2x128xf32>
    %c0_66 = arith.constant 0 : index
    %c0_67 = arith.constant 0 : index
    %88 = vector.load %arg44[%c0_66, %c0_67] : memref<2x128xf32, #tpu.memory_space<vmem>>, vector<2x128xf32>
    %89 = arith.addf %87, %88 : vector<2x128xf32>
    %90 = math.tanh %89 : vector<2x128xf32>
    %c0_68 = arith.constant 0 : index
    %c0_69 = arith.constant 0 : index
    %91 = vector.load %arg17[%c0_68, %c0_69] : memref<128x8xf32, #tpu.memory_space<vmem>>, vector<128x8xf32>
    %cst_70 = arith.constant dense<0.000000e+00> : vector<2x8xf32>
    %92 = tpu.matmul %90, %91, %cst_70 {dimension_numbers = #tpu.dot_dimension_numbers<[1], [0], [0], [1], [0, 0, 1, 1], [], []>} : vector<2x128xf32>, vector<128x8xf32>, vector<2x8xf32> -> vector<2x8xf32>
    %93 = tpu.iota {dimensions = array<i32: 1>} : vector<2x8xi32>
    %94 = vector.broadcast %arg0 : i32 to vector<2x8xi32>
    %95 = arith.cmpi sle, %93, %94 : vector<2x8xi32>
    %c0_71 = arith.constant 0 : index
    %c0_72 = arith.constant 0 : index
    %96 = vector.load %arg6[%c0_71, %c0_72] : memref<2x8xf32, #tpu.memory_space<vmem>>, vector<2x8xf32>
    %cst_73 = arith.constant 5.000000e-01 : f32
    %97 = vector.broadcast %cst_73 : f32 to vector<2x8xf32>
    %98 = arith.cmpf ogt, %96, %97 : vector<2x8xf32>
    %99 = arith.andi %95, %98 : vector<2x8xi1>
    %cst_74 = arith.constant -1.000000e+30 : f32
    %100 = vector.broadcast %cst_74 : f32 to vector<2x8xf32>
    %101 = arith.select %99, %92, %100 : vector<2x8xi1>, vector<2x8xf32>
    %cst_75 = arith.constant dense<0xFF800000> : vector<2xf32>
    %102 = vector.multi_reduction <maximumf>, %101, %cst_75 [1] : vector<2x8xf32> to vector<2xf32>
    %103 = vector.shape_cast %102 : vector<2xf32> to vector<2x1xf32>
    %104 = vector.broadcast %103 : vector<2x1xf32> to vector<2x8xf32>
    %105 = arith.subf %101, %104 : vector<2x8xf32>
    %106 = math.exp %105 : vector<2x8xf32>
    %cst_76 = arith.constant dense<0.000000e+00> : vector<2xf32>
    %107 = vector.multi_reduction <add>, %106, %cst_76 [1] : vector<2x8xf32> to vector<2xf32>
    %108 = vector.shape_cast %107 : vector<2xf32> to vector<2x1xf32>
    %109 = vector.broadcast %108 : vector<2x1xf32> to vector<2x8xf32>
    %110 = arith.divf %106, %109 : vector<2x8xf32>
    %c0_77 = arith.constant 0 : index
    %c0_78 = arith.constant 0 : index
    %111 = vector.load %arg18[%c0_77, %c0_78] : memref<8x256xf32, #tpu.memory_space<vmem>>, vector<8x256xf32>
    %cst_79 = arith.constant dense<0.000000e+00> : vector<2x256xf32>
    %112 = tpu.matmul %110, %111, %cst_79 {dimension_numbers = #tpu.dot_dimension_numbers<[1], [0], [0], [1], [0, 0, 1, 1], [], []>} : vector<2x8xf32>, vector<8x256xf32>, vector<2x256xf32> -> vector<2x256xf32>
    %c0_80 = arith.constant 0 : index
    %c0_81 = arith.constant 0 : index
    %113 = vector.load %arg45[%c0_80, %c0_81] : memref<2x256xf32, #tpu.memory_space<vmem>>, vector<2x256xf32>
    %114 = arith.mulf %112, %113 : vector<2x256xf32>
    %c0_82 = arith.constant 0 : index
    %c0_83 = arith.constant 0 : index
    %115 = vector.load %arg19[%c0_82, %c0_83] : memref<256x32xf32, #tpu.memory_space<vmem>>, vector<256x32xf32>
    %cst_84 = arith.constant dense<0.000000e+00> : vector<2x32xf32>
    %116 = tpu.matmul %114, %115, %cst_84 {dimension_numbers = #tpu.dot_dimension_numbers<[1], [0], [0], [1], [0, 0, 1, 1], [], []>} : vector<2x256xf32>, vector<256x32xf32>, vector<2x32xf32> -> vector<2x32xf32>
    %c0_85 = arith.constant 0 : index
    %c0_86 = arith.constant 0 : index
    %117 = vector.load %arg25[%c0_85, %c0_86] : memref<32x64xf32, #tpu.memory_space<vmem>>, vector<32x64xf32>
    %cst_87 = arith.constant dense<0.000000e+00> : vector<2x64xf32>
    %118 = tpu.matmul %116, %117, %cst_87 {dimension_numbers = #tpu.dot_dimension_numbers<[1], [0], [0], [1], [0, 0, 1, 1], [], []>} : vector<2x32xf32>, vector<32x64xf32>, vector<2x64xf32> -> vector<2x64xf32>
    %c0_88 = arith.constant 0 : index
    %c0_89 = arith.constant 0 : index
    %119 = vector.load %arg26[%c0_88, %c0_89] : memref<1x64xf32, #tpu.memory_space<vmem>>, vector<1x64xf32>
    %120 = vector.broadcast %119 : vector<1x64xf32> to vector<2x64xf32>
    %121 = arith.addf %118, %120 : vector<2x64xf32>
    %cst_90 = arith.constant 0.000000e+00 : f32
    %122 = vector.broadcast %cst_90 : f32 to vector<2x64xf32>
    %123 = arith.maximumf %121, %122 : vector<2x64xf32>
    %c0_91 = arith.constant 0 : index
    %c0_92 = arith.constant 0 : index
    %124 = vector.load %arg27[%c0_91, %c0_92] : memref<64x64xf32, #tpu.memory_space<vmem>>, vector<64x64xf32>
    %cst_93 = arith.constant dense<0.000000e+00> : vector<2x64xf32>
    %125 = tpu.matmul %123, %124, %cst_93 {dimension_numbers = #tpu.dot_dimension_numbers<[1], [0], [0], [1], [0, 0, 1, 1], [], []>} : vector<2x64xf32>, vector<64x64xf32>, vector<2x64xf32> -> vector<2x64xf32>
    %c0_94 = arith.constant 0 : index
    %c0_95 = arith.constant 0 : index
    %126 = vector.load %arg28[%c0_94, %c0_95] : memref<1x64xf32, #tpu.memory_space<vmem>>, vector<1x64xf32>
    %127 = vector.broadcast %126 : vector<1x64xf32> to vector<2x64xf32>
    %128 = arith.addf %125, %127 : vector<2x64xf32>
    %cst_96 = arith.constant 0.000000e+00 : f32
    %129 = vector.broadcast %cst_96 : f32 to vector<2x64xf32>
    %130 = arith.maximumf %128, %129 : vector<2x64xf32>
    %c0_97 = arith.constant 0 : index
    %c0_98 = arith.constant 0 : index
    %131 = vector.load %arg29[%c0_97, %c0_98] : memref<64x32xf32, #tpu.memory_space<vmem>>, vector<64x32xf32>
    %cst_99 = arith.constant dense<0.000000e+00> : vector<2x32xf32>
    %132 = tpu.matmul %130, %131, %cst_99 {dimension_numbers = #tpu.dot_dimension_numbers<[1], [0], [0], [1], [0, 0, 1, 1], [], []>} : vector<2x64xf32>, vector<64x32xf32>, vector<2x32xf32> -> vector<2x32xf32>
    %c0_100 = arith.constant 0 : index
    %c0_101 = arith.constant 0 : index
    %133 = vector.load %arg30[%c0_100, %c0_101] : memref<1x32xf32, #tpu.memory_space<vmem>>, vector<1x32xf32>
    %134 = vector.broadcast %133 : vector<1x32xf32> to vector<2x32xf32>
    %135 = arith.addf %132, %134 : vector<2x32xf32>
    %136 = arith.addf %116, %135 : vector<2x32xf32>
    %c0_102 = arith.constant 0 : index
    %c0_103 = arith.constant 0 : index
    %137 = vector.load %arg40[%c0_102, %c0_103] : memref<2x32xf32, #tpu.memory_space<vmem>>, vector<2x32xf32>
    tpu.vector_store %arg40[%c0_102, %c0_103], %136 {strides = array<i32>} : memref<2x32xf32, #tpu.memory_space<vmem>>, vector<2x32xf32>,
    %138 = tpu.iota {dimensions = array<i32: 1>} : vector<1x128xi32>
    %c1_i32 = arith.constant 1 : i32
    %139 = arith.addi %arg0, %c1_i32 : i32
    %c16_i32 = arith.constant 16 : i32
    %140 = arith.muli %139, %c16_i32 : i32
    %141 = vector.broadcast %140 : i32 to vector<1x128xi32>
    %142 = arith.cmpi sge, %138, %141 : vector<1x128xi32>
    %c2_i32 = arith.constant 2 : i32
    %143 = arith.addi %arg0, %c2_i32 : i32
    %c16_i32_104 = arith.constant 16 : i32
    %144 = arith.muli %143, %c16_i32_104 : i32
    %145 = vector.broadcast %144 : i32 to vector<1x128xi32>
    %146 = arith.cmpi slt, %138, %145 : vector<1x128xi32>
    %147 = arith.andi %142, %146 : vector<1x128xi1>
    %148 = arith.extui %147 : vector<1x128xi1> to vector<1x128xi32>
    %149 = arith.sitofp %148 : vector<1x128xi32> to vector<1x128xf32>
    %c0_105 = arith.constant 0 : index
    %c0_106 = arith.constant 0 : index
    %150 = vector.load %arg44[%c0_105, %c0_106] : memref<2x128xf32, #tpu.memory_space<vmem>>, vector<2x128xf32>
    %c0_107 = arith.constant 0 : index
    %c0_108 = arith.constant 0 : index
    %151 = vector.load %arg16[%c0_107, %c0_108] : memref<32x128xf32, #tpu.memory_space<vmem>>, vector<32x128xf32>
    %cst_109 = arith.constant dense<0.000000e+00> : vector<2x128xf32>
    %152 = tpu.matmul %136, %151, %cst_109 {dimension_numbers = #tpu.dot_dimension_numbers<[1], [0], [0], [1], [0, 0, 1, 1], [], []>} : vector<2x32xf32>, vector<32x128xf32>, vector<2x128xf32> -> vector<2x128xf32>
    %153 = vector.broadcast %149 : vector<1x128xf32> to vector<2x128xf32>
    %154 = arith.mulf %152, %153 : vector<2x128xf32>
    %155 = arith.addf %150, %154 : vector<2x128xf32>
    %c0_110 = arith.constant 0 : index
    %c0_111 = arith.constant 0 : index
    %156 = vector.load %arg44[%c0_110, %c0_111] : memref<2x128xf32, #tpu.memory_space<vmem>>, vector<2x128xf32>
    tpu.vector_store %arg44[%c0_110, %c0_111], %155 {strides = array<i32>} : memref<2x128xf32, #tpu.memory_space<vmem>>, vector<2x128xf32>,
    %157 = tpu.iota {dimensions = array<i32: 1>} : vector<1x256xi32>
    %c1_i32_112 = arith.constant 1 : i32
    %158 = arith.addi %arg0, %c1_i32_112 : i32
    %c32_i32 = arith.constant 32 : i32
    %159 = arith.muli %158, %c32_i32 : i32
    %160 = vector.broadcast %159 : i32 to vector<1x256xi32>
    %161 = arith.cmpi sge, %157, %160 : vector<1x256xi32>
    %c2_i32_113 = arith.constant 2 : i32
    %162 = arith.addi %arg0, %c2_i32_113 : i32
    %c32_i32_114 = arith.constant 32 : i32
    %163 = arith.muli %162, %c32_i32_114 : i32
    %164 = vector.broadcast %163 : i32 to vector<1x256xi32>
    %165 = arith.cmpi slt, %157, %164 : vector<1x256xi32>
    %166 = arith.andi %161, %165 : vector<1x256xi1>
    %167 = arith.extui %166 : vector<1x256xi1> to vector<1x256xi32>
    %168 = arith.sitofp %167 : vector<1x256xi32> to vector<1x256xf32>
    %c0_115 = arith.constant 0 : index
    %c0_116 = arith.constant 0 : index
    %169 = vector.load %arg45[%c0_115, %c0_116] : memref<2x256xf32, #tpu.memory_space<vmem>>, vector<2x256xf32>
    %c0_117 = arith.constant 0 : index
    %c0_118 = arith.constant 0 : index
    %170 = vector.load %arg20[%c0_117, %c0_118] : memref<32x256xf32, #tpu.memory_space<vmem>>, vector<32x256xf32>
    %cst_119 = arith.constant dense<0.000000e+00> : vector<2x256xf32>
    %171 = tpu.matmul %136, %170, %cst_119 {dimension_numbers = #tpu.dot_dimension_numbers<[1], [0], [0], [1], [0, 0, 1, 1], [], []>} : vector<2x32xf32>, vector<32x256xf32>, vector<2x256xf32> -> vector<2x256xf32>
    %172 = vector.broadcast %168 : vector<1x256xf32> to vector<2x256xf32>
    %173 = arith.mulf %171, %172 : vector<2x256xf32>
    %174 = arith.addf %169, %173 : vector<2x256xf32>
    %c0_120 = arith.constant 0 : index
    %c0_121 = arith.constant 0 : index
    %175 = vector.load %arg45[%c0_120, %c0_121] : memref<2x256xf32, #tpu.memory_space<vmem>>, vector<2x256xf32>
    tpu.vector_store %arg45[%c0_120, %c0_121], %174 {strides = array<i32>} : memref<2x256xf32, #tpu.memory_space<vmem>>, vector<2x256xf32>,
    %c0_122 = arith.constant 0 : index
    %c0_123 = arith.constant 0 : index
    %176 = vector.load %arg43[%c0_122, %c0_123] : memref<2x8xf32, #tpu.memory_space<vmem>>, vector<2x8xf32>
    %177 = arith.addf %176, %110 : vector<2x8xf32>
    %c0_124 = arith.constant 0 : index
    %c0_125 = arith.constant 0 : index
    %178 = vector.load %arg43[%c0_124, %c0_125] : memref<2x8xf32, #tpu.memory_space<vmem>>, vector<2x8xf32>
    tpu.vector_store %arg43[%c0_124, %c0_125], %177 {strides = array<i32>} : memref<2x8xf32, #tpu.memory_space<vmem>>, vector<2x8xf32>,
    %c0_126 = arith.constant 0 : index
    %c0_127 = arith.constant 0 : index
    %179 = vector.load %arg42[%c0_126, %c0_127] : memref<2x8xf32, #tpu.memory_space<vmem>>, vector<2x8xf32>
    tpu.vector_store %arg42[%c0_126, %c0_127], %110 {strides = array<i32>} : memref<2x8xf32, #tpu.memory_space<vmem>>, vector<2x8xf32>,
    %c0_128 = arith.constant 0 : index
    %c0_129 = arith.constant 0 : index
    %180 = vector.load %arg21[%c0_128, %c0_129] : memref<128x512xf32, #tpu.memory_space<vmem>>, vector<128x512xf32>
    %cst_130 = arith.constant dense<0.000000e+00> : vector<2x512xf32>
    %181 = tpu.matmul %72, %180, %cst_130 {dimension_numbers = #tpu.dot_dimension_numbers<[1], [0], [0], [1], [0, 0, 1, 1], [], []>} : vector<2x128xf32>, vector<128x512xf32>, vector<2x512xf32> -> vector<2x512xf32>
    %c0_131 = arith.constant 0 : index
    %c0_132 = arith.constant 0 : index
    %182 = vector.load %arg22[%c0_131, %c0_132] : memref<32x512xf32, #tpu.memory_space<vmem>>, vector<32x512xf32>
    %cst_133 = arith.constant dense<0.000000e+00> : vector<2x512xf32>
    %183 = tpu.matmul %136, %182, %cst_133 {dimension_numbers = #tpu.dot_dimension_numbers<[1], [0], [0], [1], [0, 0, 1, 1], [], []>} : vector<2x32xf32>, vector<32x512xf32>, vector<2x512xf32> -> vector<2x512xf32>
    %184 = arith.addf %181, %183 : vector<2x512xf32>
    %c0_134 = arith.constant 0 : index
    %c0_135 = arith.constant 0 : index
    %185 = vector.load %arg38[%c0_134, %c0_135] : memref<2x128xf32, #tpu.memory_space<vmem>>, vector<2x128xf32>
    %c0_136 = arith.constant 0 : index
    %c0_137 = arith.constant 0 : index
    %186 = vector.load %arg23[%c0_136, %c0_137] : memref<128x512xf32, #tpu.memory_space<vmem>>, vector<128x512xf32>
    %cst_138 = arith.constant dense<0.000000e+00> : vector<2x512xf32>
    %187 = tpu.matmul %185, %186, %cst_138 {dimension_numbers = #tpu.dot_dimension_numbers<[1], [0], [0], [1], [0, 0, 1, 1], [], []>} : vector<2x128xf32>, vector<128x512xf32>, vector<2x512xf32> -> vector<2x512xf32>
    %188 = arith.addf %184, %187 : vector<2x512xf32>
    %c0_139 = arith.constant 0 : index
    %c0_140 = arith.constant 0 : index
    %189 = vector.load %arg24[%c0_139, %c0_140] : memref<1x512xf32, #tpu.memory_space<vmem>>, vector<1x512xf32>
    %190 = vector.broadcast %189 : vector<1x512xf32> to vector<2x512xf32>
    %191 = arith.addf %188, %190 : vector<2x512xf32>
    %192 = vector.extract_strided_slice %191 {offsets = [0, 0], sizes = [2, 128], strides = [1, 1]} : vector<2x512xf32> to vector<2x128xf32>
    %193 = arith.negf %192 : vector<2x128xf32>
    %194 = math.exp %193 : vector<2x128xf32>
    %cst_141 = arith.constant 1.000000e+00 : f32
    %195 = vector.broadcast %cst_141 : f32 to vector<2x128xf32>
    %196 = arith.addf %195, %194 : vector<2x128xf32>
    %197 = arith.divf %195, %196 : vector<2x128xf32>
    %198 = vector.extract_strided_slice %191 {offsets = [0, 128], sizes = [2, 128], strides = [1, 1]} : vector<2x512xf32> to vector<2x128xf32>
    %199 = arith.negf %198 : vector<2x128xf32>
    %200 = math.exp %199 : vector<2x128xf32>
    %cst_142 = arith.constant 1.000000e+00 : f32
    %201 = vector.broadcast %cst_142 : f32 to vector<2x128xf32>
    %202 = arith.addf %201, %200 : vector<2x128xf32>
    %203 = arith.divf %201, %202 : vector<2x128xf32>
    %204 = vector.extract_strided_slice %191 {offsets = [0, 256], sizes = [2, 128], strides = [1, 1]} : vector<2x512xf32> to vector<2x128xf32>
    %205 = math.tanh %204 : vector<2x128xf32>
    %206 = vector.extract_strided_slice %191 {offsets = [0, 384], sizes = [2, 128], strides = [1, 1]} : vector<2x512xf32> to vector<2x128xf32>
    %207 = arith.negf %206 : vector<2x128xf32>
    %208 = math.exp %207 : vector<2x128xf32>
    %cst_143 = arith.constant 1.000000e+00 : f32
    %209 = vector.broadcast %cst_143 : f32 to vector<2x128xf32>
    %210 = arith.addf %209, %208 : vector<2x128xf32>
    %211 = arith.divf %209, %210 : vector<2x128xf32>
    %c0_144 = arith.constant 0 : index
    %c0_145 = arith.constant 0 : index
    %212 = vector.load %arg39[%c0_144, %c0_145] : memref<2x128xf32, #tpu.memory_space<vmem>>, vector<2x128xf32>
    %213 = arith.mulf %203, %212 : vector<2x128xf32>
    %214 = arith.mulf %197, %205 : vector<2x128xf32>
    %215 = arith.addf %213, %214 : vector<2x128xf32>
    %216 = math.tanh %215 : vector<2x128xf32>
    %217 = arith.mulf %211, %216 : vector<2x128xf32>
    %c0_146 = arith.constant 0 : index
    %c0_147 = arith.constant 0 : index
    %c0_148 = arith.constant 0 : index
    %c0_149 = arith.constant 0 : index
    %218 = vector.load %arg5[%c0_146, %c0_147, %c0_148, %c0_149] : memref<1x2x2x128xf32, #tpu.memory_space<vmem>>, vector<1x1x2x128xf32>
    %219 = vector.shape_cast %218 : vector<1x1x2x128xf32> to vector<2x128xf32>
    %220 = arith.mulf %217, %219 : vector<2x128xf32>
    %c0_150 = arith.constant 0 : index
    %c1_151 = arith.constant 1 : index
    %c0_152 = arith.constant 0 : index
    %c0_153 = arith.constant 0 : index
    %221 = vector.load %arg5[%c0_150, %c1_151, %c0_152, %c0_153] : memref<1x2x2x128xf32, #tpu.memory_space<vmem>>, vector<1x1x2x128xf32>
    %222 = vector.shape_cast %221 : vector<1x1x2x128xf32> to vector<2x128xf32>
    %223 = arith.mulf %215, %222 : vector<2x128xf32>
    %c0_154 = arith.constant 0 : index
    %c0_155 = arith.constant 0 : index
    %224 = vector.load %arg38[%c0_154, %c0_155] : memref<2x128xf32, #tpu.memory_space<vmem>>, vector<2x128xf32>
    tpu.vector_store %arg38[%c0_154, %c0_155], %220 {strides = array<i32>} : memref<2x128xf32, #tpu.memory_space<vmem>>, vector<2x128xf32>,
    %c0_156 = arith.constant 0 : index
    %c0_157 = arith.constant 0 : index
    %225 = vector.load %arg39[%c0_156, %c0_157] : memref<2x128xf32, #tpu.memory_space<vmem>>, vector<2x128xf32>
    tpu.vector_store %arg39[%c0_156, %c0_157], %223 {strides = array<i32>} : memref<2x128xf32, #tpu.memory_space<vmem>>, vector<2x128xf32>,
    %c0_158 = arith.constant 0 : index
    %c0_159 = arith.constant 0 : index
    %226 = vector.load %arg31[%c0_158, %c0_159] : memref<128x5xf32, #tpu.memory_space<vmem>>, vector<128x5xf32>
    %cst_160 = arith.constant dense<0.000000e+00> : vector<2x5xf32>
    %227 = tpu.matmul %220, %226, %cst_160 {dimension_numbers = #tpu.dot_dimension_numbers<[1], [0], [0], [1], [0, 0, 1, 1], [], []>} : vector<2x128xf32>, vector<128x5xf32>, vector<2x5xf32> -> vector<2x5xf32>
    %c0_161 = arith.constant 0 : index
    %c0_162 = arith.constant 0 : index
    %228 = vector.load %arg32[%c0_161, %c0_162] : memref<32x5xf32, #tpu.memory_space<vmem>>, vector<32x5xf32>
    %cst_163 = arith.constant dense<0.000000e+00> : vector<2x5xf32>
    %229 = tpu.matmul %136, %228, %cst_163 {dimension_numbers = #tpu.dot_dimension_numbers<[1], [0], [0], [1], [0, 0, 1, 1], [], []>} : vector<2x32xf32>, vector<32x5xf32>, vector<2x5xf32> -> vector<2x5xf32>
    %230 = arith.addf %227, %229 : vector<2x5xf32>
    %c0_164 = arith.constant 0 : index
    %c0_165 = arith.constant 0 : index
    %231 = vector.load %arg33[%c0_164, %c0_165] : memref<1x5xf32, #tpu.memory_space<vmem>>, vector<1x5xf32>
    %232 = vector.broadcast %231 : vector<1x5xf32> to vector<2x5xf32>
    %233 = arith.addf %230, %232 : vector<2x5xf32>
    %c0_166 = arith.constant 0 : index
    %c0_167 = arith.constant 0 : index
    %c0_168 = arith.constant 0 : index
    %234 = vector.load %arg34[%c0_166, %c0_167, %c0_168] : memref<1x2x5xf32, #tpu.memory_space<vmem>>, vector<1x2x5xf32>
    %235 = vector.shape_cast %234 : vector<1x2x5xf32> to vector<2x5xf32>
    %236 = vector.shape_cast %233 : vector<2x5xf32> to vector<1x2x5xf32>
    tpu.vector_store %arg34[%c0_166, %c0_167, %c0_168], %236 {strides = array<i32>} : memref<1x2x5xf32, #tpu.memory_space<vmem>>, vector<1x2x5xf32>,
    %c0_169 = arith.constant 0 : index
    %c0_170 = arith.constant 0 : index
    %c0_171 = arith.constant 0 : index
    %237 = vector.load %arg35[%c0_169, %c0_170, %c0_171] : memref<1x2x8xf32, #tpu.memory_space<vmem>>, vector<1x2x8xf32>
    %238 = vector.shape_cast %237 : vector<1x2x8xf32> to vector<2x8xf32>
    %239 = vector.shape_cast %110 : vector<2x8xf32> to vector<1x2x8xf32>
    tpu.vector_store %arg35[%c0_169, %c0_170, %c0_171], %239 {strides = array<i32>} : memref<1x2x8xf32, #tpu.memory_space<vmem>>, vector<1x2x8xf32>,
    %240 = vector.extract_strided_slice %233 {offsets = [0, 0], sizes = [2, 4], strides = [1, 1]} : vector<2x5xf32> to vector<2x4xf32>
    %c0_172 = arith.constant 0 : index
    %c0_173 = arith.constant 0 : index
    %241 = vector.load %arg41[%c0_172, %c0_173] : memref<2x4xf32, #tpu.memory_space<vmem>>, vector<2x4xf32>
    tpu.vector_store %arg41[%c0_172, %c0_173], %240 {strides = array<i32>} : memref<2x4xf32, #tpu.memory_space<vmem>>, vector<2x4xf32>,
    return
  }
  func.func @transform_0(%arg0: i32, %arg1: memref<8xi32, #tpu.memory_space<smem>>) -> (i32, i32, i32) {
    %c0_i32 = arith.constant 0 : i32
    %c0_i32_0 = arith.constant 0 : i32
    %c0_i32_1 = arith.constant 0 : i32
    return %arg0, %c0_i32, %c0_i32_0 : i32, i32, i32
  }
  func.func @transform_1(%arg0: i32, %arg1: memref<8xi32, #tpu.memory_space<smem>>) -> (i32, i32, i32, i32) {
    %c0_i32 = arith.constant 0 : i32
    %c0_i32_0 = arith.constant 0 : i32
    %c0_i32_1 = arith.constant 0 : i32
    %c0_i32_2 = arith.constant 0 : i32
    return %arg0, %c0_i32, %c0_i32_0, %c0_i32_1 : i32, i32, i32, i32
  }
  func.func @transform_2(%arg0: i32, %arg1: memref<8xi32, #tpu.memory_space<smem>>) -> (i32, i32, i32, i32) {
    %c0_i32 = arith.constant 0 : i32
    %c0_i32_0 = arith.constant 0 : i32
    %c0_i32_1 = arith.constant 0 : i32
    %c0_i32_2 = arith.constant 0 : i32
    return %arg0, %c0_i32, %c0_i32_0, %c0_i32_1 : i32, i32, i32, i32
  }
  func.func @transform_3(%arg0: i32, %arg1: memref<8xi32, #tpu.memory_space<smem>>) -> (i32, i32, i32, i32) {
    %c0_i32 = arith.constant 0 : i32
    %c0_i32_0 = arith.constant 0 : i32
    %c0_i32_1 = arith.constant 0 : i32
    %c0_i32_2 = arith.constant 0 : i32
    return %arg0, %c0_i32, %c0_i32_0, %c0_i32_1 : i32, i32, i32, i32
  }
  func.func @transform_4(%arg0: i32, %arg1: memref<8xi32, #tpu.memory_space<smem>>) -> (i32, i32) {
    %c0_i32 = arith.constant 0 : i32
    %c0_i32_0 = arith.constant 0 : i32
    %c0_i32_1 = arith.constant 0 : i32
    return %c0_i32, %c0_i32_0 : i32, i32
  }
  func.func @transform_5(%arg0: i32, %arg1: memref<8xi32, #tpu.memory_space<smem>>) -> (i32, i32) {
    %c0_i32 = arith.constant 0 : i32
    %c0_i32_0 = arith.constant 0 : i32
    %c0_i32_1 = arith.constant 0 : i32
    return %c0_i32, %c0_i32_0 : i32, i32
  }
  func.func @transform_6(%arg0: i32, %arg1: memref<8xi32, #tpu.memory_space<smem>>) -> (i32, i32) {
    %c0_i32 = arith.constant 0 : i32
    %c0_i32_0 = arith.constant 0 : i32
    %c0_i32_1 = arith.constant 0 : i32
    return %c0_i32, %c0_i32_0 : i32, i32
  }
  func.func @transform_7(%arg0: i32, %arg1: memref<8xi32, #tpu.memory_space<smem>>) -> (i32, i32) {
    %c0_i32 = arith.constant 0 : i32
    %c0_i32_0 = arith.constant 0 : i32
    %c0_i32_1 = arith.constant 0 : i32
    return %c0_i32, %c0_i32_0 : i32, i32
  }
  func.func @transform_8(%arg0: i32, %arg1: memref<8xi32, #tpu.memory_space<smem>>) -> (i32, i32) {
    %c0_i32 = arith.constant 0 : i32
    %c0_i32_0 = arith.constant 0 : i32
    %c0_i32_1 = arith.constant 0 : i32
    return %c0_i32, %c0_i32_0 : i32, i32
  }
  func.func @transform_9(%arg0: i32, %arg1: memref<8xi32, #tpu.memory_space<smem>>) -> (i32, i32) {
    %c0_i32 = arith.constant 0 : i32
    %c0_i32_0 = arith.constant 0 : i32
    %c0_i32_1 = arith.constant 0 : i32
    return %c0_i32, %c0_i32_0 : i32, i32
  }
  func.func @transform_10(%arg0: i32, %arg1: memref<8xi32, #tpu.memory_space<smem>>) -> (i32, i32) {
    %c0_i32 = arith.constant 0 : i32
    %c0_i32_0 = arith.constant 0 : i32
    %c0_i32_1 = arith.constant 0 : i32
    return %c0_i32, %c0_i32_0 : i32, i32
  }
  func.func @transform_11(%arg0: i32, %arg1: memref<8xi32, #tpu.memory_space<smem>>) -> (i32, i32) {
    %c0_i32 = arith.constant 0 : i32
    %c0_i32_0 = arith.constant 0 : i32
    %c0_i32_1 = arith.constant 0 : i32
    return %c0_i32, %c0_i32_0 : i32, i32
  }
  func.func @transform_12(%arg0: i32, %arg1: memref<8xi32, #tpu.memory_space<smem>>) -> (i32, i32) {
    %c0_i32 = arith.constant 0 : i32
    %c0_i32_0 = arith.constant 0 : i32
    %c0_i32_1 = arith.constant 0 : i32
    return %c0_i32, %c0_i32_0 : i32, i32
  }
  func.func @transform_13(%arg0: i32, %arg1: memref<8xi32, #tpu.memory_space<smem>>) -> (i32, i32) {
    %c0_i32 = arith.constant 0 : i32
    %c0_i32_0 = arith.constant 0 : i32
    %c0_i32_1 = arith.constant 0 : i32
    return %c0_i32, %c0_i32_0 : i32, i32
  }
  func.func @transform_14(%arg0: i32, %arg1: memref<8xi32, #tpu.memory_space<smem>>) -> (i32, i32) {
    %c0_i32 = arith.constant 0 : i32
    %c0_i32_0 = arith.constant 0 : i32
    %c0_i32_1 = arith.constant 0 : i32
    return %c0_i32, %c0_i32_0 : i32, i32
  }
  func.func @transform_15(%arg0: i32, %arg1: memref<8xi32, #tpu.memory_space<smem>>) -> (i32, i32) {
    %c0_i32 = arith.constant 0 : i32
    %c0_i32_0 = arith.constant 0 : i32
    %c0_i32_1 = arith.constant 0 : i32
    return %c0_i32, %c0_i32_0 : i32, i32
  }
  func.func @transform_16(%arg0: i32, %arg1: memref<8xi32, #tpu.memory_space<smem>>) -> (i32, i32) {
    %c0_i32 = arith.constant 0 : i32
    %c0_i32_0 = arith.constant 0 : i32
    %c0_i32_1 = arith.constant 0 : i32
    return %c0_i32, %c0_i32_0 : i32, i32
  }
  func.func @transform_17(%arg0: i32, %arg1: memref<8xi32, #tpu.memory_space<smem>>) -> (i32, i32) {
    %c0_i32 = arith.constant 0 : i32
    %c0_i32_0 = arith.constant 0 : i32
    %c0_i32_1 = arith.constant 0 : i32
    return %c0_i32, %c0_i32_0 : i32, i32
  }
  func.func @transform_18(%arg0: i32, %arg1: memref<8xi32, #tpu.memory_space<smem>>) -> (i32, i32) {
    %c0_i32 = arith.constant 0 : i32
    %c0_i32_0 = arith.constant 0 : i32
    %c0_i32_1 = arith.constant 0 : i32
    return %c0_i32, %c0_i32_0 : i32, i32
  }
  func.func @transform_19(%arg0: i32, %arg1: memref<8xi32, #tpu.memory_space<smem>>) -> (i32, i32) {
    %c0_i32 = arith.constant 0 : i32
    %c0_i32_0 = arith.constant 0 : i32
    %c0_i32_1 = arith.constant 0 : i32
    return %c0_i32, %c0_i32_0 : i32, i32
  }
  func.func @transform_20(%arg0: i32, %arg1: memref<8xi32, #tpu.memory_space<smem>>) -> (i32, i32) {
    %c0_i32 = arith.constant 0 : i32
    %c0_i32_0 = arith.constant 0 : i32
    %c0_i32_1 = arith.constant 0 : i32
    return %c0_i32, %c0_i32_0 : i32, i32
  }
  func.func @transform_21(%arg0: i32, %arg1: memref<8xi32, #tpu.memory_space<smem>>) -> (i32, i32) {
    %c0_i32 = arith.constant 0 : i32
    %c0_i32_0 = arith.constant 0 : i32
    %c0_i32_1 = arith.constant 0 : i32
    return %c0_i32, %c0_i32_0 : i32, i32
  }
  func.func @transform_22(%arg0: i32, %arg1: memref<8xi32, #tpu.memory_space<smem>>) -> (i32, i32) {
    %c0_i32 = arith.constant 0 : i32
    %c0_i32_0 = arith.constant 0 : i32
    %c0_i32_1 = arith.constant 0 : i32
    return %c0_i32, %c0_i32_0 : i32, i32
  }
  func.func @transform_23(%arg0: i32, %arg1: memref<8xi32, #tpu.memory_space<smem>>) -> (i32, i32) {
    %c0_i32 = arith.constant 0 : i32
    %c0_i32_0 = arith.constant 0 : i32
    %c0_i32_1 = arith.constant 0 : i32
    return %c0_i32, %c0_i32_0 : i32, i32
  }
  func.func @transform_24(%arg0: i32, %arg1: memref<8xi32, #tpu.memory_space<smem>>) -> (i32, i32) {
    %c0_i32 = arith.constant 0 : i32
    %c0_i32_0 = arith.constant 0 : i32
    %c0_i32_1 = arith.constant 0 : i32
    return %c0_i32, %c0_i32_0 : i32, i32
  }
  func.func @transform_25(%arg0: i32, %arg1: memref<8xi32, #tpu.memory_space<smem>>) -> (i32, i32) {
    %c0_i32 = arith.constant 0 : i32
    %c0_i32_0 = arith.constant 0 : i32
    %c0_i32_1 = arith.constant 0 : i32
    return %c0_i32, %c0_i32_0 : i32, i32
  }
  func.func @transform_26(%arg0: i32, %arg1: memref<8xi32, #tpu.memory_space<smem>>) -> (i32, i32) {
    %c0_i32 = arith.constant 0 : i32
    %c0_i32_0 = arith.constant 0 : i32
    %c0_i32_1 = arith.constant 0 : i32
    return %c0_i32, %c0_i32_0 : i32, i32
  }
  func.func @transform_27(%arg0: i32, %arg1: memref<8xi32, #tpu.memory_space<smem>>) -> (i32, i32) {
    %c0_i32 = arith.constant 0 : i32
    %c0_i32_0 = arith.constant 0 : i32
    %c0_i32_1 = arith.constant 0 : i32
    return %c0_i32, %c0_i32_0 : i32, i32
  }
  func.func @transform_28(%arg0: i32, %arg1: memref<8xi32, #tpu.memory_space<smem>>) -> (i32, i32) {
    %c0_i32 = arith.constant 0 : i32
    %c0_i32_0 = arith.constant 0 : i32
    %c0_i32_1 = arith.constant 0 : i32
    return %c0_i32, %c0_i32_0 : i32, i32
  }
  func.func @transform_29(%arg0: i32, %arg1: memref<8xi32, #tpu.memory_space<smem>>) -> (i32, i32) {
    %c0_i32 = arith.constant 0 : i32
    %c0_i32_0 = arith.constant 0 : i32
    %c0_i32_1 = arith.constant 0 : i32
    return %c0_i32, %c0_i32_0 : i32, i32
  }
  func.func @transform_30(%arg0: i32, %arg1: memref<8xi32, #tpu.memory_space<smem>>) -> (i32, i32) {
    %c0_i32 = arith.constant 0 : i32
    %c0_i32_0 = arith.constant 0 : i32
    %c0_i32_1 = arith.constant 0 : i32
    return %c0_i32, %c0_i32_0 : i32, i32
  }
  func.func @transform_31(%arg0: i32, %arg1: memref<8xi32, #tpu.memory_space<smem>>) -> (i32, i32) {
    %c0_i32 = arith.constant 0 : i32
    %c0_i32_0 = arith.constant 0 : i32
    %c0_i32_1 = arith.constant 0 : i32
    return %c0_i32, %c0_i32_0 : i32, i32
  }
  func.func @transform_32(%arg0: i32, %arg1: memref<8xi32, #tpu.memory_space<smem>>) -> (i32, i32, i32) {
    %c0_i32 = arith.constant 0 : i32
    %c0_i32_0 = arith.constant 0 : i32
    %c0_i32_1 = arith.constant 0 : i32
    return %arg0, %c0_i32, %c0_i32_0 : i32, i32, i32
  }
  func.func @transform_33(%arg0: i32, %arg1: memref<8xi32, #tpu.memory_space<smem>>) -> (i32, i32, i32) {
    %c0_i32 = arith.constant 0 : i32
    %c0_i32_0 = arith.constant 0 : i32
    %c0_i32_1 = arith.constant 0 : i32
    return %arg0, %c0_i32, %c0_i32_0 : i32, i32, i32
  }
}

module attributes {stable_mosaic.version = 11 : i64} {
  func.func @kernel(%arg0: memref<16x20xf32, #tpu.memory_space<vmem>>, %arg1: memref<20x32xf32, #tpu.memory_space<vmem>>, %arg2: memref<1x32xf32, #tpu.memory_space<vmem>>, %arg3: memref<1x32xf32, #tpu.memory_space<vmem>>, %arg4: memref<1x32xf32, #tpu.memory_space<vmem>>, %arg5: memref<16x32xf32, #tpu.memory_space<vmem>>, %arg6: memref<16x32xf32, #tpu.memory_space<vmem>>) attributes {dimension_semantics = [], scalar_prefetch = 0 : i64, scratch_operands = 0 : i64, tpu.core_type = #tpu.core_type<tc>} {
    %c0 = arith.constant 0 : index
    %c0_0 = arith.constant 0 : index
    %0 = vector.load %arg0[%c0, %c0_0] : memref<16x20xf32, #tpu.memory_space<vmem>>, vector<16x20xf32>
    %c0_1 = arith.constant 0 : index
    %c0_2 = arith.constant 0 : index
    %1 = vector.load %arg1[%c0_1, %c0_2] : memref<20x32xf32, #tpu.memory_space<vmem>>, vector<20x32xf32>
    %cst = arith.constant dense<0.000000e+00> : vector<16x32xf32>
    %2 = tpu.matmul %0, %1, %cst {dimension_numbers = #tpu.dot_dimension_numbers<[1], [0], [0], [1], [0, 0, 1, 1], [], []>} : vector<16x20xf32>, vector<20x32xf32>, vector<16x32xf32> -> vector<16x32xf32>
    %c0_3 = arith.constant 0 : index
    %c0_4 = arith.constant 0 : index
    %3 = vector.load %arg2[%c0_3, %c0_4] : memref<1x32xf32, #tpu.memory_space<vmem>>, vector<1x32xf32>
    %4 = vector.broadcast %3 : vector<1x32xf32> to vector<16x32xf32>
    %5 = arith.addf %2, %4 : vector<16x32xf32>
    %cst_5 = arith.constant dense<0.000000e+00> : vector<32xf32>
    %6 = vector.multi_reduction <add>, %5, %cst_5 [0] : vector<16x32xf32> to vector<32xf32>
    %7 = vector.shape_cast %6 : vector<32xf32> to vector<1x32xf32>
    %cst_6 = arith.constant 6.250000e-02 : f32
    %8 = vector.broadcast %cst_6 : f32 to vector<1x32xf32>
    %9 = arith.mulf %7, %8 : vector<1x32xf32>
    %10 = vector.broadcast %9 : vector<1x32xf32> to vector<16x32xf32>
    %11 = arith.subf %5, %10 : vector<16x32xf32>
    %12 = arith.mulf %11, %11 : vector<16x32xf32>
    %cst_7 = arith.constant dense<0.000000e+00> : vector<32xf32>
    %13 = vector.multi_reduction <add>, %12, %cst_7 [0] : vector<16x32xf32> to vector<32xf32>
    %14 = vector.shape_cast %13 : vector<32xf32> to vector<1x32xf32>
    %cst_8 = arith.constant 6.250000e-02 : f32
    %15 = vector.broadcast %cst_8 : f32 to vector<1x32xf32>
    %16 = arith.mulf %14, %15 : vector<1x32xf32>
    %cst_9 = arith.constant 9.99999974E-6 : f32
    %17 = vector.broadcast %cst_9 : f32 to vector<1x32xf32>
    %18 = arith.addf %16, %17 : vector<1x32xf32>
    %19 = math.rsqrt %18 : vector<1x32xf32>
    %20 = vector.broadcast %19 : vector<1x32xf32> to vector<16x32xf32>
    %21 = arith.mulf %11, %20 : vector<16x32xf32>
    %c0_10 = arith.constant 0 : index
    %c0_11 = arith.constant 0 : index
    %22 = vector.load %arg3[%c0_10, %c0_11] : memref<1x32xf32, #tpu.memory_space<vmem>>, vector<1x32xf32>
    %23 = vector.broadcast %22 : vector<1x32xf32> to vector<16x32xf32>
    %24 = arith.mulf %21, %23 : vector<16x32xf32>
    %c0_12 = arith.constant 0 : index
    %c0_13 = arith.constant 0 : index
    %25 = vector.load %arg4[%c0_12, %c0_13] : memref<1x32xf32, #tpu.memory_space<vmem>>, vector<1x32xf32>
    %26 = vector.broadcast %25 : vector<1x32xf32> to vector<16x32xf32>
    %27 = arith.addf %24, %26 : vector<16x32xf32>
    %28 = math.tanh %27 : vector<16x32xf32>
    %c0_14 = arith.constant 0 : index
    %c0_15 = arith.constant 0 : index
    %29 = vector.load %arg5[%c0_14, %c0_15] : memref<16x32xf32, #tpu.memory_space<vmem>>, vector<16x32xf32>
    %30 = arith.mulf %28, %29 : vector<16x32xf32>
    %c0_16 = arith.constant 0 : index
    %c0_17 = arith.constant 0 : index
    %31 = vector.load %arg6[%c0_16, %c0_17] : memref<16x32xf32, #tpu.memory_space<vmem>>, vector<16x32xf32>
    tpu.vector_store %arg6[%c0_16, %c0_17], %30 {strides = array<i32>} : memref<16x32xf32, #tpu.memory_space<vmem>>, vector<16x32xf32>,
    return
  }
}

module attributes {stable_mosaic.version = 11 : i64} {
  func.func @kernel(%arg0: memref<16x160xf32, #tpu.memory_space<vmem>>, %arg1: memref<160x32xf32, #tpu.memory_space<vmem>>, %arg2: memref<1x32xf32, #tpu.memory_space<vmem>>, %arg3: memref<1x32xf32, #tpu.memory_space<vmem>>, %arg4: memref<1x32xf32, #tpu.memory_space<vmem>>, %arg5: memref<16x32xf32, #tpu.memory_space<vmem>>, %arg6: memref<16x32xf32, #tpu.memory_space<vmem>>) attributes {dimension_semantics = [], scalar_prefetch = 0 : i64, scratch_operands = 0 : i64, tpu.core_type = #tpu.core_type<tc>} {
    %c0 = arith.constant 0 : index
    %c0_0 = arith.constant 0 : index
    %0 = vector.load %arg0[%c0, %c0_0] : memref<16x160xf32, #tpu.memory_space<vmem>>, vector<16x160xf32>
    %c0_1 = arith.constant 0 : index
    %c0_2 = arith.constant 0 : index
    %1 = vector.load %arg1[%c0_1, %c0_2] : memref<160x32xf32, #tpu.memory_space<vmem>>, vector<160x32xf32>
    %cst = arith.constant dense<0.000000e+00> : vector<16x32xf32>
    %2 = tpu.matmul %0, %1, %cst {dimension_numbers = #tpu.dot_dimension_numbers<[1], [0], [0], [1], [0, 0, 1, 1], [], []>} : vector<16x160xf32>, vector<160x32xf32>, vector<16x32xf32> -> vector<16x32xf32>
    %c0_3 = arith.constant 0 : index
    %c0_4 = arith.constant 0 : index
    %3 = vector.load %arg2[%c0_3, %c0_4] : memref<1x32xf32, #tpu.memory_space<vmem>>, vector<1x32xf32>
    %4 = vector.broadcast %3 : vector<1x32xf32> to vector<16x32xf32>
    %5 = arith.addf %2, %4 : vector<16x32xf32>
    %cst_5 = arith.constant dense<0.000000e+00> : vector<32xf32>
    %6 = vector.multi_reduction <add>, %5, %cst_5 [0] : vector<16x32xf32> to vector<32xf32>
    %7 = vector.shape_cast %6 : vector<32xf32> to vector<1x32xf32>
    %cst_6 = arith.constant 6.250000e-02 : f32
    %8 = vector.broadcast %cst_6 : f32 to vector<1x32xf32>
    %9 = arith.mulf %7, %8 : vector<1x32xf32>
    %10 = vector.broadcast %9 : vector<1x32xf32> to vector<16x32xf32>
    %11 = arith.subf %5, %10 : vector<16x32xf32>
    %12 = arith.mulf %11, %11 : vector<16x32xf32>
    %cst_7 = arith.constant dense<0.000000e+00> : vector<32xf32>
    %13 = vector.multi_reduction <add>, %12, %cst_7 [0] : vector<16x32xf32> to vector<32xf32>
    %14 = vector.shape_cast %13 : vector<32xf32> to vector<1x32xf32>
    %cst_8 = arith.constant 6.250000e-02 : f32
    %15 = vector.broadcast %cst_8 : f32 to vector<1x32xf32>
    %16 = arith.mulf %14, %15 : vector<1x32xf32>
    %cst_9 = arith.constant 9.99999974E-6 : f32
    %17 = vector.broadcast %cst_9 : f32 to vector<1x32xf32>
    %18 = arith.addf %16, %17 : vector<1x32xf32>
    %19 = math.rsqrt %18 : vector<1x32xf32>
    %20 = vector.broadcast %19 : vector<1x32xf32> to vector<16x32xf32>
    %21 = arith.mulf %11, %20 : vector<16x32xf32>
    %c0_10 = arith.constant 0 : index
    %c0_11 = arith.constant 0 : index
    %22 = vector.load %arg3[%c0_10, %c0_11] : memref<1x32xf32, #tpu.memory_space<vmem>>, vector<1x32xf32>
    %23 = vector.broadcast %22 : vector<1x32xf32> to vector<16x32xf32>
    %24 = arith.mulf %21, %23 : vector<16x32xf32>
    %c0_12 = arith.constant 0 : index
    %c0_13 = arith.constant 0 : index
    %25 = vector.load %arg4[%c0_12, %c0_13] : memref<1x32xf32, #tpu.memory_space<vmem>>, vector<1x32xf32>
    %26 = vector.broadcast %25 : vector<1x32xf32> to vector<16x32xf32>
    %27 = arith.addf %24, %26 : vector<16x32xf32>
    %28 = math.tanh %27 : vector<16x32xf32>
    %c0_14 = arith.constant 0 : index
    %c0_15 = arith.constant 0 : index
    %29 = vector.load %arg5[%c0_14, %c0_15] : memref<16x32xf32, #tpu.memory_space<vmem>>, vector<16x32xf32>
    %30 = arith.mulf %28, %29 : vector<16x32xf32>
    %c0_16 = arith.constant 0 : index
    %c0_17 = arith.constant 0 : index
    %31 = vector.load %arg6[%c0_16, %c0_17] : memref<16x32xf32, #tpu.memory_space<vmem>>, vector<16x32xf32>
    tpu.vector_store %arg6[%c0_16, %c0_17], %30 {strides = array<i32>} : memref<16x32xf32, #tpu.memory_space<vmem>>, vector<16x32xf32>,
    return
  }
}

module attributes {stable_mosaic.version = 11 : i64} {
  func.func @kernel(%arg0: memref<16x160xf32, #tpu.memory_space<vmem>>, %arg1: memref<160x4xf32, #tpu.memory_space<vmem>>, %arg2: memref<1x4xf32, #tpu.memory_space<vmem>>, %arg3: memref<1x4xf32, #tpu.memory_space<vmem>>, %arg4: memref<1x4xf32, #tpu.memory_space<vmem>>, %arg5: memref<16x4xf32, #tpu.memory_space<vmem>>, %arg6: memref<16x4xf32, #tpu.memory_space<vmem>>) attributes {dimension_semantics = [], scalar_prefetch = 0 : i64, scratch_operands = 0 : i64, tpu.core_type = #tpu.core_type<tc>} {
    %c0 = arith.constant 0 : index
    %c0_0 = arith.constant 0 : index
    %0 = vector.load %arg0[%c0, %c0_0] : memref<16x160xf32, #tpu.memory_space<vmem>>, vector<16x160xf32>
    %c0_1 = arith.constant 0 : index
    %c0_2 = arith.constant 0 : index
    %1 = vector.load %arg1[%c0_1, %c0_2] : memref<160x4xf32, #tpu.memory_space<vmem>>, vector<160x4xf32>
    %cst = arith.constant dense<0.000000e+00> : vector<16x4xf32>
    %2 = tpu.matmul %0, %1, %cst {dimension_numbers = #tpu.dot_dimension_numbers<[1], [0], [0], [1], [0, 0, 1, 1], [], []>} : vector<16x160xf32>, vector<160x4xf32>, vector<16x4xf32> -> vector<16x4xf32>
    %c0_3 = arith.constant 0 : index
    %c0_4 = arith.constant 0 : index
    %3 = vector.load %arg2[%c0_3, %c0_4] : memref<1x4xf32, #tpu.memory_space<vmem>>, vector<1x4xf32>
    %4 = vector.broadcast %3 : vector<1x4xf32> to vector<16x4xf32>
    %5 = arith.addf %2, %4 : vector<16x4xf32>
    %cst_5 = arith.constant dense<0.000000e+00> : vector<4xf32>
    %6 = vector.multi_reduction <add>, %5, %cst_5 [0] : vector<16x4xf32> to vector<4xf32>
    %7 = vector.shape_cast %6 : vector<4xf32> to vector<1x4xf32>
    %cst_6 = arith.constant 6.250000e-02 : f32
    %8 = vector.broadcast %cst_6 : f32 to vector<1x4xf32>
    %9 = arith.mulf %7, %8 : vector<1x4xf32>
    %10 = vector.broadcast %9 : vector<1x4xf32> to vector<16x4xf32>
    %11 = arith.subf %5, %10 : vector<16x4xf32>
    %12 = arith.mulf %11, %11 : vector<16x4xf32>
    %cst_7 = arith.constant dense<0.000000e+00> : vector<4xf32>
    %13 = vector.multi_reduction <add>, %12, %cst_7 [0] : vector<16x4xf32> to vector<4xf32>
    %14 = vector.shape_cast %13 : vector<4xf32> to vector<1x4xf32>
    %cst_8 = arith.constant 6.250000e-02 : f32
    %15 = vector.broadcast %cst_8 : f32 to vector<1x4xf32>
    %16 = arith.mulf %14, %15 : vector<1x4xf32>
    %cst_9 = arith.constant 9.99999974E-6 : f32
    %17 = vector.broadcast %cst_9 : f32 to vector<1x4xf32>
    %18 = arith.addf %16, %17 : vector<1x4xf32>
    %19 = math.rsqrt %18 : vector<1x4xf32>
    %20 = vector.broadcast %19 : vector<1x4xf32> to vector<16x4xf32>
    %21 = arith.mulf %11, %20 : vector<16x4xf32>
    %c0_10 = arith.constant 0 : index
    %c0_11 = arith.constant 0 : index
    %22 = vector.load %arg3[%c0_10, %c0_11] : memref<1x4xf32, #tpu.memory_space<vmem>>, vector<1x4xf32>
    %23 = vector.broadcast %22 : vector<1x4xf32> to vector<16x4xf32>
    %24 = arith.mulf %21, %23 : vector<16x4xf32>
    %c0_12 = arith.constant 0 : index
    %c0_13 = arith.constant 0 : index
    %25 = vector.load %arg4[%c0_12, %c0_13] : memref<1x4xf32, #tpu.memory_space<vmem>>, vector<1x4xf32>
    %26 = vector.broadcast %25 : vector<1x4xf32> to vector<16x4xf32>
    %27 = arith.addf %24, %26 : vector<16x4xf32>
    %c0_14 = arith.constant 0 : index
    %c0_15 = arith.constant 0 : index
    %28 = vector.load %arg5[%c0_14, %c0_15] : memref<16x4xf32, #tpu.memory_space<vmem>>, vector<16x4xf32>
    %29 = arith.mulf %27, %28 : vector<16x4xf32>
    %c0_16 = arith.constant 0 : index
    %c0_17 = arith.constant 0 : index
    %30 = vector.load %arg6[%c0_16, %c0_17] : memref<16x4xf32, #tpu.memory_space<vmem>>, vector<16x4xf32>
    tpu.vector_store %arg6[%c0_16, %c0_17], %29 {strides = array<i32>} : memref<16x4xf32, #tpu.memory_space<vmem>>, vector<16x4xf32>,
    return
  }
}

</mosaic_0001>

<llo_original>
// kernel: squeeze.52
$region0: #{squeeze.52}
  %s0 = inlined_call_operand.vmem [shape: f32[1,8,8,16], index: 0, kind: input, shape index: {}]
  %s1 = inlined_call_operand.vmem [shape: f32[8,128], index: 1, kind: output, shape index: {}]
  %v2 = vld [vmem:[%s0] ss:$8 sm:$0xf]
  %v3 = vld [vmem:[%s0] ss:$8 sm:$0xf0]
  %vm4 = vcmask 1047556
  %v5 = vsel %vm4, %v3, %v2
  %vm6 = vcmask 130048
  %7 = vst.msk [vmem:[%s1] sm:$0xff] %vm6, %v5
  %s8 = scalar_lea.vmem %s0, 7
  %v9 = vld [vmem:[%s8] ss:$8 sm:$0xf]
  %s10 = scalar_lea.vmem %s0, 7
  %v11 = vld [vmem:[%s10] ss:$8 sm:$0xf0]
  %vm12 = vcmask 1047556
  %v13 = vsel %vm12, %v11, %v9
  %14 = vrot.lane.b32.xlu0 %v13, 112
  %v15 = vpop.permute.xlu0 %14
  %vm16 = vcmask 1048448
  %17 = vst.msk [vmem:[%s1] sm:$0xff] %vm16, %v15
  %s18 = scalar_lea.vmem %s0, 6
  %v19 = vld [vmem:[%s18] ss:$8 sm:$0xf]
  %s20 = scalar_lea.vmem %s0, 6
  %v21 = vld [vmem:[%s20] ss:$8 sm:$0xf0]
  %vm22 = vcmask 1047556
  %v23 = vsel %vm22, %v21, %v19
  %24 = vrot.lane.b32.xlu0 %v23, 96
  %v25 = vpop.permute.xlu0 %24
  %vm26 = vcmask 917248
  %27 = vst.msk [vmem:[%s1] sm:$0xff] %vm26, %v25
  %s28 = scalar_lea.vmem %s0, 5
  %v29 = vld [vmem:[%s28] ss:$8 sm:$0xf]
  %s30 = scalar_lea.vmem %s0, 5
  %v31 = vld [vmem:[%s30] ss:$8 sm:$0xf0]
  %vm32 = vcmask 1047556
  %v33 = vsel %vm32, %v31, %v29
  %34 = vrot.lane.b32.xlu0 %v33, 80
  %v35 = vpop.permute.xlu0 %34
  %vm36 = vcmask 786048
  %37 = vst.msk [vmem:[%s1] sm:$0xff] %vm36, %v35
  %s38 = scalar_lea.vmem %s0, 4
  %v39 = vld [vmem:[%s38] ss:$8 sm:$0xf]
  %s40 = scalar_lea.vmem %s0, 4
  %v41 = vld [vmem:[%s40] ss:$8 sm:$0xf0]
  %vm42 = vcmask 1047556
  %v43 = vsel %vm42, %v41, %v39
  %44 = vrot.lane.b32.xlu0 %v43, 64
  %v45 = vpop.permute.xlu0 %44
  %vm46 = vcmask 654848
  %47 = vst.msk [vmem:[%s1] sm:$0xff] %vm46, %v45
  %s48 = scalar_lea.vmem %s0, 3
  %v49 = vld [vmem:[%s48] ss:$8 sm:$0xf]
  %s50 = scalar_lea.vmem %s0, 3
  %v51 = vld [vmem:[%s50] ss:$8 sm:$0xf0]
  %vm52 = vcmask 1047556
  %v53 = vsel %vm52, %v51, %v49
  %54 = vrot.lane.b32.xlu0 %v53, 48
  %v55 = vpop.permute.xlu0 %54
  %vm56 = vcmask 523648
  %57 = vst.msk [vmem:[%s1] sm:$0xff] %vm56, %v55
  %s58 = scalar_lea.vmem %s0, 2
  %v59 = vld [vmem:[%s58] ss:$8 sm:$0xf]
  %s60 = scalar_lea.vmem %s0, 2
  %v61 = vld [vmem:[%s60] ss:$8 sm:$0xf0]
  %vm62 = vcmask 1047556
  %v63 = vsel %vm62, %v61, %v59
  %64 = vrot.lane.b32.xlu0 %v63, 32
  %v65 = vpop.permute.xlu0 %64
  %vm66 = vcmask 392448
  %67 = vst.msk [vmem:[%s1] sm:$0xff] %vm66, %v65
  %s68 = scalar_lea.vmem %s0, 1
  %v69 = vld [vmem:[%s68] ss:$8 sm:$0xf]
  %s70 = scalar_lea.vmem %s0, 1
  %v71 = vld [vmem:[%s70] ss:$8 sm:$0xf0]
  %vm72 = vcmask 1047556
  %v73 = vsel %vm72, %v71, %v69
  %74 = vrot.lane.b32.xlu0 %v73, 16
  %v75 = vpop.permute.xlu0 %74
  %vm76 = vcmask 261248
  %77 = vst.msk [vmem:[%s1] sm:$0xff] %vm76, %v75

// kernel: _lambda_.5
$region0: #{_lambda_.5}
  #allocation0 [shape = 'u32[]', space=smem, size = 0x4, offset = 0x4, fixed_abs, tag = 'smem constant byte address 0x4 - core index']
  #allocation1 [shape = 'u32[144,128]{1,0:T(1,128)}', space=vmem, size = 0x12000, scoped, tag = 'internal scratch']
  %s0 = inlined_call_operand.vmem [shape: f32[16,4], index: 0, kind: input, shape index: {}]
  %s1 = inlined_call_operand.vmem [shape: f32[4,32], index: 1, kind: input, shape index: {}]
  %s2 = inlined_call_operand.vmem [shape: f32[32,32], index: 2, kind: input, shape index: {}]
  %s3 = inlined_call_operand.vmem [shape: f32[16,32], index: 3, kind: input, shape index: {}]
  %s4 = inlined_call_operand.vmem [shape: f32[16,32], index: 4, kind: input, shape index: {}]
  %s5 = inlined_call_operand.vmem [shape: f32[16,32], index: 5, kind: output, shape index: {}]
  %s6 = sld [smem:[#allocation0]]
  $region30: #{_lambda_.5} parent=0
    _
  %s8 = ssub.s32 1, %s6
  %s9 = scalar_select 0, %s8, %s6
  // Predicated region
  $region2: #{_lambda_.5} parent=0 // pred_check
    _
  $region3: #{_lambda_.5} parent=0 // pred_check_branch
    %11 = sbr.rel (0) target = $region5
  $region4: #{_lambda_.5} parent=0 // pred_region
    _
  $region5: #{_lambda_.5} parent=0 // pred_fallthru
    _
  // Predicated region
  $region6: #{_lambda_.5} parent=0 // pred_check
    _
  $region7: #{_lambda_.5} parent=0 // pred_check_branch
    %13 = sbr.rel (0) target = $region9
  $region8: #{_lambda_.5} parent=0 // pred_region
    _
  $region9: #{_lambda_.5} parent=0 // pred_fallthru
    _
  // Predicated region
  $region10: #{_lambda_.5} parent=0 // pred_check
    _
  $region11: #{_lambda_.5} parent=0 // pred_check_branch
    %15 = sbr.rel (0) target = $region13
  $region12: #{_lambda_.5} parent=0 // pred_region
    _
  $region13: #{_lambda_.5} parent=0 // pred_fallthru
    _
  // Predicated region
  $region14: #{_lambda_.5} parent=0 // pred_check
    _
  $region15: #{_lambda_.5} parent=0 // pred_check_branch
    %17 = sbr.rel (0) target = $region17
  $region16: #{_lambda_.5} parent=0 // pred_region
    _
  $region17: #{_lambda_.5} parent=0 // pred_fallthru
    _
  // Predicated region
  $region18: #{_lambda_.5} parent=0 // pred_check
    _
  $region19: #{_lambda_.5} parent=0 // pred_check_branch
    %19 = sbr.rel (0) target = $region21
  $region20: #{_lambda_.5} parent=0 // pred_region
    _
  $region21: #{_lambda_.5} parent=0 // pred_fallthru
    _
  %v20 = vld [vmem:[%s0] sm:$0xff]
  %v21 = vld [vmem:[%s0 + $0x8] sm:$0xff]
  %v22 = vld [vmem:[%s1] sm:$0xf]
  %vm23 = vcmask 31744
  %v25 = vsel %vm23, %v20, 0
  %v28 = vsel %vm23, %v21, 0
  %vm30 = vcmask 1043456
  %v32 = vsel %vm30, %v22, 0
  %34 = vmatprep.subr.mxu0 0.0
  %35 = vmatpush1.msra.mxu0 0.0
  %36 = vmatprep.subr.mxu0 0.0
  %37 = vmatpush1.msra.mxu0 0.0
  %38 = vmatprep.subr.mxu0 0.0
  %39 = vmatpush1.msra.mxu0 0.0
  %40 = vmatprep.subr.mxu0 0.0
  %41 = vmatpush1.msra.mxu0 0.0
  %42 = vmatprep.subr.mxu0 0.0
  %43 = vmatpush1.msra.mxu0 0.0
  %44 = vmatprep.subr.mxu0 0.0
  %45 = vmatpush1.msra.mxu0 0.0
  %46 = vmatprep.subr.mxu0 0.0
  %47 = vmatpush1.msra.mxu0 0.0
  %48 = vmatprep.subr.mxu0 0.0
  %49 = vmatpush1.msra.mxu0 0.0
  %50 = vmatprep.subr.mxu0 0.0
  %51 = vmatpush1.msra.mxu0 0.0
  %52 = vmatprep.subr.mxu0 0.0
  %53 = vmatpush1.msra.mxu0 0.0
  %54 = vmatprep.subr.mxu0 0.0
  %55 = vmatpush1.msra.mxu0 0.0
  %56 = vmatprep.subr.mxu0 0.0
  %57 = vmatpush1.msra.mxu0 0.0
  %58 = vmatprep.subr.mxu0 0.0
  %59 = vmatpush1.msra.mxu0 0.0
  %60 = vmatprep.subr.mxu0 0.0
  %61 = vmatpush1.msra.mxu0 0.0
  %62 = vmatprep.subr.mxu0 0.0
  %63 = vmatpush1.msra.mxu0 0.0
  %64 = vmatprep.subr.mxu0 0.0
  %65 = vmatpush1.msra.mxu0 %v32
  %66 = vmatprep.subr.mxu0 0.0
  %67 = vmatpush2.msra.mxu0 0.0
  %68 = vmatprep.subr.mxu0 0.0
  %69 = vmatpush2.msra.mxu0 0.0
  %70 = vmatprep.subr.mxu0 0.0
  %71 = vmatpush2.msra.mxu0 0.0
  %72 = vmatprep.subr.mxu0 0.0
  %73 = vmatpush2.msra.mxu0 0.0
  %74 = vmatprep.subr.mxu0 0.0
  %75 = vmatpush2.msra.mxu0 0.0
  %76 = vmatprep.subr.mxu0 0.0
  %77 = vmatpush2.msra.mxu0 0.0
  %78 = vmatprep.subr.mxu0 0.0
  %79 = vmatpush2.msra.mxu0 0.0
  %80 = vmatprep.subr.mxu0 0.0
  %81 = vmatpush2.msra.mxu0 0.0
  %82 = vmatprep.subr.mxu0 0.0
  %83 = vmatpush2.msra.mxu0 0.0
  %84 = vmatprep.subr.mxu0 0.0
  %85 = vmatpush2.msra.mxu0 0.0
  %86 = vmatprep.subr.mxu0 0.0
  %87 = vmatpush2.msra.mxu0 0.0
  %88 = vmatprep.subr.mxu0 0.0
  %89 = vmatpush2.msra.mxu0 0.0
  %90 = vmatprep.subr.mxu0 0.0
  %91 = vmatpush2.msra.mxu0 0.0
  %92 = vmatprep.subr.mxu0 0.0
  %93 = vmatpush2.msra.mxu0 0.0
  %94 = vmatprep.subr.mxu0 0.0
  %95 = vmatpush2.msra.mxu0 0.0
  %96 = vmatprep.subr.mxu0 0.0
  %97 = vmatpush2.msra.mxu0 0.0
  %98 = vmatprep.mubr.f32.mxu0 0.0
  %99 = vmatmul.mubr.f32.gmra.mxu0 %v25
  %v100 = vpop.f32.mrf.mxu0
  %v101 = vadd.f32 0.0, %v100
  %v102 = vpop.f32.mrf.mxu0
  %103 = vmatprep.mubr.f32.mxu0 0.0
  %104 = vmatmul.mubr.f32.gmra.mxu0 %v28
  %v105 = vpop.f32.mrf.mxu0
  %v106 = vadd.f32 0.0, %v105
  %v107 = vpop.f32.mrf.mxu0
  %108 = vdwg.mxu0
  %v109 = vmax.f32 %v101, 0.0
  %v110 = vmax.f32 %v106, 0.0
  %v111 = vld [vmem:[%s3] sm:$0xff]
  %v112 = vld [vmem:[%s3 + $0x8] sm:$0xff]
  %v113 = vmul.f32 %v109, %v111
  %v114 = vmul.f32 %v110, %v112
  %v115 = vld [vmem:[%s2] sm:$0xff]
  %v116 = vld [vmem:[%s2 + $0x8] sm:$0xff]
  %v117 = vld [vmem:[%s2 + $0x10] sm:$0xff]
  %v118 = vld [vmem:[%s2 + $0x18] sm:$0xff]
  %vm119 = vcmask 261120
  %v121 = vsel %vm119, %v113, 0
  %v124 = vsel %vm119, %v114, 0
  %126 = vmatprep.subr.mxu0 0.0
  %127 = vmatpush1.msra.mxu0 0.0
  %128 = vmatprep.subr.mxu0 0.0
  %129 = vmatpush1.msra.mxu0 0.0
  %130 = vmatprep.subr.mxu0 0.0
  %131 = vmatpush1.msra.mxu0 0.0
  %132 = vmatprep.subr.mxu0 0.0
  %133 = vmatpush1.msra.mxu0 0.0
  %134 = vmatprep.subr.mxu0 0.0
  %135 = vmatpush1.msra.mxu0 0.0
  %136 = vmatprep.subr.mxu0 0.0
  %137 = vmatpush1.msra.mxu0 0.0
  %138 = vmatprep.subr.mxu0 0.0
  %139 = vmatpush1.msra.mxu0 0.0
  %140 = vmatprep.subr.mxu0 0.0
  %141 = vmatpush1.msra.mxu0 0.0
  %142 = vmatprep.subr.mxu0 0.0
  %143 = vmatpush1.msra.mxu0 0.0
  %144 = vmatprep.subr.mxu0 0.0
  %145 = vmatpush1.msra.mxu0 0.0
  %146 = vmatprep.subr.mxu0 0.0
  %147 = vmatpush1.msra.mxu0 0.0
  %148 = vmatprep.subr.mxu0 0.0
  %149 = vmatpush1.msra.mxu0 0.0
  %150 = vmatprep.subr.mxu0 0.0
  %151 = vmatpush1.msra.mxu0 %v118
  %152 = vmatprep.subr.mxu0 0.0
  %153 = vmatpush1.msra.mxu0 %v117
  %154 = vmatprep.subr.mxu0 0.0
  %155 = vmatpush1.msra.mxu0 %v116
  %156 = vmatprep.subr.mxu0 0.0
  %157 = vmatpush1.msra.mxu0 %v115
  %158 = vmatprep.subr.mxu0 0.0
  %159 = vmatpush2.msra.mxu0 0.0
  %160 = vmatprep.subr.mxu0 0.0
  %161 = vmatpush2.msra.mxu0 0.0
  %162 = vmatprep.subr.mxu0 0.0
  %163 = vmatpush2.msra.mxu0 0.0
  %164 = vmatprep.subr.mxu0 0.0
  %165 = vmatpush2.msra.mxu0 0.0
  %166 = vmatprep.subr.mxu0 0.0
  %167 = vmatpush2.msra.mxu0 0.0
  %168 = vmatprep.subr.mxu0 0.0
  %169 = vmatpush2.msra.mxu0 0.0
  %170 = vmatprep.subr.mxu0 0.0
  %171 = vmatpush2.msra.mxu0 0.0
  %172 = vmatprep.subr.mxu0 0.0
  %173 = vmatpush2.msra.mxu0 0.0
  %174 = vmatprep.subr.mxu0 0.0
  %175 = vmatpush2.msra.mxu0 0.0
  %176 = vmatprep.subr.mxu0 0.0
  %177 = vmatpush2.msra.mxu0 0.0
  %178 = vmatprep.subr.mxu0 0.0
  %179 = vmatpush2.msra.mxu0 0.0
  %180 = vmatprep.subr.mxu0 0.0
  %181 = vmatpush2.msra.mxu0 0.0
  %182 = vmatprep.subr.mxu0 0.0
  %183 = vmatpush2.msra.mxu0 0.0
  %184 = vmatprep.subr.mxu0 0.0
  %185 = vmatpush2.msra.mxu0 0.0
  %186 = vmatprep.subr.mxu0 0.0
  %187 = vmatpush2.msra.mxu0 0.0
  %188 = vmatprep.subr.mxu0 0.0
  %189 = vmatpush2.msra.mxu0 0.0
  %190 = vmatprep.mubr.f32.mxu0 0.0
  %191 = vmatmul.mubr.f32.gmra.mxu0 %v121
  %v192 = vpop.f32.mrf.mxu0
  %v193 = vadd.f32 0.0, %v192
  %v194 = vpop.f32.mrf.mxu0
  %195 = vmatprep.mubr.f32.mxu0 0.0
  %196 = vmatmul.mubr.f32.gmra.mxu0 %v124
  %v197 = vpop.f32.mrf.mxu0
  %v198 = vadd.f32 0.0, %v197
  %v199 = vpop.f32.mrf.mxu0
  %200 = vdwg.mxu0
  %v201 = vmax.f32 %v193, 0.0
  %v202 = vmax.f32 %v198, 0.0
  %v203 = vld [vmem:[%s4] sm:$0xff]
  %v204 = vld [vmem:[%s4 + $0x8] sm:$0xff]
  %v205 = vmul.f32 %v201, %v203
  %v206 = vmul.f32 %v202, %v204
  %207 = vst.msk [vmem:[%s5] sm:$0xff] %vm119, %v205
  %208 = vst.msk [vmem:[%s5 + $0x8] sm:$0xff] %vm119, %v206
  // Predicated region
  $region22: #{_lambda_.5} parent=0 // pred_check
    _
  $region23: #{_lambda_.5} parent=0 // pred_check_branch
    %210 = sbr.rel (0) target = $region25
  $region24: #{_lambda_.5} parent=0 // pred_region
    _
  $region25: #{_lambda_.5} parent=0 // pred_fallthru
    _
  // Predicated region
  $region26: #{_lambda_.5} parent=0 // pred_check
    _
  $region27: #{_lambda_.5} parent=0 // pred_check_branch
    %212 = sbr.rel (0) target = $region29
  $region28: #{_lambda_.5} parent=0 // pred_region
    _
  $region29: #{_lambda_.5} parent=0 // pred_fallthru
    _

// kernel: tile.39
$region0: #{tile.39}
  %s0 = inlined_call_operand.vmem [shape: f32[32,8,32], index: 0, kind: input, shape index: {}]
  %s1 = inlined_call_operand.vmem [shape: f32[32,256], index: 1, kind: output, shape index: {}]
  %v2 = vld [vmem:[%s0] ss:$4 sm:$0xff]
  %vm3 = vcmask 261120
  %4 = vst.msk [vmem:[%s1] ss:$8 sm:$0x3] %vm3, %v2
  %s5 = scalar_lea.vmem %s1, 4294967281
  %6 = vst.msk [vmem:[%s5] ss:$8 sm:$0xc] %vm3, %v2
  %s7 = scalar_lea.vmem %s1, 4294967266
  %8 = vst.msk [vmem:[%s7] ss:$8 sm:$0x30] %vm3, %v2
  %s9 = scalar_lea.vmem %s1, 4294967251
  %10 = vst.msk [vmem:[%s9] ss:$8 sm:$0xc0] %vm3, %v2
  %s11 = scalar_lea.vmem %s0, 32
  %v12 = vld [vmem:[%s11] ss:$4 sm:$0xff]
  %vm13 = vcmask 261120
  %s14 = scalar_lea.vmem %s1, 4
  %15 = vst.msk [vmem:[%s14] ss:$8 sm:$0x3] %vm13, %v12
  %s16 = scalar_lea.vmem %s1, 4294967285
  %17 = vst.msk [vmem:[%s16] ss:$8 sm:$0xc] %vm13, %v12
  %s18 = scalar_lea.vmem %s1, 4294967270
  %19 = vst.msk [vmem:[%s18] ss:$8 sm:$0x30] %vm13, %v12
  %s20 = scalar_lea.vmem %s1, 4294967255
  %21 = vst.msk [vmem:[%s20] ss:$8 sm:$0xc0] %vm13, %v12
  %s22 = scalar_lea.vmem %s0, 64
  %v23 = vld [vmem:[%s22] ss:$4 sm:$0xff]
  %vm24 = vcmask 261120
  %s25 = scalar_lea.vmem %s1, 16
  %26 = vst.msk [vmem:[%s25] ss:$8 sm:$0x3] %vm24, %v23
  %s27 = scalar_lea.vmem %s1, 1
  %28 = vst.msk [vmem:[%s27] ss:$8 sm:$0xc] %vm24, %v23
  %s29 = scalar_lea.vmem %s1, 4294967282
  %30 = vst.msk [vmem:[%s29] ss:$8 sm:$0x30] %vm24, %v23
  %s31 = scalar_lea.vmem %s1, 4294967267
  %32 = vst.msk [vmem:[%s31] ss:$8 sm:$0xc0] %vm24, %v23
  %s33 = scalar_lea.vmem %s0, 96
  %v34 = vld [vmem:[%s33] ss:$4 sm:$0xff]
  %vm35 = vcmask 261120
  %s36 = scalar_lea.vmem %s1, 20
  %37 = vst.msk [vmem:[%s36] ss:$8 sm:$0x3] %vm35, %v34
  %s38 = scalar_lea.vmem %s1, 5
  %39 = vst.msk [vmem:[%s38] ss:$8 sm:$0xc] %vm35, %v34
  %s40 = scalar_lea.vmem %s1, 4294967286
  %41 = vst.msk [vmem:[%s40] ss:$8 sm:$0x30] %vm35, %v34
  %s42 = scalar_lea.vmem %s1, 4294967271
  %43 = vst.msk [vmem:[%s42] ss:$8 sm:$0xc0] %vm35, %v34
  %s44 = scalar_lea.vmem %s0, 128
  %v45 = vld [vmem:[%s44] ss:$4 sm:$0xff]
  %vm46 = vcmask 261120
  %s47 = scalar_lea.vmem %s1, 32
  %48 = vst.msk [vmem:[%s47] ss:$8 sm:$0x3] %vm46, %v45
  %s49 = scalar_lea.vmem %s1, 17
  %50 = vst.msk [vmem:[%s49] ss:$8 sm:$0xc] %vm46, %v45
  %s51 = scalar_lea.vmem %s1, 2
  %52 = vst.msk [vmem:[%s51] ss:$8 sm:$0x30] %vm46, %v45
  %s53 = scalar_lea.vmem %s1, 4294967283
  %54 = vst.msk [vmem:[%s53] ss:$8 sm:$0xc0] %vm46, %v45
  %s55 = scalar_lea.vmem %s0, 160
  %v56 = vld [vmem:[%s55] ss:$4 sm:$0xff]
  %vm57 = vcmask 261120
  %s58 = scalar_lea.vmem %s1, 36
  %59 = vst.msk [vmem:[%s58] ss:$8 sm:$0x3] %vm57, %v56
  %s60 = scalar_lea.vmem %s1, 21
  %61 = vst.msk [vmem:[%s60] ss:$8 sm:$0xc] %vm57, %v56
  %s62 = scalar_lea.vmem %s1, 6
  %63 = vst.msk [vmem:[%s62] ss:$8 sm:$0x30] %vm57, %v56
  %s64 = scalar_lea.vmem %s1, 4294967287
  %65 = vst.msk [vmem:[%s64] ss:$8 sm:$0xc0] %vm57, %v56
  %s66 = scalar_lea.vmem %s0, 192
  %v67 = vld [vmem:[%s66] ss:$4 sm:$0xff]
  %vm68 = vcmask 261120
  %s69 = scalar_lea.vmem %s1, 48
  %70 = vst.msk [vmem:[%s69] ss:$8 sm:$0x3] %vm68, %v67
  %s71 = scalar_lea.vmem %s1, 33
  %72 = vst.msk [vmem:[%s71] ss:$8 sm:$0xc] %vm68, %v67
  %s73 = scalar_lea.vmem %s1, 18
  %74 = vst.msk [vmem:[%s73] ss:$8 sm:$0x30] %vm68, %v67
  %s75 = scalar_lea.vmem %s1, 3
  %76 = vst.msk [vmem:[%s75] ss:$8 sm:$0xc0] %vm68, %v67
  %s77 = scalar_lea.vmem %s0, 224
  %v78 = vld [vmem:[%s77] ss:$4 sm:$0xff]
  %vm79 = vcmask 261120
  %s80 = scalar_lea.vmem %s1, 52
  %81 = vst.msk [vmem:[%s80] ss:$8 sm:$0x3] %vm79, %v78
  %s82 = scalar_lea.vmem %s1, 37
  %83 = vst.msk [vmem:[%s82] ss:$8 sm:$0xc] %vm79, %v78
  %s84 = scalar_lea.vmem %s1, 22
  %85 = vst.msk [vmem:[%s84] ss:$8 sm:$0x30] %vm79, %v78
  %s86 = scalar_lea.vmem %s1, 7
  %87 = vst.msk [vmem:[%s86] ss:$8 sm:$0xc0] %vm79, %v78
  %s88 = scalar_lea.vmem %s0, 3
  %v89 = vld [vmem:[%s88] ss:$8 sm:$0xf]
  %s90 = scalar_lea.vmem %s0, 3
  %v91 = vld [vmem:[%s90] ss:$8 sm:$0xf0]
  %vm92 = vcmask 1047556
  %v93 = vsel %vm92, %v91, %v89
  %94 = vrot.lane.b32.xlu0 %v93, 96
  %v95 = vpop.permute.xlu0 %94
  %vm96 = vcmask 1048320
  %97 = vst.msk [vmem:[%s1] sm:$0xff] %vm96, %v95
  %s98 = scalar_lea.vmem %s0, 131
  %v99 = vld [vmem:[%s98] ss:$8 sm:$0xf]
  %s100 = scalar_lea.vmem %s0, 131
  %v101 = vld [vmem:[%s100] ss:$8 sm:$0xf0]
  %vm102 = vcmask 1047556
  %v103 = vsel %vm102, %v101, %v99
  %104 = vrot.lane.b32.xlu0 %v103, 96
  %v105 = vpop.permute.xlu0 %104
  %vm106 = vcmask 1048320
  %s107 = scalar_lea.vmem %s1, 32
  %108 = vst.msk [vmem:[%s107] sm:$0xff] %vm106, %v105
  %s109 = scalar_lea.vmem %s0, 7
  %v110 = vld [vmem:[%s109] ss:$8 sm:$0xf]
  %s111 = scalar_lea.vmem %s0, 7
  %v112 = vld [vmem:[%s111] ss:$8 sm:$0xf0]
  %vm113 = vcmask 1047556
  %v114 = vsel %vm113, %v112, %v110
  %115 = vrot.lane.b32.xlu0 %v114, 96
  %v116 = vpop.permute.xlu0 %115
  %vm117 = vcmask 1048320
  %s118 = scalar_lea.vmem %s1, 8
  %119 = vst.msk [vmem:[%s118] sm:$0xff] %vm117, %v116
  %s120 = scalar_lea.vmem %s0, 135
  %v121 = vld [vmem:[%s120] ss:$8 sm:$0xf]
  %s122 = scalar_lea.vmem %s0, 135
  %v123 = vld [vmem:[%s122] ss:$8 sm:$0xf0]
  %vm124 = vcmask 1047556
  %v125 = vsel %vm124, %v123, %v121
  %126 = vrot.lane.b32.xlu0 %v125, 96
  %v127 = vpop.permute.xlu0 %126
  %vm128 = vcmask 1048320
  %s129 = scalar_lea.vmem %s1, 40
  %130 = vst.msk [vmem:[%s129] sm:$0xff] %vm128, %v127
  %s131 = scalar_lea.vmem %s0, 67
  %v132 = vld [vmem:[%s131] ss:$8 sm:$0xf]
  %s133 = scalar_lea.vmem %s0, 67
  %v134 = vld [vmem:[%s133] ss:$8 sm:$0xf0]
  %vm135 = vcmask 1047556
  %v136 = vsel %vm135, %v134, %v132
  %137 = vrot.lane.b32.xlu0 %v136, 96
  %v138 = vpop.permute.xlu0 %137
  %vm139 = vcmask 1048320
  %s140 = scalar_lea.vmem %s1, 16
  %141 = vst.msk [vmem:[%s140] sm:$0xff] %vm139, %v138
  %s142 = scalar_lea.vmem %s0, 195
  %v143 = vld [vmem:[%s142] ss:$8 sm:$0xf]
  %s144 = scalar_lea.vmem %s0, 195
  %v145 = vld [vmem:[%s144] ss:$8 sm:$0xf0]
  %vm146 = vcmask 1047556
  %v147 = vsel %vm146, %v145, %v143
  %148 = vrot.lane.b32.xlu0 %v147, 96
  %v149 = vpop.permute.xlu0 %148
  %vm150 = vcmask 1048320
  %s151 = scalar_lea.vmem %s1, 48
  %152 = vst.msk [vmem:[%s151] sm:$0xff] %vm150, %v149
  %s153 = scalar_lea.vmem %s0, 71
  %v154 = vld [vmem:[%s153] ss:$8 sm:$0xf]
  %s155 = scalar_lea.vmem %s0, 71
  %v156 = vld [vmem:[%s155] ss:$8 sm:$0xf0]
  %vm157 = vcmask 1047556
  %v158 = vsel %vm157, %v156, %v154
  %159 = vrot.lane.b32.xlu0 %v158, 96
  %v160 = vpop.permute.xlu0 %159
  %vm161 = vcmask 1048320
  %s162 = scalar_lea.vmem %s1, 24
  %163 = vst.msk [vmem:[%s162] sm:$0xff] %vm161, %v160
  %s164 = scalar_lea.vmem %s0, 199
  %v165 = vld [vmem:[%s164] ss:$8 sm:$0xf]
  %s166 = scalar_lea.vmem %s0, 199
  %v167 = vld [vmem:[%s166] ss:$8 sm:$0xf0]
  %vm168 = vcmask 1047556
  %v169 = vsel %vm168, %v167, %v165
  %170 = vrot.lane.b32.xlu0 %v169, 96
  %v171 = vpop.permute.xlu0 %170
  %vm172 = vcmask 1048320
  %s173 = scalar_lea.vmem %s1, 56
  %174 = vst.msk [vmem:[%s173] sm:$0xff] %vm172, %v171
  %s175 = scalar_lea.vmem %s0, 2
  %v176 = vld [vmem:[%s175] ss:$8 sm:$0xf]
  %s177 = scalar_lea.vmem %s0, 2
  %v178 = vld [vmem:[%s177] ss:$8 sm:$0xf0]
  %vm179 = vcmask 1047556
  %v180 = vsel %vm179, %v178, %v176
  %181 = vrot.lane.b32.xlu0 %v180, 64
  %v182 = vpop.permute.xlu0 %181
  %vm183 = vcmask 785920
  %184 = vst.msk [vmem:[%s1] sm:$0xff] %vm183, %v182
  %s185 = scalar_lea.vmem %s0, 130
  %v186 = vld [vmem:[%s185] ss:$8 sm:$0xf]
  %s187 = scalar_lea.vmem %s0, 130
  %v188 = vld [vmem:[%s187] ss:$8 sm:$0xf0]
  %vm189 = vcmask 1047556
  %v190 = vsel %vm189, %v188, %v186
  %191 = vrot.lane.b32.xlu0 %v190, 64
  %v192 = vpop.permute.xlu0 %191
  %vm193 = vcmask 785920
  %s194 = scalar_lea.vmem %s1, 32
  %195 = vst.msk [vmem:[%s194] sm:$0xff] %vm193, %v192
  %s196 = scalar_lea.vmem %s0, 6
  %v197 = vld [vmem:[%s196] ss:$8 sm:$0xf]
  %s198 = scalar_lea.vmem %s0, 6
  %v199 = vld [vmem:[%s198] ss:$8 sm:$0xf0]
  %vm200 = vcmask 1047556
  %v201 = vsel %vm200, %v199, %v197
  %202 = vrot.lane.b32.xlu0 %v201, 64
  %v203 = vpop.permute.xlu0 %202
  %vm204 = vcmask 785920
  %s205 = scalar_lea.vmem %s1, 8
  %206 = vst.msk [vmem:[%s205] sm:$0xff] %vm204, %v203
  %s207 = scalar_lea.vmem %s0, 134
  %v208 = vld [vmem:[%s207] ss:$8 sm:$0xf]
  %s209 = scalar_lea.vmem %s0, 134
  %v210 = vld [vmem:[%s209] ss:$8 sm:$0xf0]
  %vm211 = vcmask 1047556
  %v212 = vsel %vm211, %v210, %v208
  %213 = vrot.lane.b32.xlu0 %v212, 64
  %v214 = vpop.permute.xlu0 %213
  %vm215 = vcmask 785920
  %s216 = scalar_lea.vmem %s1, 40
  %217 = vst.msk [vmem:[%s216] sm:$0xff] %vm215, %v214
  %s218 = scalar_lea.vmem %s0, 66
  %v219 = vld [vmem:[%s218] ss:$8 sm:$0xf]
  %s220 = scalar_lea.vmem %s0, 66
  %v221 = vld [vmem:[%s220] ss:$8 sm:$0xf0]
  %vm222 = vcmask 1047556
  %v223 = vsel %vm222, %v221, %v219
  %224 = vrot.lane.b32.xlu0 %v223, 64
  %v225 = vpop.permute.xlu0 %224
  %vm226 = vcmask 785920
  %s227 = scalar_lea.vmem %s1, 16
  %228 = vst.msk [vmem:[%s227] sm:$0xff] %vm226, %v225
  %s229 = scalar_lea.vmem %s0, 194
  %v230 = vld [vmem:[%s229] ss:$8 sm:$0xf]
  %s231 = scalar_lea.vmem %s0, 194
  %v232 = vld [vmem:[%s231] ss:$8 sm:$0xf0]
  %vm233 = vcmask 1047556
  %v234 = vsel %vm233, %v232, %v230
  %235 = vrot.lane.b32.xlu0 %v234, 64
  %v236 = vpop.permute.xlu0 %235
  %vm237 = vcmask 785920
  %s238 = scalar_lea.vmem %s1, 48
  %239 = vst.msk [vmem:[%s238] sm:$0xff] %vm237, %v236
  %s240 = scalar_lea.vmem %s0, 70
  %v241 = vld [vmem:[%s240] ss:$8 sm:$0xf]
  %s242 = scalar_lea.vmem %s0, 70
  %v243 = vld [vmem:[%s242] ss:$8 sm:$0xf0]
  %vm244 = vcmask 1047556
  %v245 = vsel %vm244, %v243, %v241
  %246 = vrot.lane.b32.xlu0 %v245, 64
  %v247 = vpop.permute.xlu0 %246
  %vm248 = vcmask 785920
  %s249 = scalar_lea.vmem %s1, 24
  %250 = vst.msk [vmem:[%s249] sm:$0xff] %vm248, %v247
  %s251 = scalar_lea.vmem %s0, 198
  %v252 = vld [vmem:[%s251] ss:$8 sm:$0xf]
  %s253 = scalar_lea.vmem %s0, 198
  %v254 = vld [vmem:[%s253] ss:$8 sm:$0xf0]
  %vm255 = vcmask 1047556
  %v256 = vsel %vm255, %v254, %v252
  %257 = vrot.lane.b32.xlu0 %v256, 64
  %v258 = vpop.permute.xlu0 %257
  %vm259 = vcmask 785920
  %s260 = scalar_lea.vmem %s1, 56
  %261 = vst.msk [vmem:[%s260] sm:$0xff] %vm259, %v258
  %s262 = scalar_lea.vmem %s0, 1
  %v263 = vld [vmem:[%s262] ss:$8 sm:$0xf]
  %s264 = scalar_lea.vmem %s0, 1
  %v265 = vld [vmem:[%s264] ss:$8 sm:$0xf0]
  %vm266 = vcmask 1047556
  %v267 = vsel %vm266, %v265, %v263
  %268 = vrot.lane.b32.xlu0 %v267, 32
  %v269 = vpop.permute.xlu0 %268
  %vm270 = vcmask 523520
  %271 = vst.msk [vmem:[%s1] sm:$0xff] %vm270, %v269
  %s272 = scalar_lea.vmem %s0, 129
  %v273 = vld [vmem:[%s272] ss:$8 sm:$0xf]
  %s274 = scalar_lea.vmem %s0, 129
  %v275 = vld [vmem:[%s274] ss:$8 sm:$0xf0]
  %vm276 = vcmask 1047556
  %v277 = vsel %vm276, %v275, %v273
  %278 = vrot.lane.b32.xlu0 %v277, 32
  %v279 = vpop.permute.xlu0 %278
  %vm280 = vcmask 523520
  %s281 = scalar_lea.vmem %s1, 32
  %282 = vst.msk [vmem:[%s281] sm:$0xff] %vm280, %v279
  %s283 = scalar_lea.vmem %s0, 5
  %v284 = vld [vmem:[%s283] ss:$8 sm:$0xf]
  %s285 = scalar_lea.vmem %s0, 5
  %v286 = vld [vmem:[%s285] ss:$8 sm:$0xf0]
  %vm287 = vcmask 1047556
  %v288 = vsel %vm287, %v286, %v284
  %289 = vrot.lane.b32.xlu0 %v288, 32
  %v290 = vpop.permute.xlu0 %289
  %vm291 = vcmask 523520
  %s292 = scalar_lea.vmem %s1, 8
  %293 = vst.msk [vmem:[%s292] sm:$0xff] %vm291, %v290
  %s294 = scalar_lea.vmem %s0, 133
  %v295 = vld [vmem:[%s294] ss:$8 sm:$0xf]
  %s296 = scalar_lea.vmem %s0, 133
  %v297 = vld [vmem:[%s296] ss:$8 sm:$0xf0]
  %vm298 = vcmask 1047556
  %v299 = vsel %vm298, %v297, %v295
  %300 = vrot.lane.b32.xlu0 %v299, 32
  %v301 = vpop.permute.xlu0 %300
  %vm302 = vcmask 523520
  %s303 = scalar_lea.vmem %s1, 40
  %304 = vst.msk [vmem:[%s303] sm:$0xff] %vm302, %v301
  %s305 = scalar_lea.vmem %s0, 65
  %v306 = vld [vmem:[%s305] ss:$8 sm:$0xf]
  %s307 = scalar_lea.vmem %s0, 65
  %v308 = vld [vmem:[%s307] ss:$8 sm:$0xf0]
  %vm309 = vcmask 1047556
  %v310 = vsel %vm309, %v308, %v306
  %311 = vrot.lane.b32.xlu0 %v310, 32
  %v312 = vpop.permute.xlu0 %311
  %vm313 = vcmask 523520
  %s314 = scalar_lea.vmem %s1, 16
  %315 = vst.msk [vmem:[%s314] sm:$0xff] %vm313, %v312
  %s316 = scalar_lea.vmem %s0, 193
  %v317 = vld [vmem:[%s316] ss:$8 sm:$0xf]
  %s318 = scalar_lea.vmem %s0, 193
  %v319 = vld [vmem:[%s318] ss:$8 sm:$0xf0]
  %vm320 = vcmask 1047556
  %v321 = vsel %vm320, %v319, %v317
  %322 = vrot.lane.b32.xlu0 %v321, 32
  %v323 = vpop.permute.xlu0 %322
  %vm324 = vcmask 523520
  %s325 = scalar_lea.vmem %s1, 48
  %326 = vst.msk [vmem:[%s325] sm:$0xff] %vm324, %v323
  %s327 = scalar_lea.vmem %s0, 69
  %v328 = vld [vmem:[%s327] ss:$8 sm:$0xf]
  %s329 = scalar_lea.vmem %s0, 69
  %v330 = vld [vmem:[%s329] ss:$8 sm:$0xf0]
  %vm331 = vcmask 1047556
  %v332 = vsel %vm331, %v330, %v328
  %333 = vrot.lane.b32.xlu0 %v332, 32
  %v334 = vpop.permute.xlu0 %333
  %vm335 = vcmask 523520
  %s336 = scalar_lea.vmem %s1, 24
  %337 = vst.msk [vmem:[%s336] sm:$0xff] %vm335, %v334
  %s338 = scalar_lea.vmem %s0, 197
  %v339 = vld [vmem:[%s338] ss:$8 sm:$0xf]
  %s340 = scalar_lea.vmem %s0, 197
  %v341 = vld [vmem:[%s340] ss:$8 sm:$0xf0]
  %vm342 = vcmask 1047556
  %v343 = vsel %vm342, %v341, %v339
  %344 = vrot.lane.b32.xlu0 %v343, 32
  %v345 = vpop.permute.xlu0 %344
  %vm346 = vcmask 523520
  %s347 = scalar_lea.vmem %s1, 56
  %348 = vst.msk [vmem:[%s347] sm:$0xff] %vm346, %v345

// kernel: _lambda_.7
$region0: #{_lambda_.7}
  #allocation0 [shape = 'u32[]', space=smem, size = 0x4, offset = 0x4, fixed_abs, tag = 'smem constant byte address 0x4 - core index']
  #allocation1 [shape = 'u32[144,128]{1,0:T(1,128)}', space=vmem, size = 0x12000, scoped, tag = 'internal scratch']
  %s0 = inlined_call_operand.vmem [shape: f32[16,20], index: 0, kind: input, shape index: {}]
  %s1 = inlined_call_operand.vmem [shape: f32[20,32], index: 1, kind: input, shape index: {}]
  %s2 = inlined_call_operand.vmem [shape: f32[1,32], index: 2, kind: input, shape index: {}]
  %s3 = inlined_call_operand.vmem [shape: f32[1,32], index: 3, kind: input, shape index: {}]
  %s4 = inlined_call_operand.vmem [shape: f32[1,32], index: 4, kind: input, shape index: {}]
  %s5 = inlined_call_operand.vmem [shape: f32[16,32], index: 5, kind: input, shape index: {}]
  %s6 = inlined_call_operand.vmem [shape: f32[16,32], index: 6, kind: output, shape index: {}]
  %s7 = sld [smem:[#allocation0]]
  $region34: #{_lambda_.7} parent=0
    _
  %s9 = ssub.s32 1, %s7
  %s10 = scalar_select 0, %s9, %s7
  // Predicated region
  $region2: #{_lambda_.7} parent=0 // pred_check
    _
  $region3: #{_lambda_.7} parent=0 // pred_check_branch
    %12 = sbr.rel (0) target = $region5
  $region4: #{_lambda_.7} parent=0 // pred_region
    _
  $region5: #{_lambda_.7} parent=0 // pred_fallthru
    _
  // Predicated region
  $region6: #{_lambda_.7} parent=0 // pred_check
    _
  $region7: #{_lambda_.7} parent=0 // pred_check_branch
    %14 = sbr.rel (0) target = $region9
  $region8: #{_lambda_.7} parent=0 // pred_region
    _
  $region9: #{_lambda_.7} parent=0 // pred_fallthru
    _
  // Predicated region
  $region10: #{_lambda_.7} parent=0 // pred_check
    _
  $region11: #{_lambda_.7} parent=0 // pred_check_branch
    %16 = sbr.rel (0) target = $region13
  $region12: #{_lambda_.7} parent=0 // pred_region
    _
  $region13: #{_lambda_.7} parent=0 // pred_fallthru
    _
  // Predicated region
  $region14: #{_lambda_.7} parent=0 // pred_check
    _
  $region15: #{_lambda_.7} parent=0 // pred_check_branch
    %18 = sbr.rel (0) target = $region17
  $region16: #{_lambda_.7} parent=0 // pred_region
    _
  $region17: #{_lambda_.7} parent=0 // pred_fallthru
    _
  // Predicated region
  $region18: #{_lambda_.7} parent=0 // pred_check
    _
  $region19: #{_lambda_.7} parent=0 // pred_check_branch
    %20 = sbr.rel (0) target = $region21
  $region20: #{_lambda_.7} parent=0 // pred_region
    _
  $region21: #{_lambda_.7} parent=0 // pred_fallthru
    _
  // Predicated region
  $region22: #{_lambda_.7} parent=0 // pred_check
    _
  $region23: #{_lambda_.7} parent=0 // pred_check_branch
    %22 = sbr.rel (0) target = $region25
  $region24: #{_lambda_.7} parent=0 // pred_region
    _
  $region25: #{_lambda_.7} parent=0 // pred_fallthru
    _
  %v23 = vld [vmem:[%s0] sm:$0xff]
  %v24 = vld [vmem:[%s0 + $0x8] sm:$0xff]
  %v25 = vld [vmem:[%s1] sm:$0xff]
  %v26 = vld [vmem:[%s1 + $0x8] sm:$0xff]
  %v27 = vld [vmem:[%s1 + $0x10] sm:$0xf]
  %v28 = vld [vmem:[%s2] sm:$0x1]
  %v30 = vlaneseq
  %v31 = vshrl.u32 %v30, 7
  %v32 = vsub.s32 0, %v31
  %v33 = vrot.slane %v28, %v32
  %vm35 = vcmask 162816
  %v37 = vsel %vm35, %v23, 0
  %v40 = vsel %vm35, %v24, 0
  %vm42 = vcmask 1043456
  %v44 = vsel %vm42, %v27, 0
  %46 = vmatprep.subr.mxu0 0.0
  %47 = vmatpush1.msra.mxu0 0.0
  %48 = vmatprep.subr.mxu0 0.0
  %49 = vmatpush1.msra.mxu0 0.0
  %50 = vmatprep.subr.mxu0 0.0
  %51 = vmatpush1.msra.mxu0 0.0
  %52 = vmatprep.subr.mxu0 0.0
  %53 = vmatpush1.msra.mxu0 0.0
  %54 = vmatprep.subr.mxu0 0.0
  %55 = vmatpush1.msra.mxu0 0.0
  %56 = vmatprep.subr.mxu0 0.0
  %57 = vmatpush1.msra.mxu0 0.0
  %58 = vmatprep.subr.mxu0 0.0
  %59 = vmatpush1.msra.mxu0 0.0
  %60 = vmatprep.subr.mxu0 0.0
  %61 = vmatpush1.msra.mxu0 0.0
  %62 = vmatprep.subr.mxu0 0.0
  %63 = vmatpush1.msra.mxu0 0.0
  %64 = vmatprep.subr.mxu0 0.0
  %65 = vmatpush1.msra.mxu0 0.0
  %66 = vmatprep.subr.mxu0 0.0
  %67 = vmatpush1.msra.mxu0 0.0
  %68 = vmatprep.subr.mxu0 0.0
  %69 = vmatpush1.msra.mxu0 0.0
  %70 = vmatprep.subr.mxu0 0.0
  %71 = vmatpush1.msra.mxu0 0.0
  %72 = vmatprep.subr.mxu0 0.0
  %73 = vmatpush1.msra.mxu0 %v44
  %74 = vmatprep.subr.mxu0 0.0
  %75 = vmatpush1.msra.mxu0 %v26
  %76 = vmatprep.subr.mxu0 0.0
  %77 = vmatpush1.msra.mxu0 %v25
  %78 = vmatprep.subr.mxu0 0.0
  %79 = vmatpush2.msra.mxu0 0.0
  %80 = vmatprep.subr.mxu0 0.0
  %81 = vmatpush2.msra.mxu0 0.0
  %82 = vmatprep.subr.mxu0 0.0
  %83 = vmatpush2.msra.mxu0 0.0
  %84 = vmatprep.subr.mxu0 0.0
  %85 = vmatpush2.msra.mxu0 0.0
  %86 = vmatprep.subr.mxu0 0.0
  %87 = vmatpush2.msra.mxu0 0.0
  %88 = vmatprep.subr.mxu0 0.0
  %89 = vmatpush2.msra.mxu0 0.0
  %90 = vmatprep.subr.mxu0 0.0
  %91 = vmatpush2.msra.mxu0 0.0
  %92 = vmatprep.subr.mxu0 0.0
  %93 = vmatpush2.msra.mxu0 0.0
  %94 = vmatprep.subr.mxu0 0.0
  %95 = vmatpush2.msra.mxu0 0.0
  %96 = vmatprep.subr.mxu0 0.0
  %97 = vmatpush2.msra.mxu0 0.0
  %98 = vmatprep.subr.mxu0 0.0
  %99 = vmatpush2.msra.mxu0 0.0
  %100 = vmatprep.subr.mxu0 0.0
  %101 = vmatpush2.msra.mxu0 0.0
  %102 = vmatprep.subr.mxu0 0.0
  %103 = vmatpush2.msra.mxu0 0.0
  %104 = vmatprep.subr.mxu0 0.0
  %105 = vmatpush2.msra.mxu0 0.0
  %106 = vmatprep.subr.mxu0 0.0
  %107 = vmatpush2.msra.mxu0 0.0
  %108 = vmatprep.subr.mxu0 0.0
  %109 = vmatpush2.msra.mxu0 0.0
  %110 = vmatprep.mubr.f32.mxu0 0.0
  %111 = vmatmul.mubr.f32.gmra.mxu0 %v37
  %v112 = vpop.f32.mrf.mxu0
  %v113 = vadd.f32 %v33, %v112
  %v114 = vpop.f32.mrf.mxu0
  %115 = vmatprep.mubr.f32.mxu0 0.0
  %116 = vmatmul.mubr.f32.gmra.mxu0 %v40
  %v117 = vpop.f32.mrf.mxu0
  %v118 = vadd.f32 %v33, %v117
  %v119 = vpop.f32.mrf.mxu0
  %120 = vdwg.mxu0
  %vm121 = vcmask 261120
  %v122 = vsel %vm121, %v113, 0.0
  %v123 = vsel %vm121, %v118, 0.0
  %v124 = vadd.f32 %v122, %v123
  %v125 = vrot.slane %v124, 4
  %v126 = vadd.f32 %v124, %v125
  %v127 = vrot.slane %v126, 2
  %v128 = vadd.f32 %v126, %v127
  %v129 = vrot.slane %v128, 1
  %v130 = vadd.f32 %v128, %v129
  %v131 = vmul.f32 %v130, 0.0625
  %v132 = vsub.f32 %v113, %v131
  %v133 = vsub.f32 %v118, %v131
  %v134 = vmul.f32 %v132, %v132
  %v135 = vmul.f32 %v133, %v133
  %v136 = vsel %vm121, %v134, 0.0
  %v137 = vsel %vm121, %v135, 0.0
  %v138 = vadd.f32 %v136, %v137
  %v139 = vrot.slane %v138, 4
  %v140 = vadd.f32 %v138, %v139
  %v141 = vrot.slane %v140, 2
  %v142 = vadd.f32 %v140, %v141
  %v143 = vrot.slane %v142, 1
  %v144 = vadd.f32 %v142, %v143
  %v145 = vmul.f32 %v144, 0.0625
  %v146 = vadd.f32 %v145, 1e-05
  %v147 = vrsqrt.pop %v146
  %v148 = vmul.f32 %v132, %v147
  %v149 = vmul.f32 %v133, %v147
  %v150 = vld [vmem:[%s3] sm:$0x1]
  %v152 = vlaneseq
  %v153 = vshrl.u32 %v152, 7
  %v154 = vsub.s32 0, %v153
  %v155 = vrot.slane %v150, %v154
  %v157 = vmul.f32 %v148, %v155
  %v158 = vmul.f32 %v149, %v155
  %v159 = vld [vmem:[%s4] sm:$0x1]
  %v161 = vlaneseq
  %v162 = vshrl.u32 %v161, 7
  %v163 = vsub.s32 0, %v162
  %v164 = vrot.slane %v159, %v163
  %v166 = vadd.f32 %v157, %v164
  %v167 = vadd.f32 %v158, %v164
  %v168 = vtanh.pop %v166
  %v169 = vtanh.pop %v167
  %v170 = vld [vmem:[%s5] sm:$0xff]
  %v171 = vld [vmem:[%s5 + $0x8] sm:$0xff]
  %v172 = vmul.f32 %v168, %v170
  %v173 = vmul.f32 %v169, %v171
  %174 = vst.msk [vmem:[%s6] sm:$0xff] %vm121, %v172
  %175 = vst.msk [vmem:[%s6 + $0x8] sm:$0xff] %vm121, %v173
  // Predicated region
  $region26: #{_lambda_.7} parent=0 // pred_check
    _
  $region27: #{_lambda_.7} parent=0 // pred_check_branch
    %177 = sbr.rel (0) target = $region29
  $region28: #{_lambda_.7} parent=0 // pred_region
    _
  $region29: #{_lambda_.7} parent=0 // pred_fallthru
    _
  // Predicated region
  $region30: #{_lambda_.7} parent=0 // pred_check
    _
  $region31: #{_lambda_.7} parent=0 // pred_check_branch
    %179 = sbr.rel (0) target = $region33
  $region32: #{_lambda_.7} parent=0 // pred_region
    _
  $region33: #{_lambda_.7} parent=0 // pred_fallthru
    _

// kernel: _lambda_.8
$region0: #{_lambda_.8}
  #allocation0 [shape = 'u32[]', space=smem, size = 0x4, offset = 0x4, fixed_abs, tag = 'smem constant byte address 0x4 - core index']
  #allocation1 [shape = 'u32[144,128]{1,0:T(1,128)}', space=vmem, size = 0x12000, scoped, tag = 'internal scratch']
  %s0 = inlined_call_operand.vmem [shape: f32[16,160], index: 0, kind: input, shape index: {}]
  %s1 = inlined_call_operand.vmem [shape: f32[160,32], index: 1, kind: input, shape index: {}]
  %s2 = inlined_call_operand.vmem [shape: f32[1,32], index: 2, kind: input, shape index: {}]
  %s3 = inlined_call_operand.vmem [shape: f32[1,32], index: 3, kind: input, shape index: {}]
  %s4 = inlined_call_operand.vmem [shape: f32[1,32], index: 4, kind: input, shape index: {}]
  %s5 = inlined_call_operand.vmem [shape: f32[16,32], index: 5, kind: input, shape index: {}]
  %s6 = inlined_call_operand.vmem [shape: f32[16,32], index: 6, kind: output, shape index: {}]
  %s7 = sld [smem:[#allocation0]]
  $region34: #{_lambda_.8} parent=0
    _
  %s9 = ssub.s32 1, %s7
  %s10 = scalar_select 0, %s9, %s7
  // Predicated region
  $region2: #{_lambda_.8} parent=0 // pred_check
    _
  $region3: #{_lambda_.8} parent=0 // pred_check_branch
    %12 = sbr.rel (0) target = $region5
  $region4: #{_lambda_.8} parent=0 // pred_region
    _
  $region5: #{_lambda_.8} parent=0 // pred_fallthru
    _
  // Predicated region
  $region6: #{_lambda_.8} parent=0 // pred_check
    _
  $region7: #{_lambda_.8} parent=0 // pred_check_branch
    %14 = sbr.rel (0) target = $region9
  $region8: #{_lambda_.8} parent=0 // pred_region
    _
  $region9: #{_lambda_.8} parent=0 // pred_fallthru
    _
  // Predicated region
  $region10: #{_lambda_.8} parent=0 // pred_check
    _
  $region11: #{_lambda_.8} parent=0 // pred_check_branch
    %16 = sbr.rel (0) target = $region13
  $region12: #{_lambda_.8} parent=0 // pred_region
    _
  $region13: #{_lambda_.8} parent=0 // pred_fallthru
    _
  // Predicated region
  $region14: #{_lambda_.8} parent=0 // pred_check
    _
  $region15: #{_lambda_.8} parent=0 // pred_check_branch
    %18 = sbr.rel (0) target = $region17
  $region16: #{_lambda_.8} parent=0 // pred_region
    _
  $region17: #{_lambda_.8} parent=0 // pred_fallthru
    _
  // Predicated region
  $region18: #{_lambda_.8} parent=0 // pred_check
    _
  $region19: #{_lambda_.8} parent=0 // pred_check_branch
    %20 = sbr.rel (0) target = $region21
  $region20: #{_lambda_.8} parent=0 // pred_region
    _
  $region21: #{_lambda_.8} parent=0 // pred_fallthru
    _
  // Predicated region
  $region22: #{_lambda_.8} parent=0 // pred_check
    _
  $region23: #{_lambda_.8} parent=0 // pred_check_branch
    %22 = sbr.rel (0) target = $region25
  $region24: #{_lambda_.8} parent=0 // pred_region
    _
  $region25: #{_lambda_.8} parent=0 // pred_fallthru
    _
  %v23 = vld [vmem:[%s0] sm:$0xff]
  %v24 = vld [vmem:[%s0 + $0x8] sm:$0xff]
  %v25 = vld [vmem:[%s0 + $0x10] sm:$0xff]
  %v26 = vld [vmem:[%s0 + $0x18] sm:$0xff]
  %v27 = vld [vmem:[%s1] sm:$0xff]
  %v28 = vld [vmem:[%s1 + $0x8] sm:$0xff]
  %v29 = vld [vmem:[%s1 + $0x10] sm:$0xff]
  %v30 = vld [vmem:[%s1 + $0x18] sm:$0xff]
  %v31 = vld [vmem:[%s1 + $0x20] sm:$0xff]
  %v32 = vld [vmem:[%s1 + $0x28] sm:$0xff]
  %v33 = vld [vmem:[%s1 + $0x30] sm:$0xff]
  %v34 = vld [vmem:[%s1 + $0x38] sm:$0xff]
  %v35 = vld [vmem:[%s1 + $0x40] sm:$0xff]
  %v36 = vld [vmem:[%s1 + $0x48] sm:$0xff]
  %v37 = vld [vmem:[%s1 + $0x50] sm:$0xff]
  %v38 = vld [vmem:[%s1 + $0x58] sm:$0xff]
  %v39 = vld [vmem:[%s1 + $0x60] sm:$0xff]
  %v40 = vld [vmem:[%s1 + $0x68] sm:$0xff]
  %v41 = vld [vmem:[%s1 + $0x70] sm:$0xff]
  %v42 = vld [vmem:[%s1 + $0x78] sm:$0xff]
  %v43 = vld [vmem:[%s1 + $0x80] sm:$0xff]
  %v44 = vld [vmem:[%s1 + $0x88] sm:$0xff]
  %v45 = vld [vmem:[%s1 + $0x90] sm:$0xff]
  %v46 = vld [vmem:[%s1 + $0x98] sm:$0xff]
  %v47 = vld [vmem:[%s2] sm:$0x1]
  %v49 = vlaneseq
  %v50 = vshrl.u32 %v49, 7
  %v51 = vsub.s32 0, %v50
  %v52 = vrot.slane %v47, %v51
  %vm54 = vcmask 261120
  %v56 = vsel %vm54, %v24, 0
  %v59 = vsel %vm54, %v26, 0
  %61 = vmatprep.subr.mxu0 0.0
  %62 = vmatpush1.msra.mxu0 %v42
  %63 = vmatprep.subr.mxu0 0.0
  %64 = vmatpush1.msra.mxu0 %v41
  %65 = vmatprep.subr.mxu0 0.0
  %66 = vmatpush1.msra.mxu0 %v40
  %67 = vmatprep.subr.mxu0 0.0
  %68 = vmatpush1.msra.mxu0 %v39
  %69 = vmatprep.subr.mxu0 0.0
  %70 = vmatpush1.msra.mxu0 %v38
  %71 = vmatprep.subr.mxu0 0.0
  %72 = vmatpush1.msra.mxu0 %v37
  %73 = vmatprep.subr.mxu0 0.0
  %74 = vmatpush1.msra.mxu0 %v36
  %75 = vmatprep.subr.mxu0 0.0
  %76 = vmatpush1.msra.mxu0 %v35
  %77 = vmatprep.subr.mxu0 0.0
  %78 = vmatpush1.msra.mxu0 %v34
  %79 = vmatprep.subr.mxu0 0.0
  %80 = vmatpush1.msra.mxu0 %v33
  %81 = vmatprep.subr.mxu0 0.0
  %82 = vmatpush1.msra.mxu0 %v32
  %83 = vmatprep.subr.mxu0 0.0
  %84 = vmatpush1.msra.mxu0 %v31
  %85 = vmatprep.subr.mxu0 0.0
  %86 = vmatpush1.msra.mxu0 %v30
  %87 = vmatprep.subr.mxu0 0.0
  %88 = vmatpush1.msra.mxu0 %v29
  %89 = vmatprep.subr.mxu0 0.0
  %90 = vmatpush1.msra.mxu0 %v28
  %91 = vmatprep.subr.mxu0 0.0
  %92 = vmatpush1.msra.mxu0 %v27
  %93 = vmatprep.subr.mxu0 0.0
  %94 = vmatpush2.msra.mxu0 0.0
  %95 = vmatprep.subr.mxu0 0.0
  %96 = vmatpush2.msra.mxu0 0.0
  %97 = vmatprep.subr.mxu0 0.0
  %98 = vmatpush2.msra.mxu0 0.0
  %99 = vmatprep.subr.mxu0 0.0
  %100 = vmatpush2.msra.mxu0 0.0
  %101 = vmatprep.subr.mxu0 0.0
  %102 = vmatpush2.msra.mxu0 0.0
  %103 = vmatprep.subr.mxu0 0.0
  %104 = vmatpush2.msra.mxu0 0.0
  %105 = vmatprep.subr.mxu0 0.0
  %106 = vmatpush2.msra.mxu0 0.0
  %107 = vmatprep.subr.mxu0 0.0
  %108 = vmatpush2.msra.mxu0 0.0
  %109 = vmatprep.subr.mxu0 0.0
  %110 = vmatpush2.msra.mxu0 0.0
  %111 = vmatprep.subr.mxu0 0.0
  %112 = vmatpush2.msra.mxu0 0.0
  %113 = vmatprep.subr.mxu0 0.0
  %114 = vmatpush2.msra.mxu0 0.0
  %115 = vmatprep.subr.mxu0 0.0
  %116 = vmatpush2.msra.mxu0 0.0
  %117 = vmatprep.subr.mxu0 0.0
  %118 = vmatpush2.msra.mxu0 %v46
  %119 = vmatprep.subr.mxu0 0.0
  %120 = vmatpush2.msra.mxu0 %v45
  %121 = vmatprep.subr.mxu0 0.0
  %122 = vmatpush2.msra.mxu0 %v44
  %123 = vmatprep.subr.mxu0 0.0
  %124 = vmatpush2.msra.mxu0 %v43
  %125 = vmatprep.mubr.f32.mxu0 %v56
  %126 = vmatmul.mubr.f32.gmra.mxu0 %v23
  %v127 = vpop.f32.mrf.mxu0
  %v128 = vadd.f32 %v52, %v127
  %v129 = vpop.f32.mrf.mxu0
  %130 = vmatprep.mubr.f32.mxu0 %v59
  %131 = vmatmul.mubr.f32.gmra.mxu0 %v25
  %v132 = vpop.f32.mrf.mxu0
  %v133 = vadd.f32 %v52, %v132
  %v134 = vpop.f32.mrf.mxu0
  %135 = vdwg.mxu0
  %v136 = vsel %vm54, %v128, 0.0
  %v137 = vsel %vm54, %v133, 0.0
  %v138 = vadd.f32 %v136, %v137
  %v139 = vrot.slane %v138, 4
  %v140 = vadd.f32 %v138, %v139
  %v141 = vrot.slane %v140, 2
  %v142 = vadd.f32 %v140, %v141
  %v143 = vrot.slane %v142, 1
  %v144 = vadd.f32 %v142, %v143
  %v145 = vmul.f32 %v144, 0.0625
  %v146 = vsub.f32 %v128, %v145
  %v147 = vsub.f32 %v133, %v145
  %v148 = vmul.f32 %v146, %v146
  %v149 = vmul.f32 %v147, %v147
  %v150 = vsel %vm54, %v148, 0.0
  %v151 = vsel %vm54, %v149, 0.0
  %v152 = vadd.f32 %v150, %v151
  %v153 = vrot.slane %v152, 4
  %v154 = vadd.f32 %v152, %v153
  %v155 = vrot.slane %v154, 2
  %v156 = vadd.f32 %v154, %v155
  %v157 = vrot.slane %v156, 1
  %v158 = vadd.f32 %v156, %v157
  %v159 = vmul.f32 %v158, 0.0625
  %v160 = vadd.f32 %v159, 1e-05
  %v161 = vrsqrt.pop %v160
  %v162 = vmul.f32 %v146, %v161
  %v163 = vmul.f32 %v147, %v161
  %v164 = vld [vmem:[%s3] sm:$0x1]
  %v166 = vlaneseq
  %v167 = vshrl.u32 %v166, 7
  %v168 = vsub.s32 0, %v167
  %v169 = vrot.slane %v164, %v168
  %v171 = vmul.f32 %v162, %v169
  %v172 = vmul.f32 %v163, %v169
  %v173 = vld [vmem:[%s4] sm:$0x1]
  %v175 = vlaneseq
  %v176 = vshrl.u32 %v175, 7
  %v177 = vsub.s32 0, %v176
  %v178 = vrot.slane %v173, %v177
  %v180 = vadd.f32 %v171, %v178
  %v181 = vadd.f32 %v172, %v178
  %v182 = vtanh.pop %v180
  %v183 = vtanh.pop %v181
  %v184 = vld [vmem:[%s5] sm:$0xff]
  %v185 = vld [vmem:[%s5 + $0x8] sm:$0xff]
  %v186 = vmul.f32 %v182, %v184
  %v187 = vmul.f32 %v183, %v185
  %188 = vst.msk [vmem:[%s6] sm:$0xff] %vm54, %v186
  %189 = vst.msk [vmem:[%s6 + $0x8] sm:$0xff] %vm54, %v187
  // Predicated region
  $region26: #{_lambda_.8} parent=0 // pred_check
    _
  $region27: #{_lambda_.8} parent=0 // pred_check_branch
    %191 = sbr.rel (0) target = $region29
  $region28: #{_lambda_.8} parent=0 // pred_region
    _
  $region29: #{_lambda_.8} parent=0 // pred_fallthru
    _
  // Predicated region
  $region30: #{_lambda_.8} parent=0 // pred_check
    _
  $region31: #{_lambda_.8} parent=0 // pred_check_branch
    %193 = sbr.rel (0) target = $region33
  $region32: #{_lambda_.8} parent=0 // pred_region
    _
  $region33: #{_lambda_.8} parent=0 // pred_fallthru
    _

// kernel: _lambda_.9
$region0: #{_lambda_.9}
  #allocation0 [shape = 'u32[]', space=smem, size = 0x4, offset = 0x4, fixed_abs, tag = 'smem constant byte address 0x4 - core index']
  #allocation1 [shape = 'u32[144,128]{1,0:T(1,128)}', space=vmem, size = 0x12000, scoped, tag = 'internal scratch']
  %s0 = inlined_call_operand.vmem [shape: f32[16,160], index: 0, kind: input, shape index: {}]
  %s1 = inlined_call_operand.vmem [shape: f32[160,4], index: 1, kind: input, shape index: {}]
  %s2 = inlined_call_operand.vmem [shape: f32[1,4], index: 2, kind: input, shape index: {}]
  %s3 = inlined_call_operand.vmem [shape: f32[1,4], index: 3, kind: input, shape index: {}]
  %s4 = inlined_call_operand.vmem [shape: f32[1,4], index: 4, kind: input, shape index: {}]
  %s5 = inlined_call_operand.vmem [shape: f32[16,4], index: 5, kind: input, shape index: {}]
  %s6 = inlined_call_operand.vmem [shape: f32[16,4], index: 6, kind: output, shape index: {}]
  %s7 = sld [smem:[#allocation0]]
  $region34: #{_lambda_.9} parent=0
    _
  %s9 = ssub.s32 1, %s7
  %s10 = scalar_select 0, %s9, %s7
  // Predicated region
  $region2: #{_lambda_.9} parent=0 // pred_check
    _
  $region3: #{_lambda_.9} parent=0 // pred_check_branch
    %12 = sbr.rel (0) target = $region5
  $region4: #{_lambda_.9} parent=0 // pred_region
    _
  $region5: #{_lambda_.9} parent=0 // pred_fallthru
    _
  // Predicated region
  $region6: #{_lambda_.9} parent=0 // pred_check
    _
  $region7: #{_lambda_.9} parent=0 // pred_check_branch
    %14 = sbr.rel (0) target = $region9
  $region8: #{_lambda_.9} parent=0 // pred_region
    _
  $region9: #{_lambda_.9} parent=0 // pred_fallthru
    _
  // Predicated region
  $region10: #{_lambda_.9} parent=0 // pred_check
    _
  $region11: #{_lambda_.9} parent=0 // pred_check_branch
    %16 = sbr.rel (0) target = $region13
  $region12: #{_lambda_.9} parent=0 // pred_region
    _
  $region13: #{_lambda_.9} parent=0 // pred_fallthru
    _
  // Predicated region
  $region14: #{_lambda_.9} parent=0 // pred_check
    _
  $region15: #{_lambda_.9} parent=0 // pred_check_branch
    %18 = sbr.rel (0) target = $region17
  $region16: #{_lambda_.9} parent=0 // pred_region
    _
  $region17: #{_lambda_.9} parent=0 // pred_fallthru
    _
  // Predicated region
  $region18: #{_lambda_.9} parent=0 // pred_check
    _
  $region19: #{_lambda_.9} parent=0 // pred_check_branch
    %20 = sbr.rel (0) target = $region21
  $region20: #{_lambda_.9} parent=0 // pred_region
    _
  $region21: #{_lambda_.9} parent=0 // pred_fallthru
    _
  // Predicated region
  $region22: #{_lambda_.9} parent=0 // pred_check
    _
  $region23: #{_lambda_.9} parent=0 // pred_check_branch
    %22 = sbr.rel (0) target = $region25
  $region24: #{_lambda_.9} parent=0 // pred_region
    _
  $region25: #{_lambda_.9} parent=0 // pred_fallthru
    _
  %v23 = vld [vmem:[%s0] sm:$0xff]
  %v24 = vld [vmem:[%s0 + $0x8] sm:$0xff]
  %v25 = vld [vmem:[%s0 + $0x10] sm:$0xff]
  %v26 = vld [vmem:[%s0 + $0x18] sm:$0xff]
  %v27 = vld [vmem:[%s1] sm:$0xff]
  %v28 = vld [vmem:[%s1 + $0x8] sm:$0xff]
  %v29 = vld [vmem:[%s1 + $0x10] sm:$0xff]
  %v30 = vld [vmem:[%s1 + $0x18] sm:$0xff]
  %v31 = vld [vmem:[%s1 + $0x20] sm:$0xff]
  %v32 = vld [vmem:[%s1 + $0x28] sm:$0xff]
  %v33 = vld [vmem:[%s1 + $0x30] sm:$0xff]
  %v34 = vld [vmem:[%s1 + $0x38] sm:$0xff]
  %v35 = vld [vmem:[%s1 + $0x40] sm:$0xff]
  %v36 = vld [vmem:[%s1 + $0x48] sm:$0xff]
  %v37 = vld [vmem:[%s1 + $0x50] sm:$0xff]
  %v38 = vld [vmem:[%s1 + $0x58] sm:$0xff]
  %v39 = vld [vmem:[%s1 + $0x60] sm:$0xff]
  %v40 = vld [vmem:[%s1 + $0x68] sm:$0xff]
  %v41 = vld [vmem:[%s1 + $0x70] sm:$0xff]
  %v42 = vld [vmem:[%s1 + $0x78] sm:$0xff]
  %v43 = vld [vmem:[%s1 + $0x80] sm:$0xff]
  %v44 = vld [vmem:[%s1 + $0x88] sm:$0xff]
  %v45 = vld [vmem:[%s1 + $0x90] sm:$0xff]
  %v46 = vld [vmem:[%s1 + $0x98] sm:$0xff]
  %v47 = vld [vmem:[%s2] sm:$0x1]
  %v49 = vlaneseq
  %v50 = vshrl.u32 %v49, 7
  %v51 = vsub.s32 0, %v50
  %v52 = vrot.slane %v47, %v51
  %vm54 = vcmask 261120
  %v56 = vsel %vm54, %v24, 0
  %v59 = vsel %vm54, %v26, 0
  %61 = vmatprep.subr.mxu0 0.0
  %62 = vmatpush1.msra.mxu0 %v42
  %63 = vmatprep.subr.mxu0 0.0
  %64 = vmatpush1.msra.mxu0 %v41
  %65 = vmatprep.subr.mxu0 0.0
  %66 = vmatpush1.msra.mxu0 %v40
  %67 = vmatprep.subr.mxu0 0.0
  %68 = vmatpush1.msra.mxu0 %v39
  %69 = vmatprep.subr.mxu0 0.0
  %70 = vmatpush1.msra.mxu0 %v38
  %71 = vmatprep.subr.mxu0 0.0
  %72 = vmatpush1.msra.mxu0 %v37
  %73 = vmatprep.subr.mxu0 0.0
  %74 = vmatpush1.msra.mxu0 %v36
  %75 = vmatprep.subr.mxu0 0.0
  %76 = vmatpush1.msra.mxu0 %v35
  %77 = vmatprep.subr.mxu0 0.0
  %78 = vmatpush1.msra.mxu0 %v34
  %79 = vmatprep.subr.mxu0 0.0
  %80 = vmatpush1.msra.mxu0 %v33
  %81 = vmatprep.subr.mxu0 0.0
  %82 = vmatpush1.msra.mxu0 %v32
  %83 = vmatprep.subr.mxu0 0.0
  %84 = vmatpush1.msra.mxu0 %v31
  %85 = vmatprep.subr.mxu0 0.0
  %86 = vmatpush1.msra.mxu0 %v30
  %87 = vmatprep.subr.mxu0 0.0
  %88 = vmatpush1.msra.mxu0 %v29
  %89 = vmatprep.subr.mxu0 0.0
  %90 = vmatpush1.msra.mxu0 %v28
  %91 = vmatprep.subr.mxu0 0.0
  %92 = vmatpush1.msra.mxu0 %v27
  %93 = vmatprep.subr.mxu0 0.0
  %94 = vmatpush2.msra.mxu0 0.0
  %95 = vmatprep.subr.mxu0 0.0
  %96 = vmatpush2.msra.mxu0 0.0
  %97 = vmatprep.subr.mxu0 0.0
  %98 = vmatpush2.msra.mxu0 0.0
  %99 = vmatprep.subr.mxu0 0.0
  %100 = vmatpush2.msra.mxu0 0.0
  %101 = vmatprep.subr.mxu0 0.0
  %102 = vmatpush2.msra.mxu0 0.0
  %103 = vmatprep.subr.mxu0 0.0
  %104 = vmatpush2.msra.mxu0 0.0
  %105 = vmatprep.subr.mxu0 0.0
  %106 = vmatpush2.msra.mxu0 0.0
  %107 = vmatprep.subr.mxu0 0.0
  %108 = vmatpush2.msra.mxu0 0.0
  %109 = vmatprep.subr.mxu0 0.0
  %110 = vmatpush2.msra.mxu0 0.0
  %111 = vmatprep.subr.mxu0 0.0
  %112 = vmatpush2.msra.mxu0 0.0
  %113 = vmatprep.subr.mxu0 0.0
  %114 = vmatpush2.msra.mxu0 0.0
  %115 = vmatprep.subr.mxu0 0.0
  %116 = vmatpush2.msra.mxu0 0.0
  %117 = vmatprep.subr.mxu0 0.0
  %118 = vmatpush2.msra.mxu0 %v46
  %119 = vmatprep.subr.mxu0 0.0
  %120 = vmatpush2.msra.mxu0 %v45
  %121 = vmatprep.subr.mxu0 0.0
  %122 = vmatpush2.msra.mxu0 %v44
  %123 = vmatprep.subr.mxu0 0.0
  %124 = vmatpush2.msra.mxu0 %v43
  %125 = vmatprep.mubr.f32.mxu0 %v56
  %126 = vmatmul.mubr.f32.gmra.mxu0 %v23
  %v127 = vpop.f32.mrf.mxu0
  %v128 = vadd.f32 %v52, %v127
  %v129 = vpop.f32.mrf.mxu0
  %130 = vmatprep.mubr.f32.mxu0 %v59
  %131 = vmatmul.mubr.f32.gmra.mxu0 %v25
  %v132 = vpop.f32.mrf.mxu0
  %v133 = vadd.f32 %v52, %v132
  %v134 = vpop.f32.mrf.mxu0
  %135 = vdwg.mxu0
  %vm136 = vcmask 31744
  %v137 = vsel %vm136, %v128, 0.0
  %v138 = vsel %vm136, %v133, 0.0
  %v139 = vadd.f32 %v137, %v138
  %v140 = vrot.slane %v139, 4
  %v141 = vadd.f32 %v139, %v140
  %v142 = vrot.slane %v141, 2
  %v143 = vadd.f32 %v141, %v142
  %v144 = vrot.slane %v143, 1
  %v145 = vadd.f32 %v143, %v144
  %v146 = vmul.f32 %v145, 0.0625
  %v147 = vsub.f32 %v128, %v146
  %v148 = vsub.f32 %v133, %v146
  %v149 = vmul.f32 %v147, %v147
  %v150 = vmul.f32 %v148, %v148
  %v151 = vsel %vm136, %v149, 0.0
  %v152 = vsel %vm136, %v150, 0.0
  %v153 = vadd.f32 %v151, %v152
  %v154 = vrot.slane %v153, 4
  %v155 = vadd.f32 %v153, %v154
  %v156 = vrot.slane %v155, 2
  %v157 = vadd.f32 %v155, %v156
  %v158 = vrot.slane %v157, 1
  %v159 = vadd.f32 %v157, %v158
  %v160 = vmul.f32 %v159, 0.0625
  %v161 = vadd.f32 %v160, 1e-05
  %v162 = vrsqrt.pop %v161
  %v163 = vmul.f32 %v147, %v162
  %v164 = vmul.f32 %v148, %v162
  %v165 = vld [vmem:[%s3] sm:$0x1]
  %v167 = vlaneseq
  %v168 = vshrl.u32 %v167, 7
  %v169 = vsub.s32 0, %v168
  %v170 = vrot.slane %v165, %v169
  %v172 = vmul.f32 %v163, %v170
  %v173 = vmul.f32 %v164, %v170
  %v174 = vld [vmem:[%s4] sm:$0x1]
  %v176 = vlaneseq
  %v177 = vshrl.u32 %v176, 7
  %v178 = vsub.s32 0, %v177
  %v179 = vrot.slane %v174, %v178
  %v181 = vadd.f32 %v172, %v179
  %v182 = vadd.f32 %v173, %v179
  %v183 = vld [vmem:[%s5] sm:$0xff]
  %v184 = vld [vmem:[%s5 + $0x8] sm:$0xff]
  %v185 = vmul.f32 %v181, %v183
  %v186 = vmul.f32 %v182, %v184
  %187 = vst.msk [vmem:[%s6] sm:$0xff] %vm136, %v185
  %188 = vst.msk [vmem:[%s6 + $0x8] sm:$0xff] %vm136, %v186
  // Predicated region
  $region26: #{_lambda_.9} parent=0 // pred_check
    _
  $region27: #{_lambda_.9} parent=0 // pred_check_branch
    %190 = sbr.rel (0) target = $region29
  $region28: #{_lambda_.9} parent=0 // pred_region
    _
  $region29: #{_lambda_.9} parent=0 // pred_fallthru
    _
  // Predicated region
  $region30: #{_lambda_.9} parent=0 // pred_check
    _
  $region31: #{_lambda_.9} parent=0 // pred_check_branch
    %192 = sbr.rel (0) target = $region33
  $region32: #{_lambda_.9} parent=0 // pred_region
    _
  $region33: #{_lambda_.9} parent=0 // pred_fallthru
    _

// kernel: _lambda_.6
$region0: #{_lambda_.6}
  #allocation0 [shape = 'u32[]', space=smem, size = 0x4, offset = 0x4, fixed_abs, tag = 'smem constant byte address 0x4 - core index']
  #allocation1 [shape = 'u32[144,128]{1,0:T(1,128)}', space=vmem, size = 0x12000, scoped, tag = 'internal scratch']
  #allocation2 [shape = 'f32[2,128]{1,0:T(2,128)}', space=vmem, size = 0x400, scoped, tag = 'scratch operand']
  #allocation3 [shape = 'f32[2,128]{1,0:T(2,128)}', space=vmem, size = 0x400, scoped, tag = 'scratch operand']
  #allocation4 [shape = 'f32[2,128]{1,0:T(2,128)}', space=vmem, size = 0x400, scoped, tag = 'scratch operand']
  #allocation5 [shape = 'f32[2,128]{1,0:T(2,128)}', space=vmem, size = 0x400, scoped, tag = 'scratch operand']
  #allocation6 [shape = 'f32[2,32]{1,0:T(2,128)}', space=vmem, size = 0x400, scoped, tag = 'scratch operand']
  #allocation7 [shape = 'f32[2,4]{1,0:T(2,128)}', space=vmem, size = 0x400, scoped, tag = 'scratch operand']
  #allocation8 [shape = 'f32[2,8]{1,0:T(2,128)}', space=vmem, size = 0x400, scoped, tag = 'scratch operand']
  #allocation9 [shape = 'f32[2,8]{1,0:T(2,128)}', space=vmem, size = 0x400, scoped, tag = 'scratch operand']
  #allocation10 [shape = 'f32[2,128]{1,0:T(2,128)}', space=vmem, size = 0x400, scoped, tag = 'scratch operand']
  #allocation11 [shape = 'f32[2,256]{1,0:T(2,128)}', space=vmem, size = 0x800, scoped, tag = 'scratch operand']
  #allocation12 [shape = 's32[1]{0}', space=sflag, size = 0x4, scoped, tag = 'scoped memory for _lambda_.6']
  #allocation13 [shape = 'u8[512]{0}', space=smem, size = 0x200, scoped, tag = 'prefetched SMEM operand 0']
  %s0 = inlined_call_operand.smem [shape: u32[35], index: -1, kind: input, shape index: {}]
  %s1 = sld [smem:[%s0]]
  %s2 = scalar_lea.smem %s0, 1
  %s3 = sld [smem:[%s2]]
  %s4 = scalar_lea.smem %s0, 2
  %s5 = sld [smem:[%s4]]
  %s6 = scalar_lea.smem %s0, 3
  %s7 = sld [smem:[%s6]]
  %s8 = scalar_lea.smem %s0, 4
  %s9 = sld [smem:[%s8]]
  %s10 = scalar_lea.smem %s0, 5
  %s11 = sld [smem:[%s10]]
  %s12 = scalar_lea.smem %s0, 6
  %s13 = sld [smem:[%s12]]
  %s14 = scalar_lea.smem %s0, 7
  %s15 = sld [smem:[%s14]]
  %s16 = scalar_lea.smem %s0, 8
  %s17 = sld [smem:[%s16]]
  %s18 = scalar_lea.smem %s0, 9
  %s19 = sld [smem:[%s18]]
  %s20 = scalar_lea.smem %s0, 10
  %s21 = sld [smem:[%s20]]
  %s22 = scalar_lea.smem %s0, 11
  %s23 = sld [smem:[%s22]]
  %s24 = scalar_lea.smem %s0, 12
  %s25 = sld [smem:[%s24]]
  %s26 = scalar_lea.smem %s0, 13
  %s27 = sld [smem:[%s26]]
  %s28 = scalar_lea.smem %s0, 14
  %s29 = sld [smem:[%s28]]
  %s30 = scalar_lea.smem %s0, 15
  %s31 = sld [smem:[%s30]]
  %s32 = scalar_lea.smem %s0, 16
  %s33 = sld [smem:[%s32]]
  %s34 = scalar_lea.smem %s0, 17
  %s35 = sld [smem:[%s34]]
  %s36 = scalar_lea.smem %s0, 18
  %s37 = sld [smem:[%s36]]
  %s38 = scalar_lea.smem %s0, 19
  %s39 = sld [smem:[%s38]]
  %s40 = scalar_lea.smem %s0, 20
  %s41 = sld [smem:[%s40]]
  %s42 = scalar_lea.smem %s0, 21
  %s43 = sld [smem:[%s42]]
  %s44 = scalar_lea.smem %s0, 22
  %s45 = sld [smem:[%s44]]
  %s46 = scalar_lea.smem %s0, 23
  %s47 = sld [smem:[%s46]]
  %s48 = scalar_lea.smem %s0, 24
  %s49 = sld [smem:[%s48]]
  %s50 = scalar_lea.smem %s0, 25
  %s51 = sld [smem:[%s50]]
  %s52 = scalar_lea.smem %s0, 26
  %s53 = sld [smem:[%s52]]
  %s54 = scalar_lea.smem %s0, 27
  %s55 = sld [smem:[%s54]]
  %s56 = scalar_lea.smem %s0, 28
  %s57 = sld [smem:[%s56]]
  %s58 = scalar_lea.smem %s0, 29
  %s59 = sld [smem:[%s58]]
  %s60 = scalar_lea.smem %s0, 30
  %s61 = sld [smem:[%s60]]
  %s62 = scalar_lea.smem %s0, 31
  %s63 = sld [smem:[%s62]]
  %s64 = scalar_lea.smem %s0, 32
  %s65 = sld [smem:[%s64]]
  %s66 = scalar_lea.smem %s0, 33
  %s67 = sld [smem:[%s66]]
  %s68 = scalar_lea.smem %s0, 34
  %s69 = sld [smem:[%s68]]
  %70 = xla_tuple %s67, %s69
  %s71 = sld [smem:[#allocation0]]
  $region173: #{_lambda_.6} parent=0
    _
  %s73 = ssub.s32 1, %s71
  %s74 = scalar_select 0, %s73, %s71
  %s75 = sshll.u32 %s1, 4
  %s76 = int_to_ptr.vmem [resolvable:$true] %s75
  %78 = dma.vmem_to_smem %s76, 16, [#allocation13], [#allocation12]
  %79 = dma.done [#allocation12], 16
  %80 = sfence
  loop: start=0, step=1, limit=10
  $region2: #{_lambda_.6} parent=0 // loop_pre_header
    _
  $region3: #{_lambda_.6} parent=0 // loop_header
    %s82 = sphi 0, %s86
    %p83 = scmp.ge.s32.totalorder %s82, 10
    %s92 = sphi 0, %s94
    %s95 = sphi 0, %s92
    %s96 = sphi 0, %s95
    %s112 = sphi 0, %s96
    %s118 = sphi 0, %s120
    %s121 = sphi 0, %s118
    %s122 = sphi 0, %s121
    %s138 = sphi 0, %s122
    %s144 = sphi 0, %s146
    %s147 = sphi 0, %s144
    %s148 = sphi 0, %s147
    %s164 = sphi 0, %s148
    %s170 = sphi 0, %s172
    %s173 = sphi 0, %s170
    %s174 = sphi 0, %s173
    %s190 = sphi 0, %s174
    %s194 = sphi 0, %s194
    %s196 = sphi 0, %s194
    %s197 = sphi 0, %s196
    %s211 = sphi 0, %s197
    %s215 = sphi 0, %s215
    %s217 = sphi 0, %s215
    %s218 = sphi 0, %s217
    %s232 = sphi 0, %s218
    %s236 = sphi 0, %s236
    %s238 = sphi 0, %s236
    %s239 = sphi 0, %s238
    %s253 = sphi 0, %s239
    %s257 = sphi 0, %s257
    %s259 = sphi 0, %s257
    %s260 = sphi 0, %s259
    %s274 = sphi 0, %s260
    %s278 = sphi 0, %s278
    %s280 = sphi 0, %s278
    %s281 = sphi 0, %s280
    %s295 = sphi 0, %s281
    %s299 = sphi 0, %s299
    %s301 = sphi 0, %s299
    %s302 = sphi 0, %s301
    %s316 = sphi 0, %s302
    %s320 = sphi 0, %s320
    %s322 = sphi 0, %s320
    %s323 = sphi 0, %s322
    %s337 = sphi 0, %s323
    %s341 = sphi 0, %s341
    %s343 = sphi 0, %s341
    %s344 = sphi 0, %s343
    %s358 = sphi 0, %s344
    %s362 = sphi 0, %s362
    %s364 = sphi 0, %s362
    %s365 = sphi 0, %s364
    %s379 = sphi 0, %s365
    %s383 = sphi 0, %s383
    %s385 = sphi 0, %s383
    %s386 = sphi 0, %s385
    %s400 = sphi 0, %s386
    %s404 = sphi 0, %s404
    %s406 = sphi 0, %s404
    %s407 = sphi 0, %s406
    %s421 = sphi 0, %s407
    %s425 = sphi 0, %s425
    %s427 = sphi 0, %s425
    %s428 = sphi 0, %s427
    %s442 = sphi 0, %s428
    %s446 = sphi 0, %s446
    %s448 = sphi 0, %s446
    %s449 = sphi 0, %s448
    %s463 = sphi 0, %s449
    %s467 = sphi 0, %s467
    %s469 = sphi 0, %s467
    %s470 = sphi 0, %s469
    %s484 = sphi 0, %s470
    %s488 = sphi 0, %s488
    %s490 = sphi 0, %s488
    %s491 = sphi 0, %s490
    %s505 = sphi 0, %s491
    %s509 = sphi 0, %s509
    %s511 = sphi 0, %s509
    %s512 = sphi 0, %s511
    %s526 = sphi 0, %s512
    %s530 = sphi 0, %s530
    %s532 = sphi 0, %s530
    %s533 = sphi 0, %s532
    %s547 = sphi 0, %s533
    %s551 = sphi 0, %s551
    %s553 = sphi 0, %s551
    %s554 = sphi 0, %s553
    %s568 = sphi 0, %s554
    %s572 = sphi 0, %s572
    %s574 = sphi 0, %s572
    %s575 = sphi 0, %s574
    %s589 = sphi 0, %s575
    %s593 = sphi 0, %s593
    %s595 = sphi 0, %s593
    %s596 = sphi 0, %s595
    %s610 = sphi 0, %s596
    %s614 = sphi 0, %s614
    %s616 = sphi 0, %s614
    %s617 = sphi 0, %s616
    %s631 = sphi 0, %s617
    %s635 = sphi 0, %s635
    %s637 = sphi 0, %s635
    %s638 = sphi 0, %s637
    %s652 = sphi 0, %s638
    %s656 = sphi 0, %s656
    %s658 = sphi 0, %s656
    %s659 = sphi 0, %s658
    %s673 = sphi 0, %s659
    %s677 = sphi 0, %s677
    %s679 = sphi 0, %s677
    %s680 = sphi 0, %s679
    %s694 = sphi 0, %s680
    %s698 = sphi 0, %s698
    %s700 = sphi 0, %s698
    %s701 = sphi 0, %s700
    %s715 = sphi 0, %s701
    %s719 = sphi 0, %s719
    %s721 = sphi 0, %s719
    %s722 = sphi 0, %s721
    %s736 = sphi 0, %s722
    %s740 = sphi 0, %s740
    %s742 = sphi 0, %s740
    %s743 = sphi 0, %s742
    %s757 = sphi 0, %s743
    %s761 = sphi 0, %s761
    %s763 = sphi 0, %s761
    %s764 = sphi 0, %s763
    %s778 = sphi 0, %s764
    %s784 = sphi 0, %s786
    %s787 = sphi 0, %s784
    %s788 = sphi 0, %s787
    %s804 = sphi 0, %s788
    %s810 = sphi 0, %s812
    %s813 = sphi 0, %s810
    %s814 = sphi 0, %s813
    %s830 = sphi 0, %s814
  $region4: #{_lambda_.6} parent=0 // loop_header_branch
    %85 = sbr.rel (%p83) target = $region8
  $region5: #{_lambda_.6} parent=0 // loop_body
    %s87 = ssub.s32 %s82, 1
    %s88 = ssub.s32 %s82, 2
    %s89 = sadd.s32 %s82, 1
    %s90 = ssub.s32 %s82, %s89
    %p91 = scmp.eq.s32.totalorder %s90, 0
    %s93 = sadd.s32 %s92, 1
    %s94 = scalar_select %p91, %s92, %s93
    %p97 = pneg %p91
    %p98 = scmp.eq.s32.totalorder %s82, 7
    %p99 = por %p97, %p98
    %p100 = scmp.ne.s32.totalorder %s92, %s95
    %p101 = scmp.eq.s32.totalorder %s82, 0
    %p102 = por %p100, %p101
    %p103 = scmp.ne.s32.totalorder %s92, %s95
    %p104 = scmp.eq.s32.totalorder %s87, 7
    %p105 = por %p103, %p104
    %p106 = scmp.ne.s32.totalorder %s95, %s96
    %p107 = scmp.eq.s32.totalorder %s87, 0
    %p108 = por %p106, %p107
    %p109 = scmp.ne.s32.totalorder %s95, %s96
    %p110 = scmp.eq.s32.totalorder %s88, 7
    %p111 = por %p109, %p110
    %p113 = scmp.ne.s32.totalorder %s96, %s112
    %p114 = scmp.eq.s32.totalorder %s88, 0
    %p115 = por %p113, %p114
    %s116 = ssub.s32 %s82, %s89
    %p117 = scmp.eq.s32.totalorder %s116, 0
    %s119 = sadd.s32 %s118, 1
    %s120 = scalar_select %p117, %s118, %s119
    %p123 = pneg %p117
    %p124 = scmp.eq.s32.totalorder %s82, 7
    %p125 = por %p123, %p124
    %p126 = scmp.ne.s32.totalorder %s118, %s121
    %p127 = scmp.eq.s32.totalorder %s82, 0
    %p128 = por %p126, %p127
    %p129 = scmp.ne.s32.totalorder %s118, %s121
    %p130 = scmp.eq.s32.totalorder %s87, 7
    %p131 = por %p129, %p130
    %p132 = scmp.ne.s32.totalorder %s121, %s122
    %p133 = scmp.eq.s32.totalorder %s87, 0
    %p134 = por %p132, %p133
    %p135 = scmp.ne.s32.totalorder %s121, %s122
    %p136 = scmp.eq.s32.totalorder %s88, 7
    %p137 = por %p135, %p136
    %p139 = scmp.ne.s32.totalorder %s122, %s138
    %p140 = scmp.eq.s32.totalorder %s88, 0
    %p141 = por %p139, %p140
    %s142 = ssub.s32 %s82, %s89
    %p143 = scmp.eq.s32.totalorder %s142, 0
    %s145 = sadd.s32 %s144, 1
    %s146 = scalar_select %p143, %s144, %s145
    %p149 = pneg %p143
    %p150 = scmp.eq.s32.totalorder %s82, 7
    %p151 = por %p149, %p150
    %p152 = scmp.ne.s32.totalorder %s144, %s147
    %p153 = scmp.eq.s32.totalorder %s82, 0
    %p154 = por %p152, %p153
    %p155 = scmp.ne.s32.totalorder %s144, %s147
    %p156 = scmp.eq.s32.totalorder %s87, 7
    %p157 = por %p155, %p156
    %p158 = scmp.ne.s32.totalorder %s147, %s148
    %p159 = scmp.eq.s32.totalorder %s87, 0
    %p160 = por %p158, %p159
    %p161 = scmp.ne.s32.totalorder %s147, %s148
    %p162 = scmp.eq.s32.totalorder %s88, 7
    %p163 = por %p161, %p162
    %p165 = scmp.ne.s32.totalorder %s148, %s164
    %p166 = scmp.eq.s32.totalorder %s88, 0
    %p167 = por %p165, %p166
    %s168 = ssub.s32 %s82, %s89
    %p169 = scmp.eq.s32.totalorder %s168, 0
    %s171 = sadd.s32 %s170, 1
    %s172 = scalar_select %p169, %s170, %s171
    %p175 = pneg %p169
    %p176 = scmp.eq.s32.totalorder %s82, 7
    %p177 = por %p175, %p176
    %p178 = scmp.ne.s32.totalorder %s170, %s173
    %p179 = scmp.eq.s32.totalorder %s82, 0
    %p180 = por %p178, %p179
    %p181 = scmp.ne.s32.totalorder %s170, %s173
    %p182 = scmp.eq.s32.totalorder %s87, 7
    %p183 = por %p181, %p182
    %p184 = scmp.ne.s32.totalorder %s173, %s174
    %p185 = scmp.eq.s32.totalorder %s87, 0
    %p186 = por %p184, %p185
    %p187 = scmp.ne.s32.totalorder %s173, %s174
    %p188 = scmp.eq.s32.totalorder %s88, 7
    %p189 = por %p187, %p188
    %p191 = scmp.ne.s32.totalorder %s174, %s190
    %p192 = scmp.eq.s32.totalorder %s88, 0
    %p193 = por %p191, %p192
    %s195 = sadd.s32 %s194, 1
    %p198 = scmp.eq.s32.totalorder %s82, 7
    %p199 = scmp.ne.s32.totalorder %s194, %s196
    %p200 = scmp.eq.s32.totalorder %s82, 0
    %p201 = por %p199, %p200
    %p202 = scmp.ne.s32.totalorder %s194, %s196
    %p203 = scmp.eq.s32.totalorder %s87, 7
    %p204 = por %p202, %p203
    %p205 = scmp.ne.s32.totalorder %s196, %s197
    %p206 = scmp.eq.s32.totalorder %s87, 0
    %p207 = por %p205, %p206
    %p208 = scmp.ne.s32.totalorder %s196, %s197
    %p209 = scmp.eq.s32.totalorder %s88, 7
    %p210 = por %p208, %p209
    %p212 = scmp.ne.s32.totalorder %s197, %s211
    %p213 = scmp.eq.s32.totalorder %s88, 0
    %p214 = por %p212, %p213
    %s216 = sadd.s32 %s215, 1
    %p219 = scmp.eq.s32.totalorder %s82, 7
    %p220 = scmp.ne.s32.totalorder %s215, %s217
    %p221 = scmp.eq.s32.totalorder %s82, 0
    %p222 = por %p220, %p221
    %p223 = scmp.ne.s32.totalorder %s215, %s217
    %p224 = scmp.eq.s32.totalorder %s87, 7
    %p225 = por %p223, %p224
    %p226 = scmp.ne.s32.totalorder %s217, %s218
    %p227 = scmp.eq.s32.totalorder %s87, 0
    %p228 = por %p226, %p227
    %p229 = scmp.ne.s32.totalorder %s217, %s218
    %p230 = scmp.eq.s32.totalorder %s88, 7
    %p231 = por %p229, %p230
    %p233 = scmp.ne.s32.totalorder %s218, %s232
    %p234 = scmp.eq.s32.totalorder %s88, 0
    %p235 = por %p233, %p234
    %s237 = sadd.s32 %s236, 1
    %p240 = scmp.eq.s32.totalorder %s82, 7
    %p241 = scmp.ne.s32.totalorder %s236, %s238
    %p242 = scmp.eq.s32.totalorder %s82, 0
    %p243 = por %p241, %p242
    %p244 = scmp.ne.s32.totalorder %s236, %s238
    %p245 = scmp.eq.s32.totalorder %s87, 7
    %p246 = por %p244, %p245
    %p247 = scmp.ne.s32.totalorder %s238, %s239
    %p248 = scmp.eq.s32.totalorder %s87, 0
    %p249 = por %p247, %p248
    %p250 = scmp.ne.s32.totalorder %s238, %s239
    %p251 = scmp.eq.s32.totalorder %s88, 7
    %p252 = por %p250, %p251
    %p254 = scmp.ne.s32.totalorder %s239, %s253
    %p255 = scmp.eq.s32.totalorder %s88, 0
    %p256 = por %p254, %p255
    %s258 = sadd.s32 %s257, 1
    %p261 = scmp.eq.s32.totalorder %s82, 7
    %p262 = scmp.ne.s32.totalorder %s257, %s259
    %p263 = scmp.eq.s32.totalorder %s82, 0
    %p264 = por %p262, %p263
    %p265 = scmp.ne.s32.totalorder %s257, %s259
    %p266 = scmp.eq.s32.totalorder %s87, 7
    %p267 = por %p265, %p266
    %p268 = scmp.ne.s32.totalorder %s259, %s260
    %p269 = scmp.eq.s32.totalorder %s87, 0
    %p270 = por %p268, %p269
    %p271 = scmp.ne.s32.totalorder %s259, %s260
    %p272 = scmp.eq.s32.totalorder %s88, 7
    %p273 = por %p271, %p272
    %p275 = scmp.ne.s32.totalorder %s260, %s274
    %p276 = scmp.eq.s32.totalorder %s88, 0
    %p277 = por %p275, %p276
    %s279 = sadd.s32 %s278, 1
    %p282 = scmp.eq.s32.totalorder %s82, 7
    %p283 = scmp.ne.s32.totalorder %s278, %s280
    %p284 = scmp.eq.s32.totalorder %s82, 0
    %p285 = por %p283, %p284
    %p286 = scmp.ne.s32.totalorder %s278, %s280
    %p287 = scmp.eq.s32.totalorder %s87, 7
    %p288 = por %p286, %p287
    %p289 = scmp.ne.s32.totalorder %s280, %s281
    %p290 = scmp.eq.s32.totalorder %s87, 0
    %p291 = por %p289, %p290
    %p292 = scmp.ne.s32.totalorder %s280, %s281
    %p293 = scmp.eq.s32.totalorder %s88, 7
    %p294 = por %p292, %p293
    %p296 = scmp.ne.s32.totalorder %s281, %s295
    %p297 = scmp.eq.s32.totalorder %s88, 0
    %p298 = por %p296, %p297
    %s300 = sadd.s32 %s299, 1
    %p303 = scmp.eq.s32.totalorder %s82, 7
    %p304 = scmp.ne.s32.totalorder %s299, %s301
    %p305 = scmp.eq.s32.totalorder %s82, 0
    %p306 = por %p304, %p305
    %p307 = scmp.ne.s32.totalorder %s299, %s301
    %p308 = scmp.eq.s32.totalorder %s87, 7
    %p309 = por %p307, %p308
    %p310 = scmp.ne.s32.totalorder %s301, %s302
    %p311 = scmp.eq.s32.totalorder %s87, 0
    %p312 = por %p310, %p311
    %p313 = scmp.ne.s32.totalorder %s301, %s302
    %p314 = scmp.eq.s32.totalorder %s88, 7
    %p315 = por %p313, %p314
    %p317 = scmp.ne.s32.totalorder %s302, %s316
    %p318 = scmp.eq.s32.totalorder %s88, 0
    %p319 = por %p317, %p318
    %s321 = sadd.s32 %s320, 1
    %p324 = scmp.eq.s32.totalorder %s82, 7
    %p325 = scmp.ne.s32.totalorder %s320, %s322
    %p326 = scmp.eq.s32.totalorder %s82, 0
    %p327 = por %p325, %p326
    %p328 = scmp.ne.s32.totalorder %s320, %s322
    %p329 = scmp.eq.s32.totalorder %s87, 7
    %p330 = por %p328, %p329
    %p331 = scmp.ne.s32.totalorder %s322, %s323
    %p332 = scmp.eq.s32.totalorder %s87, 0
    %p333 = por %p331, %p332
    %p334 = scmp.ne.s32.totalorder %s322, %s323
    %p335 = scmp.eq.s32.totalorder %s88, 7
    %p336 = por %p334, %p335
    %p338 = scmp.ne.s32.totalorder %s323, %s337
    %p339 = scmp.eq.s32.totalorder %s88, 0
    %p340 = por %p338, %p339
    %s342 = sadd.s32 %s341, 1
    %p345 = scmp.eq.s32.totalorder %s82, 7
    %p346 = scmp.ne.s32.totalorder %s341, %s343
    %p347 = scmp.eq.s32.totalorder %s82, 0
    %p348 = por %p346, %p347
    %p349 = scmp.ne.s32.totalorder %s341, %s343
    %p350 = scmp.eq.s32.totalorder %s87, 7
    %p351 = por %p349, %p350
    %p352 = scmp.ne.s32.totalorder %s343, %s344
    %p353 = scmp.eq.s32.totalorder %s87, 0
    %p354 = por %p352, %p353
    %p355 = scmp.ne.s32.totalorder %s343, %s344
    %p356 = scmp.eq.s32.totalorder %s88, 7
    %p357 = por %p355, %p356
    %p359 = scmp.ne.s32.totalorder %s344, %s358
    %p360 = scmp.eq.s32.totalorder %s88, 0
    %p361 = por %p359, %p360
    %s363 = sadd.s32 %s362, 1
    %p366 = scmp.eq.s32.totalorder %s82, 7
    %p367 = scmp.ne.s32.totalorder %s362, %s364
    %p368 = scmp.eq.s32.totalorder %s82, 0
    %p369 = por %p367, %p368
    %p370 = scmp.ne.s32.totalorder %s362, %s364
    %p371 = scmp.eq.s32.totalorder %s87, 7
    %p372 = por %p370, %p371
    %p373 = scmp.ne.s32.totalorder %s364, %s365
    %p374 = scmp.eq.s32.totalorder %s87, 0
    %p375 = por %p373, %p374
    %p376 = scmp.ne.s32.totalorder %s364, %s365
    %p377 = scmp.eq.s32.totalorder %s88, 7
    %p378 = por %p376, %p377
    %p380 = scmp.ne.s32.totalorder %s365, %s379
    %p381 = scmp.eq.s32.totalorder %s88, 0
    %p382 = por %p380, %p381
    %s384 = sadd.s32 %s383, 1
    %p387 = scmp.eq.s32.totalorder %s82, 7
    %p388 = scmp.ne.s32.totalorder %s383, %s385
    %p389 = scmp.eq.s32.totalorder %s82, 0
    %p390 = por %p388, %p389
    %p391 = scmp.ne.s32.totalorder %s383, %s385
    %p392 = scmp.eq.s32.totalorder %s87, 7
    %p393 = por %p391, %p392
    %p394 = scmp.ne.s32.totalorder %s385, %s386
    %p395 = scmp.eq.s32.totalorder %s87, 0
    %p396 = por %p394, %p395
    %p397 = scmp.ne.s32.totalorder %s385, %s386
    %p398 = scmp.eq.s32.totalorder %s88, 7
    %p399 = por %p397, %p398
    %p401 = scmp.ne.s32.totalorder %s386, %s400
    %p402 = scmp.eq.s32.totalorder %s88, 0
    %p403 = por %p401, %p402
    %s405 = sadd.s32 %s404, 1
    %p408 = scmp.eq.s32.totalorder %s82, 7
    %p409 = scmp.ne.s32.totalorder %s404, %s406
    %p410 = scmp.eq.s32.totalorder %s82, 0
    %p411 = por %p409, %p410
    %p412 = scmp.ne.s32.totalorder %s404, %s406
    %p413 = scmp.eq.s32.totalorder %s87, 7
    %p414 = por %p412, %p413
    %p415 = scmp.ne.s32.totalorder %s406, %s407
    %p416 = scmp.eq.s32.totalorder %s87, 0
    %p417 = por %p415, %p416
    %p418 = scmp.ne.s32.totalorder %s406, %s407
    %p419 = scmp.eq.s32.totalorder %s88, 7
    %p420 = por %p418, %p419
    %p422 = scmp.ne.s32.totalorder %s407, %s421
    %p423 = scmp.eq.s32.totalorder %s88, 0
    %p424 = por %p422, %p423
    %s426 = sadd.s32 %s425, 1
    %p429 = scmp.eq.s32.totalorder %s82, 7
    %p430 = scmp.ne.s32.totalorder %s425, %s427
    %p431 = scmp.eq.s32.totalorder %s82, 0
    %p432 = por %p430, %p431
    %p433 = scmp.ne.s32.totalorder %s425, %s427
    %p434 = scmp.eq.s32.totalorder %s87, 7
    %p435 = por %p433, %p434
    %p436 = scmp.ne.s32.totalorder %s427, %s428
    %p437 = scmp.eq.s32.totalorder %s87, 0
    %p438 = por %p436, %p437
    %p439 = scmp.ne.s32.totalorder %s427, %s428
    %p440 = scmp.eq.s32.totalorder %s88, 7
    %p441 = por %p439, %p440
    %p443 = scmp.ne.s32.totalorder %s428, %s442
    %p444 = scmp.eq.s32.totalorder %s88, 0
    %p445 = por %p443, %p444
    %s447 = sadd.s32 %s446, 1
    %p450 = scmp.eq.s32.totalorder %s82, 7
    %p451 = scmp.ne.s32.totalorder %s446, %s448
    %p452 = scmp.eq.s32.totalorder %s82, 0
    %p453 = por %p451, %p452
    %p454 = scmp.ne.s32.totalorder %s446, %s448
    %p455 = scmp.eq.s32.totalorder %s87, 7
    %p456 = por %p454, %p455
    %p457 = scmp.ne.s32.totalorder %s448, %s449
    %p458 = scmp.eq.s32.totalorder %s87, 0
    %p459 = por %p457, %p458
    %p460 = scmp.ne.s32.totalorder %s448, %s449
    %p461 = scmp.eq.s32.totalorder %s88, 7
    %p462 = por %p460, %p461
    %p464 = scmp.ne.s32.totalorder %s449, %s463
    %p465 = scmp.eq.s32.totalorder %s88, 0
    %p466 = por %p464, %p465
    %s468 = sadd.s32 %s467, 1
    %p471 = scmp.eq.s32.totalorder %s82, 7
    %p472 = scmp.ne.s32.totalorder %s467, %s469
    %p473 = scmp.eq.s32.totalorder %s82, 0
    %p474 = por %p472, %p473
    %p475 = scmp.ne.s32.totalorder %s467, %s469
    %p476 = scmp.eq.s32.totalorder %s87, 7
    %p477 = por %p475, %p476
    %p478 = scmp.ne.s32.totalorder %s469, %s470
    %p479 = scmp.eq.s32.totalorder %s87, 0
    %p480 = por %p478, %p479
    %p481 = scmp.ne.s32.totalorder %s469, %s470
    %p482 = scmp.eq.s32.totalorder %s88, 7
    %p483 = por %p481, %p482
    %p485 = scmp.ne.s32.totalorder %s470, %s484
    %p486 = scmp.eq.s32.totalorder %s88, 0
    %p487 = por %p485, %p486
    %s489 = sadd.s32 %s488, 1
    %p492 = scmp.eq.s32.totalorder %s82, 7
    %p493 = scmp.ne.s32.totalorder %s488, %s490
    %p494 = scmp.eq.s32.totalorder %s82, 0
    %p495 = por %p493, %p494
    %p496 = scmp.ne.s32.totalorder %s488, %s490
    %p497 = scmp.eq.s32.totalorder %s87, 7
    %p498 = por %p496, %p497
    %p499 = scmp.ne.s32.totalorder %s490, %s491
    %p500 = scmp.eq.s32.totalorder %s87, 0
    %p501 = por %p499, %p500
    %p502 = scmp.ne.s32.totalorder %s490, %s491
    %p503 = scmp.eq.s32.totalorder %s88, 7
    %p504 = por %p502, %p503
    %p506 = scmp.ne.s32.totalorder %s491, %s505
    %p507 = scmp.eq.s32.totalorder %s88, 0
    %p508 = por %p506, %p507
    %s510 = sadd.s32 %s509, 1
    %p513 = scmp.eq.s32.totalorder %s82, 7
    %p514 = scmp.ne.s32.totalorder %s509, %s511
    %p515 = scmp.eq.s32.totalorder %s82, 0
    %p516 = por %p514, %p515
    %p517 = scmp.ne.s32.totalorder %s509, %s511
    %p518 = scmp.eq.s32.totalorder %s87, 7
    %p519 = por %p517, %p518
    %p520 = scmp.ne.s32.totalorder %s511, %s512
    %p521 = scmp.eq.s32.totalorder %s87, 0
    %p522 = por %p520, %p521
    %p523 = scmp.ne.s32.totalorder %s511, %s512
    %p524 = scmp.eq.s32.totalorder %s88, 7
    %p525 = por %p523, %p524
    %p527 = scmp.ne.s32.totalorder %s512, %s526
    %p528 = scmp.eq.s32.totalorder %s88, 0
    %p529 = por %p527, %p528
    %s531 = sadd.s32 %s530, 1
    %p534 = scmp.eq.s32.totalorder %s82, 7
    %p535 = scmp.ne.s32.totalorder %s530, %s532
    %p536 = scmp.eq.s32.totalorder %s82, 0
    %p537 = por %p535, %p536
    %p538 = scmp.ne.s32.totalorder %s530, %s532
    %p539 = scmp.eq.s32.totalorder %s87, 7
    %p540 = por %p538, %p539
    %p541 = scmp.ne.s32.totalorder %s532, %s533
    %p542 = scmp.eq.s32.totalorder %s87, 0
    %p543 = por %p541, %p542
    %p544 = scmp.ne.s32.totalorder %s532, %s533
    %p545 = scmp.eq.s32.totalorder %s88, 7
    %p546 = por %p544, %p545
    %p548 = scmp.ne.s32.totalorder %s533, %s547
    %p549 = scmp.eq.s32.totalorder %s88, 0
    %p550 = por %p548, %p549
    %s552 = sadd.s32 %s551, 1
    %p555 = scmp.eq.s32.totalorder %s82, 7
    %p556 = scmp.ne.s32.totalorder %s551, %s553
    %p557 = scmp.eq.s32.totalorder %s82, 0
    %p558 = por %p556, %p557
    %p559 = scmp.ne.s32.totalorder %s551, %s553
    %p560 = scmp.eq.s32.totalorder %s87, 7
    %p561 = por %p559, %p560
    %p562 = scmp.ne.s32.totalorder %s553, %s554
    %p563 = scmp.eq.s32.totalorder %s87, 0
    %p564 = por %p562, %p563
    %p565 = scmp.ne.s32.totalorder %s553, %s554
    %p566 = scmp.eq.s32.totalorder %s88, 7
    %p567 = por %p565, %p566
    %p569 = scmp.ne.s32.totalorder %s554, %s568
    %p570 = scmp.eq.s32.totalorder %s88, 0
    %p571 = por %p569, %p570
    %s573 = sadd.s32 %s572, 1
    %p576 = scmp.eq.s32.totalorder %s82, 7
    %p577 = scmp.ne.s32.totalorder %s572, %s574
    %p578 = scmp.eq.s32.totalorder %s82, 0
    %p579 = por %p577, %p578
    %p580 = scmp.ne.s32.totalorder %s572, %s574
    %p581 = scmp.eq.s32.totalorder %s87, 7
    %p582 = por %p580, %p581
    %p583 = scmp.ne.s32.totalorder %s574, %s575
    %p584 = scmp.eq.s32.totalorder %s87, 0
    %p585 = por %p583, %p584
    %p586 = scmp.ne.s32.totalorder %s574, %s575
    %p587 = scmp.eq.s32.totalorder %s88, 7
    %p588 = por %p586, %p587
    %p590 = scmp.ne.s32.totalorder %s575, %s589
    %p591 = scmp.eq.s32.totalorder %s88, 0
    %p592 = por %p590, %p591
    %s594 = sadd.s32 %s593, 1
    %p597 = scmp.eq.s32.totalorder %s82, 7
    %p598 = scmp.ne.s32.totalorder %s593, %s595
    %p599 = scmp.eq.s32.totalorder %s82, 0
    %p600 = por %p598, %p599
    %p601 = scmp.ne.s32.totalorder %s593, %s595
    %p602 = scmp.eq.s32.totalorder %s87, 7
    %p603 = por %p601, %p602
    %p604 = scmp.ne.s32.totalorder %s595, %s596
    %p605 = scmp.eq.s32.totalorder %s87, 0
    %p606 = por %p604, %p605
    %p607 = scmp.ne.s32.totalorder %s595, %s596
    %p608 = scmp.eq.s32.totalorder %s88, 7
    %p609 = por %p607, %p608
    %p611 = scmp.ne.s32.totalorder %s596, %s610
    %p612 = scmp.eq.s32.totalorder %s88, 0
    %p613 = por %p611, %p612
    %s615 = sadd.s32 %s614, 1
    %p618 = scmp.eq.s32.totalorder %s82, 7
    %p619 = scmp.ne.s32.totalorder %s614, %s616
    %p620 = scmp.eq.s32.totalorder %s82, 0
    %p621 = por %p619, %p620
    %p622 = scmp.ne.s32.totalorder %s614, %s616
    %p623 = scmp.eq.s32.totalorder %s87, 7
    %p624 = por %p622, %p623
    %p625 = scmp.ne.s32.totalorder %s616, %s617
    %p626 = scmp.eq.s32.totalorder %s87, 0
    %p627 = por %p625, %p626
    %p628 = scmp.ne.s32.totalorder %s616, %s617
    %p629 = scmp.eq.s32.totalorder %s88, 7
    %p630 = por %p628, %p629
    %p632 = scmp.ne.s32.totalorder %s617, %s631
    %p633 = scmp.eq.s32.totalorder %s88, 0
    %p634 = por %p632, %p633
    %s636 = sadd.s32 %s635, 1
    %p639 = scmp.eq.s32.totalorder %s82, 7
    %p640 = scmp.ne.s32.totalorder %s635, %s637
    %p641 = scmp.eq.s32.totalorder %s82, 0
    %p642 = por %p640, %p641
    %p643 = scmp.ne.s32.totalorder %s635, %s637
    %p644 = scmp.eq.s32.totalorder %s87, 7
    %p645 = por %p643, %p644
    %p646 = scmp.ne.s32.totalorder %s637, %s638
    %p647 = scmp.eq.s32.totalorder %s87, 0
    %p648 = por %p646, %p647
    %p649 = scmp.ne.s32.totalorder %s637, %s638
    %p650 = scmp.eq.s32.totalorder %s88, 7
    %p651 = por %p649, %p650
    %p653 = scmp.ne.s32.totalorder %s638, %s652
    %p654 = scmp.eq.s32.totalorder %s88, 0
    %p655 = por %p653, %p654
    %s657 = sadd.s32 %s656, 1
    %p660 = scmp.eq.s32.totalorder %s82, 7
    %p661 = scmp.ne.s32.totalorder %s656, %s658
    %p662 = scmp.eq.s32.totalorder %s82, 0
    %p663 = por %p661, %p662
    %p664 = scmp.ne.s32.totalorder %s656, %s658
    %p665 = scmp.eq.s32.totalorder %s87, 7
    %p666 = por %p664, %p665
    %p667 = scmp.ne.s32.totalorder %s658, %s659
    %p668 = scmp.eq.s32.totalorder %s87, 0
    %p669 = por %p667, %p668
    %p670 = scmp.ne.s32.totalorder %s658, %s659
    %p671 = scmp.eq.s32.totalorder %s88, 7
    %p672 = por %p670, %p671
    %p674 = scmp.ne.s32.totalorder %s659, %s673
    %p675 = scmp.eq.s32.totalorder %s88, 0
    %p676 = por %p674, %p675
    %s678 = sadd.s32 %s677, 1
    %p681 = scmp.eq.s32.totalorder %s82, 7
    %p682 = scmp.ne.s32.totalorder %s677, %s679
    %p683 = scmp.eq.s32.totalorder %s82, 0
    %p684 = por %p682, %p683
    %p685 = scmp.ne.s32.totalorder %s677, %s679
    %p686 = scmp.eq.s32.totalorder %s87, 7
    %p687 = por %p685, %p686
    %p688 = scmp.ne.s32.totalorder %s679, %s680
    %p689 = scmp.eq.s32.totalorder %s87, 0
    %p690 = por %p688, %p689
    %p691 = scmp.ne.s32.totalorder %s679, %s680
    %p692 = scmp.eq.s32.totalorder %s88, 7
    %p693 = por %p691, %p692
    %p695 = scmp.ne.s32.totalorder %s680, %s694
    %p696 = scmp.eq.s32.totalorder %s88, 0
    %p697 = por %p695, %p696
    %s699 = sadd.s32 %s698, 1
    %p702 = scmp.eq.s32.totalorder %s82, 7
    %p703 = scmp.ne.s32.totalorder %s698, %s700
    %p704 = scmp.eq.s32.totalorder %s82, 0
    %p705 = por %p703, %p704
    %p706 = scmp.ne.s32.totalorder %s698, %s700
    %p707 = scmp.eq.s32.totalorder %s87, 7
    %p708 = por %p706, %p707
    %p709 = scmp.ne.s32.totalorder %s700, %s701
    %p710 = scmp.eq.s32.totalorder %s87, 0
    %p711 = por %p709, %p710
    %p712 = scmp.ne.s32.totalorder %s700, %s701
    %p713 = scmp.eq.s32.totalorder %s88, 7
    %p714 = por %p712, %p713
    %p716 = scmp.ne.s32.totalorder %s701, %s715
    %p717 = scmp.eq.s32.totalorder %s88, 0
    %p718 = por %p716, %p717
    %s720 = sadd.s32 %s719, 1
    %p723 = scmp.eq.s32.totalorder %s82, 7
    %p724 = scmp.ne.s32.totalorder %s719, %s721
    %p725 = scmp.eq.s32.totalorder %s82, 0
    %p726 = por %p724, %p725
    %p727 = scmp.ne.s32.totalorder %s719, %s721
    %p728 = scmp.eq.s32.totalorder %s87, 7
    %p729 = por %p727, %p728
    %p730 = scmp.ne.s32.totalorder %s721, %s722
    %p731 = scmp.eq.s32.totalorder %s87, 0
    %p732 = por %p730, %p731
    %p733 = scmp.ne.s32.totalorder %s721, %s722
    %p734 = scmp.eq.s32.totalorder %s88, 7
    %p735 = por %p733, %p734
    %p737 = scmp.ne.s32.totalorder %s722, %s736
    %p738 = scmp.eq.s32.totalorder %s88, 0
    %p739 = por %p737, %p738
    %s741 = sadd.s32 %s740, 1
    %p744 = scmp.eq.s32.totalorder %s82, 7
    %p745 = scmp.ne.s32.totalorder %s740, %s742
    %p746 = scmp.eq.s32.totalorder %s82, 0
    %p747 = por %p745, %p746
    %p748 = scmp.ne.s32.totalorder %s740, %s742
    %p749 = scmp.eq.s32.totalorder %s87, 7
    %p750 = por %p748, %p749
    %p751 = scmp.ne.s32.totalorder %s742, %s743
    %p752 = scmp.eq.s32.totalorder %s87, 0
    %p753 = por %p751, %p752
    %p754 = scmp.ne.s32.totalorder %s742, %s743
    %p755 = scmp.eq.s32.totalorder %s88, 7
    %p756 = por %p754, %p755
    %p758 = scmp.ne.s32.totalorder %s743, %s757
    %p759 = scmp.eq.s32.totalorder %s88, 0
    %p760 = por %p758, %p759
    %s762 = sadd.s32 %s761, 1
    %p765 = scmp.eq.s32.totalorder %s82, 7
    %p766 = scmp.ne.s32.totalorder %s761, %s763
    %p767 = scmp.eq.s32.totalorder %s82, 0
    %p768 = por %p766, %p767
    %p769 = scmp.ne.s32.totalorder %s761, %s763
    %p770 = scmp.eq.s32.totalorder %s87, 7
    %p771 = por %p769, %p770
    %p772 = scmp.ne.s32.totalorder %s763, %s764
    %p773 = scmp.eq.s32.totalorder %s87, 0
    %p774 = por %p772, %p773
    %p775 = scmp.ne.s32.totalorder %s763, %s764
    %p776 = scmp.eq.s32.totalorder %s88, 7
    %p777 = por %p775, %p776
    %p779 = scmp.ne.s32.totalorder %s764, %s778
    %p780 = scmp.eq.s32.totalorder %s88, 0
    %p781 = por %p779, %p780
    %s782 = ssub.s32 %s82, %s89
    %p783 = scmp.eq.s32.totalorder %s782, 0
    %s785 = sadd.s32 %s784, 1
    %s786 = scalar_select %p783, %s784, %s785
    %p789 = pneg %p783
    %p790 = scmp.eq.s32.totalorder %s82, 7
    %p791 = por %p789, %p790
    %p792 = scmp.ne.s32.totalorder %s784, %s787
    %p793 = scmp.eq.s32.totalorder %s82, 0
    %p794 = por %p792, %p793
    %p795 = scmp.ne.s32.totalorder %s784, %s787
    %p796 = scmp.eq.s32.totalorder %s87, 7
    %p797 = por %p795, %p796
    %p798 = scmp.ne.s32.totalorder %s787, %s788
    %p799 = scmp.eq.s32.totalorder %s87, 0
    %p800 = por %p798, %p799
    %p801 = scmp.ne.s32.totalorder %s787, %s788
    %p802 = scmp.eq.s32.totalorder %s88, 7
    %p803 = por %p801, %p802
    %p805 = scmp.ne.s32.totalorder %s788, %s804
    %p806 = scmp.eq.s32.totalorder %s88, 0
    %p807 = por %p805, %p806
    %s808 = ssub.s32 %s82, %s89
    %p809 = scmp.eq.s32.totalorder %s808, 0
    %s811 = sadd.s32 %s810, 1
    %s812 = scalar_select %p809, %s810, %s811
    %p815 = pneg %p809
    %p816 = scmp.eq.s32.totalorder %s82, 7
    %p817 = por %p815, %p816
    %p818 = scmp.ne.s32.totalorder %s810, %s813
    %p819 = scmp.eq.s32.totalorder %s82, 0
    %p820 = por %p818, %p819
    %p821 = scmp.ne.s32.totalorder %s810, %s813
    %p822 = scmp.eq.s32.totalorder %s87, 7
    %p823 = por %p821, %p822
    %p824 = scmp.ne.s32.totalorder %s813, %s814
    %p825 = scmp.eq.s32.totalorder %s87, 0
    %p826 = por %p824, %p825
    %p827 = scmp.ne.s32.totalorder %s813, %s814
    %p828 = scmp.eq.s32.totalorder %s88, 7
    %p829 = por %p827, %p828
    %p831 = scmp.ne.s32.totalorder %s814, %s830
    %p832 = scmp.eq.s32.totalorder %s88, 0
    %p833 = por %p831, %p832
    %p834 = scmp.le.s32.totalorder 1, %s82
    %p835 = scmp.lt.s32.totalorder %s82, 9
    %p836 = pnand %p834, %p835
    %p837 = pneg %p836
    // Predicated region
    $region9: #{_lambda_.6} parent=5 // pred_check
      _
    $region10: #{_lambda_.6} parent=5 // pred_check_branch
      %839 = sbr.rel (%p836) target = $region12
    $region11: #{_lambda_.6} parent=5 // pred_region
      %s840 = ssub.s32 %s82, 1
      // Predicated region
      $region13: #{_lambda_.6} parent=11 // pred_check
        %p841 = pneg %p207
      $region14: #{_lambda_.6} parent=11 // pred_check_branch
        %843 = sbr.rel (%p841) target = $region16
      $region15: #{_lambda_.6} parent=11 // pred_region
        _
      $region16: #{_lambda_.6} parent=11 // pred_fallthru
        _
      // Predicated region
      $region17: #{_lambda_.6} parent=11 // pred_check
        %p844 = pneg %p228
      $region18: #{_lambda_.6} parent=11 // pred_check_branch
        %846 = sbr.rel (%p844) target = $region20
      $region19: #{_lambda_.6} parent=11 // pred_region
        _
      $region20: #{_lambda_.6} parent=11 // pred_fallthru
        _
      // Predicated region
      $region21: #{_lambda_.6} parent=11 // pred_check
        %p847 = pneg %p249
      $region22: #{_lambda_.6} parent=11 // pred_check_branch
        %849 = sbr.rel (%p847) target = $region24
      $region23: #{_lambda_.6} parent=11 // pred_region
        _
      $region24: #{_lambda_.6} parent=11 // pred_fallthru
        _
      // Predicated region
      $region25: #{_lambda_.6} parent=11 // pred_check
        %p850 = pneg %p270
      $region26: #{_lambda_.6} parent=11 // pred_check_branch
        %852 = sbr.rel (%p850) target = $region28
      $region27: #{_lambda_.6} parent=11 // pred_region
        _
      $region28: #{_lambda_.6} parent=11 // pred_fallthru
        _
      // Predicated region
      $region29: #{_lambda_.6} parent=11 // pred_check
        %p853 = pneg %p291
      $region30: #{_lambda_.6} parent=11 // pred_check_branch
        %855 = sbr.rel (%p853) target = $region32
      $region31: #{_lambda_.6} parent=11 // pred_region
        _
      $region32: #{_lambda_.6} parent=11 // pred_fallthru
        _
      // Predicated region
      $region33: #{_lambda_.6} parent=11 // pred_check
        %p856 = pneg %p312
      $region34: #{_lambda_.6} parent=11 // pred_check_branch
        %858 = sbr.rel (%p856) target = $region36
      $region35: #{_lambda_.6} parent=11 // pred_region
        _
      $region36: #{_lambda_.6} parent=11 // pred_fallthru
        _
      // Predicated region
      $region37: #{_lambda_.6} parent=11 // pred_check
        %p859 = pneg %p333
      $region38: #{_lambda_.6} parent=11 // pred_check_branch
        %861 = sbr.rel (%p859) target = $region40
      $region39: #{_lambda_.6} parent=11 // pred_region
        _
      $region40: #{_lambda_.6} parent=11 // pred_fallthru
        _
      // Predicated region
      $region41: #{_lambda_.6} parent=11 // pred_check
        %p862 = pneg %p354
      $region42: #{_lambda_.6} parent=11 // pred_check_branch
        %864 = sbr.rel (%p862) target = $region44
      $region43: #{_lambda_.6} parent=11 // pred_region
        _
      $region44: #{_lambda_.6} parent=11 // pred_fallthru
        _
      // Predicated region
      $region45: #{_lambda_.6} parent=11 // pred_check
        %p865 = pneg %p375
      $region46: #{_lambda_.6} parent=11 // pred_check_branch
        %867 = sbr.rel (%p865) target = $region48
      $region47: #{_lambda_.6} parent=11 // pred_region
        _
      $region48: #{_lambda_.6} parent=11 // pred_fallthru
        _
      // Predicated region
      $region49: #{_lambda_.6} parent=11 // pred_check
        %p868 = pneg %p396
      $region50: #{_lambda_.6} parent=11 // pred_check_branch
        %870 = sbr.rel (%p868) target = $region52
      $region51: #{_lambda_.6} parent=11 // pred_region
        _
      $region52: #{_lambda_.6} parent=11 // pred_fallthru
        _
      // Predicated region
      $region53: #{_lambda_.6} parent=11 // pred_check
        %p871 = pneg %p417
      $region54: #{_lambda_.6} parent=11 // pred_check_branch
        %873 = sbr.rel (%p871) target = $region56
      $region55: #{_lambda_.6} parent=11 // pred_region
        _
      $region56: #{_lambda_.6} parent=11 // pred_fallthru
        _
      // Predicated region
      $region57: #{_lambda_.6} parent=11 // pred_check
        %p874 = pneg %p438
      $region58: #{_lambda_.6} parent=11 // pred_check_branch
        %876 = sbr.rel (%p874) target = $region60
      $region59: #{_lambda_.6} parent=11 // pred_region
        _
      $region60: #{_lambda_.6} parent=11 // pred_fallthru
        _
      // Predicated region
      $region61: #{_lambda_.6} parent=11 // pred_check
        %p877 = pneg %p459
      $region62: #{_lambda_.6} parent=11 // pred_check_branch
        %879 = sbr.rel (%p877) target = $region64
      $region63: #{_lambda_.6} parent=11 // pred_region
        _
      $region64: #{_lambda_.6} parent=11 // pred_fallthru
        _
      // Predicated region
      $region65: #{_lambda_.6} parent=11 // pred_check
        %p880 = pneg %p480
      $region66: #{_lambda_.6} parent=11 // pred_check_branch
        %882 = sbr.rel (%p880) target = $region68
      $region67: #{_lambda_.6} parent=11 // pred_region
        _
      $region68: #{_lambda_.6} parent=11 // pred_fallthru
        _
      // Predicated region
      $region69: #{_lambda_.6} parent=11 // pred_check
        %p883 = pneg %p501
      $region70: #{_lambda_.6} parent=11 // pred_check_branch
        %885 = sbr.rel (%p883) target = $region72
      $region71: #{_lambda_.6} parent=11 // pred_region
        _
      $region72: #{_lambda_.6} parent=11 // pred_fallthru
        _
      // Predicated region
      $region73: #{_lambda_.6} parent=11 // pred_check
        %p886 = pneg %p522
      $region74: #{_lambda_.6} parent=11 // pred_check_branch
        %888 = sbr.rel (%p886) target = $region76
      $region75: #{_lambda_.6} parent=11 // pred_region
        _
      $region76: #{_lambda_.6} parent=11 // pred_fallthru
        _
      // Predicated region
      $region77: #{_lambda_.6} parent=11 // pred_check
        %p889 = pneg %p543
      $region78: #{_lambda_.6} parent=11 // pred_check_branch
        %891 = sbr.rel (%p889) target = $region80
      $region79: #{_lambda_.6} parent=11 // pred_region
        _
      $region80: #{_lambda_.6} parent=11 // pred_fallthru
        _
      // Predicated region
      $region81: #{_lambda_.6} parent=11 // pred_check
        %p892 = pneg %p564
      $region82: #{_lambda_.6} parent=11 // pred_check_branch
        %894 = sbr.rel (%p892) target = $region84
      $region83: #{_lambda_.6} parent=11 // pred_region
        _
      $region84: #{_lambda_.6} parent=11 // pred_fallthru
        _
      // Predicated region
      $region85: #{_lambda_.6} parent=11 // pred_check
        %p895 = pneg %p585
      $region86: #{_lambda_.6} parent=11 // pred_check_branch
        %897 = sbr.rel (%p895) target = $region88
      $region87: #{_lambda_.6} parent=11 // pred_region
        _
      $region88: #{_lambda_.6} parent=11 // pred_fallthru
        _
      // Predicated region
      $region89: #{_lambda_.6} parent=11 // pred_check
        %p898 = pneg %p606
      $region90: #{_lambda_.6} parent=11 // pred_check_branch
        %900 = sbr.rel (%p898) target = $region92
      $region91: #{_lambda_.6} parent=11 // pred_region
        _
      $region92: #{_lambda_.6} parent=11 // pred_fallthru
        _
      // Predicated region
      $region93: #{_lambda_.6} parent=11 // pred_check
        %p901 = pneg %p627
      $region94: #{_lambda_.6} parent=11 // pred_check_branch
        %903 = sbr.rel (%p901) target = $region96
      $region95: #{_lambda_.6} parent=11 // pred_region
        _
      $region96: #{_lambda_.6} parent=11 // pred_fallthru
        _
      // Predicated region
      $region97: #{_lambda_.6} parent=11 // pred_check
        %p904 = pneg %p648
      $region98: #{_lambda_.6} parent=11 // pred_check_branch
        %906 = sbr.rel (%p904) target = $region100
      $region99: #{_lambda_.6} parent=11 // pred_region
        _
      $region100: #{_lambda_.6} parent=11 // pred_fallthru
        _
      // Predicated region
      $region101: #{_lambda_.6} parent=11 // pred_check
        %p907 = pneg %p669
      $region102: #{_lambda_.6} parent=11 // pred_check_branch
        %909 = sbr.rel (%p907) target = $region104
      $region103: #{_lambda_.6} parent=11 // pred_region
        _
      $region104: #{_lambda_.6} parent=11 // pred_fallthru
        _
      // Predicated region
      $region105: #{_lambda_.6} parent=11 // pred_check
        %p910 = pneg %p690
      $region106: #{_lambda_.6} parent=11 // pred_check_branch
        %912 = sbr.rel (%p910) target = $region108
      $region107: #{_lambda_.6} parent=11 // pred_region
        _
      $region108: #{_lambda_.6} parent=11 // pred_fallthru
        _
      // Predicated region
      $region109: #{_lambda_.6} parent=11 // pred_check
        %p913 = pneg %p711
      $region110: #{_lambda_.6} parent=11 // pred_check_branch
        %915 = sbr.rel (%p913) target = $region112
      $region111: #{_lambda_.6} parent=11 // pred_region
        _
      $region112: #{_lambda_.6} parent=11 // pred_fallthru
        _
      // Predicated region
      $region113: #{_lambda_.6} parent=11 // pred_check
        %p916 = pneg %p732
      $region114: #{_lambda_.6} parent=11 // pred_check_branch
        %918 = sbr.rel (%p916) target = $region116
      $region115: #{_lambda_.6} parent=11 // pred_region
        _
      $region116: #{_lambda_.6} parent=11 // pred_fallthru
        _
      // Predicated region
      $region117: #{_lambda_.6} parent=11 // pred_check
        %p919 = pneg %p753
      $region118: #{_lambda_.6} parent=11 // pred_check_branch
        %921 = sbr.rel (%p919) target = $region120
      $region119: #{_lambda_.6} parent=11 // pred_region
        _
      $region120: #{_lambda_.6} parent=11 // pred_fallthru
        _
      // Predicated region
      $region121: #{_lambda_.6} parent=11 // pred_check
        %p922 = pneg %p774
      $region122: #{_lambda_.6} parent=11 // pred_check_branch
        %924 = sbr.rel (%p922) target = $region124
      $region123: #{_lambda_.6} parent=11 // pred_region
        _
      $region124: #{_lambda_.6} parent=11 // pred_fallthru
        _
    $region12: #{_lambda_.6} parent=5 // pred_fallthru
      _
    %p925 = scmp.lt.s32.totalorder %s82, 8
    // Predicated region
    $region125: #{_lambda_.6} parent=5 // pred_check
      %p926 = pneg %p925
    $region126: #{_lambda_.6} parent=5 // pred_check_branch
      %928 = sbr.rel (%p926) target = $region128
    $region127: #{_lambda_.6} parent=5 // pred_region
      // Predicated region
      $region129: #{_lambda_.6} parent=127 // pred_check
        %p929 = pneg %p102
      $region130: #{_lambda_.6} parent=127 // pred_check_branch
        %931 = sbr.rel (%p929) target = $region132
      $region131: #{_lambda_.6} parent=127 // pred_region
        %p932 = scmp.lt.s32.totalorder %s82, 7
        %s933 = scalar_select %p932, %s82, 7
        %s934 = smul.addr %s933, 2
        %s935 = scalar_lea.vmem %s3, %s934
      $region132: #{_lambda_.6} parent=127 // pred_fallthru
        _
      // Predicated region
      $region133: #{_lambda_.6} parent=127 // pred_check
        %p936 = pneg %p128
      $region134: #{_lambda_.6} parent=127 // pred_check_branch
        %938 = sbr.rel (%p936) target = $region136
      $region135: #{_lambda_.6} parent=127 // pred_region
        %p939 = scmp.lt.s32.totalorder %s82, 7
        %s940 = scalar_select %p939, %s82, 7
        %s941 = smul.addr %s940, 2
        %s942 = smul.addr %s941, 2
        %s943 = scalar_lea.vmem %s5, %s942
      $region136: #{_lambda_.6} parent=127 // pred_fallthru
        _
      // Predicated region
      $region137: #{_lambda_.6} parent=127 // pred_check
        %p944 = pneg %p154
      $region138: #{_lambda_.6} parent=127 // pred_check_branch
        %946 = sbr.rel (%p944) target = $region140
      $region139: #{_lambda_.6} parent=127 // pred_region
        %p947 = scmp.lt.s32.totalorder %s82, 7
        %s948 = scalar_select %p947, %s82, 7
        %s949 = smul.addr %s948, 2
        %s950 = smul.addr %s949, 2
        %s951 = scalar_lea.vmem %s7, %s950
      $region140: #{_lambda_.6} parent=127 // pred_fallthru
        _
      // Predicated region
      $region141: #{_lambda_.6} parent=127 // pred_check
        %p952 = pneg %p180
      $region142: #{_lambda_.6} parent=127 // pred_check_branch
        %954 = sbr.rel (%p952) target = $region144
      $region143: #{_lambda_.6} parent=127 // pred_region
        %p955 = scmp.lt.s32.totalorder %s82, 7
        %s956 = scalar_select %p955, %s82, 7
        %s957 = smul.addr %s956, 2
        %s958 = smul.addr %s957, 2
        %s959 = scalar_lea.vmem %s9, %s958
      $region144: #{_lambda_.6} parent=127 // pred_fallthru
        _
    $region128: #{_lambda_.6} parent=5 // pred_fallthru
      _
    %p960 = scmp.le.s32.totalorder 1, %s82
    %p961 = scmp.lt.s32.totalorder %s82, 9
    %p962 = pnand %p960, %p961
    %p963 = pneg %p962
    // Predicated region
    $region145: #{_lambda_.6} parent=5 // pred_check
      _
    $region146: #{_lambda_.6} parent=5 // pred_check_branch
      %965 = sbr.rel (%p962) target = $region148
    $region147: #{_lambda_.6} parent=5 // pred_region
      %s966 = ssub.s32 %s82, 1
      %p967 = scmp.lt.s32.totalorder %s87, 7
      %s968 = scalar_select %p967, %s87, 7
      %s969 = smul.addr %s968, 2
      %s970 = scalar_lea.vmem %s3, %s969
      %p971 = pneg %p108
      %p972 = pneg %p105
      %p973 = scmp.lt.s32.totalorder %s87, 7
      %s974 = scalar_select %p973, %s87, 7
      %s975 = smul.addr %s974, 2
      %s976 = smul.addr %s975, 2
      %s977 = scalar_lea.vmem %s5, %s976
      %p978 = pneg %p134
      %p979 = pneg %p131
      %p980 = scmp.lt.s32.totalorder %s87, 7
      %s981 = scalar_select %p980, %s87, 7
      %s982 = smul.addr %s981, 2
      %s983 = smul.addr %s982, 2
      %s984 = scalar_lea.vmem %s7, %s983
      %p985 = pneg %p160
      %p986 = pneg %p157
      %p987 = scmp.lt.s32.totalorder %s87, 7
      %s988 = scalar_select %p987, %s87, 7
      %s989 = smul.addr %s988, 2
      %s990 = smul.addr %s989, 2
      %s991 = scalar_lea.vmem %s9, %s990
      %p992 = pneg %p186
      %p993 = pneg %p183
      %p994 = pneg %p207
      %p995 = pneg %p204
      %p996 = pneg %p228
      %p997 = pneg %p225
      %p998 = pneg %p249
      %p999 = pneg %p246
      %p1000 = pneg %p270
      %p1001 = pneg %p267
      %p1002 = pneg %p291
      %p1003 = pneg %p288
      %p1004 = pneg %p312
      %p1005 = pneg %p309
      %p1006 = pneg %p333
      %p1007 = pneg %p330
      %p1008 = pneg %p354
      %p1009 = pneg %p351
      %p1010 = pneg %p375
      %p1011 = pneg %p372
      %p1012 = pneg %p396
      %p1013 = pneg %p393
      %p1014 = pneg %p417
      %p1015 = pneg %p414
      %p1016 = pneg %p438
      %p1017 = pneg %p435
      %p1018 = pneg %p459
      %p1019 = pneg %p456
      %p1020 = pneg %p480
      %p1021 = pneg %p477
      %p1022 = pneg %p501
      %p1023 = pneg %p498
      %p1024 = pneg %p522
      %p1025 = pneg %p519
      %p1026 = pneg %p543
      %p1027 = pneg %p540
      %p1028 = pneg %p564
      %p1029 = pneg %p561
      %p1030 = pneg %p585
      %p1031 = pneg %p582
      %p1032 = pneg %p606
      %p1033 = pneg %p603
      %p1034 = pneg %p627
      %p1035 = pneg %p624
      %p1036 = pneg %p648
      %p1037 = pneg %p645
      %p1038 = pneg %p669
      %p1039 = pneg %p666
      %p1040 = pneg %p690
      %p1041 = pneg %p687
      %p1042 = pneg %p711
      %p1043 = pneg %p708
      %p1044 = pneg %p732
      %p1045 = pneg %p729
      %p1046 = pneg %p753
      %p1047 = pneg %p750
      %p1048 = pneg %p774
      %p1049 = pneg %p771
      %p1050 = pneg %p800
      %p1051 = pneg %p797
      %p1052 = scmp.lt.s32.totalorder %s87, 7
      %s1053 = scalar_select %p1052, %s87, 7
      %s1054 = smul.addr %s1053, 2
      %s1055 = scalar_lea.vmem %s67, %s1054
      %p1056 = pneg %p826
      %p1057 = pneg %p823
      %p1058 = scmp.lt.s32.totalorder %s87, 7
      %s1059 = scalar_select %p1058, %s87, 7
      %s1060 = smul.addr %s1059, 2
      %s1061 = scalar_lea.vmem %s69, %s1060
      %p1062 = scmp.lt.s32.totalorder %s87, 7
      %s1063 = scalar_select %p1062, %s87, 7
      %s1064 = smul.addr %s1063, 2
      %s1065 = scalar_lea.vmem %s3, %s1064
      %p1066 = scmp.lt.s32.totalorder %s87, 7
      %s1067 = scalar_select %p1066, %s87, 7
      %s1068 = smul.addr %s1067, 2
      %s1069 = smul.addr %s1068, 2
      %s1070 = scalar_lea.vmem %s5, %s1069
      %p1071 = scmp.lt.s32.totalorder %s87, 7
      %s1072 = scalar_select %p1071, %s87, 7
      %s1073 = smul.addr %s1072, 2
      %s1074 = smul.addr %s1073, 2
      %s1075 = scalar_lea.vmem %s7, %s1074
      %p1076 = scmp.lt.s32.totalorder %s87, 7
      %s1077 = scalar_select %p1076, %s87, 7
      %s1078 = smul.addr %s1077, 2
      %s1079 = smul.addr %s1078, 2
      %s1080 = scalar_lea.vmem %s9, %s1079
      %p1081 = scmp.lt.s32.totalorder %s87, 7
      %s1082 = scalar_select %p1081, %s87, 7
      %s1083 = smul.addr %s1082, 2
      %s1084 = scalar_lea.vmem %s67, %s1083
      %p1085 = scmp.lt.s32.totalorder %s87, 7
      %s1086 = scalar_select %p1085, %s87, 7
      %s1087 = smul.addr %s1086, 2
      %s1088 = scalar_lea.vmem %s69, %s1087
      %p1089 = scmp.eq.s32.totalorder %s87, 0
      // Predicated region
      $region149: #{_lambda_.6} parent=147 // pred_check
        %p1090 = pneg %p1089
      $region150: #{_lambda_.6} parent=147 // pred_check_branch
        %1092 = sbr.rel (%p1090) target = $region152
      $region151: #{_lambda_.6} parent=147 // pred_region
        %1093 = vst [vmem:[#allocation2] sm:$0x3] 0.0
        %1094 = vst [vmem:[#allocation3] sm:$0x3] 0.0
        %1095 = vst [vmem:[#allocation4] sm:$0x3] 0.0
        %1096 = vst [vmem:[#allocation5] sm:$0x3] 0.0
        %vm1097 = vcmask 254976
        %1098 = vst.msk [vmem:[#allocation6] sm:$0x3] %vm1097, 0.0
        %vm1099 = vcmask 25600
        %1100 = vst.msk [vmem:[#allocation7] sm:$0x3] %vm1099, 0.0
        %vm1101 = vcmask 58368
        %1102 = vst.msk [vmem:[#allocation8] sm:$0x3] %vm1101, 0.0
        %1103 = vst.msk [vmem:[#allocation9] sm:$0x3] %vm1101, 0.0
        %1104 = vst [vmem:[#allocation10] sm:$0x3] 0.0
        %1105 = vst [vmem:[#allocation11] sm:$0xf] 0.0
      $region152: #{_lambda_.6} parent=147 // pred_fallthru
        _
      %v1106 = vld [vmem:[#allocation7] sm:$0x3]
      %v1107 = vld [vmem:[%s13] sm:$0xf]
      %vm1108 = vcmask 31744
      %v1110 = vsel %vm1108, %v1106, 0
      %vm1112 = vcmask 1043456
      %v1114 = vsel %vm1112, %v1107, 0
      %1116 = vmatprep.subr.mxu0 0.0
      %1117 = vmatpush1.msra.mxu0 0.0
      %1118 = vmatprep.subr.mxu0 0.0
      %1119 = vmatpush1.msra.mxu0 0.0
      %1120 = vmatprep.subr.mxu0 0.0
      %1121 = vmatpush1.msra.mxu0 0.0
      %1122 = vmatprep.subr.mxu0 0.0
      %1123 = vmatpush1.msra.mxu0 0.0
      %1124 = vmatprep.subr.mxu0 0.0
      %1125 = vmatpush1.msra.mxu0 0.0
      %1126 = vmatprep.subr.mxu0 0.0
      %1127 = vmatpush1.msra.mxu0 0.0
      %1128 = vmatprep.subr.mxu0 0.0
      %1129 = vmatpush1.msra.mxu0 0.0
      %1130 = vmatprep.subr.mxu0 0.0
      %1131 = vmatpush1.msra.mxu0 0.0
      %1132 = vmatprep.subr.mxu0 0.0
      %1133 = vmatpush1.msra.mxu0 0.0
      %1134 = vmatprep.subr.mxu0 0.0
      %1135 = vmatpush1.msra.mxu0 0.0
      %1136 = vmatprep.subr.mxu0 0.0
      %1137 = vmatpush1.msra.mxu0 0.0
      %1138 = vmatprep.subr.mxu0 0.0
      %1139 = vmatpush1.msra.mxu0 0.0
      %1140 = vmatprep.subr.mxu0 0.0
      %1141 = vmatpush1.msra.mxu0 0.0
      %1142 = vmatprep.subr.mxu0 0.0
      %1143 = vmatpush1.msra.mxu0 0.0
      %1144 = vmatprep.subr.mxu0 0.0
      %1145 = vmatpush1.msra.mxu0 0.0
      %1146 = vmatprep.subr.mxu0 0.0
      %1147 = vmatpush1.msra.mxu0 %v1114
      %1148 = vmatprep.subr.mxu0 0.0
      %1149 = vmatpush2.msra.mxu0 0.0
      %1150 = vmatprep.subr.mxu0 0.0
      %1151 = vmatpush2.msra.mxu0 0.0
      %1152 = vmatprep.subr.mxu0 0.0
      %1153 = vmatpush2.msra.mxu0 0.0
      %1154 = vmatprep.subr.mxu0 0.0
      %1155 = vmatpush2.msra.mxu0 0.0
      %1156 = vmatprep.subr.mxu0 0.0
      %1157 = vmatpush2.msra.mxu0 0.0
      %1158 = vmatprep.subr.mxu0 0.0
      %1159 = vmatpush2.msra.mxu0 0.0
      %1160 = vmatprep.subr.mxu0 0.0
      %1161 = vmatpush2.msra.mxu0 0.0
      %1162 = vmatprep.subr.mxu0 0.0
      %1163 = vmatpush2.msra.mxu0 0.0
      %1164 = vmatprep.subr.mxu0 0.0
      %1165 = vmatpush2.msra.mxu0 0.0
      %1166 = vmatprep.subr.mxu0 0.0
      %1167 = vmatpush2.msra.mxu0 0.0
      %1168 = vmatprep.subr.mxu0 0.0
      %1169 = vmatpush2.msra.mxu0 0.0
      %1170 = vmatprep.subr.mxu0 0.0
      %1171 = vmatpush2.msra.mxu0 0.0
      %1172 = vmatprep.subr.mxu0 0.0
      %1173 = vmatpush2.msra.mxu0 0.0
      %1174 = vmatprep.subr.mxu0 0.0
      %1175 = vmatpush2.msra.mxu0 0.0
      %1176 = vmatprep.subr.mxu0 0.0
      %1177 = vmatpush2.msra.mxu0 0.0
      %1178 = vmatprep.subr.mxu0 0.0
      %1179 = vmatpush2.msra.mxu0 0.0
      %1180 = vmatprep.mubr.f32.mxu0 0.0
      %1181 = vmatmul.mubr.f32.gmra.mxu0 %v1110
      %v1182 = vpop.f32.mrf.mxu0
      %v1183 = vadd.f32 0.0, %v1182
      %v1184 = vpop.f32.mrf.mxu0
      %1185 = vdwg.mxu0
      %v1186 = vmax.f32 %v1183, 0.0
      %v1187 = vld [vmem:[%s1070] sm:$0x3]
      %v1188 = vmul.f32 %v1186, %v1187
      %v1189 = vld [vmem:[%s15] sm:$0xff]
      %v1190 = vld [vmem:[%s15 + $0x8] sm:$0xff]
      %v1191 = vld [vmem:[%s15 + $0x10] sm:$0xff]
      %v1192 = vld [vmem:[%s15 + $0x18] sm:$0xff]
      %vm1193 = vcmask 261120
      %v1195 = vsel %vm1193, %v1188, 0
      %1197 = vmatprep.subr.mxu0 0.0
      %1198 = vmatpush1.msra.mxu0 0.0
      %1199 = vmatprep.subr.mxu0 0.0
      %1200 = vmatpush1.msra.mxu0 0.0
      %1201 = vmatprep.subr.mxu0 0.0
      %1202 = vmatpush1.msra.mxu0 0.0
      %1203 = vmatprep.subr.mxu0 0.0
      %1204 = vmatpush1.msra.mxu0 0.0
      %1205 = vmatprep.subr.mxu0 0.0
      %1206 = vmatpush1.msra.mxu0 0.0
      %1207 = vmatprep.subr.mxu0 0.0
      %1208 = vmatpush1.msra.mxu0 0.0
      %1209 = vmatprep.subr.mxu0 0.0
      %1210 = vmatpush1.msra.mxu0 0.0
      %1211 = vmatprep.subr.mxu0 0.0
      %1212 = vmatpush1.msra.mxu0 0.0
      %1213 = vmatprep.subr.mxu0 0.0
      %1214 = vmatpush1.msra.mxu0 0.0
      %1215 = vmatprep.subr.mxu0 0.0
      %1216 = vmatpush1.msra.mxu0 0.0
      %1217 = vmatprep.subr.mxu0 0.0
      %1218 = vmatpush1.msra.mxu0 0.0
      %1219 = vmatprep.subr.mxu0 0.0
      %1220 = vmatpush1.msra.mxu0 0.0
      %1221 = vmatprep.subr.mxu0 0.0
      %1222 = vmatpush1.msra.mxu0 %v1192
      %1223 = vmatprep.subr.mxu0 0.0
      %1224 = vmatpush1.msra.mxu0 %v1191
      %1225 = vmatprep.subr.mxu0 0.0
      %1226 = vmatpush1.msra.mxu0 %v1190
      %1227 = vmatprep.subr.mxu0 0.0
      %1228 = vmatpush1.msra.mxu0 %v1189
      %1229 = vmatprep.subr.mxu0 0.0
      %1230 = vmatpush2.msra.mxu0 0.0
      %1231 = vmatprep.subr.mxu0 0.0
      %1232 = vmatpush2.msra.mxu0 0.0
      %1233 = vmatprep.subr.mxu0 0.0
      %1234 = vmatpush2.msra.mxu0 0.0
      %1235 = vmatprep.subr.mxu0 0.0
      %1236 = vmatpush2.msra.mxu0 0.0
      %1237 = vmatprep.subr.mxu0 0.0
      %1238 = vmatpush2.msra.mxu0 0.0
      %1239 = vmatprep.subr.mxu0 0.0
      %1240 = vmatpush2.msra.mxu0 0.0
      %1241 = vmatprep.subr.mxu0 0.0
      %1242 = vmatpush2.msra.mxu0 0.0
      %1243 = vmatprep.subr.mxu0 0.0
      %1244 = vmatpush2.msra.mxu0 0.0
      %1245 = vmatprep.subr.mxu0 0.0
      %1246 = vmatpush2.msra.mxu0 0.0
      %1247 = vmatprep.subr.mxu0 0.0
      %1248 = vmatpush2.msra.mxu0 0.0
      %1249 = vmatprep.subr.mxu0 0.0
      %1250 = vmatpush2.msra.mxu0 0.0
      %1251 = vmatprep.subr.mxu0 0.0
      %1252 = vmatpush2.msra.mxu0 0.0
      %1253 = vmatprep.subr.mxu0 0.0
      %1254 = vmatpush2.msra.mxu0 0.0
      %1255 = vmatprep.subr.mxu0 0.0
      %1256 = vmatpush2.msra.mxu0 0.0
      %1257 = vmatprep.subr.mxu0 0.0
      %1258 = vmatpush2.msra.mxu0 0.0
      %1259 = vmatprep.subr.mxu0 0.0
      %1260 = vmatpush2.msra.mxu0 0.0
      %1261 = vmatprep.mubr.f32.mxu0 0.0
      %1262 = vmatmul.mubr.f32.gmra.mxu0 %v1195
      %v1263 = vpop.f32.mrf.mxu0
      %v1264 = vadd.f32 0.0, %v1263
      %v1265 = vpop.f32.mrf.mxu0
      %1266 = vdwg.mxu0
      %v1267 = vmax.f32 %v1264, 0.0
      %s1268 = scalar_lea.vmem %s1070, 2
      %v1269 = vld [vmem:[%s1268] sm:$0x3]
      %v1270 = vmul.f32 %v1267, %v1269
      %s1271 = sld [smem:[#allocation13 + %s87]]
      %p1272 = scmp.gt.s32.totalorder %s1271, 0
      %s1273 = scalar_select %p1272, 1, 0
      %s1274 = scvt.s32.f32 %s1273
      %v1275 = vstv %s1274
      %v1276 = vmul.f32 %v1275, %v1270
      %s1277 = ssub.f32 1.0, %s1274
      %v1278 = vld [vmem:[%s1065] sm:$0x3]
      %v1279 = vstv %s1277
      %v1280 = vmul.f32 %v1279, %v1278
      %v1281 = vadd.f32 %v1276, %v1280
      %v1282 = vld [vmem:[%s17] sm:$0xff]
      %v1283 = vld [vmem:[%s17 + $0x8] sm:$0xff]
      %v1284 = vld [vmem:[%s17 + $0x10] sm:$0xff]
      %v1285 = vld [vmem:[%s17 + $0x18] sm:$0xff]
      %v1286 = vld [vmem:[%s17 + $0x20] sm:$0xff]
      %v1287 = vld [vmem:[%s17 + $0x28] sm:$0xff]
      %v1288 = vld [vmem:[%s17 + $0x30] sm:$0xff]
      %v1289 = vld [vmem:[%s17 + $0x38] sm:$0xff]
      %v1290 = vld [vmem:[%s17 + $0x40] sm:$0xff]
      %v1291 = vld [vmem:[%s17 + $0x48] sm:$0xff]
      %v1292 = vld [vmem:[%s17 + $0x50] sm:$0xff]
      %v1293 = vld [vmem:[%s17 + $0x58] sm:$0xff]
      %v1294 = vld [vmem:[%s17 + $0x60] sm:$0xff]
      %v1295 = vld [vmem:[%s17 + $0x68] sm:$0xff]
      %v1296 = vld [vmem:[%s17 + $0x70] sm:$0xff]
      %v1297 = vld [vmem:[%s17 + $0x78] sm:$0xff]
      %v1298 = vld [vmem:[#allocation6] sm:$0x3]
      %v1299 = vld [vmem:[%s19] sm:$0xff]
      %v1300 = vld [vmem:[%s19 + $0x8] sm:$0xff]
      %v1301 = vld [vmem:[%s19 + $0x10] sm:$0xff]
      %v1302 = vld [vmem:[%s19 + $0x18] sm:$0xff]
      %v1303 = vld [vmem:[%s19 + $0x20] sm:$0xff]
      %v1304 = vld [vmem:[%s19 + $0x28] sm:$0xff]
      %v1305 = vld [vmem:[%s19 + $0x30] sm:$0xff]
      %v1306 = vld [vmem:[%s19 + $0x38] sm:$0xff]
      %v1307 = vld [vmem:[%s19 + $0x40] sm:$0xff]
      %v1308 = vld [vmem:[%s19 + $0x48] sm:$0xff]
      %v1309 = vld [vmem:[%s19 + $0x50] sm:$0xff]
      %v1310 = vld [vmem:[%s19 + $0x58] sm:$0xff]
      %v1311 = vld [vmem:[%s19 + $0x60] sm:$0xff]
      %v1312 = vld [vmem:[%s19 + $0x68] sm:$0xff]
      %v1313 = vld [vmem:[%s19 + $0x70] sm:$0xff]
      %v1314 = vld [vmem:[%s19 + $0x78] sm:$0xff]
      %v1316 = vsel %vm1193, %v1298, 0
      %1318 = vmatprep.subr.mxu0 0.0
      %1319 = vmatpush1.msra.mxu0 0.0
      %1320 = vmatprep.subr.mxu0 0.0
      %1321 = vmatpush1.msra.mxu0 0.0
      %1322 = vmatprep.subr.mxu0 0.0
      %1323 = vmatpush1.msra.mxu0 0.0
      %1324 = vmatprep.subr.mxu0 0.0
      %1325 = vmatpush1.msra.mxu0 0.0
      %1326 = vmatprep.subr.mxu0 0.0
      %1327 = vmatpush1.msra.mxu0 0.0
      %1328 = vmatprep.subr.mxu0 0.0
      %1329 = vmatpush1.msra.mxu0 0.0
      %1330 = vmatprep.subr.mxu0 0.0
      %1331 = vmatpush1.msra.mxu0 0.0
      %1332 = vmatprep.subr.mxu0 0.0
      %1333 = vmatpush1.msra.mxu0 0.0
      %1334 = vmatprep.subr.mxu0 0.0
      %1335 = vmatpush1.msra.mxu0 0.0
      %1336 = vmatprep.subr.mxu0 0.0
      %1337 = vmatpush1.msra.mxu0 0.0
      %1338 = vmatprep.subr.mxu0 0.0
      %1339 = vmatpush1.msra.mxu0 0.0
      %1340 = vmatprep.subr.mxu0 0.0
      %1341 = vmatpush1.msra.mxu0 0.0
      %1342 = vmatprep.subr.mxu0 %v1312
      %1343 = vmatpush1.msra.mxu0 %v1311
      %1344 = vmatprep.subr.mxu0 %v1308
      %1345 = vmatpush1.msra.mxu0 %v1307
      %1346 = vmatprep.subr.mxu0 %v1304
      %1347 = vmatpush1.msra.mxu0 %v1303
      %1348 = vmatprep.subr.mxu0 %v1300
      %1349 = vmatpush1.msra.mxu0 %v1299
      %1350 = vmatprep.subr.mxu0 0.0
      %1351 = vmatpush2.msra.mxu0 0.0
      %1352 = vmatprep.subr.mxu0 0.0
      %1353 = vmatpush2.msra.mxu0 0.0
      %1354 = vmatprep.subr.mxu0 0.0
      %1355 = vmatpush2.msra.mxu0 0.0
      %1356 = vmatprep.subr.mxu0 0.0
      %1357 = vmatpush2.msra.mxu0 0.0
      %1358 = vmatprep.subr.mxu0 0.0
      %1359 = vmatpush2.msra.mxu0 0.0
      %1360 = vmatprep.subr.mxu0 0.0
      %1361 = vmatpush2.msra.mxu0 0.0
      %1362 = vmatprep.subr.mxu0 0.0
      %1363 = vmatpush2.msra.mxu0 0.0
      %1364 = vmatprep.subr.mxu0 0.0
      %1365 = vmatpush2.msra.mxu0 0.0
      %1366 = vmatprep.subr.mxu0 0.0
      %1367 = vmatpush2.msra.mxu0 0.0
      %1368 = vmatprep.subr.mxu0 0.0
      %1369 = vmatpush2.msra.mxu0 0.0
      %1370 = vmatprep.subr.mxu0 0.0
      %1371 = vmatpush2.msra.mxu0 0.0
      %1372 = vmatprep.subr.mxu0 0.0
      %1373 = vmatpush2.msra.mxu0 0.0
      %1374 = vmatprep.subr.mxu0 0.0
      %1375 = vmatpush2.msra.mxu0 0.0
      %1376 = vmatprep.subr.mxu0 0.0
      %1377 = vmatpush2.msra.mxu0 0.0
      %1378 = vmatprep.subr.mxu0 0.0
      %1379 = vmatpush2.msra.mxu0 0.0
      %1380 = vmatprep.subr.mxu0 0.0
      %1381 = vmatpush2.msra.mxu0 0.0
      %1382 = vmatprep.mubr.f32.mxu0 0.0
      %1383 = vmatmul.mubr.f32.gmra.mxu0 %v1316
      %v1384 = vpop.f32.mrf.mxu0
      %v1385 = vadd.f32 0.0, %v1384
      %v1386 = vpop.f32.mrf.mxu0
      %v1387 = vadd.f32 0.0, %v1386
      %1388 = vdwg.mxu0
      %1389 = vmatprep.subr.mxu0 0.0
      %1390 = vmatpush1.msra.mxu0 0.0
      %1391 = vmatprep.subr.mxu0 0.0
      %1392 = vmatpush1.msra.mxu0 0.0
      %1393 = vmatprep.subr.mxu0 0.0
      %1394 = vmatpush1.msra.mxu0 0.0
      %1395 = vmatprep.subr.mxu0 0.0
      %1396 = vmatpush1.msra.mxu0 0.0
      %1397 = vmatprep.subr.mxu0 0.0
      %1398 = vmatpush1.msra.mxu0 0.0
      %1399 = vmatprep.subr.mxu0 0.0
      %1400 = vmatpush1.msra.mxu0 0.0
      %1401 = vmatprep.subr.mxu0 0.0
      %1402 = vmatpush1.msra.mxu0 0.0
      %1403 = vmatprep.subr.mxu0 0.0
      %1404 = vmatpush1.msra.mxu0 0.0
      %1405 = vmatprep.subr.mxu0 0.0
      %1406 = vmatpush1.msra.mxu0 0.0
      %1407 = vmatprep.subr.mxu0 0.0
      %1408 = vmatpush1.msra.mxu0 0.0
      %1409 = vmatprep.subr.mxu0 0.0
      %1410 = vmatpush1.msra.mxu0 0.0
      %1411 = vmatprep.subr.mxu0 0.0
      %1412 = vmatpush1.msra.mxu0 0.0
      %1413 = vmatprep.subr.mxu0 %v1314
      %1414 = vmatpush1.msra.mxu0 %v1313
      %1415 = vmatprep.subr.mxu0 %v1310
      %1416 = vmatpush1.msra.mxu0 %v1309
      %1417 = vmatprep.subr.mxu0 %v1306
      %1418 = vmatpush1.msra.mxu0 %v1305
      %1419 = vmatprep.subr.mxu0 %v1302
      %1420 = vmatpush1.msra.mxu0 %v1301
      %1421 = vmatprep.subr.mxu0 0.0
      %1422 = vmatpush2.msra.mxu0 0.0
      %1423 = vmatprep.subr.mxu0 0.0
      %1424 = vmatpush2.msra.mxu0 0.0
      %1425 = vmatprep.subr.mxu0 0.0
      %1426 = vmatpush2.msra.mxu0 0.0
      %1427 = vmatprep.subr.mxu0 0.0
      %1428 = vmatpush2.msra.mxu0 0.0
      %1429 = vmatprep.subr.mxu0 0.0
      %1430 = vmatpush2.msra.mxu0 0.0
      %1431 = vmatprep.subr.mxu0 0.0
      %1432 = vmatpush2.msra.mxu0 0.0
      %1433 = vmatprep.subr.mxu0 0.0
      %1434 = vmatpush2.msra.mxu0 0.0
      %1435 = vmatprep.subr.mxu0 0.0
      %1436 = vmatpush2.msra.mxu0 0.0
      %1437 = vmatprep.subr.mxu0 0.0
      %1438 = vmatpush2.msra.mxu0 0.0
      %1439 = vmatprep.subr.mxu0 0.0
      %1440 = vmatpush2.msra.mxu0 0.0
      %1441 = vmatprep.subr.mxu0 0.0
      %1442 = vmatpush2.msra.mxu0 0.0
      %1443 = vmatprep.subr.mxu0 0.0
      %1444 = vmatpush2.msra.mxu0 0.0
      %1445 = vmatprep.subr.mxu0 0.0
      %1446 = vmatpush2.msra.mxu0 0.0
      %1447 = vmatprep.subr.mxu0 0.0
      %1448 = vmatpush2.msra.mxu0 0.0
      %1449 = vmatprep.subr.mxu0 0.0
      %1450 = vmatpush2.msra.mxu0 0.0
      %1451 = vmatprep.subr.mxu0 0.0
      %1452 = vmatpush2.msra.mxu0 0.0
      %1453 = vmatprep.mubr.f32.mxu0 0.0
      %1454 = vmatmul.mubr.f32.gmra.mxu0 %v1316
      %v1455 = vpop.f32.mrf.mxu0
      %v1456 = vadd.f32 0.0, %v1455
      %v1457 = vpop.f32.mrf.mxu0
      %v1458 = vadd.f32 0.0, %v1457
      %1459 = vdwg.mxu0
      %v1461 = vsel %vm1193, %v1281, 0
      %1463 = vmatprep.subr.mxu0 0.0
      %1464 = vmatpush1.msra.mxu0 0.0
      %1465 = vmatprep.subr.mxu0 0.0
      %1466 = vmatpush1.msra.mxu0 0.0
      %1467 = vmatprep.subr.mxu0 0.0
      %1468 = vmatpush1.msra.mxu0 0.0
      %1469 = vmatprep.subr.mxu0 0.0
      %1470 = vmatpush1.msra.mxu0 0.0
      %1471 = vmatprep.subr.mxu0 0.0
      %1472 = vmatpush1.msra.mxu0 0.0
      %1473 = vmatprep.subr.mxu0 0.0
      %1474 = vmatpush1.msra.mxu0 0.0
      %1475 = vmatprep.subr.mxu0 0.0
      %1476 = vmatpush1.msra.mxu0 0.0
      %1477 = vmatprep.subr.mxu0 0.0
      %1478 = vmatpush1.msra.mxu0 0.0
      %1479 = vmatprep.subr.mxu0 0.0
      %1480 = vmatpush1.msra.mxu0 0.0
      %1481 = vmatprep.subr.mxu0 0.0
      %1482 = vmatpush1.msra.mxu0 0.0
      %1483 = vmatprep.subr.mxu0 0.0
      %1484 = vmatpush1.msra.mxu0 0.0
      %1485 = vmatprep.subr.mxu0 0.0
      %1486 = vmatpush1.msra.mxu0 0.0
      %1487 = vmatprep.subr.mxu0 %v1295
      %1488 = vmatpush1.msra.mxu0 %v1294
      %1489 = vmatprep.subr.mxu0 %v1291
      %1490 = vmatpush1.msra.mxu0 %v1290
      %1491 = vmatprep.subr.mxu0 %v1287
      %1492 = vmatpush1.msra.mxu0 %v1286
      %1493 = vmatprep.subr.mxu0 %v1283
      %1494 = vmatpush1.msra.mxu0 %v1282
      %1495 = vmatprep.subr.mxu0 0.0
      %1496 = vmatpush2.msra.mxu0 0.0
      %1497 = vmatprep.subr.mxu0 0.0
      %1498 = vmatpush2.msra.mxu0 0.0
      %1499 = vmatprep.subr.mxu0 0.0
      %1500 = vmatpush2.msra.mxu0 0.0
      %1501 = vmatprep.subr.mxu0 0.0
      %1502 = vmatpush2.msra.mxu0 0.0
      %1503 = vmatprep.subr.mxu0 0.0
      %1504 = vmatpush2.msra.mxu0 0.0
      %1505 = vmatprep.subr.mxu0 0.0
      %1506 = vmatpush2.msra.mxu0 0.0
      %1507 = vmatprep.subr.mxu0 0.0
      %1508 = vmatpush2.msra.mxu0 0.0
      %1509 = vmatprep.subr.mxu0 0.0
      %1510 = vmatpush2.msra.mxu0 0.0
      %1511 = vmatprep.subr.mxu0 0.0
      %1512 = vmatpush2.msra.mxu0 0.0
      %1513 = vmatprep.subr.mxu0 0.0
      %1514 = vmatpush2.msra.mxu0 0.0
      %1515 = vmatprep.subr.mxu0 0.0
      %1516 = vmatpush2.msra.mxu0 0.0
      %1517 = vmatprep.subr.mxu0 0.0
      %1518 = vmatpush2.msra.mxu0 0.0
      %1519 = vmatprep.subr.mxu0 0.0
      %1520 = vmatpush2.msra.mxu0 0.0
      %1521 = vmatprep.subr.mxu0 0.0
      %1522 = vmatpush2.msra.mxu0 0.0
      %1523 = vmatprep.subr.mxu0 0.0
      %1524 = vmatpush2.msra.mxu0 0.0
      %1525 = vmatprep.subr.mxu0 0.0
      %1526 = vmatpush2.msra.mxu0 0.0
      %1527 = vmatprep.mubr.f32.mxu0 0.0
      %1528 = vmatmul.mubr.f32.gmra.mxu0 %v1461
      %v1529 = vpop.f32.mrf.mxu0
      %v1530 = vadd.f32 %v1385, %v1529
      %v1531 = vpop.f32.mrf.mxu0
      %v1532 = vadd.f32 %v1387, %v1531
      %1533 = vdwg.mxu0
      %1534 = vmatprep.subr.mxu0 0.0
      %1535 = vmatpush1.msra.mxu0 0.0
      %1536 = vmatprep.subr.mxu0 0.0
      %1537 = vmatpush1.msra.mxu0 0.0
      %1538 = vmatprep.subr.mxu0 0.0
      %1539 = vmatpush1.msra.mxu0 0.0
      %1540 = vmatprep.subr.mxu0 0.0
      %1541 = vmatpush1.msra.mxu0 0.0
      %1542 = vmatprep.subr.mxu0 0.0
      %1543 = vmatpush1.msra.mxu0 0.0
      %1544 = vmatprep.subr.mxu0 0.0
      %1545 = vmatpush1.msra.mxu0 0.0
      %1546 = vmatprep.subr.mxu0 0.0
      %1547 = vmatpush1.msra.mxu0 0.0
      %1548 = vmatprep.subr.mxu0 0.0
      %1549 = vmatpush1.msra.mxu0 0.0
      %1550 = vmatprep.subr.mxu0 0.0
      %1551 = vmatpush1.msra.mxu0 0.0
      %1552 = vmatprep.subr.mxu0 0.0
      %1553 = vmatpush1.msra.mxu0 0.0
      %1554 = vmatprep.subr.mxu0 0.0
      %1555 = vmatpush1.msra.mxu0 0.0
      %1556 = vmatprep.subr.mxu0 0.0
      %1557 = vmatpush1.msra.mxu0 0.0
      %1558 = vmatprep.subr.mxu0 %v1297
      %1559 = vmatpush1.msra.mxu0 %v1296
      %1560 = vmatprep.subr.mxu0 %v1293
      %1561 = vmatpush1.msra.mxu0 %v1292
      %1562 = vmatprep.subr.mxu0 %v1289
      %1563 = vmatpush1.msra.mxu0 %v1288
      %1564 = vmatprep.subr.mxu0 %v1285
      %1565 = vmatpush1.msra.mxu0 %v1284
      %1566 = vmatprep.subr.mxu0 0.0
      %1567 = vmatpush2.msra.mxu0 0.0
      %1568 = vmatprep.subr.mxu0 0.0
      %1569 = vmatpush2.msra.mxu0 0.0
      %1570 = vmatprep.subr.mxu0 0.0
      %1571 = vmatpush2.msra.mxu0 0.0
      %1572 = vmatprep.subr.mxu0 0.0
      %1573 = vmatpush2.msra.mxu0 0.0
      %1574 = vmatprep.subr.mxu0 0.0
      %1575 = vmatpush2.msra.mxu0 0.0
      %1576 = vmatprep.subr.mxu0 0.0
      %1577 = vmatpush2.msra.mxu0 0.0
      %1578 = vmatprep.subr.mxu0 0.0
      %1579 = vmatpush2.msra.mxu0 0.0
      %1580 = vmatprep.subr.mxu0 0.0
      %1581 = vmatpush2.msra.mxu0 0.0
      %1582 = vmatprep.subr.mxu0 0.0
      %1583 = vmatpush2.msra.mxu0 0.0
      %1584 = vmatprep.subr.mxu0 0.0
      %1585 = vmatpush2.msra.mxu0 0.0
      %1586 = vmatprep.subr.mxu0 0.0
      %1587 = vmatpush2.msra.mxu0 0.0
      %1588 = vmatprep.subr.mxu0 0.0
      %1589 = vmatpush2.msra.mxu0 0.0
      %1590 = vmatprep.subr.mxu0 0.0
      %1591 = vmatpush2.msra.mxu0 0.0
      %1592 = vmatprep.subr.mxu0 0.0
      %1593 = vmatpush2.msra.mxu0 0.0
      %1594 = vmatprep.subr.mxu0 0.0
      %1595 = vmatpush2.msra.mxu0 0.0
      %1596 = vmatprep.subr.mxu0 0.0
      %1597 = vmatpush2.msra.mxu0 0.0
      %1598 = vmatprep.mubr.f32.mxu0 0.0
      %1599 = vmatmul.mubr.f32.gmra.mxu0 %v1461
      %v1600 = vpop.f32.mrf.mxu0
      %v1601 = vadd.f32 %v1456, %v1600
      %v1602 = vpop.f32.mrf.mxu0
      %v1603 = vadd.f32 %v1458, %v1602
      %1604 = vdwg.mxu0
      %v1605 = vld [vmem:[#allocation2] sm:$0x3]
      %v1606 = vld [vmem:[%s21] sm:$0xff]
      %v1607 = vld [vmem:[%s21 + $0x8] sm:$0xff]
      %v1608 = vld [vmem:[%s21 + $0x10] sm:$0xff]
      %v1609 = vld [vmem:[%s21 + $0x18] sm:$0xff]
      %v1610 = vld [vmem:[%s21 + $0x20] sm:$0xff]
      %v1611 = vld [vmem:[%s21 + $0x28] sm:$0xff]
      %v1612 = vld [vmem:[%s21 + $0x30] sm:$0xff]
      %v1613 = vld [vmem:[%s21 + $0x38] sm:$0xff]
      %v1614 = vld [vmem:[%s21 + $0x40] sm:$0xff]
      %v1615 = vld [vmem:[%s21 + $0x48] sm:$0xff]
      %v1616 = vld [vmem:[%s21 + $0x50] sm:$0xff]
      %v1617 = vld [vmem:[%s21 + $0x58] sm:$0xff]
      %v1618 = vld [vmem:[%s21 + $0x60] sm:$0xff]
      %v1619 = vld [vmem:[%s21 + $0x68] sm:$0xff]
      %v1620 = vld [vmem:[%s21 + $0x70] sm:$0xff]
      %v1621 = vld [vmem:[%s21 + $0x78] sm:$0xff]
      %v1622 = vld [vmem:[%s21 + $0x80] sm:$0xff]
      %v1623 = vld [vmem:[%s21 + $0x88] sm:$0xff]
      %v1624 = vld [vmem:[%s21 + $0x90] sm:$0xff]
      %v1625 = vld [vmem:[%s21 + $0x98] sm:$0xff]
      %v1626 = vld [vmem:[%s21 + $0xa0] sm:$0xff]
      %v1627 = vld [vmem:[%s21 + $0xa8] sm:$0xff]
      %v1628 = vld [vmem:[%s21 + $0xb0] sm:$0xff]
      %v1629 = vld [vmem:[%s21 + $0xb8] sm:$0xff]
      %v1630 = vld [vmem:[%s21 + $0xc0] sm:$0xff]
      %v1631 = vld [vmem:[%s21 + $0xc8] sm:$0xff]
      %v1632 = vld [vmem:[%s21 + $0xd0] sm:$0xff]
      %v1633 = vld [vmem:[%s21 + $0xd8] sm:$0xff]
      %v1634 = vld [vmem:[%s21 + $0xe0] sm:$0xff]
      %v1635 = vld [vmem:[%s21 + $0xe8] sm:$0xff]
      %v1636 = vld [vmem:[%s21 + $0xf0] sm:$0xff]
      %v1637 = vld [vmem:[%s21 + $0xf8] sm:$0xff]
      %v1638 = vld [vmem:[%s21 + $0x100] sm:$0xff]
      %v1639 = vld [vmem:[%s21 + $0x108] sm:$0xff]
      %v1640 = vld [vmem:[%s21 + $0x110] sm:$0xff]
      %v1641 = vld [vmem:[%s21 + $0x118] sm:$0xff]
      %v1642 = vld [vmem:[%s21 + $0x120] sm:$0xff]
      %v1643 = vld [vmem:[%s21 + $0x128] sm:$0xff]
      %v1644 = vld [vmem:[%s21 + $0x130] sm:$0xff]
      %v1645 = vld [vmem:[%s21 + $0x138] sm:$0xff]
      %v1646 = vld [vmem:[%s21 + $0x140] sm:$0xff]
      %v1647 = vld [vmem:[%s21 + $0x148] sm:$0xff]
      %v1648 = vld [vmem:[%s21 + $0x150] sm:$0xff]
      %v1649 = vld [vmem:[%s21 + $0x158] sm:$0xff]
      %v1650 = vld [vmem:[%s21 + $0x160] sm:$0xff]
      %v1651 = vld [vmem:[%s21 + $0x168] sm:$0xff]
      %v1652 = vld [vmem:[%s21 + $0x170] sm:$0xff]
      %v1653 = vld [vmem:[%s21 + $0x178] sm:$0xff]
      %v1654 = vld [vmem:[%s21 + $0x180] sm:$0xff]
      %v1655 = vld [vmem:[%s21 + $0x188] sm:$0xff]
      %v1656 = vld [vmem:[%s21 + $0x190] sm:$0xff]
      %v1657 = vld [vmem:[%s21 + $0x198] sm:$0xff]
      %v1658 = vld [vmem:[%s21 + $0x1a0] sm:$0xff]
      %v1659 = vld [vmem:[%s21 + $0x1a8] sm:$0xff]
      %v1660 = vld [vmem:[%s21 + $0x1b0] sm:$0xff]
      %v1661 = vld [vmem:[%s21 + $0x1b8] sm:$0xff]
      %v1662 = vld [vmem:[%s21 + $0x1c0] sm:$0xff]
      %v1663 = vld [vmem:[%s21 + $0x1c8] sm:$0xff]
      %v1664 = vld [vmem:[%s21 + $0x1d0] sm:$0xff]
      %v1665 = vld [vmem:[%s21 + $0x1d8] sm:$0xff]
      %v1666 = vld [vmem:[%s21 + $0x1e0] sm:$0xff]
      %v1667 = vld [vmem:[%s21 + $0x1e8] sm:$0xff]
      %v1668 = vld [vmem:[%s21 + $0x1f0] sm:$0xff]
      %v1669 = vld [vmem:[%s21 + $0x1f8] sm:$0xff]
      %1670 = vmatprep.subr.mxu0 %v1667
      %1671 = vmatpush1.msra.mxu0 %v1666
      %1672 = vmatprep.subr.mxu0 %v1663
      %1673 = vmatpush1.msra.mxu0 %v1662
      %1674 = vmatprep.subr.mxu0 %v1659
      %1675 = vmatpush1.msra.mxu0 %v1658
      %1676 = vmatprep.subr.mxu0 %v1655
      %1677 = vmatpush1.msra.mxu0 %v1654
      %1678 = vmatprep.subr.mxu0 %v1651
      %1679 = vmatpush1.msra.mxu0 %v1650
      %1680 = vmatprep.subr.mxu0 %v1647
      %1681 = vmatpush1.msra.mxu0 %v1646
      %1682 = vmatprep.subr.mxu0 %v1643
      %1683 = vmatpush1.msra.mxu0 %v1642
      %1684 = vmatprep.subr.mxu0 %v1639
      %1685 = vmatpush1.msra.mxu0 %v1638
      %1686 = vmatprep.subr.mxu0 %v1635
      %1687 = vmatpush1.msra.mxu0 %v1634
      %1688 = vmatprep.subr.mxu0 %v1631
      %1689 = vmatpush1.msra.mxu0 %v1630
      %1690 = vmatprep.subr.mxu0 %v1627
      %1691 = vmatpush1.msra.mxu0 %v1626
      %1692 = vmatprep.subr.mxu0 %v1623
      %1693 = vmatpush1.msra.mxu0 %v1622
      %1694 = vmatprep.subr.mxu0 %v1619
      %1695 = vmatpush1.msra.mxu0 %v1618
      %1696 = vmatprep.subr.mxu0 %v1615
      %1697 = vmatpush1.msra.mxu0 %v1614
      %1698 = vmatprep.subr.mxu0 %v1611
      %1699 = vmatpush1.msra.mxu0 %v1610
      %1700 = vmatprep.subr.mxu0 %v1607
      %1701 = vmatpush1.msra.mxu0 %v1606
      %1702 = vmatprep.subr.mxu0 0.0
      %1703 = vmatpush2.msra.mxu0 0.0
      %1704 = vmatprep.subr.mxu0 0.0
      %1705 = vmatpush2.msra.mxu0 0.0
      %1706 = vmatprep.subr.mxu0 0.0
      %1707 = vmatpush2.msra.mxu0 0.0
      %1708 = vmatprep.subr.mxu0 0.0
      %1709 = vmatpush2.msra.mxu0 0.0
      %1710 = vmatprep.subr.mxu0 0.0
      %1711 = vmatpush2.msra.mxu0 0.0
      %1712 = vmatprep.subr.mxu0 0.0
      %1713 = vmatpush2.msra.mxu0 0.0
      %1714 = vmatprep.subr.mxu0 0.0
      %1715 = vmatpush2.msra.mxu0 0.0
      %1716 = vmatprep.subr.mxu0 0.0
      %1717 = vmatpush2.msra.mxu0 0.0
      %1718 = vmatprep.subr.mxu0 0.0
      %1719 = vmatpush2.msra.mxu0 0.0
      %1720 = vmatprep.subr.mxu0 0.0
      %1721 = vmatpush2.msra.mxu0 0.0
      %1722 = vmatprep.subr.mxu0 0.0
      %1723 = vmatpush2.msra.mxu0 0.0
      %1724 = vmatprep.subr.mxu0 0.0
      %1725 = vmatpush2.msra.mxu0 0.0
      %1726 = vmatprep.subr.mxu0 0.0
      %1727 = vmatpush2.msra.mxu0 0.0
      %1728 = vmatprep.subr.mxu0 0.0
      %1729 = vmatpush2.msra.mxu0 0.0
      %1730 = vmatprep.subr.mxu0 0.0
      %1731 = vmatpush2.msra.mxu0 0.0
      %1732 = vmatprep.subr.mxu0 0.0
      %1733 = vmatpush2.msra.mxu0 0.0
      %1734 = vmatprep.mubr.f32.mxu0 0.0
      %1735 = vmatmul.mubr.f32.gmra.mxu0 %v1605
      %v1736 = vpop.f32.mrf.mxu0
      %v1737 = vadd.f32 0.0, %v1736
      %v1738 = vpop.f32.mrf.mxu0
      %v1739 = vadd.f32 0.0, %v1738
      %1740 = vdwg.mxu0
      %1741 = vmatprep.subr.mxu0 %v1669
      %1742 = vmatpush1.msra.mxu0 %v1668
      %1743 = vmatprep.subr.mxu0 %v1665
      %1744 = vmatpush1.msra.mxu0 %v1664
      %1745 = vmatprep.subr.mxu0 %v1661
      %1746 = vmatpush1.msra.mxu0 %v1660
      %1747 = vmatprep.subr.mxu0 %v1657
      %1748 = vmatpush1.msra.mxu0 %v1656
      %1749 = vmatprep.subr.mxu0 %v1653
      %1750 = vmatpush1.msra.mxu0 %v1652
      %1751 = vmatprep.subr.mxu0 %v1649
      %1752 = vmatpush1.msra.mxu0 %v1648
      %1753 = vmatprep.subr.mxu0 %v1645
      %1754 = vmatpush1.msra.mxu0 %v1644
      %1755 = vmatprep.subr.mxu0 %v1641
      %1756 = vmatpush1.msra.mxu0 %v1640
      %1757 = vmatprep.subr.mxu0 %v1637
      %1758 = vmatpush1.msra.mxu0 %v1636
      %1759 = vmatprep.subr.mxu0 %v1633
      %1760 = vmatpush1.msra.mxu0 %v1632
      %1761 = vmatprep.subr.mxu0 %v1629
      %1762 = vmatpush1.msra.mxu0 %v1628
      %1763 = vmatprep.subr.mxu0 %v1625
      %1764 = vmatpush1.msra.mxu0 %v1624
      %1765 = vmatprep.subr.mxu0 %v1621
      %1766 = vmatpush1.msra.mxu0 %v1620
      %1767 = vmatprep.subr.mxu0 %v1617
      %1768 = vmatpush1.msra.mxu0 %v1616
      %1769 = vmatprep.subr.mxu0 %v1613
      %1770 = vmatpush1.msra.mxu0 %v1612
      %1771 = vmatprep.subr.mxu0 %v1609
      %1772 = vmatpush1.msra.mxu0 %v1608
      %1773 = vmatprep.subr.mxu0 0.0
      %1774 = vmatpush2.msra.mxu0 0.0
      %1775 = vmatprep.subr.mxu0 0.0
      %1776 = vmatpush2.msra.mxu0 0.0
      %1777 = vmatprep.subr.mxu0 0.0
      %1778 = vmatpush2.msra.mxu0 0.0
      %1779 = vmatprep.subr.mxu0 0.0
      %1780 = vmatpush2.msra.mxu0 0.0
      %1781 = vmatprep.subr.mxu0 0.0
      %1782 = vmatpush2.msra.mxu0 0.0
      %1783 = vmatprep.subr.mxu0 0.0
      %1784 = vmatpush2.msra.mxu0 0.0
      %1785 = vmatprep.subr.mxu0 0.0
      %1786 = vmatpush2.msra.mxu0 0.0
      %1787 = vmatprep.subr.mxu0 0.0
      %1788 = vmatpush2.msra.mxu0 0.0
      %1789 = vmatprep.subr.mxu0 0.0
      %1790 = vmatpush2.msra.mxu0 0.0
      %1791 = vmatprep.subr.mxu0 0.0
      %1792 = vmatpush2.msra.mxu0 0.0
      %1793 = vmatprep.subr.mxu0 0.0
      %1794 = vmatpush2.msra.mxu0 0.0
      %1795 = vmatprep.subr.mxu0 0.0
      %1796 = vmatpush2.msra.mxu0 0.0
      %1797 = vmatprep.subr.mxu0 0.0
      %1798 = vmatpush2.msra.mxu0 0.0
      %1799 = vmatprep.subr.mxu0 0.0
      %1800 = vmatpush2.msra.mxu0 0.0
      %1801 = vmatprep.subr.mxu0 0.0
      %1802 = vmatpush2.msra.mxu0 0.0
      %1803 = vmatprep.subr.mxu0 0.0
      %1804 = vmatpush2.msra.mxu0 0.0
      %1805 = vmatprep.mubr.f32.mxu0 0.0
      %1806 = vmatmul.mubr.f32.gmra.mxu0 %v1605
      %v1807 = vpop.f32.mrf.mxu0
      %v1808 = vadd.f32 0.0, %v1807
      %v1809 = vpop.f32.mrf.mxu0
      %v1810 = vadd.f32 0.0, %v1809
      %1811 = vdwg.mxu0
      %v1812 = vadd.f32 %v1530, %v1737
      %v1813 = vadd.f32 %v1532, %v1739
      %v1814 = vadd.f32 %v1601, %v1808
      %v1815 = vadd.f32 %v1603, %v1810
      %v1816 = vld [vmem:[%s23] sm:$0xf]
      %v1818 = vlaneseq
      %v1819 = vshrl.u32 %v1818, 7
      %v1820 = vsub.s32 0, %v1819
      %v1821 = vrot.slane %v1816, %v1820
      %v1822 = vlaneseq
      %v1823 = vshrl.u32 %v1822, 7
      %v1824 = vsub.s32 1, %v1823
      %v1825 = vrot.slane %v1816, %v1824
      %v1826 = vlaneseq
      %v1827 = vshrl.u32 %v1826, 7
      %v1828 = vsub.s32 2, %v1827
      %v1829 = vrot.slane %v1816, %v1828
      %v1830 = vlaneseq
      %v1831 = vshrl.u32 %v1830, 7
      %v1832 = vsub.s32 3, %v1831
      %v1833 = vrot.slane %v1816, %v1832
      %v1838 = vadd.f32 %v1812, %v1821
      %v1839 = vadd.f32 %v1813, %v1825
      %v1840 = vadd.f32 %v1814, %v1829
      %v1841 = vadd.f32 %v1815, %v1833
      %v1842 = vxor.u32 %v1838, 2147483648
      %v1843 = vmul.f32 %v1842, 1.442695
      %v1844 = vpow.pop %v1843
      %v1845 = vadd.f32 %v1844, 1.0
      %v1846 = vrcp.pop %v1845
      %v1847 = vmul.f32 1.0, %v1846
      %v1848 = vxor.u32 %v1839, 2147483648
      %v1849 = vmul.f32 %v1848, 1.442695
      %v1850 = vpow.pop %v1849
      %v1851 = vadd.f32 %v1850, 1.0
      %v1852 = vrcp.pop %v1851
      %v1853 = vmul.f32 1.0, %v1852
      %v1854 = vtanh.pop %v1840
      %v1855 = vxor.u32 %v1841, 2147483648
      %v1856 = vmul.f32 %v1855, 1.442695
      %v1857 = vpow.pop %v1856
      %v1858 = vadd.f32 %v1857, 1.0
      %v1859 = vrcp.pop %v1858
      %v1860 = vmul.f32 1.0, %v1859
      %v1861 = vld [vmem:[#allocation3] sm:$0x3]
      %v1862 = vmul.f32 %v1853, %v1861
      %v1863 = vmul.f32 %v1847, %v1854
      %v1864 = vadd.f32 %v1862, %v1863
      %v1865 = vtanh.pop %v1864
      %v1866 = vmul.f32 %v1860, %v1865
      %v1867 = vld [vmem:[%s1075] sm:$0x3]
      %v1868 = vmul.f32 %v1866, %v1867
      %s1869 = scalar_lea.vmem %s1075, 2
      %v1870 = vld [vmem:[%s1869] sm:$0x3]
      %v1871 = vmul.f32 %v1864, %v1870
      %1872 = vst [vmem:[#allocation2] sm:$0x3] %v1868
      %1873 = vst [vmem:[#allocation3] sm:$0x3] %v1871
      %v1874 = vld [vmem:[%s25] sm:$0xff]
      %v1875 = vld [vmem:[%s25 + $0x8] sm:$0xff]
      %v1876 = vld [vmem:[%s25 + $0x10] sm:$0xff]
      %v1877 = vld [vmem:[%s25 + $0x18] sm:$0xff]
      %v1878 = vld [vmem:[%s25 + $0x20] sm:$0xff]
      %v1879 = vld [vmem:[%s25 + $0x28] sm:$0xff]
      %v1880 = vld [vmem:[%s25 + $0x30] sm:$0xff]
      %v1881 = vld [vmem:[%s25 + $0x38] sm:$0xff]
      %v1882 = vld [vmem:[%s25 + $0x40] sm:$0xff]
      %v1883 = vld [vmem:[%s25 + $0x48] sm:$0xff]
      %v1884 = vld [vmem:[%s25 + $0x50] sm:$0xff]
      %v1885 = vld [vmem:[%s25 + $0x58] sm:$0xff]
      %v1886 = vld [vmem:[%s25 + $0x60] sm:$0xff]
      %v1887 = vld [vmem:[%s25 + $0x68] sm:$0xff]
      %v1888 = vld [vmem:[%s25 + $0x70] sm:$0xff]
      %v1889 = vld [vmem:[%s25 + $0x78] sm:$0xff]
      %v1890 = vld [vmem:[#allocation8] sm:$0x3]
      %v1891 = vld [vmem:[%s27] sm:$0xff]
      %v1892 = vld [vmem:[#allocation9] sm:$0x3]
      %v1893 = vld [vmem:[%s29] sm:$0xff]
      %vm1894 = vcmask 64512
      %v1896 = vsel %vm1894, %v1892, 0
      %1898 = vmatprep.subr.mxu0 0.0
      %1899 = vmatpush1.msra.mxu0 0.0
      %1900 = vmatprep.subr.mxu0 0.0
      %1901 = vmatpush1.msra.mxu0 0.0
      %1902 = vmatprep.subr.mxu0 0.0
      %1903 = vmatpush1.msra.mxu0 0.0
      %1904 = vmatprep.subr.mxu0 0.0
      %1905 = vmatpush1.msra.mxu0 0.0
      %1906 = vmatprep.subr.mxu0 0.0
      %1907 = vmatpush1.msra.mxu0 0.0
      %1908 = vmatprep.subr.mxu0 0.0
      %1909 = vmatpush1.msra.mxu0 0.0
      %1910 = vmatprep.subr.mxu0 0.0
      %1911 = vmatpush1.msra.mxu0 0.0
      %1912 = vmatprep.subr.mxu0 0.0
      %1913 = vmatpush1.msra.mxu0 0.0
      %1914 = vmatprep.subr.mxu0 0.0
      %1915 = vmatpush1.msra.mxu0 0.0
      %1916 = vmatprep.subr.mxu0 0.0
      %1917 = vmatpush1.msra.mxu0 0.0
      %1918 = vmatprep.subr.mxu0 0.0
      %1919 = vmatpush1.msra.mxu0 0.0
      %1920 = vmatprep.subr.mxu0 0.0
      %1921 = vmatpush1.msra.mxu0 0.0
      %1922 = vmatprep.subr.mxu0 0.0
      %1923 = vmatpush1.msra.mxu0 0.0
      %1924 = vmatprep.subr.mxu0 0.0
      %1925 = vmatpush1.msra.mxu0 0.0
      %1926 = vmatprep.subr.mxu0 0.0
      %1927 = vmatpush1.msra.mxu0 0.0
      %1928 = vmatprep.subr.mxu0 0.0
      %1929 = vmatpush1.msra.mxu0 %v1893
      %1930 = vmatprep.subr.mxu0 0.0
      %1931 = vmatpush2.msra.mxu0 0.0
      %1932 = vmatprep.subr.mxu0 0.0
      %1933 = vmatpush2.msra.mxu0 0.0
      %1934 = vmatprep.subr.mxu0 0.0
      %1935 = vmatpush2.msra.mxu0 0.0
      %1936 = vmatprep.subr.mxu0 0.0
      %1937 = vmatpush2.msra.mxu0 0.0
      %1938 = vmatprep.subr.mxu0 0.0
      %1939 = vmatpush2.msra.mxu0 0.0
      %1940 = vmatprep.subr.mxu0 0.0
      %1941 = vmatpush2.msra.mxu0 0.0
      %1942 = vmatprep.subr.mxu0 0.0
      %1943 = vmatpush2.msra.mxu0 0.0
      %1944 = vmatprep.subr.mxu0 0.0
      %1945 = vmatpush2.msra.mxu0 0.0
      %1946 = vmatprep.subr.mxu0 0.0
      %1947 = vmatpush2.msra.mxu0 0.0
      %1948 = vmatprep.subr.mxu0 0.0
      %1949 = vmatpush2.msra.mxu0 0.0
      %1950 = vmatprep.subr.mxu0 0.0
      %1951 = vmatpush2.msra.mxu0 0.0
      %1952 = vmatprep.subr.mxu0 0.0
      %1953 = vmatpush2.msra.mxu0 0.0
      %1954 = vmatprep.subr.mxu0 0.0
      %1955 = vmatpush2.msra.mxu0 0.0
      %1956 = vmatprep.subr.mxu0 0.0
      %1957 = vmatpush2.msra.mxu0 0.0
      %1958 = vmatprep.subr.mxu0 0.0
      %1959 = vmatpush2.msra.mxu0 0.0
      %1960 = vmatprep.subr.mxu0 0.0
      %1961 = vmatpush2.msra.mxu0 0.0
      %1962 = vmatprep.mubr.f32.mxu0 0.0
      %1963 = vmatmul.mubr.f32.gmra.mxu0 %v1896
      %v1964 = vpop.f32.mrf.mxu0
      %v1965 = vadd.f32 0.0, %v1964
      %v1966 = vpop.f32.mrf.mxu0
      %1967 = vdwg.mxu0
      %v1969 = vsel %vm1894, %v1890, 0
      %1971 = vmatprep.subr.mxu0 0.0
      %1972 = vmatpush1.msra.mxu0 0.0
      %1973 = vmatprep.subr.mxu0 0.0
      %1974 = vmatpush1.msra.mxu0 0.0
      %1975 = vmatprep.subr.mxu0 0.0
      %1976 = vmatpush1.msra.mxu0 0.0
      %1977 = vmatprep.subr.mxu0 0.0
      %1978 = vmatpush1.msra.mxu0 0.0
      %1979 = vmatprep.subr.mxu0 0.0
      %1980 = vmatpush1.msra.mxu0 0.0
      %1981 = vmatprep.subr.mxu0 0.0
      %1982 = vmatpush1.msra.mxu0 0.0
      %1983 = vmatprep.subr.mxu0 0.0
      %1984 = vmatpush1.msra.mxu0 0.0
      %1985 = vmatprep.subr.mxu0 0.0
      %1986 = vmatpush1.msra.mxu0 0.0
      %1987 = vmatprep.subr.mxu0 0.0
      %1988 = vmatpush1.msra.mxu0 0.0
      %1989 = vmatprep.subr.mxu0 0.0
      %1990 = vmatpush1.msra.mxu0 0.0
      %1991 = vmatprep.subr.mxu0 0.0
      %1992 = vmatpush1.msra.mxu0 0.0
      %1993 = vmatprep.subr.mxu0 0.0
      %1994 = vmatpush1.msra.mxu0 0.0
      %1995 = vmatprep.subr.mxu0 0.0
      %1996 = vmatpush1.msra.mxu0 0.0
      %1997 = vmatprep.subr.mxu0 0.0
      %1998 = vmatpush1.msra.mxu0 0.0
      %1999 = vmatprep.subr.mxu0 0.0
      %2000 = vmatpush1.msra.mxu0 0.0
      %2001 = vmatprep.subr.mxu0 0.0
      %2002 = vmatpush1.msra.mxu0 %v1891
      %2003 = vmatprep.subr.mxu0 0.0
      %2004 = vmatpush2.msra.mxu0 0.0
      %2005 = vmatprep.subr.mxu0 0.0
      %2006 = vmatpush2.msra.mxu0 0.0
      %2007 = vmatprep.subr.mxu0 0.0
      %2008 = vmatpush2.msra.mxu0 0.0
      %2009 = vmatprep.subr.mxu0 0.0
      %2010 = vmatpush2.msra.mxu0 0.0
      %2011 = vmatprep.subr.mxu0 0.0
      %2012 = vmatpush2.msra.mxu0 0.0
      %2013 = vmatprep.subr.mxu0 0.0
      %2014 = vmatpush2.msra.mxu0 0.0
      %2015 = vmatprep.subr.mxu0 0.0
      %2016 = vmatpush2.msra.mxu0 0.0
      %2017 = vmatprep.subr.mxu0 0.0
      %2018 = vmatpush2.msra.mxu0 0.0
      %2019 = vmatprep.subr.mxu0 0.0
      %2020 = vmatpush2.msra.mxu0 0.0
      %2021 = vmatprep.subr.mxu0 0.0
      %2022 = vmatpush2.msra.mxu0 0.0
      %2023 = vmatprep.subr.mxu0 0.0
      %2024 = vmatpush2.msra.mxu0 0.0
      %2025 = vmatprep.subr.mxu0 0.0
      %2026 = vmatpush2.msra.mxu0 0.0
      %2027 = vmatprep.subr.mxu0 0.0
      %2028 = vmatpush2.msra.mxu0 0.0
      %2029 = vmatprep.subr.mxu0 0.0
      %2030 = vmatpush2.msra.mxu0 0.0
      %2031 = vmatprep.subr.mxu0 0.0
      %2032 = vmatpush2.msra.mxu0 0.0
      %2033 = vmatprep.subr.mxu0 0.0
      %2034 = vmatpush2.msra.mxu0 0.0
      %2035 = vmatprep.mubr.f32.mxu0 0.0
      %2036 = vmatmul.mubr.f32.gmra.mxu0 %v1969
      %v2037 = vpop.f32.mrf.mxu0
      %v2038 = vadd.f32 %v1965, %v2037
      %v2039 = vpop.f32.mrf.mxu0
      %2040 = vdwg.mxu0
      %2041 = vmatprep.subr.mxu0 0.0
      %2042 = vmatpush1.msra.mxu0 %v1889
      %2043 = vmatprep.subr.mxu0 0.0
      %2044 = vmatpush1.msra.mxu0 %v1888
      %2045 = vmatprep.subr.mxu0 0.0
      %2046 = vmatpush1.msra.mxu0 %v1887
      %2047 = vmatprep.subr.mxu0 0.0
      %2048 = vmatpush1.msra.mxu0 %v1886
      %2049 = vmatprep.subr.mxu0 0.0
      %2050 = vmatpush1.msra.mxu0 %v1885
      %2051 = vmatprep.subr.mxu0 0.0
      %2052 = vmatpush1.msra.mxu0 %v1884
      %2053 = vmatprep.subr.mxu0 0.0
      %2054 = vmatpush1.msra.mxu0 %v1883
      %2055 = vmatprep.subr.mxu0 0.0
      %2056 = vmatpush1.msra.mxu0 %v1882
      %2057 = vmatprep.subr.mxu0 0.0
      %2058 = vmatpush1.msra.mxu0 %v1881
      %2059 = vmatprep.subr.mxu0 0.0
      %2060 = vmatpush1.msra.mxu0 %v1880
      %2061 = vmatprep.subr.mxu0 0.0
      %2062 = vmatpush1.msra.mxu0 %v1879
      %2063 = vmatprep.subr.mxu0 0.0
      %2064 = vmatpush1.msra.mxu0 %v1878
      %2065 = vmatprep.subr.mxu0 0.0
      %2066 = vmatpush1.msra.mxu0 %v1877
      %2067 = vmatprep.subr.mxu0 0.0
      %2068 = vmatpush1.msra.mxu0 %v1876
      %2069 = vmatprep.subr.mxu0 0.0
      %2070 = vmatpush1.msra.mxu0 %v1875
      %2071 = vmatprep.subr.mxu0 0.0
      %2072 = vmatpush1.msra.mxu0 %v1874
      %2073 = vmatprep.subr.mxu0 0.0
      %2074 = vmatpush2.msra.mxu0 0.0
      %2075 = vmatprep.subr.mxu0 0.0
      %2076 = vmatpush2.msra.mxu0 0.0
      %2077 = vmatprep.subr.mxu0 0.0
      %2078 = vmatpush2.msra.mxu0 0.0
      %2079 = vmatprep.subr.mxu0 0.0
      %2080 = vmatpush2.msra.mxu0 0.0
      %2081 = vmatprep.subr.mxu0 0.0
      %2082 = vmatpush2.msra.mxu0 0.0
      %2083 = vmatprep.subr.mxu0 0.0
      %2084 = vmatpush2.msra.mxu0 0.0
      %2085 = vmatprep.subr.mxu0 0.0
      %2086 = vmatpush2.msra.mxu0 0.0
      %2087 = vmatprep.subr.mxu0 0.0
      %2088 = vmatpush2.msra.mxu0 0.0
      %2089 = vmatprep.subr.mxu0 0.0
      %2090 = vmatpush2.msra.mxu0 0.0
      %2091 = vmatprep.subr.mxu0 0.0
      %2092 = vmatpush2.msra.mxu0 0.0
      %2093 = vmatprep.subr.mxu0 0.0
      %2094 = vmatpush2.msra.mxu0 0.0
      %2095 = vmatprep.subr.mxu0 0.0
      %2096 = vmatpush2.msra.mxu0 0.0
      %2097 = vmatprep.subr.mxu0 0.0
      %2098 = vmatpush2.msra.mxu0 0.0
      %2099 = vmatprep.subr.mxu0 0.0
      %2100 = vmatpush2.msra.mxu0 0.0
      %2101 = vmatprep.subr.mxu0 0.0
      %2102 = vmatpush2.msra.mxu0 0.0
      %2103 = vmatprep.subr.mxu0 0.0
      %2104 = vmatpush2.msra.mxu0 0.0
      %2105 = vmatprep.mubr.f32.mxu0 0.0
      %2106 = vmatmul.mubr.f32.gmra.mxu0 %v1868
      %v2107 = vpop.f32.mrf.mxu0
      %v2108 = vadd.f32 %v2038, %v2107
      %v2109 = vpop.f32.mrf.mxu0
      %2110 = vdwg.mxu0
      %v2111 = vld [vmem:[#allocation10] sm:$0x3]
      %v2112 = vadd.f32 %v2108, %v2111
      %v2113 = vtanh.pop %v2112
      %v2114 = vld [vmem:[%s33] sm:$0xff]
      %v2115 = vld [vmem:[%s33 + $0x8] sm:$0xff]
      %v2116 = vld [vmem:[%s33 + $0x10] sm:$0xff]
      %v2117 = vld [vmem:[%s33 + $0x18] sm:$0xff]
      %v2118 = vld [vmem:[%s33 + $0x20] sm:$0xff]
      %v2119 = vld [vmem:[%s33 + $0x28] sm:$0xff]
      %v2120 = vld [vmem:[%s33 + $0x30] sm:$0xff]
      %v2121 = vld [vmem:[%s33 + $0x38] sm:$0xff]
      %v2122 = vld [vmem:[%s33 + $0x40] sm:$0xff]
      %v2123 = vld [vmem:[%s33 + $0x48] sm:$0xff]
      %v2124 = vld [vmem:[%s33 + $0x50] sm:$0xff]
      %v2125 = vld [vmem:[%s33 + $0x58] sm:$0xff]
      %v2126 = vld [vmem:[%s33 + $0x60] sm:$0xff]
      %v2127 = vld [vmem:[%s33 + $0x68] sm:$0xff]
      %v2128 = vld [vmem:[%s33 + $0x70] sm:$0xff]
      %v2129 = vld [vmem:[%s33 + $0x78] sm:$0xff]
      %2130 = vmatprep.subr.mxu0 0.0
      %2131 = vmatpush1.msra.mxu0 %v2129
      %2132 = vmatprep.subr.mxu0 0.0
      %2133 = vmatpush1.msra.mxu0 %v2128
      %2134 = vmatprep.subr.mxu0 0.0
      %2135 = vmatpush1.msra.mxu0 %v2127
      %2136 = vmatprep.subr.mxu0 0.0
      %2137 = vmatpush1.msra.mxu0 %v2126
      %2138 = vmatprep.subr.mxu0 0.0
      %2139 = vmatpush1.msra.mxu0 %v2125
      %2140 = vmatprep.subr.mxu0 0.0
      %2141 = vmatpush1.msra.mxu0 %v2124
      %2142 = vmatprep.subr.mxu0 0.0
      %2143 = vmatpush1.msra.mxu0 %v2123
      %2144 = vmatprep.subr.mxu0 0.0
      %2145 = vmatpush1.msra.mxu0 %v2122
      %2146 = vmatprep.subr.mxu0 0.0
      %2147 = vmatpush1.msra.mxu0 %v2121
      %2148 = vmatprep.subr.mxu0 0.0
      %2149 = vmatpush1.msra.mxu0 %v2120
      %2150 = vmatprep.subr.mxu0 0.0
      %2151 = vmatpush1.msra.mxu0 %v2119
      %2152 = vmatprep.subr.mxu0 0.0
      %2153 = vmatpush1.msra.mxu0 %v2118
      %2154 = vmatprep.subr.mxu0 0.0
      %2155 = vmatpush1.msra.mxu0 %v2117
      %2156 = vmatprep.subr.mxu0 0.0
      %2157 = vmatpush1.msra.mxu0 %v2116
      %2158 = vmatprep.subr.mxu0 0.0
      %2159 = vmatpush1.msra.mxu0 %v2115
      %2160 = vmatprep.subr.mxu0 0.0
      %2161 = vmatpush1.msra.mxu0 %v2114
      %2162 = vmatprep.subr.mxu0 0.0
      %2163 = vmatpush2.msra.mxu0 0.0
      %2164 = vmatprep.subr.mxu0 0.0
      %2165 = vmatpush2.msra.mxu0 0.0
      %2166 = vmatprep.subr.mxu0 0.0
      %2167 = vmatpush2.msra.mxu0 0.0
      %2168 = vmatprep.subr.mxu0 0.0
      %2169 = vmatpush2.msra.mxu0 0.0
      %2170 = vmatprep.subr.mxu0 0.0
      %2171 = vmatpush2.msra.mxu0 0.0
      %2172 = vmatprep.subr.mxu0 0.0
      %2173 = vmatpush2.msra.mxu0 0.0
      %2174 = vmatprep.subr.mxu0 0.0
      %2175 = vmatpush2.msra.mxu0 0.0
      %2176 = vmatprep.subr.mxu0 0.0
      %2177 = vmatpush2.msra.mxu0 0.0
      %2178 = vmatprep.subr.mxu0 0.0
      %2179 = vmatpush2.msra.mxu0 0.0
      %2180 = vmatprep.subr.mxu0 0.0
      %2181 = vmatpush2.msra.mxu0 0.0
      %2182 = vmatprep.subr.mxu0 0.0
      %2183 = vmatpush2.msra.mxu0 0.0
      %2184 = vmatprep.subr.mxu0 0.0
      %2185 = vmatpush2.msra.mxu0 0.0
      %2186 = vmatprep.subr.mxu0 0.0
      %2187 = vmatpush2.msra.mxu0 0.0
      %2188 = vmatprep.subr.mxu0 0.0
      %2189 = vmatpush2.msra.mxu0 0.0
      %2190 = vmatprep.subr.mxu0 0.0
      %2191 = vmatpush2.msra.mxu0 0.0
      %2192 = vmatprep.subr.mxu0 0.0
      %2193 = vmatpush2.msra.mxu0 0.0
      %2194 = vmatprep.mubr.f32.mxu0 0.0
      %2195 = vmatmul.mubr.f32.gmra.mxu0 %v2113
      %v2196 = vpop.f32.mrf.mxu0
      %v2197 = vadd.f32 0.0, %v2196
      %v2198 = vpop.f32.mrf.mxu0
      %2199 = vdwg.mxu0
      %v2200 = vlaneseq
      %v2201 = vand.u32 %v2200, 127
      %v2202 = vstv %s87
      %vm2203 = vcmp.le.s32.totalorder %v2201, %v2202
      %v2204 = vld [vmem:[%s11] sm:$0x3]
      %vm2205 = vcmp.gt.f32.partialorder %v2204, 0.5
      %vm2206 = vmand %vm2203, %vm2205
      %v2207 = vsel %vm2206, %v2197, -1e+30
      %vm2208 = vcmask 58368
      %v2209 = vsel %vm2208, %v2207, -inf
      %2210 = vmax.xlane.f32.xlu0 %v2209
      %v2211 = vpop.xlane.xlu0 %2210
      %v2212 = vsub.f32 %v2207, %v2211
      %v2213 = vmul.f32 %v2212, 1.442695
      %v2214 = vpow.pop %v2213
      %v2215 = vsel %vm2208, %v2214, 0.0
      %2216 = vadd.xlane.f32.xlu0 %v2215
      %v2217 = vpop.xlane.xlu0 %2216
      %v2218 = vrcp.pop %v2217
      %v2219 = vmul.f32 %v2214, %v2218
      %v2220 = vld [vmem:[%s35] sm:$0xff]
      %v2221 = vld [vmem:[%s35 + $0x8] sm:$0xff]
      %v2223 = vsel %vm1894, %v2219, 0
      %2225 = vmatprep.subr.mxu0 0.0
      %2226 = vmatpush1.msra.mxu0 0.0
      %2227 = vmatprep.subr.mxu0 0.0
      %2228 = vmatpush1.msra.mxu0 0.0
      %2229 = vmatprep.subr.mxu0 0.0
      %2230 = vmatpush1.msra.mxu0 0.0
      %2231 = vmatprep.subr.mxu0 0.0
      %2232 = vmatpush1.msra.mxu0 0.0
      %2233 = vmatprep.subr.mxu0 0.0
      %2234 = vmatpush1.msra.mxu0 0.0
      %2235 = vmatprep.subr.mxu0 0.0
      %2236 = vmatpush1.msra.mxu0 0.0
      %2237 = vmatprep.subr.mxu0 0.0
      %2238 = vmatpush1.msra.mxu0 0.0
      %2239 = vmatprep.subr.mxu0 0.0
      %2240 = vmatpush1.msra.mxu0 0.0
      %2241 = vmatprep.subr.mxu0 0.0
      %2242 = vmatpush1.msra.mxu0 0.0
      %2243 = vmatprep.subr.mxu0 0.0
      %2244 = vmatpush1.msra.mxu0 0.0
      %2245 = vmatprep.subr.mxu0 0.0
      %2246 = vmatpush1.msra.mxu0 0.0
      %2247 = vmatprep.subr.mxu0 0.0
      %2248 = vmatpush1.msra.mxu0 0.0
      %2249 = vmatprep.subr.mxu0 0.0
      %2250 = vmatpush1.msra.mxu0 0.0
      %2251 = vmatprep.subr.mxu0 0.0
      %2252 = vmatpush1.msra.mxu0 0.0
      %2253 = vmatprep.subr.mxu0 0.0
      %2254 = vmatpush1.msra.mxu0 0.0
      %2255 = vmatprep.subr.mxu0 %v2221
      %2256 = vmatpush1.msra.mxu0 %v2220
      %2257 = vmatprep.subr.mxu0 0.0
      %2258 = vmatpush2.msra.mxu0 0.0
      %2259 = vmatprep.subr.mxu0 0.0
      %2260 = vmatpush2.msra.mxu0 0.0
      %2261 = vmatprep.subr.mxu0 0.0
      %2262 = vmatpush2.msra.mxu0 0.0
      %2263 = vmatprep.subr.mxu0 0.0
      %2264 = vmatpush2.msra.mxu0 0.0
      %2265 = vmatprep.subr.mxu0 0.0
      %2266 = vmatpush2.msra.mxu0 0.0
      %2267 = vmatprep.subr.mxu0 0.0
      %2268 = vmatpush2.msra.mxu0 0.0
      %2269 = vmatprep.subr.mxu0 0.0
      %2270 = vmatpush2.msra.mxu0 0.0
      %2271 = vmatprep.subr.mxu0 0.0
      %2272 = vmatpush2.msra.mxu0 0.0
      %2273 = vmatprep.subr.mxu0 0.0
      %2274 = vmatpush2.msra.mxu0 0.0
      %2275 = vmatprep.subr.mxu0 0.0
      %2276 = vmatpush2.msra.mxu0 0.0
      %2277 = vmatprep.subr.mxu0 0.0
      %2278 = vmatpush2.msra.mxu0 0.0
      %2279 = vmatprep.subr.mxu0 0.0
      %2280 = vmatpush2.msra.mxu0 0.0
      %2281 = vmatprep.subr.mxu0 0.0
      %2282 = vmatpush2.msra.mxu0 0.0
      %2283 = vmatprep.subr.mxu0 0.0
      %2284 = vmatpush2.msra.mxu0 0.0
      %2285 = vmatprep.subr.mxu0 0.0
      %2286 = vmatpush2.msra.mxu0 0.0
      %2287 = vmatprep.subr.mxu0 0.0
      %2288 = vmatpush2.msra.mxu0 0.0
      %2289 = vmatprep.mubr.f32.mxu0 0.0
      %2290 = vmatmul.mubr.f32.gmra.mxu0 %v2223
      %v2291 = vpop.f32.mrf.mxu0
      %v2292 = vadd.f32 0.0, %v2291
      %v2293 = vpop.f32.mrf.mxu0
      %v2294 = vadd.f32 0.0, %v2293
      %2295 = vdwg.mxu0
      %v2296 = vld [vmem:[#allocation11] sm:$0xf]
      %v2299 = vunpack.c.l.s4 1983009808
      %v2300 = vunpack.c.0.s8 %v2299
      %v2301 = vlaneseq
      %v2302 = vshrl.u32 %v2301, 7
      %v2303 = vsub.s32 %v2300, %v2302
      %v2304 = vrot.slane %v2296, %v2303
      %v2305 = vcombine.high %v2304, %v2304
      %v2308 = vmul.f32 %v2292, %v2304
      %v2309 = vmul.f32 %v2294, %v2305
      %v2310 = vld [vmem:[%s37] sm:$0xff]
      %v2311 = vld [vmem:[%s37 + $0x8] sm:$0xff]
      %v2312 = vld [vmem:[%s37 + $0x10] sm:$0xff]
      %v2313 = vld [vmem:[%s37 + $0x18] sm:$0xff]
      %v2314 = vld [vmem:[%s37 + $0x20] sm:$0xff]
      %v2315 = vld [vmem:[%s37 + $0x28] sm:$0xff]
      %v2316 = vld [vmem:[%s37 + $0x30] sm:$0xff]
      %v2317 = vld [vmem:[%s37 + $0x38] sm:$0xff]
      %v2318 = vld [vmem:[%s37 + $0x40] sm:$0xff]
      %v2319 = vld [vmem:[%s37 + $0x48] sm:$0xff]
      %v2320 = vld [vmem:[%s37 + $0x50] sm:$0xff]
      %v2321 = vld [vmem:[%s37 + $0x58] sm:$0xff]
      %v2322 = vld [vmem:[%s37 + $0x60] sm:$0xff]
      %v2323 = vld [vmem:[%s37 + $0x68] sm:$0xff]
      %v2324 = vld [vmem:[%s37 + $0x70] sm:$0xff]
      %v2325 = vld [vmem:[%s37 + $0x78] sm:$0xff]
      %v2326 = vld [vmem:[%s37 + $0x80] sm:$0xff]
      %v2327 = vld [vmem:[%s37 + $0x88] sm:$0xff]
      %v2328 = vld [vmem:[%s37 + $0x90] sm:$0xff]
      %v2329 = vld [vmem:[%s37 + $0x98] sm:$0xff]
      %v2330 = vld [vmem:[%s37 + $0xa0] sm:$0xff]
      %v2331 = vld [vmem:[%s37 + $0xa8] sm:$0xff]
      %v2332 = vld [vmem:[%s37 + $0xb0] sm:$0xff]
      %v2333 = vld [vmem:[%s37 + $0xb8] sm:$0xff]
      %v2334 = vld [vmem:[%s37 + $0xc0] sm:$0xff]
      %v2335 = vld [vmem:[%s37 + $0xc8] sm:$0xff]
      %v2336 = vld [vmem:[%s37 + $0xd0] sm:$0xff]
      %v2337 = vld [vmem:[%s37 + $0xd8] sm:$0xff]
      %v2338 = vld [vmem:[%s37 + $0xe0] sm:$0xff]
      %v2339 = vld [vmem:[%s37 + $0xe8] sm:$0xff]
      %v2340 = vld [vmem:[%s37 + $0xf0] sm:$0xff]
      %v2341 = vld [vmem:[%s37 + $0xf8] sm:$0xff]
      %2342 = vmatprep.subr.mxu0 0.0
      %2343 = vmatpush1.msra.mxu0 %v2325
      %2344 = vmatprep.subr.mxu0 0.0
      %2345 = vmatpush1.msra.mxu0 %v2324
      %2346 = vmatprep.subr.mxu0 0.0
      %2347 = vmatpush1.msra.mxu0 %v2323
      %2348 = vmatprep.subr.mxu0 0.0
      %2349 = vmatpush1.msra.mxu0 %v2322
      %2350 = vmatprep.subr.mxu0 0.0
      %2351 = vmatpush1.msra.mxu0 %v2321
      %2352 = vmatprep.subr.mxu0 0.0
      %2353 = vmatpush1.msra.mxu0 %v2320
      %2354 = vmatprep.subr.mxu0 0.0
      %2355 = vmatpush1.msra.mxu0 %v2319
      %2356 = vmatprep.subr.mxu0 0.0
      %2357 = vmatpush1.msra.mxu0 %v2318
      %2358 = vmatprep.subr.mxu0 0.0
      %2359 = vmatpush1.msra.mxu0 %v2317
      %2360 = vmatprep.subr.mxu0 0.0
      %2361 = vmatpush1.msra.mxu0 %v2316
      %2362 = vmatprep.subr.mxu0 0.0
      %2363 = vmatpush1.msra.mxu0 %v2315
      %2364 = vmatprep.subr.mxu0 0.0
      %2365 = vmatpush1.msra.mxu0 %v2314
      %2366 = vmatprep.subr.mxu0 0.0
      %2367 = vmatpush1.msra.mxu0 %v2313
      %2368 = vmatprep.subr.mxu0 0.0
      %2369 = vmatpush1.msra.mxu0 %v2312
      %2370 = vmatprep.subr.mxu0 0.0
      %2371 = vmatpush1.msra.mxu0 %v2311
      %2372 = vmatprep.subr.mxu0 0.0
      %2373 = vmatpush1.msra.mxu0 %v2310
      %2374 = vmatprep.subr.mxu0 0.0
      %2375 = vmatpush2.msra.mxu0 %v2341
      %2376 = vmatprep.subr.mxu0 0.0
      %2377 = vmatpush2.msra.mxu0 %v2340
      %2378 = vmatprep.subr.mxu0 0.0
      %2379 = vmatpush2.msra.mxu0 %v2339
      %2380 = vmatprep.subr.mxu0 0.0
      %2381 = vmatpush2.msra.mxu0 %v2338
      %2382 = vmatprep.subr.mxu0 0.0
      %2383 = vmatpush2.msra.mxu0 %v2337
      %2384 = vmatprep.subr.mxu0 0.0
      %2385 = vmatpush2.msra.mxu0 %v2336
      %2386 = vmatprep.subr.mxu0 0.0
      %2387 = vmatpush2.msra.mxu0 %v2335
      %2388 = vmatprep.subr.mxu0 0.0
      %2389 = vmatpush2.msra.mxu0 %v2334
      %2390 = vmatprep.subr.mxu0 0.0
      %2391 = vmatpush2.msra.mxu0 %v2333
      %2392 = vmatprep.subr.mxu0 0.0
      %2393 = vmatpush2.msra.mxu0 %v2332
      %2394 = vmatprep.subr.mxu0 0.0
      %2395 = vmatpush2.msra.mxu0 %v2331
      %2396 = vmatprep.subr.mxu0 0.0
      %2397 = vmatpush2.msra.mxu0 %v2330
      %2398 = vmatprep.subr.mxu0 0.0
      %2399 = vmatpush2.msra.mxu0 %v2329
      %2400 = vmatprep.subr.mxu0 0.0
      %2401 = vmatpush2.msra.mxu0 %v2328
      %2402 = vmatprep.subr.mxu0 0.0
      %2403 = vmatpush2.msra.mxu0 %v2327
      %2404 = vmatprep.subr.mxu0 0.0
      %2405 = vmatpush2.msra.mxu0 %v2326
      %2406 = vmatprep.mubr.f32.mxu0 %v2309
      %2407 = vmatmul.mubr.f32.gmra.mxu0 %v2308
      %v2408 = vpop.f32.mrf.mxu0
      %v2409 = vadd.f32 0.0, %v2408
      %v2410 = vpop.f32.mrf.mxu0
      %2411 = vdwg.mxu0
      %v2412 = vld [vmem:[%s49] sm:$0xff]
      %v2413 = vld [vmem:[%s49 + $0x8] sm:$0xff]
      %v2414 = vld [vmem:[%s49 + $0x10] sm:$0xff]
      %v2415 = vld [vmem:[%s49 + $0x18] sm:$0xff]
      %v2416 = vld [vmem:[%s51] sm:$0x1]
      %v2418 = vlaneseq
      %v2419 = vshrl.u32 %v2418, 7
      %v2420 = vsub.s32 0, %v2419
      %v2421 = vrot.slane %v2416, %v2420
      %v2424 = vsel %vm1193, %v2409, 0
      %2426 = vmatprep.subr.mxu0 0.0
      %2427 = vmatpush1.msra.mxu0 0.0
      %2428 = vmatprep.subr.mxu0 0.0
      %2429 = vmatpush1.msra.mxu0 0.0
      %2430 = vmatprep.subr.mxu0 0.0
      %2431 = vmatpush1.msra.mxu0 0.0
      %2432 = vmatprep.subr.mxu0 0.0
      %2433 = vmatpush1.msra.mxu0 0.0
      %2434 = vmatprep.subr.mxu0 0.0
      %2435 = vmatpush1.msra.mxu0 0.0
      %2436 = vmatprep.subr.mxu0 0.0
      %2437 = vmatpush1.msra.mxu0 0.0
      %2438 = vmatprep.subr.mxu0 0.0
      %2439 = vmatpush1.msra.mxu0 0.0
      %2440 = vmatprep.subr.mxu0 0.0
      %2441 = vmatpush1.msra.mxu0 0.0
      %2442 = vmatprep.subr.mxu0 0.0
      %2443 = vmatpush1.msra.mxu0 0.0
      %2444 = vmatprep.subr.mxu0 0.0
      %2445 = vmatpush1.msra.mxu0 0.0
      %2446 = vmatprep.subr.mxu0 0.0
      %2447 = vmatpush1.msra.mxu0 0.0
      %2448 = vmatprep.subr.mxu0 0.0
      %2449 = vmatpush1.msra.mxu0 0.0
      %2450 = vmatprep.subr.mxu0 0.0
      %2451 = vmatpush1.msra.mxu0 %v2415
      %2452 = vmatprep.subr.mxu0 0.0
      %2453 = vmatpush1.msra.mxu0 %v2414
      %2454 = vmatprep.subr.mxu0 0.0
      %2455 = vmatpush1.msra.mxu0 %v2413
      %2456 = vmatprep.subr.mxu0 0.0
      %2457 = vmatpush1.msra.mxu0 %v2412
      %2458 = vmatprep.subr.mxu0 0.0
      %2459 = vmatpush2.msra.mxu0 0.0
      %2460 = vmatprep.subr.mxu0 0.0
      %2461 = vmatpush2.msra.mxu0 0.0
      %2462 = vmatprep.subr.mxu0 0.0
      %2463 = vmatpush2.msra.mxu0 0.0
      %2464 = vmatprep.subr.mxu0 0.0
      %2465 = vmatpush2.msra.mxu0 0.0
      %2466 = vmatprep.subr.mxu0 0.0
      %2467 = vmatpush2.msra.mxu0 0.0
      %2468 = vmatprep.subr.mxu0 0.0
      %2469 = vmatpush2.msra.mxu0 0.0
      %2470 = vmatprep.subr.mxu0 0.0
      %2471 = vmatpush2.msra.mxu0 0.0
      %2472 = vmatprep.subr.mxu0 0.0
      %2473 = vmatpush2.msra.mxu0 0.0
      %2474 = vmatprep.subr.mxu0 0.0
      %2475 = vmatpush2.msra.mxu0 0.0
      %2476 = vmatprep.subr.mxu0 0.0
      %2477 = vmatpush2.msra.mxu0 0.0
      %2478 = vmatprep.subr.mxu0 0.0
      %2479 = vmatpush2.msra.mxu0 0.0
      %2480 = vmatprep.subr.mxu0 0.0
      %2481 = vmatpush2.msra.mxu0 0.0
      %2482 = vmatprep.subr.mxu0 0.0
      %2483 = vmatpush2.msra.mxu0 0.0
      %2484 = vmatprep.subr.mxu0 0.0
      %2485 = vmatpush2.msra.mxu0 0.0
      %2486 = vmatprep.subr.mxu0 0.0
      %2487 = vmatpush2.msra.mxu0 0.0
      %2488 = vmatprep.subr.mxu0 0.0
      %2489 = vmatpush2.msra.mxu0 0.0
      %2490 = vmatprep.mubr.f32.mxu0 0.0
      %2491 = vmatmul.mubr.f32.gmra.mxu0 %v2424
      %v2492 = vpop.f32.mrf.mxu0
      %v2493 = vadd.f32 %v2421, %v2492
      %v2494 = vpop.f32.mrf.mxu0
      %2495 = vdwg.mxu0
      %v2496 = vmax.f32 %v2493, 0.0
      %v2497 = vld [vmem:[%s53] sm:$0xff]
      %v2498 = vld [vmem:[%s53 + $0x8] sm:$0xff]
      %v2499 = vld [vmem:[%s53 + $0x10] sm:$0xff]
      %v2500 = vld [vmem:[%s53 + $0x18] sm:$0xff]
      %v2501 = vld [vmem:[%s53 + $0x20] sm:$0xff]
      %v2502 = vld [vmem:[%s53 + $0x28] sm:$0xff]
      %v2503 = vld [vmem:[%s53 + $0x30] sm:$0xff]
      %v2504 = vld [vmem:[%s53 + $0x38] sm:$0xff]
      %v2505 = vld [vmem:[%s55] sm:$0x1]
      %v2507 = vlaneseq
      %v2508 = vshrl.u32 %v2507, 7
      %v2509 = vsub.s32 0, %v2508
      %v2510 = vrot.slane %v2505, %v2509
      %vm2512 = vcmask 523264
      %v2514 = vsel %vm2512, %v2496, 0
      %2516 = vmatprep.subr.mxu0 0.0
      %2517 = vmatpush1.msra.mxu0 0.0
      %2518 = vmatprep.subr.mxu0 0.0
      %2519 = vmatpush1.msra.mxu0 0.0
      %2520 = vmatprep.subr.mxu0 0.0
      %2521 = vmatpush1.msra.mxu0 0.0
      %2522 = vmatprep.subr.mxu0 0.0
      %2523 = vmatpush1.msra.mxu0 0.0
      %2524 = vmatprep.subr.mxu0 0.0
      %2525 = vmatpush1.msra.mxu0 0.0
      %2526 = vmatprep.subr.mxu0 0.0
      %2527 = vmatpush1.msra.mxu0 0.0
      %2528 = vmatprep.subr.mxu0 0.0
      %2529 = vmatpush1.msra.mxu0 0.0
      %2530 = vmatprep.subr.mxu0 0.0
      %2531 = vmatpush1.msra.mxu0 0.0
      %2532 = vmatprep.subr.mxu0 0.0
      %2533 = vmatpush1.msra.mxu0 %v2504
      %2534 = vmatprep.subr.mxu0 0.0
      %2535 = vmatpush1.msra.mxu0 %v2503
      %2536 = vmatprep.subr.mxu0 0.0
      %2537 = vmatpush1.msra.mxu0 %v2502
      %2538 = vmatprep.subr.mxu0 0.0
      %2539 = vmatpush1.msra.mxu0 %v2501
      %2540 = vmatprep.subr.mxu0 0.0
      %2541 = vmatpush1.msra.mxu0 %v2500
      %2542 = vmatprep.subr.mxu0 0.0
      %2543 = vmatpush1.msra.mxu0 %v2499
      %2544 = vmatprep.subr.mxu0 0.0
      %2545 = vmatpush1.msra.mxu0 %v2498
      %2546 = vmatprep.subr.mxu0 0.0
      %2547 = vmatpush1.msra.mxu0 %v2497
      %2548 = vmatprep.subr.mxu0 0.0
      %2549 = vmatpush2.msra.mxu0 0.0
      %2550 = vmatprep.subr.mxu0 0.0
      %2551 = vmatpush2.msra.mxu0 0.0
      %2552 = vmatprep.subr.mxu0 0.0
      %2553 = vmatpush2.msra.mxu0 0.0
      %2554 = vmatprep.subr.mxu0 0.0
      %2555 = vmatpush2.msra.mxu0 0.0
      %2556 = vmatprep.subr.mxu0 0.0
      %2557 = vmatpush2.msra.mxu0 0.0
      %2558 = vmatprep.subr.mxu0 0.0
      %2559 = vmatpush2.msra.mxu0 0.0
      %2560 = vmatprep.subr.mxu0 0.0
      %2561 = vmatpush2.msra.mxu0 0.0
      %2562 = vmatprep.subr.mxu0 0.0
      %2563 = vmatpush2.msra.mxu0 0.0
      %2564 = vmatprep.subr.mxu0 0.0
      %2565 = vmatpush2.msra.mxu0 0.0
      %2566 = vmatprep.subr.mxu0 0.0
      %2567 = vmatpush2.msra.mxu0 0.0
      %2568 = vmatprep.subr.mxu0 0.0
      %2569 = vmatpush2.msra.mxu0 0.0
      %2570 = vmatprep.subr.mxu0 0.0
      %2571 = vmatpush2.msra.mxu0 0.0
      %2572 = vmatprep.subr.mxu0 0.0
      %2573 = vmatpush2.msra.mxu0 0.0
      %2574 = vmatprep.subr.mxu0 0.0
      %2575 = vmatpush2.msra.mxu0 0.0
      %2576 = vmatprep.subr.mxu0 0.0
      %2577 = vmatpush2.msra.mxu0 0.0
      %2578 = vmatprep.subr.mxu0 0.0
      %2579 = vmatpush2.msra.mxu0 0.0
      %2580 = vmatprep.mubr.f32.mxu0 0.0
      %2581 = vmatmul.mubr.f32.gmra.mxu0 %v2514
      %v2582 = vpop.f32.mrf.mxu0
      %v2583 = vadd.f32 %v2510, %v2582
      %v2584 = vpop.f32.mrf.mxu0
      %2585 = vdwg.mxu0
      %v2586 = vmax.f32 %v2583, 0.0
      %v2587 = vld [vmem:[%s57] sm:$0xff]
      %v2588 = vld [vmem:[%s57 + $0x8] sm:$0xff]
      %v2589 = vld [vmem:[%s57 + $0x10] sm:$0xff]
      %v2590 = vld [vmem:[%s57 + $0x18] sm:$0xff]
      %v2591 = vld [vmem:[%s57 + $0x20] sm:$0xff]
      %v2592 = vld [vmem:[%s57 + $0x28] sm:$0xff]
      %v2593 = vld [vmem:[%s57 + $0x30] sm:$0xff]
      %v2594 = vld [vmem:[%s57 + $0x38] sm:$0xff]
      %v2595 = vld [vmem:[%s59] sm:$0x1]
      %v2597 = vlaneseq
      %v2598 = vshrl.u32 %v2597, 7
      %v2599 = vsub.s32 0, %v2598
      %v2600 = vrot.slane %v2595, %v2599
      %v2603 = vsel %vm2512, %v2586, 0
      %2605 = vmatprep.subr.mxu0 0.0
      %2606 = vmatpush1.msra.mxu0 0.0
      %2607 = vmatprep.subr.mxu0 0.0
      %2608 = vmatpush1.msra.mxu0 0.0
      %2609 = vmatprep.subr.mxu0 0.0
      %2610 = vmatpush1.msra.mxu0 0.0
      %2611 = vmatprep.subr.mxu0 0.0
      %2612 = vmatpush1.msra.mxu0 0.0
      %2613 = vmatprep.subr.mxu0 0.0
      %2614 = vmatpush1.msra.mxu0 0.0
      %2615 = vmatprep.subr.mxu0 0.0
      %2616 = vmatpush1.msra.mxu0 0.0
      %2617 = vmatprep.subr.mxu0 0.0
      %2618 = vmatpush1.msra.mxu0 0.0
      %2619 = vmatprep.subr.mxu0 0.0
      %2620 = vmatpush1.msra.mxu0 0.0
      %2621 = vmatprep.subr.mxu0 0.0
      %2622 = vmatpush1.msra.mxu0 %v2594
      %2623 = vmatprep.subr.mxu0 0.0
      %2624 = vmatpush1.msra.mxu0 %v2593
      %2625 = vmatprep.subr.mxu0 0.0
      %2626 = vmatpush1.msra.mxu0 %v2592
      %2627 = vmatprep.subr.mxu0 0.0
      %2628 = vmatpush1.msra.mxu0 %v2591
      %2629 = vmatprep.subr.mxu0 0.0
      %2630 = vmatpush1.msra.mxu0 %v2590
      %2631 = vmatprep.subr.mxu0 0.0
      %2632 = vmatpush1.msra.mxu0 %v2589
      %2633 = vmatprep.subr.mxu0 0.0
      %2634 = vmatpush1.msra.mxu0 %v2588
      %2635 = vmatprep.subr.mxu0 0.0
      %2636 = vmatpush1.msra.mxu0 %v2587
      %2637 = vmatprep.subr.mxu0 0.0
      %2638 = vmatpush2.msra.mxu0 0.0
      %2639 = vmatprep.subr.mxu0 0.0
      %2640 = vmatpush2.msra.mxu0 0.0
      %2641 = vmatprep.subr.mxu0 0.0
      %2642 = vmatpush2.msra.mxu0 0.0
      %2643 = vmatprep.subr.mxu0 0.0
      %2644 = vmatpush2.msra.mxu0 0.0
      %2645 = vmatprep.subr.mxu0 0.0
      %2646 = vmatpush2.msra.mxu0 0.0
      %2647 = vmatprep.subr.mxu0 0.0
      %2648 = vmatpush2.msra.mxu0 0.0
      %2649 = vmatprep.subr.mxu0 0.0
      %2650 = vmatpush2.msra.mxu0 0.0
      %2651 = vmatprep.subr.mxu0 0.0
      %2652 = vmatpush2.msra.mxu0 0.0
      %2653 = vmatprep.subr.mxu0 0.0
      %2654 = vmatpush2.msra.mxu0 0.0
      %2655 = vmatprep.subr.mxu0 0.0
      %2656 = vmatpush2.msra.mxu0 0.0
      %2657 = vmatprep.subr.mxu0 0.0
      %2658 = vmatpush2.msra.mxu0 0.0
      %2659 = vmatprep.subr.mxu0 0.0
      %2660 = vmatpush2.msra.mxu0 0.0
      %2661 = vmatprep.subr.mxu0 0.0
      %2662 = vmatpush2.msra.mxu0 0.0
      %2663 = vmatprep.subr.mxu0 0.0
      %2664 = vmatpush2.msra.mxu0 0.0
      %2665 = vmatprep.subr.mxu0 0.0
      %2666 = vmatpush2.msra.mxu0 0.0
      %2667 = vmatprep.subr.mxu0 0.0
      %2668 = vmatpush2.msra.mxu0 0.0
      %2669 = vmatprep.mubr.f32.mxu0 0.0
      %2670 = vmatmul.mubr.f32.gmra.mxu0 %v2603
      %v2671 = vpop.f32.mrf.mxu0
      %v2672 = vadd.f32 %v2600, %v2671
      %v2673 = vpop.f32.mrf.mxu0
      %2674 = vdwg.mxu0
      %v2675 = vadd.f32 %v2409, %v2672
      %vm2676 = vcmask 254976
      %2677 = vst.msk [vmem:[#allocation6] sm:$0x3] %vm2676, %v2675
      %s2678 = sadd.s32 %s87, 1
      %s2679 = smul.u32 %s2678, 16
      %v2680 = vstv %s2679
      %vm2681 = vcmp.ge.s32.totalorder %v2201, %v2680
      %s2682 = sadd.s32 %s87, 2
      %s2683 = smul.u32 %s2682, 16
      %v2684 = vstv %s2683
      %vm2685 = vcmp.lt.s32.totalorder %v2201, %v2684
      %vm2686 = vmand %vm2681, %vm2685
      %v2687 = vsel %vm2686, 1, 0
      %v2688 = vcvt.s32.f32 %v2687
      %v2689 = vld [vmem:[#allocation10] sm:$0x3]
      %v2690 = vld [vmem:[%s31] sm:$0xff]
      %v2691 = vld [vmem:[%s31 + $0x8] sm:$0xff]
      %v2692 = vld [vmem:[%s31 + $0x10] sm:$0xff]
      %v2693 = vld [vmem:[%s31 + $0x18] sm:$0xff]
      %v2695 = vsel %vm1193, %v2675, 0
      %2697 = vmatprep.subr.mxu0 0.0
      %2698 = vmatpush1.msra.mxu0 0.0
      %2699 = vmatprep.subr.mxu0 0.0
      %2700 = vmatpush1.msra.mxu0 0.0
      %2701 = vmatprep.subr.mxu0 0.0
      %2702 = vmatpush1.msra.mxu0 0.0
      %2703 = vmatprep.subr.mxu0 0.0
      %2704 = vmatpush1.msra.mxu0 0.0
      %2705 = vmatprep.subr.mxu0 0.0
      %2706 = vmatpush1.msra.mxu0 0.0
      %2707 = vmatprep.subr.mxu0 0.0
      %2708 = vmatpush1.msra.mxu0 0.0
      %2709 = vmatprep.subr.mxu0 0.0
      %2710 = vmatpush1.msra.mxu0 0.0
      %2711 = vmatprep.subr.mxu0 0.0
      %2712 = vmatpush1.msra.mxu0 0.0
      %2713 = vmatprep.subr.mxu0 0.0
      %2714 = vmatpush1.msra.mxu0 0.0
      %2715 = vmatprep.subr.mxu0 0.0
      %2716 = vmatpush1.msra.mxu0 0.0
      %2717 = vmatprep.subr.mxu0 0.0
      %2718 = vmatpush1.msra.mxu0 0.0
      %2719 = vmatprep.subr.mxu0 0.0
      %2720 = vmatpush1.msra.mxu0 0.0
      %2721 = vmatprep.subr.mxu0 0.0
      %2722 = vmatpush1.msra.mxu0 %v2693
      %2723 = vmatprep.subr.mxu0 0.0
      %2724 = vmatpush1.msra.mxu0 %v2692
      %2725 = vmatprep.subr.mxu0 0.0
      %2726 = vmatpush1.msra.mxu0 %v2691
      %2727 = vmatprep.subr.mxu0 0.0
      %2728 = vmatpush1.msra.mxu0 %v2690
      %2729 = vmatprep.subr.mxu0 0.0
      %2730 = vmatpush2.msra.mxu0 0.0
      %2731 = vmatprep.subr.mxu0 0.0
      %2732 = vmatpush2.msra.mxu0 0.0
      %2733 = vmatprep.subr.mxu0 0.0
      %2734 = vmatpush2.msra.mxu0 0.0
      %2735 = vmatprep.subr.mxu0 0.0
      %2736 = vmatpush2.msra.mxu0 0.0
      %2737 = vmatprep.subr.mxu0 0.0
      %2738 = vmatpush2.msra.mxu0 0.0
      %2739 = vmatprep.subr.mxu0 0.0
      %2740 = vmatpush2.msra.mxu0 0.0
      %2741 = vmatprep.subr.mxu0 0.0
      %2742 = vmatpush2.msra.mxu0 0.0
      %2743 = vmatprep.subr.mxu0 0.0
      %2744 = vmatpush2.msra.mxu0 0.0
      %2745 = vmatprep.subr.mxu0 0.0
      %2746 = vmatpush2.msra.mxu0 0.0
      %2747 = vmatprep.subr.mxu0 0.0
      %2748 = vmatpush2.msra.mxu0 0.0
      %2749 = vmatprep.subr.mxu0 0.0
      %2750 = vmatpush2.msra.mxu0 0.0
      %2751 = vmatprep.subr.mxu0 0.0
      %2752 = vmatpush2.msra.mxu0 0.0
      %2753 = vmatprep.subr.mxu0 0.0
      %2754 = vmatpush2.msra.mxu0 0.0
      %2755 = vmatprep.subr.mxu0 0.0
      %2756 = vmatpush2.msra.mxu0 0.0
      %2757 = vmatprep.subr.mxu0 0.0
      %2758 = vmatpush2.msra.mxu0 0.0
      %2759 = vmatprep.subr.mxu0 0.0
      %2760 = vmatpush2.msra.mxu0 0.0
      %2761 = vmatprep.mubr.f32.mxu0 0.0
      %2762 = vmatmul.mubr.f32.gmra.mxu0 %v2695
      %v2763 = vpop.f32.mrf.mxu0
      %v2764 = vadd.f32 0.0, %v2763
      %v2765 = vpop.f32.mrf.mxu0
      %2766 = vdwg.mxu0
      %v2767 = vmul.f32 %v2764, %v2688
      %v2768 = vadd.f32 %v2689, %v2767
      %2769 = vst [vmem:[#allocation10] sm:$0x3] %v2768
      %v2770 = vadd.s32 %v2201, 128
      %s2771 = smul.u32 %s2678, 32
      %v2772 = vstv %s2771
      %vm2773 = vcmp.ge.s32.totalorder %v2201, %v2772
      %vm2774 = vcmp.ge.s32.totalorder %v2770, %v2772
      %s2775 = smul.u32 %s2682, 32
      %v2776 = vstv %s2775
      %vm2777 = vcmp.lt.s32.totalorder %v2201, %v2776
      %vm2778 = vcmp.lt.s32.totalorder %v2770, %v2776
      %vm2779 = vmand %vm2773, %vm2777
      %vm2780 = vmand %vm2774, %vm2778
      %v2781 = vsel %vm2779, 1, 0
      %v2782 = vsel %vm2780, 1, 0
      %v2783 = vcvt.s32.f32 %v2781
      %v2784 = vcvt.s32.f32 %v2782
      %v2785 = vld [vmem:[#allocation11] sm:$0xf]
      %v2786 = vld [vmem:[%s39] sm:$0xff]
      %v2787 = vld [vmem:[%s39 + $0x8] sm:$0xff]
      %v2788 = vld [vmem:[%s39 + $0x10] sm:$0xff]
      %v2789 = vld [vmem:[%s39 + $0x18] sm:$0xff]
      %v2790 = vld [vmem:[%s39 + $0x20] sm:$0xff]
      %v2791 = vld [vmem:[%s39 + $0x28] sm:$0xff]
      %v2792 = vld [vmem:[%s39 + $0x30] sm:$0xff]
      %v2793 = vld [vmem:[%s39 + $0x38] sm:$0xff]
      %2794 = vmatprep.subr.mxu0 0.0
      %2795 = vmatpush1.msra.mxu0 0.0
      %2796 = vmatprep.subr.mxu0 0.0
      %2797 = vmatpush1.msra.mxu0 0.0
      %2798 = vmatprep.subr.mxu0 0.0
      %2799 = vmatpush1.msra.mxu0 0.0
      %2800 = vmatprep.subr.mxu0 0.0
      %2801 = vmatpush1.msra.mxu0 0.0
      %2802 = vmatprep.subr.mxu0 0.0
      %2803 = vmatpush1.msra.mxu0 0.0
      %2804 = vmatprep.subr.mxu0 0.0
      %2805 = vmatpush1.msra.mxu0 0.0
      %2806 = vmatprep.subr.mxu0 0.0
      %2807 = vmatpush1.msra.mxu0 0.0
      %2808 = vmatprep.subr.mxu0 0.0
      %2809 = vmatpush1.msra.mxu0 0.0
      %2810 = vmatprep.subr.mxu0 0.0
      %2811 = vmatpush1.msra.mxu0 0.0
      %2812 = vmatprep.subr.mxu0 0.0
      %2813 = vmatpush1.msra.mxu0 0.0
      %2814 = vmatprep.subr.mxu0 0.0
      %2815 = vmatpush1.msra.mxu0 0.0
      %2816 = vmatprep.subr.mxu0 0.0
      %2817 = vmatpush1.msra.mxu0 0.0
      %2818 = vmatprep.subr.mxu0 %v2793
      %2819 = vmatpush1.msra.mxu0 %v2792
      %2820 = vmatprep.subr.mxu0 %v2791
      %2821 = vmatpush1.msra.mxu0 %v2790
      %2822 = vmatprep.subr.mxu0 %v2789
      %2823 = vmatpush1.msra.mxu0 %v2788
      %2824 = vmatprep.subr.mxu0 %v2787
      %2825 = vmatpush1.msra.mxu0 %v2786
      %2826 = vmatprep.subr.mxu0 0.0
      %2827 = vmatpush2.msra.mxu0 0.0
      %2828 = vmatprep.subr.mxu0 0.0
      %2829 = vmatpush2.msra.mxu0 0.0
      %2830 = vmatprep.subr.mxu0 0.0
      %2831 = vmatpush2.msra.mxu0 0.0
      %2832 = vmatprep.subr.mxu0 0.0
      %2833 = vmatpush2.msra.mxu0 0.0
      %2834 = vmatprep.subr.mxu0 0.0
      %2835 = vmatpush2.msra.mxu0 0.0
      %2836 = vmatprep.subr.mxu0 0.0
      %2837 = vmatpush2.msra.mxu0 0.0
      %2838 = vmatprep.subr.mxu0 0.0
      %2839 = vmatpush2.msra.mxu0 0.0
      %2840 = vmatprep.subr.mxu0 0.0
      %2841 = vmatpush2.msra.mxu0 0.0
      %2842 = vmatprep.subr.mxu0 0.0
      %2843 = vmatpush2.msra.mxu0 0.0
      %2844 = vmatprep.subr.mxu0 0.0
      %2845 = vmatpush2.msra.mxu0 0.0
      %2846 = vmatprep.subr.mxu0 0.0
      %2847 = vmatpush2.msra.mxu0 0.0
      %2848 = vmatprep.subr.mxu0 0.0
      %2849 = vmatpush2.msra.mxu0 0.0
      %2850 = vmatprep.subr.mxu0 0.0
      %2851 = vmatpush2.msra.mxu0 0.0
      %2852 = vmatprep.subr.mxu0 0.0
      %2853 = vmatpush2.msra.mxu0 0.0
      %2854 = vmatprep.subr.mxu0 0.0
      %2855 = vmatpush2.msra.mxu0 0.0
      %2856 = vmatprep.subr.mxu0 0.0
      %2857 = vmatpush2.msra.mxu0 0.0
      %2858 = vmatprep.mubr.f32.mxu0 0.0
      %2859 = vmatmul.mubr.f32.gmra.mxu0 %v2695
      %v2860 = vpop.f32.mrf.mxu0
      %v2861 = vadd.f32 0.0, %v2860
      %v2862 = vpop.f32.mrf.mxu0
      %v2863 = vadd.f32 0.0, %v2862
      %2864 = vdwg.mxu0
      %v2865 = vmul.f32 %v2861, %v2783
      %v2866 = vmul.f32 %v2863, %v2784
      %v2869 = vcombine.low %v2865, %v2866
      %v2871 = vunpack.c.l.s4 1983009808
      %v2872 = vunpack.c.0.s8 %v2871
      %v2873 = vlaneseq
      %v2874 = vshrl.u32 %v2873, 7
      %v2875 = vsub.s32 %v2872, %v2874
      %v2876 = vrot.slane %v2869, %v2875
      %v2878 = vadd.f32 %v2785, %v2876
      %2879 = vst [vmem:[#allocation11] sm:$0xf] %v2878
      %v2880 = vld [vmem:[#allocation9] sm:$0x3]
      %v2881 = vadd.f32 %v2880, %v2219
      %2882 = vst.msk [vmem:[#allocation9] sm:$0x3] %vm2208, %v2881
      %2883 = vst.msk [vmem:[#allocation8] sm:$0x3] %vm2208, %v2219
      %v2884 = vld [vmem:[%s41] sm:$0xff]
      %v2885 = vld [vmem:[%s41 + $0x8] sm:$0xff]
      %v2886 = vld [vmem:[%s41 + $0x10] sm:$0xff]
      %v2887 = vld [vmem:[%s41 + $0x18] sm:$0xff]
      %v2888 = vld [vmem:[%s41 + $0x20] sm:$0xff]
      %v2889 = vld [vmem:[%s41 + $0x28] sm:$0xff]
      %v2890 = vld [vmem:[%s41 + $0x30] sm:$0xff]
      %v2891 = vld [vmem:[%s41 + $0x38] sm:$0xff]
      %v2892 = vld [vmem:[%s41 + $0x40] sm:$0xff]
      %v2893 = vld [vmem:[%s41 + $0x48] sm:$0xff]
      %v2894 = vld [vmem:[%s41 + $0x50] sm:$0xff]
      %v2895 = vld [vmem:[%s41 + $0x58] sm:$0xff]
      %v2896 = vld [vmem:[%s41 + $0x60] sm:$0xff]
      %v2897 = vld [vmem:[%s41 + $0x68] sm:$0xff]
      %v2898 = vld [vmem:[%s41 + $0x70] sm:$0xff]
      %v2899 = vld [vmem:[%s41 + $0x78] sm:$0xff]
      %v2900 = vld [vmem:[%s41 + $0x80] sm:$0xff]
      %v2901 = vld [vmem:[%s41 + $0x88] sm:$0xff]
      %v2902 = vld [vmem:[%s41 + $0x90] sm:$0xff]
      %v2903 = vld [vmem:[%s41 + $0x98] sm:$0xff]
      %v2904 = vld [vmem:[%s41 + $0xa0] sm:$0xff]
      %v2905 = vld [vmem:[%s41 + $0xa8] sm:$0xff]
      %v2906 = vld [vmem:[%s41 + $0xb0] sm:$0xff]
      %v2907 = vld [vmem:[%s41 + $0xb8] sm:$0xff]
      %v2908 = vld [vmem:[%s41 + $0xc0] sm:$0xff]
      %v2909 = vld [vmem:[%s41 + $0xc8] sm:$0xff]
      %v2910 = vld [vmem:[%s41 + $0xd0] sm:$0xff]
      %v2911 = vld [vmem:[%s41 + $0xd8] sm:$0xff]
      %v2912 = vld [vmem:[%s41 + $0xe0] sm:$0xff]
      %v2913 = vld [vmem:[%s41 + $0xe8] sm:$0xff]
      %v2914 = vld [vmem:[%s41 + $0xf0] sm:$0xff]
      %v2915 = vld [vmem:[%s41 + $0xf8] sm:$0xff]
      %v2916 = vld [vmem:[%s41 + $0x100] sm:$0xff]
      %v2917 = vld [vmem:[%s41 + $0x108] sm:$0xff]
      %v2918 = vld [vmem:[%s41 + $0x110] sm:$0xff]
      %v2919 = vld [vmem:[%s41 + $0x118] sm:$0xff]
      %v2920 = vld [vmem:[%s41 + $0x120] sm:$0xff]
      %v2921 = vld [vmem:[%s41 + $0x128] sm:$0xff]
      %v2922 = vld [vmem:[%s41 + $0x130] sm:$0xff]
      %v2923 = vld [vmem:[%s41 + $0x138] sm:$0xff]
      %v2924 = vld [vmem:[%s41 + $0x140] sm:$0xff]
      %v2925 = vld [vmem:[%s41 + $0x148] sm:$0xff]
      %v2926 = vld [vmem:[%s41 + $0x150] sm:$0xff]
      %v2927 = vld [vmem:[%s41 + $0x158] sm:$0xff]
      %v2928 = vld [vmem:[%s41 + $0x160] sm:$0xff]
      %v2929 = vld [vmem:[%s41 + $0x168] sm:$0xff]
      %v2930 = vld [vmem:[%s41 + $0x170] sm:$0xff]
      %v2931 = vld [vmem:[%s41 + $0x178] sm:$0xff]
      %v2932 = vld [vmem:[%s41 + $0x180] sm:$0xff]
      %v2933 = vld [vmem:[%s41 + $0x188] sm:$0xff]
      %v2934 = vld [vmem:[%s41 + $0x190] sm:$0xff]
      %v2935 = vld [vmem:[%s41 + $0x198] sm:$0xff]
      %v2936 = vld [vmem:[%s41 + $0x1a0] sm:$0xff]
      %v2937 = vld [vmem:[%s41 + $0x1a8] sm:$0xff]
      %v2938 = vld [vmem:[%s41 + $0x1b0] sm:$0xff]
      %v2939 = vld [vmem:[%s41 + $0x1b8] sm:$0xff]
      %v2940 = vld [vmem:[%s41 + $0x1c0] sm:$0xff]
      %v2941 = vld [vmem:[%s41 + $0x1c8] sm:$0xff]
      %v2942 = vld [vmem:[%s41 + $0x1d0] sm:$0xff]
      %v2943 = vld [vmem:[%s41 + $0x1d8] sm:$0xff]
      %v2944 = vld [vmem:[%s41 + $0x1e0] sm:$0xff]
      %v2945 = vld [vmem:[%s41 + $0x1e8] sm:$0xff]
      %v2946 = vld [vmem:[%s41 + $0x1f0] sm:$0xff]
      %v2947 = vld [vmem:[%s41 + $0x1f8] sm:$0xff]
      %v2948 = vld [vmem:[%s43] sm:$0xff]
      %v2949 = vld [vmem:[%s43 + $0x8] sm:$0xff]
      %v2950 = vld [vmem:[%s43 + $0x10] sm:$0xff]
      %v2951 = vld [vmem:[%s43 + $0x18] sm:$0xff]
      %v2952 = vld [vmem:[%s43 + $0x20] sm:$0xff]
      %v2953 = vld [vmem:[%s43 + $0x28] sm:$0xff]
      %v2954 = vld [vmem:[%s43 + $0x30] sm:$0xff]
      %v2955 = vld [vmem:[%s43 + $0x38] sm:$0xff]
      %v2956 = vld [vmem:[%s43 + $0x40] sm:$0xff]
      %v2957 = vld [vmem:[%s43 + $0x48] sm:$0xff]
      %v2958 = vld [vmem:[%s43 + $0x50] sm:$0xff]
      %v2959 = vld [vmem:[%s43 + $0x58] sm:$0xff]
      %v2960 = vld [vmem:[%s43 + $0x60] sm:$0xff]
      %v2961 = vld [vmem:[%s43 + $0x68] sm:$0xff]
      %v2962 = vld [vmem:[%s43 + $0x70] sm:$0xff]
      %v2963 = vld [vmem:[%s43 + $0x78] sm:$0xff]
      %2964 = vmatprep.subr.mxu0 0.0
      %2965 = vmatpush1.msra.mxu0 0.0
      %2966 = vmatprep.subr.mxu0 0.0
      %2967 = vmatpush1.msra.mxu0 0.0
      %2968 = vmatprep.subr.mxu0 0.0
      %2969 = vmatpush1.msra.mxu0 0.0
      %2970 = vmatprep.subr.mxu0 0.0
      %2971 = vmatpush1.msra.mxu0 0.0
      %2972 = vmatprep.subr.mxu0 0.0
      %2973 = vmatpush1.msra.mxu0 0.0
      %2974 = vmatprep.subr.mxu0 0.0
      %2975 = vmatpush1.msra.mxu0 0.0
      %2976 = vmatprep.subr.mxu0 0.0
      %2977 = vmatpush1.msra.mxu0 0.0
      %2978 = vmatprep.subr.mxu0 0.0
      %2979 = vmatpush1.msra.mxu0 0.0
      %2980 = vmatprep.subr.mxu0 0.0
      %2981 = vmatpush1.msra.mxu0 0.0
      %2982 = vmatprep.subr.mxu0 0.0
      %2983 = vmatpush1.msra.mxu0 0.0
      %2984 = vmatprep.subr.mxu0 0.0
      %2985 = vmatpush1.msra.mxu0 0.0
      %2986 = vmatprep.subr.mxu0 0.0
      %2987 = vmatpush1.msra.mxu0 0.0
      %2988 = vmatprep.subr.mxu0 %v2961
      %2989 = vmatpush1.msra.mxu0 %v2960
      %2990 = vmatprep.subr.mxu0 %v2957
      %2991 = vmatpush1.msra.mxu0 %v2956
      %2992 = vmatprep.subr.mxu0 %v2953
      %2993 = vmatpush1.msra.mxu0 %v2952
      %2994 = vmatprep.subr.mxu0 %v2949
      %2995 = vmatpush1.msra.mxu0 %v2948
      %2996 = vmatprep.subr.mxu0 0.0
      %2997 = vmatpush2.msra.mxu0 0.0
      %2998 = vmatprep.subr.mxu0 0.0
      %2999 = vmatpush2.msra.mxu0 0.0
      %3000 = vmatprep.subr.mxu0 0.0
      %3001 = vmatpush2.msra.mxu0 0.0
      %3002 = vmatprep.subr.mxu0 0.0
      %3003 = vmatpush2.msra.mxu0 0.0
      %3004 = vmatprep.subr.mxu0 0.0
      %3005 = vmatpush2.msra.mxu0 0.0
      %3006 = vmatprep.subr.mxu0 0.0
      %3007 = vmatpush2.msra.mxu0 0.0
      %3008 = vmatprep.subr.mxu0 0.0
      %3009 = vmatpush2.msra.mxu0 0.0
      %3010 = vmatprep.subr.mxu0 0.0
      %3011 = vmatpush2.msra.mxu0 0.0
      %3012 = vmatprep.subr.mxu0 0.0
      %3013 = vmatpush2.msra.mxu0 0.0
      %3014 = vmatprep.subr.mxu0 0.0
      %3015 = vmatpush2.msra.mxu0 0.0
      %3016 = vmatprep.subr.mxu0 0.0
      %3017 = vmatpush2.msra.mxu0 0.0
      %3018 = vmatprep.subr.mxu0 0.0
      %3019 = vmatpush2.msra.mxu0 0.0
      %3020 = vmatprep.subr.mxu0 0.0
      %3021 = vmatpush2.msra.mxu0 0.0
      %3022 = vmatprep.subr.mxu0 0.0
      %3023 = vmatpush2.msra.mxu0 0.0
      %3024 = vmatprep.subr.mxu0 0.0
      %3025 = vmatpush2.msra.mxu0 0.0
      %3026 = vmatprep.subr.mxu0 0.0
      %3027 = vmatpush2.msra.mxu0 0.0
      %3028 = vmatprep.mubr.f32.mxu0 0.0
      %3029 = vmatmul.mubr.f32.gmra.mxu0 %v2695
      %v3030 = vpop.f32.mrf.mxu0
      %v3031 = vadd.f32 0.0, %v3030
      %v3032 = vpop.f32.mrf.mxu0
      %v3033 = vadd.f32 0.0, %v3032
      %3034 = vdwg.mxu0
      %3035 = vmatprep.subr.mxu0 0.0
      %3036 = vmatpush1.msra.mxu0 0.0
      %3037 = vmatprep.subr.mxu0 0.0
      %3038 = vmatpush1.msra.mxu0 0.0
      %3039 = vmatprep.subr.mxu0 0.0
      %3040 = vmatpush1.msra.mxu0 0.0
      %3041 = vmatprep.subr.mxu0 0.0
      %3042 = vmatpush1.msra.mxu0 0.0
      %3043 = vmatprep.subr.mxu0 0.0
      %3044 = vmatpush1.msra.mxu0 0.0
      %3045 = vmatprep.subr.mxu0 0.0
      %3046 = vmatpush1.msra.mxu0 0.0
      %3047 = vmatprep.subr.mxu0 0.0
      %3048 = vmatpush1.msra.mxu0 0.0
      %3049 = vmatprep.subr.mxu0 0.0
      %3050 = vmatpush1.msra.mxu0 0.0
      %3051 = vmatprep.subr.mxu0 0.0
      %3052 = vmatpush1.msra.mxu0 0.0
      %3053 = vmatprep.subr.mxu0 0.0
      %3054 = vmatpush1.msra.mxu0 0.0
      %3055 = vmatprep.subr.mxu0 0.0
      %3056 = vmatpush1.msra.mxu0 0.0
      %3057 = vmatprep.subr.mxu0 0.0
      %3058 = vmatpush1.msra.mxu0 0.0
      %3059 = vmatprep.subr.mxu0 %v2963
      %3060 = vmatpush1.msra.mxu0 %v2962
      %3061 = vmatprep.subr.mxu0 %v2959
      %3062 = vmatpush1.msra.mxu0 %v2958
      %3063 = vmatprep.subr.mxu0 %v2955
      %3064 = vmatpush1.msra.mxu0 %v2954
      %3065 = vmatprep.subr.mxu0 %v2951
      %3066 = vmatpush1.msra.mxu0 %v2950
      %3067 = vmatprep.subr.mxu0 0.0
      %3068 = vmatpush2.msra.mxu0 0.0
      %3069 = vmatprep.subr.mxu0 0.0
      %3070 = vmatpush2.msra.mxu0 0.0
      %3071 = vmatprep.subr.mxu0 0.0
      %3072 = vmatpush2.msra.mxu0 0.0
      %3073 = vmatprep.subr.mxu0 0.0
      %3074 = vmatpush2.msra.mxu0 0.0
      %3075 = vmatprep.subr.mxu0 0.0
      %3076 = vmatpush2.msra.mxu0 0.0
      %3077 = vmatprep.subr.mxu0 0.0
      %3078 = vmatpush2.msra.mxu0 0.0
      %3079 = vmatprep.subr.mxu0 0.0
      %3080 = vmatpush2.msra.mxu0 0.0
      %3081 = vmatprep.subr.mxu0 0.0
      %3082 = vmatpush2.msra.mxu0 0.0
      %3083 = vmatprep.subr.mxu0 0.0
      %3084 = vmatpush2.msra.mxu0 0.0
      %3085 = vmatprep.subr.mxu0 0.0
      %3086 = vmatpush2.msra.mxu0 0.0
      %3087 = vmatprep.subr.mxu0 0.0
      %3088 = vmatpush2.msra.mxu0 0.0
      %3089 = vmatprep.subr.mxu0 0.0
      %3090 = vmatpush2.msra.mxu0 0.0
      %3091 = vmatprep.subr.mxu0 0.0
      %3092 = vmatpush2.msra.mxu0 0.0
      %3093 = vmatprep.subr.mxu0 0.0
      %3094 = vmatpush2.msra.mxu0 0.0
      %3095 = vmatprep.subr.mxu0 0.0
      %3096 = vmatpush2.msra.mxu0 0.0
      %3097 = vmatprep.subr.mxu0 0.0
      %3098 = vmatpush2.msra.mxu0 0.0
      %3099 = vmatprep.mubr.f32.mxu0 0.0
      %3100 = vmatmul.mubr.f32.gmra.mxu0 %v2695
      %v3101 = vpop.f32.mrf.mxu0
      %v3102 = vadd.f32 0.0, %v3101
      %v3103 = vpop.f32.mrf.mxu0
      %v3104 = vadd.f32 0.0, %v3103
      %3105 = vdwg.mxu0
      %3106 = vmatprep.subr.mxu0 %v2945
      %3107 = vmatpush1.msra.mxu0 %v2944
      %3108 = vmatprep.subr.mxu0 %v2941
      %3109 = vmatpush1.msra.mxu0 %v2940
      %3110 = vmatprep.subr.mxu0 %v2937
      %3111 = vmatpush1.msra.mxu0 %v2936
      %3112 = vmatprep.subr.mxu0 %v2933
      %3113 = vmatpush1.msra.mxu0 %v2932
      %3114 = vmatprep.subr.mxu0 %v2929
      %3115 = vmatpush1.msra.mxu0 %v2928
      %3116 = vmatprep.subr.mxu0 %v2925
      %3117 = vmatpush1.msra.mxu0 %v2924
      %3118 = vmatprep.subr.mxu0 %v2921
      %3119 = vmatpush1.msra.mxu0 %v2920
      %3120 = vmatprep.subr.mxu0 %v2917
      %3121 = vmatpush1.msra.mxu0 %v2916
      %3122 = vmatprep.subr.mxu0 %v2913
      %3123 = vmatpush1.msra.mxu0 %v2912
      %3124 = vmatprep.subr.mxu0 %v2909
      %3125 = vmatpush1.msra.mxu0 %v2908
      %3126 = vmatprep.subr.mxu0 %v2905
      %3127 = vmatpush1.msra.mxu0 %v2904
      %3128 = vmatprep.subr.mxu0 %v2901
      %3129 = vmatpush1.msra.mxu0 %v2900
      %3130 = vmatprep.subr.mxu0 %v2897
      %3131 = vmatpush1.msra.mxu0 %v2896
      %3132 = vmatprep.subr.mxu0 %v2893
      %3133 = vmatpush1.msra.mxu0 %v2892
      %3134 = vmatprep.subr.mxu0 %v2889
      %3135 = vmatpush1.msra.mxu0 %v2888
      %3136 = vmatprep.subr.mxu0 %v2885
      %3137 = vmatpush1.msra.mxu0 %v2884
      %3138 = vmatprep.subr.mxu0 0.0
      %3139 = vmatpush2.msra.mxu0 0.0
      %3140 = vmatprep.subr.mxu0 0.0
      %3141 = vmatpush2.msra.mxu0 0.0
      %3142 = vmatprep.subr.mxu0 0.0
      %3143 = vmatpush2.msra.mxu0 0.0
      %3144 = vmatprep.subr.mxu0 0.0
      %3145 = vmatpush2.msra.mxu0 0.0
      %3146 = vmatprep.subr.mxu0 0.0
      %3147 = vmatpush2.msra.mxu0 0.0
      %3148 = vmatprep.subr.mxu0 0.0
      %3149 = vmatpush2.msra.mxu0 0.0
      %3150 = vmatprep.subr.mxu0 0.0
      %3151 = vmatpush2.msra.mxu0 0.0
      %3152 = vmatprep.subr.mxu0 0.0
      %3153 = vmatpush2.msra.mxu0 0.0
      %3154 = vmatprep.subr.mxu0 0.0
      %3155 = vmatpush2.msra.mxu0 0.0
      %3156 = vmatprep.subr.mxu0 0.0
      %3157 = vmatpush2.msra.mxu0 0.0
      %3158 = vmatprep.subr.mxu0 0.0
      %3159 = vmatpush2.msra.mxu0 0.0
      %3160 = vmatprep.subr.mxu0 0.0
      %3161 = vmatpush2.msra.mxu0 0.0
      %3162 = vmatprep.subr.mxu0 0.0
      %3163 = vmatpush2.msra.mxu0 0.0
      %3164 = vmatprep.subr.mxu0 0.0
      %3165 = vmatpush2.msra.mxu0 0.0
      %3166 = vmatprep.subr.mxu0 0.0
      %3167 = vmatpush2.msra.mxu0 0.0
      %3168 = vmatprep.subr.mxu0 0.0
      %3169 = vmatpush2.msra.mxu0 0.0
      %3170 = vmatprep.mubr.f32.mxu0 0.0
      %3171 = vmatmul.mubr.f32.gmra.mxu0 %v1868
      %v3172 = vpop.f32.mrf.mxu0
      %v3173 = vadd.f32 %v3031, %v3172
      %v3174 = vpop.f32.mrf.mxu0
      %v3175 = vadd.f32 %v3033, %v3174
      %3176 = vdwg.mxu0
      %3177 = vmatprep.subr.mxu0 %v2947
      %3178 = vmatpush1.msra.mxu0 %v2946
      %3179 = vmatprep.subr.mxu0 %v2943
      %3180 = vmatpush1.msra.mxu0 %v2942
      %3181 = vmatprep.subr.mxu0 %v2939
      %3182 = vmatpush1.msra.mxu0 %v2938
      %3183 = vmatprep.subr.mxu0 %v2935
      %3184 = vmatpush1.msra.mxu0 %v2934
      %3185 = vmatprep.subr.mxu0 %v2931
      %3186 = vmatpush1.msra.mxu0 %v2930
      %3187 = vmatprep.subr.mxu0 %v2927
      %3188 = vmatpush1.msra.mxu0 %v2926
      %3189 = vmatprep.subr.mxu0 %v2923
      %3190 = vmatpush1.msra.mxu0 %v2922
      %3191 = vmatprep.subr.mxu0 %v2919
      %3192 = vmatpush1.msra.mxu0 %v2918
      %3193 = vmatprep.subr.mxu0 %v2915
      %3194 = vmatpush1.msra.mxu0 %v2914
      %3195 = vmatprep.subr.mxu0 %v2911
      %3196 = vmatpush1.msra.mxu0 %v2910
      %3197 = vmatprep.subr.mxu0 %v2907
      %3198 = vmatpush1.msra.mxu0 %v2906
      %3199 = vmatprep.subr.mxu0 %v2903
      %3200 = vmatpush1.msra.mxu0 %v2902
      %3201 = vmatprep.subr.mxu0 %v2899
      %3202 = vmatpush1.msra.mxu0 %v2898
      %3203 = vmatprep.subr.mxu0 %v2895
      %3204 = vmatpush1.msra.mxu0 %v2894
      %3205 = vmatprep.subr.mxu0 %v2891
      %3206 = vmatpush1.msra.mxu0 %v2890
      %3207 = vmatprep.subr.mxu0 %v2887
      %3208 = vmatpush1.msra.mxu0 %v2886
      %3209 = vmatprep.subr.mxu0 0.0
      %3210 = vmatpush2.msra.mxu0 0.0
      %3211 = vmatprep.subr.mxu0 0.0
      %3212 = vmatpush2.msra.mxu0 0.0
      %3213 = vmatprep.subr.mxu0 0.0
      %3214 = vmatpush2.msra.mxu0 0.0
      %3215 = vmatprep.subr.mxu0 0.0
      %3216 = vmatpush2.msra.mxu0 0.0
      %3217 = vmatprep.subr.mxu0 0.0
      %3218 = vmatpush2.msra.mxu0 0.0
      %3219 = vmatprep.subr.mxu0 0.0
      %3220 = vmatpush2.msra.mxu0 0.0
      %3221 = vmatprep.subr.mxu0 0.0
      %3222 = vmatpush2.msra.mxu0 0.0
      %3223 = vmatprep.subr.mxu0 0.0
      %3224 = vmatpush2.msra.mxu0 0.0
      %3225 = vmatprep.subr.mxu0 0.0
      %3226 = vmatpush2.msra.mxu0 0.0
      %3227 = vmatprep.subr.mxu0 0.0
      %3228 = vmatpush2.msra.mxu0 0.0
      %3229 = vmatprep.subr.mxu0 0.0
      %3230 = vmatpush2.msra.mxu0 0.0
      %3231 = vmatprep.subr.mxu0 0.0
      %3232 = vmatpush2.msra.mxu0 0.0
      %3233 = vmatprep.subr.mxu0 0.0
      %3234 = vmatpush2.msra.mxu0 0.0
      %3235 = vmatprep.subr.mxu0 0.0
      %3236 = vmatpush2.msra.mxu0 0.0
      %3237 = vmatprep.subr.mxu0 0.0
      %3238 = vmatpush2.msra.mxu0 0.0
      %3239 = vmatprep.subr.mxu0 0.0
      %3240 = vmatpush2.msra.mxu0 0.0
      %3241 = vmatprep.mubr.f32.mxu0 0.0
      %3242 = vmatmul.mubr.f32.gmra.mxu0 %v1868
      %v3243 = vpop.f32.mrf.mxu0
      %v3244 = vadd.f32 %v3102, %v3243
      %v3245 = vpop.f32.mrf.mxu0
      %v3246 = vadd.f32 %v3104, %v3245
      %3247 = vdwg.mxu0
      %v3248 = vld [vmem:[#allocation4] sm:$0x3]
      %v3249 = vld [vmem:[%s45] sm:$0xff]
      %v3250 = vld [vmem:[%s45 + $0x8] sm:$0xff]
      %v3251 = vld [vmem:[%s45 + $0x10] sm:$0xff]
      %v3252 = vld [vmem:[%s45 + $0x18] sm:$0xff]
      %v3253 = vld [vmem:[%s45 + $0x20] sm:$0xff]
      %v3254 = vld [vmem:[%s45 + $0x28] sm:$0xff]
      %v3255 = vld [vmem:[%s45 + $0x30] sm:$0xff]
      %v3256 = vld [vmem:[%s45 + $0x38] sm:$0xff]
      %v3257 = vld [vmem:[%s45 + $0x40] sm:$0xff]
      %v3258 = vld [vmem:[%s45 + $0x48] sm:$0xff]
      %v3259 = vld [vmem:[%s45 + $0x50] sm:$0xff]
      %v3260 = vld [vmem:[%s45 + $0x58] sm:$0xff]
      %v3261 = vld [vmem:[%s45 + $0x60] sm:$0xff]
      %v3262 = vld [vmem:[%s45 + $0x68] sm:$0xff]
      %v3263 = vld [vmem:[%s45 + $0x70] sm:$0xff]
      %v3264 = vld [vmem:[%s45 + $0x78] sm:$0xff]
      %v3265 = vld [vmem:[%s45 + $0x80] sm:$0xff]
      %v3266 = vld [vmem:[%s45 + $0x88] sm:$0xff]
      %v3267 = vld [vmem:[%s45 + $0x90] sm:$0xff]
      %v3268 = vld [vmem:[%s45 + $0x98] sm:$0xff]
      %v3269 = vld [vmem:[%s45 + $0xa0] sm:$0xff]
      %v3270 = vld [vmem:[%s45 + $0xa8] sm:$0xff]
      %v3271 = vld [vmem:[%s45 + $0xb0] sm:$0xff]
      %v3272 = vld [vmem:[%s45 + $0xb8] sm:$0xff]
      %v3273 = vld [vmem:[%s45 + $0xc0] sm:$0xff]
      %v3274 = vld [vmem:[%s45 + $0xc8] sm:$0xff]
      %v3275 = vld [vmem:[%s45 + $0xd0] sm:$0xff]
      %v3276 = vld [vmem:[%s45 + $0xd8] sm:$0xff]
      %v3277 = vld [vmem:[%s45 + $0xe0] sm:$0xff]
      %v3278 = vld [vmem:[%s45 + $0xe8] sm:$0xff]
      %v3279 = vld [vmem:[%s45 + $0xf0] sm:$0xff]
      %v3280 = vld [vmem:[%s45 + $0xf8] sm:$0xff]
      %v3281 = vld [vmem:[%s45 + $0x100] sm:$0xff]
      %v3282 = vld [vmem:[%s45 + $0x108] sm:$0xff]
      %v3283 = vld [vmem:[%s45 + $0x110] sm:$0xff]
      %v3284 = vld [vmem:[%s45 + $0x118] sm:$0xff]
      %v3285 = vld [vmem:[%s45 + $0x120] sm:$0xff]
      %v3286 = vld [vmem:[%s45 + $0x128] sm:$0xff]
      %v3287 = vld [vmem:[%s45 + $0x130] sm:$0xff]
      %v3288 = vld [vmem:[%s45 + $0x138] sm:$0xff]
      %v3289 = vld [vmem:[%s45 + $0x140] sm:$0xff]
      %v3290 = vld [vmem:[%s45 + $0x148] sm:$0xff]
      %v3291 = vld [vmem:[%s45 + $0x150] sm:$0xff]
      %v3292 = vld [vmem:[%s45 + $0x158] sm:$0xff]
      %v3293 = vld [vmem:[%s45 + $0x160] sm:$0xff]
      %v3294 = vld [vmem:[%s45 + $0x168] sm:$0xff]
      %v3295 = vld [vmem:[%s45 + $0x170] sm:$0xff]
      %v3296 = vld [vmem:[%s45 + $0x178] sm:$0xff]
      %v3297 = vld [vmem:[%s45 + $0x180] sm:$0xff]
      %v3298 = vld [vmem:[%s45 + $0x188] sm:$0xff]
      %v3299 = vld [vmem:[%s45 + $0x190] sm:$0xff]
      %v3300 = vld [vmem:[%s45 + $0x198] sm:$0xff]
      %v3301 = vld [vmem:[%s45 + $0x1a0] sm:$0xff]
      %v3302 = vld [vmem:[%s45 + $0x1a8] sm:$0xff]
      %v3303 = vld [vmem:[%s45 + $0x1b0] sm:$0xff]
      %v3304 = vld [vmem:[%s45 + $0x1b8] sm:$0xff]
      %v3305 = vld [vmem:[%s45 + $0x1c0] sm:$0xff]
      %v3306 = vld [vmem:[%s45 + $0x1c8] sm:$0xff]
      %v3307 = vld [vmem:[%s45 + $0x1d0] sm:$0xff]
      %v3308 = vld [vmem:[%s45 + $0x1d8] sm:$0xff]
      %v3309 = vld [vmem:[%s45 + $0x1e0] sm:$0xff]
      %v3310 = vld [vmem:[%s45 + $0x1e8] sm:$0xff]
      %v3311 = vld [vmem:[%s45 + $0x1f0] sm:$0xff]
      %v3312 = vld [vmem:[%s45 + $0x1f8] sm:$0xff]
      %3313 = vmatprep.subr.mxu0 %v3310
      %3314 = vmatpush1.msra.mxu0 %v3309
      %3315 = vmatprep.subr.mxu0 %v3306
      %3316 = vmatpush1.msra.mxu0 %v3305
      %3317 = vmatprep.subr.mxu0 %v3302
      %3318 = vmatpush1.msra.mxu0 %v3301
      %3319 = vmatprep.subr.mxu0 %v3298
      %3320 = vmatpush1.msra.mxu0 %v3297
      %3321 = vmatprep.subr.mxu0 %v3294
      %3322 = vmatpush1.msra.mxu0 %v3293
      %3323 = vmatprep.subr.mxu0 %v3290
      %3324 = vmatpush1.msra.mxu0 %v3289
      %3325 = vmatprep.subr.mxu0 %v3286
      %3326 = vmatpush1.msra.mxu0 %v3285
      %3327 = vmatprep.subr.mxu0 %v3282
      %3328 = vmatpush1.msra.mxu0 %v3281
      %3329 = vmatprep.subr.mxu0 %v3278
      %3330 = vmatpush1.msra.mxu0 %v3277
      %3331 = vmatprep.subr.mxu0 %v3274
      %3332 = vmatpush1.msra.mxu0 %v3273
      %3333 = vmatprep.subr.mxu0 %v3270
      %3334 = vmatpush1.msra.mxu0 %v3269
      %3335 = vmatprep.subr.mxu0 %v3266
      %3336 = vmatpush1.msra.mxu0 %v3265
      %3337 = vmatprep.subr.mxu0 %v3262
      %3338 = vmatpush1.msra.mxu0 %v3261
      %3339 = vmatprep.subr.mxu0 %v3258
      %3340 = vmatpush1.msra.mxu0 %v3257
      %3341 = vmatprep.subr.mxu0 %v3254
      %3342 = vmatpush1.msra.mxu0 %v3253
      %3343 = vmatprep.subr.mxu0 %v3250
      %3344 = vmatpush1.msra.mxu0 %v3249
      %3345 = vmatprep.subr.mxu0 0.0
      %3346 = vmatpush2.msra.mxu0 0.0
      %3347 = vmatprep.subr.mxu0 0.0
      %3348 = vmatpush2.msra.mxu0 0.0
      %3349 = vmatprep.subr.mxu0 0.0
      %3350 = vmatpush2.msra.mxu0 0.0
      %3351 = vmatprep.subr.mxu0 0.0
      %3352 = vmatpush2.msra.mxu0 0.0
      %3353 = vmatprep.subr.mxu0 0.0
      %3354 = vmatpush2.msra.mxu0 0.0
      %3355 = vmatprep.subr.mxu0 0.0
      %3356 = vmatpush2.msra.mxu0 0.0
      %3357 = vmatprep.subr.mxu0 0.0
      %3358 = vmatpush2.msra.mxu0 0.0
      %3359 = vmatprep.subr.mxu0 0.0
      %3360 = vmatpush2.msra.mxu0 0.0
      %3361 = vmatprep.subr.mxu0 0.0
      %3362 = vmatpush2.msra.mxu0 0.0
      %3363 = vmatprep.subr.mxu0 0.0
      %3364 = vmatpush2.msra.mxu0 0.0
      %3365 = vmatprep.subr.mxu0 0.0
      %3366 = vmatpush2.msra.mxu0 0.0
      %3367 = vmatprep.subr.mxu0 0.0
      %3368 = vmatpush2.msra.mxu0 0.0
      %3369 = vmatprep.subr.mxu0 0.0
      %3370 = vmatpush2.msra.mxu0 0.0
      %3371 = vmatprep.subr.mxu0 0.0
      %3372 = vmatpush2.msra.mxu0 0.0
      %3373 = vmatprep.subr.mxu0 0.0
      %3374 = vmatpush2.msra.mxu0 0.0
      %3375 = vmatprep.subr.mxu0 0.0
      %3376 = vmatpush2.msra.mxu0 0.0
      %3377 = vmatprep.mubr.f32.mxu0 0.0
      %3378 = vmatmul.mubr.f32.gmra.mxu0 %v3248
      %v3379 = vpop.f32.mrf.mxu0
      %v3380 = vadd.f32 0.0, %v3379
      %v3381 = vpop.f32.mrf.mxu0
      %v3382 = vadd.f32 0.0, %v3381
      %3383 = vdwg.mxu0
      %3384 = vmatprep.subr.mxu0 %v3312
      %3385 = vmatpush1.msra.mxu0 %v3311
      %3386 = vmatprep.subr.mxu0 %v3308
      %3387 = vmatpush1.msra.mxu0 %v3307
      %3388 = vmatprep.subr.mxu0 %v3304
      %3389 = vmatpush1.msra.mxu0 %v3303
      %3390 = vmatprep.subr.mxu0 %v3300
      %3391 = vmatpush1.msra.mxu0 %v3299
      %3392 = vmatprep.subr.mxu0 %v3296
      %3393 = vmatpush1.msra.mxu0 %v3295
      %3394 = vmatprep.subr.mxu0 %v3292
      %3395 = vmatpush1.msra.mxu0 %v3291
      %3396 = vmatprep.subr.mxu0 %v3288
      %3397 = vmatpush1.msra.mxu0 %v3287
      %3398 = vmatprep.subr.mxu0 %v3284
      %3399 = vmatpush1.msra.mxu0 %v3283
      %3400 = vmatprep.subr.mxu0 %v3280
      %3401 = vmatpush1.msra.mxu0 %v3279
      %3402 = vmatprep.subr.mxu0 %v3276
      %3403 = vmatpush1.msra.mxu0 %v3275
      %3404 = vmatprep.subr.mxu0 %v3272
      %3405 = vmatpush1.msra.mxu0 %v3271
      %3406 = vmatprep.subr.mxu0 %v3268
      %3407 = vmatpush1.msra.mxu0 %v3267
      %3408 = vmatprep.subr.mxu0 %v3264
      %3409 = vmatpush1.msra.mxu0 %v3263
      %3410 = vmatprep.subr.mxu0 %v3260
      %3411 = vmatpush1.msra.mxu0 %v3259
      %3412 = vmatprep.subr.mxu0 %v3256
      %3413 = vmatpush1.msra.mxu0 %v3255
      %3414 = vmatprep.subr.mxu0 %v3252
      %3415 = vmatpush1.msra.mxu0 %v3251
      %3416 = vmatprep.subr.mxu0 0.0
      %3417 = vmatpush2.msra.mxu0 0.0
      %3418 = vmatprep.subr.mxu0 0.0
      %3419 = vmatpush2.msra.mxu0 0.0
      %3420 = vmatprep.subr.mxu0 0.0
      %3421 = vmatpush2.msra.mxu0 0.0
      %3422 = vmatprep.subr.mxu0 0.0
      %3423 = vmatpush2.msra.mxu0 0.0
      %3424 = vmatprep.subr.mxu0 0.0
      %3425 = vmatpush2.msra.mxu0 0.0
      %3426 = vmatprep.subr.mxu0 0.0
      %3427 = vmatpush2.msra.mxu0 0.0
      %3428 = vmatprep.subr.mxu0 0.0
      %3429 = vmatpush2.msra.mxu0 0.0
      %3430 = vmatprep.subr.mxu0 0.0
      %3431 = vmatpush2.msra.mxu0 0.0
      %3432 = vmatprep.subr.mxu0 0.0
      %3433 = vmatpush2.msra.mxu0 0.0
      %3434 = vmatprep.subr.mxu0 0.0
      %3435 = vmatpush2.msra.mxu0 0.0
      %3436 = vmatprep.subr.mxu0 0.0
      %3437 = vmatpush2.msra.mxu0 0.0
      %3438 = vmatprep.subr.mxu0 0.0
      %3439 = vmatpush2.msra.mxu0 0.0
      %3440 = vmatprep.subr.mxu0 0.0
      %3441 = vmatpush2.msra.mxu0 0.0
      %3442 = vmatprep.subr.mxu0 0.0
      %3443 = vmatpush2.msra.mxu0 0.0
      %3444 = vmatprep.subr.mxu0 0.0
      %3445 = vmatpush2.msra.mxu0 0.0
      %3446 = vmatprep.subr.mxu0 0.0
      %3447 = vmatpush2.msra.mxu0 0.0
      %3448 = vmatprep.mubr.f32.mxu0 0.0
      %3449 = vmatmul.mubr.f32.gmra.mxu0 %v3248
      %v3450 = vpop.f32.mrf.mxu0
      %v3451 = vadd.f32 0.0, %v3450
      %v3452 = vpop.f32.mrf.mxu0
      %v3453 = vadd.f32 0.0, %v3452
      %3454 = vdwg.mxu0
      %v3455 = vadd.f32 %v3173, %v3380
      %v3456 = vadd.f32 %v3175, %v3382
      %v3457 = vadd.f32 %v3244, %v3451
      %v3458 = vadd.f32 %v3246, %v3453
      %v3459 = vld [vmem:[%s47] sm:$0xf]
      %v3461 = vlaneseq
      %v3462 = vshrl.u32 %v3461, 7
      %v3463 = vsub.s32 0, %v3462
      %v3464 = vrot.slane %v3459, %v3463
      %v3465 = vlaneseq
      %v3466 = vshrl.u32 %v3465, 7
      %v3467 = vsub.s32 1, %v3466
      %v3468 = vrot.slane %v3459, %v3467
      %v3469 = vlaneseq
      %v3470 = vshrl.u32 %v3469, 7
      %v3471 = vsub.s32 2, %v3470
      %v3472 = vrot.slane %v3459, %v3471
      %v3473 = vlaneseq
      %v3474 = vshrl.u32 %v3473, 7
      %v3475 = vsub.s32 3, %v3474
      %v3476 = vrot.slane %v3459, %v3475
      %v3481 = vadd.f32 %v3455, %v3464
      %v3482 = vadd.f32 %v3456, %v3468
      %v3483 = vadd.f32 %v3457, %v3472
      %v3484 = vadd.f32 %v3458, %v3476
      %v3485 = vxor.u32 %v3481, 2147483648
      %v3486 = vmul.f32 %v3485, 1.442695
      %v3487 = vpow.pop %v3486
      %v3488 = vadd.f32 %v3487, 1.0
      %v3489 = vrcp.pop %v3488
      %v3490 = vmul.f32 1.0, %v3489
      %v3491 = vxor.u32 %v3482, 2147483648
      %v3492 = vmul.f32 %v3491, 1.442695
      %v3493 = vpow.pop %v3492
      %v3494 = vadd.f32 %v3493, 1.0
      %v3495 = vrcp.pop %v3494
      %v3496 = vmul.f32 1.0, %v3495
      %v3497 = vtanh.pop %v3483
      %v3498 = vxor.u32 %v3484, 2147483648
      %v3499 = vmul.f32 %v3498, 1.442695
      %v3500 = vpow.pop %v3499
      %v3501 = vadd.f32 %v3500, 1.0
      %v3502 = vrcp.pop %v3501
      %v3503 = vmul.f32 1.0, %v3502
      %v3504 = vld [vmem:[#allocation5] sm:$0x3]
      %v3505 = vmul.f32 %v3496, %v3504
      %v3506 = vmul.f32 %v3490, %v3497
      %v3507 = vadd.f32 %v3505, %v3506
      %v3508 = vtanh.pop %v3507
      %v3509 = vmul.f32 %v3503, %v3508
      %v3510 = vld [vmem:[%s1080] sm:$0x3]
      %v3511 = vmul.f32 %v3509, %v3510
      %s3512 = scalar_lea.vmem %s1080, 2
      %v3513 = vld [vmem:[%s3512] sm:$0x3]
      %v3514 = vmul.f32 %v3507, %v3513
      %3515 = vst [vmem:[#allocation4] sm:$0x3] %v3511
      %3516 = vst [vmem:[#allocation5] sm:$0x3] %v3514
      %v3517 = vld [vmem:[%s61] sm:$0xff]
      %v3518 = vld [vmem:[%s61 + $0x8] sm:$0xff]
      %v3519 = vld [vmem:[%s61 + $0x10] sm:$0xff]
      %v3520 = vld [vmem:[%s61 + $0x18] sm:$0xff]
      %v3521 = vld [vmem:[%s61 + $0x20] sm:$0xff]
      %v3522 = vld [vmem:[%s61 + $0x28] sm:$0xff]
      %v3523 = vld [vmem:[%s61 + $0x30] sm:$0xff]
      %v3524 = vld [vmem:[%s61 + $0x38] sm:$0xff]
      %v3525 = vld [vmem:[%s61 + $0x40] sm:$0xff]
      %v3526 = vld [vmem:[%s61 + $0x48] sm:$0xff]
      %v3527 = vld [vmem:[%s61 + $0x50] sm:$0xff]
      %v3528 = vld [vmem:[%s61 + $0x58] sm:$0xff]
      %v3529 = vld [vmem:[%s61 + $0x60] sm:$0xff]
      %v3530 = vld [vmem:[%s61 + $0x68] sm:$0xff]
      %v3531 = vld [vmem:[%s61 + $0x70] sm:$0xff]
      %v3532 = vld [vmem:[%s61 + $0x78] sm:$0xff]
      %v3533 = vld [vmem:[%s63] sm:$0xff]
      %v3534 = vld [vmem:[%s63 + $0x8] sm:$0xff]
      %v3535 = vld [vmem:[%s63 + $0x10] sm:$0xff]
      %v3536 = vld [vmem:[%s63 + $0x18] sm:$0xff]
      %3537 = vmatprep.subr.mxu0 0.0
      %3538 = vmatpush1.msra.mxu0 0.0
      %3539 = vmatprep.subr.mxu0 0.0
      %3540 = vmatpush1.msra.mxu0 0.0
      %3541 = vmatprep.subr.mxu0 0.0
      %3542 = vmatpush1.msra.mxu0 0.0
      %3543 = vmatprep.subr.mxu0 0.0
      %3544 = vmatpush1.msra.mxu0 0.0
      %3545 = vmatprep.subr.mxu0 0.0
      %3546 = vmatpush1.msra.mxu0 0.0
      %3547 = vmatprep.subr.mxu0 0.0
      %3548 = vmatpush1.msra.mxu0 0.0
      %3549 = vmatprep.subr.mxu0 0.0
      %3550 = vmatpush1.msra.mxu0 0.0
      %3551 = vmatprep.subr.mxu0 0.0
      %3552 = vmatpush1.msra.mxu0 0.0
      %3553 = vmatprep.subr.mxu0 0.0
      %3554 = vmatpush1.msra.mxu0 0.0
      %3555 = vmatprep.subr.mxu0 0.0
      %3556 = vmatpush1.msra.mxu0 0.0
      %3557 = vmatprep.subr.mxu0 0.0
      %3558 = vmatpush1.msra.mxu0 0.0
      %3559 = vmatprep.subr.mxu0 0.0
      %3560 = vmatpush1.msra.mxu0 0.0
      %3561 = vmatprep.subr.mxu0 0.0
      %3562 = vmatpush1.msra.mxu0 %v3536
      %3563 = vmatprep.subr.mxu0 0.0
      %3564 = vmatpush1.msra.mxu0 %v3535
      %3565 = vmatprep.subr.mxu0 0.0
      %3566 = vmatpush1.msra.mxu0 %v3534
      %3567 = vmatprep.subr.mxu0 0.0
      %3568 = vmatpush1.msra.mxu0 %v3533
      %3569 = vmatprep.subr.mxu0 0.0
      %3570 = vmatpush2.msra.mxu0 0.0
      %3571 = vmatprep.subr.mxu0 0.0
      %3572 = vmatpush2.msra.mxu0 0.0
      %3573 = vmatprep.subr.mxu0 0.0
      %3574 = vmatpush2.msra.mxu0 0.0
      %3575 = vmatprep.subr.mxu0 0.0
      %3576 = vmatpush2.msra.mxu0 0.0
      %3577 = vmatprep.subr.mxu0 0.0
      %3578 = vmatpush2.msra.mxu0 0.0
      %3579 = vmatprep.subr.mxu0 0.0
      %3580 = vmatpush2.msra.mxu0 0.0
      %3581 = vmatprep.subr.mxu0 0.0
      %3582 = vmatpush2.msra.mxu0 0.0
      %3583 = vmatprep.subr.mxu0 0.0
      %3584 = vmatpush2.msra.mxu0 0.0
      %3585 = vmatprep.subr.mxu0 0.0
      %3586 = vmatpush2.msra.mxu0 0.0
      %3587 = vmatprep.subr.mxu0 0.0
      %3588 = vmatpush2.msra.mxu0 0.0
      %3589 = vmatprep.subr.mxu0 0.0
      %3590 = vmatpush2.msra.mxu0 0.0
      %3591 = vmatprep.subr.mxu0 0.0
      %3592 = vmatpush2.msra.mxu0 0.0
      %3593 = vmatprep.subr.mxu0 0.0
      %3594 = vmatpush2.msra.mxu0 0.0
      %3595 = vmatprep.subr.mxu0 0.0
      %3596 = vmatpush2.msra.mxu0 0.0
      %3597 = vmatprep.subr.mxu0 0.0
      %3598 = vmatpush2.msra.mxu0 0.0
      %3599 = vmatprep.subr.mxu0 0.0
      %3600 = vmatpush2.msra.mxu0 0.0
      %3601 = vmatprep.mubr.f32.mxu0 0.0
      %3602 = vmatmul.mubr.f32.gmra.mxu0 %v2695
      %v3603 = vpop.f32.mrf.mxu0
      %v3604 = vadd.f32 0.0, %v3603
      %v3605 = vpop.f32.mrf.mxu0
      %3606 = vdwg.mxu0
      %3607 = vmatprep.subr.mxu0 0.0
      %3608 = vmatpush1.msra.mxu0 %v3532
      %3609 = vmatprep.subr.mxu0 0.0
      %3610 = vmatpush1.msra.mxu0 %v3531
      %3611 = vmatprep.subr.mxu0 0.0
      %3612 = vmatpush1.msra.mxu0 %v3530
      %3613 = vmatprep.subr.mxu0 0.0
      %3614 = vmatpush1.msra.mxu0 %v3529
      %3615 = vmatprep.subr.mxu0 0.0
      %3616 = vmatpush1.msra.mxu0 %v3528
      %3617 = vmatprep.subr.mxu0 0.0
      %3618 = vmatpush1.msra.mxu0 %v3527
      %3619 = vmatprep.subr.mxu0 0.0
      %3620 = vmatpush1.msra.mxu0 %v3526
      %3621 = vmatprep.subr.mxu0 0.0
      %3622 = vmatpush1.msra.mxu0 %v3525
      %3623 = vmatprep.subr.mxu0 0.0
      %3624 = vmatpush1.msra.mxu0 %v3524
      %3625 = vmatprep.subr.mxu0 0.0
      %3626 = vmatpush1.msra.mxu0 %v3523
      %3627 = vmatprep.subr.mxu0 0.0
      %3628 = vmatpush1.msra.mxu0 %v3522
      %3629 = vmatprep.subr.mxu0 0.0
      %3630 = vmatpush1.msra.mxu0 %v3521
      %3631 = vmatprep.subr.mxu0 0.0
      %3632 = vmatpush1.msra.mxu0 %v3520
      %3633 = vmatprep.subr.mxu0 0.0
      %3634 = vmatpush1.msra.mxu0 %v3519
      %3635 = vmatprep.subr.mxu0 0.0
      %3636 = vmatpush1.msra.mxu0 %v3518
      %3637 = vmatprep.subr.mxu0 0.0
      %3638 = vmatpush1.msra.mxu0 %v3517
      %3639 = vmatprep.subr.mxu0 0.0
      %3640 = vmatpush2.msra.mxu0 0.0
      %3641 = vmatprep.subr.mxu0 0.0
      %3642 = vmatpush2.msra.mxu0 0.0
      %3643 = vmatprep.subr.mxu0 0.0
      %3644 = vmatpush2.msra.mxu0 0.0
      %3645 = vmatprep.subr.mxu0 0.0
      %3646 = vmatpush2.msra.mxu0 0.0
      %3647 = vmatprep.subr.mxu0 0.0
      %3648 = vmatpush2.msra.mxu0 0.0
      %3649 = vmatprep.subr.mxu0 0.0
      %3650 = vmatpush2.msra.mxu0 0.0
      %3651 = vmatprep.subr.mxu0 0.0
      %3652 = vmatpush2.msra.mxu0 0.0
      %3653 = vmatprep.subr.mxu0 0.0
      %3654 = vmatpush2.msra.mxu0 0.0
      %3655 = vmatprep.subr.mxu0 0.0
      %3656 = vmatpush2.msra.mxu0 0.0
      %3657 = vmatprep.subr.mxu0 0.0
      %3658 = vmatpush2.msra.mxu0 0.0
      %3659 = vmatprep.subr.mxu0 0.0
      %3660 = vmatpush2.msra.mxu0 0.0
      %3661 = vmatprep.subr.mxu0 0.0
      %3662 = vmatpush2.msra.mxu0 0.0
      %3663 = vmatprep.subr.mxu0 0.0
      %3664 = vmatpush2.msra.mxu0 0.0
      %3665 = vmatprep.subr.mxu0 0.0
      %3666 = vmatpush2.msra.mxu0 0.0
      %3667 = vmatprep.subr.mxu0 0.0
      %3668 = vmatpush2.msra.mxu0 0.0
      %3669 = vmatprep.subr.mxu0 0.0
      %3670 = vmatpush2.msra.mxu0 0.0
      %3671 = vmatprep.mubr.f32.mxu0 0.0
      %3672 = vmatmul.mubr.f32.gmra.mxu0 %v3511
      %v3673 = vpop.f32.mrf.mxu0
      %v3674 = vadd.f32 %v3604, %v3673
      %v3675 = vpop.f32.mrf.mxu0
      %3676 = vdwg.mxu0
      %v3677 = vld [vmem:[%s65] sm:$0x1]
      %v3679 = vlaneseq
      %v3680 = vshrl.u32 %v3679, 7
      %v3681 = vsub.s32 0, %v3680
      %v3682 = vrot.slane %v3677, %v3681
      %v3684 = vadd.f32 %v3674, %v3682
      %vm3685 = vcmask 33792
      %3686 = vst.msk [vmem:[%s1084] sm:$0x3] %vm3685, %v3684
      %3687 = vst.msk [vmem:[%s1088] sm:$0x3] %vm2208, %v2219
      %vm3688 = vcmask 25600
      %3689 = vst.msk [vmem:[#allocation7] sm:$0x3] %vm3688, %v3684
      %p3690 = scmp.lt.s32.totalorder %s87, 7
      %s3691 = scalar_select %p3690, %s87, 7
      %s3692 = smul.addr %s3691, 2
      %s3693 = scalar_lea.vmem %s67, %s3692
      %p3694 = scmp.lt.s32.totalorder %s87, 7
      %s3695 = scalar_select %p3694, %s87, 7
      %s3696 = smul.addr %s3695, 2
      %s3697 = scalar_lea.vmem %s69, %s3696
      // Predicated region
      $region153: #{_lambda_.6} parent=147 // pred_check
        %p3698 = pneg %p797
      $region154: #{_lambda_.6} parent=147 // pred_check_branch
        %3700 = sbr.rel (%p3698) target = $region156
      $region155: #{_lambda_.6} parent=147 // pred_region
        _
      $region156: #{_lambda_.6} parent=147 // pred_fallthru
        _
      // Predicated region
      $region157: #{_lambda_.6} parent=147 // pred_check
        %p3701 = pneg %p823
      $region158: #{_lambda_.6} parent=147 // pred_check_branch
        %3703 = sbr.rel (%p3701) target = $region160
      $region159: #{_lambda_.6} parent=147 // pred_region
        _
      $region160: #{_lambda_.6} parent=147 // pred_fallthru
        _
    $region148: #{_lambda_.6} parent=5 // pred_fallthru
      _
    %p3704 = scmp.le.s32.totalorder 2, %s82
    // Predicated region
    $region161: #{_lambda_.6} parent=5 // pred_check
      %p3705 = pneg %p3704
    $region162: #{_lambda_.6} parent=5 // pred_check_branch
      %3707 = sbr.rel (%p3705) target = $region164
    $region163: #{_lambda_.6} parent=5 // pred_region
      %s3708 = ssub.s32 %s82, 2
      // Predicated region
      $region165: #{_lambda_.6} parent=163 // pred_check
        %p3709 = pneg %p803
      $region166: #{_lambda_.6} parent=163 // pred_check_branch
        %3711 = sbr.rel (%p3709) target = $region168
      $region167: #{_lambda_.6} parent=163 // pred_region
        %p3712 = scmp.lt.s32.totalorder %s88, 7
        %s3713 = scalar_select %p3712, %s88, 7
        %s3714 = smul.addr %s3713, 2
        %s3715 = scalar_lea.vmem %s67, %s3714
      $region168: #{_lambda_.6} parent=163 // pred_fallthru
        _
      // Predicated region
      $region169: #{_lambda_.6} parent=163 // pred_check
        %p3716 = pneg %p829
      $region170: #{_lambda_.6} parent=163 // pred_check_branch
        %3718 = sbr.rel (%p3716) target = $region172
      $region171: #{_lambda_.6} parent=163 // pred_region
        %p3719 = scmp.lt.s32.totalorder %s88, 7
        %s3720 = scalar_select %p3719, %s88, 7
        %s3721 = smul.addr %s3720, 2
        %s3722 = scalar_lea.vmem %s69, %s3721
      $region172: #{_lambda_.6} parent=163 // pred_fallthru
        _
    $region164: #{_lambda_.6} parent=5 // pred_fallthru
      _
  $region6: #{_lambda_.6} parent=0 // loop_footer
    %s86 = sadd.s32 1, %s82
  $region7: #{_lambda_.6} parent=0 // loop_footer_branch
    %81 = sbr.rel target = $region3
  $region8: #{_lambda_.6} parent=0 // loop_exit
    _

</llo_original>
